<compile_context>
chip_gen: v6e
topology: v6e:2x2x1
jax: 0.10.0
libtpu: 0.0.40
codegen_flags: <defaults>
</compile_context>

<pallas_src>
import functools
import math

import jax
import jax.numpy as jnp
from jax.experimental import pallas as pl
from jax.experimental.pallas import tpu as pltpu

VMEM = pl.BlockSpec(memory_space=pltpu.MemorySpace.VMEM)
COORD_PAD = 8  # pad 3-D coords to 8 lanes so coord tensors are sublane-tidy


def _silu(v):
    return v * jax.nn.sigmoid(v)


# ---------------------------------------------------------------------------
# Fused forward kernel
# ---------------------------------------------------------------------------
def _egnn_fused_kernel(
    compute_dtype,
    # data
    h_ref, x_ref, ea_ref, grow_ref, gcol_ref, scat_ref, invc_ref, pool_ref,
    # embedding_in
    wemb_ref, bemb_ref,
    # stacked per-layer E_GCL weights (leading axis = layer)
    wsrc_ref, wdst_ref, wrad_ref, weat_ref, be1_ref, we2_ref, be2_ref,
    wn1h_ref, wn1a_ref, bn1_ref, wn2_ref, bn2_ref,
    wc1_ref, bc1_ref, wc2_ref,
    # node_dec / graph_dec / fused MDN heads
    wnd1_ref, bnd1_ref, wnd2_ref, bnd2_ref, wgd_ref, bgd_ref,
    wmdn_ref, bmdn_ref,
    # outputs
    pi_ref, sigma_ref, mu_ref, xout_ref,
):
    cdt = compute_dtype

    def mxu(a, b):  # bf16 MXU matmul, f32 accumulation
        return jnp.dot(a.astype(cdt), b.astype(cdt),
                       preferred_element_type=jnp.float32)

    def mxu_f32(a, b):  # keep geometry path exact
        return jnp.dot(a, b, preferred_element_type=jnp.float32)

    g_row = grow_ref[...]          # [E, N] one-hot: edge -> source node (row)
    g_col = gcol_ref[...]          # [E, N] one-hot: edge -> target node (col)
    scat = scat_ref[...]           # [N, E] = G_row^T  (scatter-add over row)
    inv_cnt = invc_ref[...]        # [N, 1] 1 / clamp(count, 1)
    edge_attr = ea_ref[...]        # [E, Fe]

    # ---- geometry: coords only change after the last layer's radial -> hoist
    x = x_ref[...]                                           # [N, 8] f32
    coord_diff = mxu_f32(g_row, x) - mxu_f32(g_col, x)       # [E, 8]
    radial = jnp.sum(coord_diff * coord_diff, axis=-1, keepdims=True)  # [E, 1]

    # ---- embedding_in
    h = mxu(h_ref[...], wemb_ref[...]) + bemb_ref[...]       # [N, H] f32

    n_layers = wsrc_ref.shape[0]
    for l in range(n_layers):                                # unrolled (L=4)
        h0 = h
        # edge_model: edge_mlp(cat([h[row], h[col], radial, edge_attr]))
        # -> split-weight matmuls at node granularity + one-hot gathers.
        hsrc = mxu(h, wsrc_ref[l])                           # [N, H]
        hdst = mxu(h, wdst_ref[l])                           # [N, H]
        e_pre = (mxu(g_row, hsrc) + mxu(g_col, hdst)
                 + radial * wrad_ref[l]                      # rank-1 term, VPU
                 + mxu(edge_attr, weat_ref[l])
                 + be1_ref[l])
        ef = _silu(e_pre)
        edge_feat = _silu(mxu(ef, we2_ref[l]) + be2_ref[l])  # [E, H]

        # coord_model (last layer only; matches update_coords schedule)
        if l == n_layers - 1:
            cm = _silu(mxu(edge_feat, wc1_ref[l]) + bc1_ref[l])          # [E, H]
            cmix = jnp.sum(cm * wc2_ref[l], axis=-1, keepdims=True)      # [E, 1]
            trans = coord_diff * cmix                                    # [E, 8]
            x = x + mxu_f32(scat, trans) * inv_cnt           # segment mean

        # node_model: node_mlp(cat([h, segment_sum(edge_feat, row)]))
        agg = mxu(scat, edge_feat)                           # [N, H]
        nh = _silu(mxu(h, wn1h_ref[l]) + mxu(agg, wn1a_ref[l]) + bn1_ref[l])
        h = h0 + mxu(nh, wn2_ref[l]) + bn2_ref[l]            # residual=True

    # ---- node_dec
    h = _silu(mxu(h, wnd1_ref[...]) + bnd1_ref[...])
    h = mxu(h, wnd2_ref[...]) + bnd2_ref[...]

    # ---- graph pooling (sum over nodes per graph) + graph_dec
    hg = mxu(pool_ref[...], h)                               # [B, H]
    hg = _silu(mxu(hg, wgd_ref[...]) + bgd_ref[...])

    # ---- fused MDN heads: one [H, 3G] matmul, then split
    out = mxu(hg, wmdn_ref[...]) + bmdn_ref[...]             # [B, 3G]
    g = pi_ref.shape[1]
    logits = out[:, :g]
    pre_sigma = out[:, g:2 * g]
    mu = out[:, 2 * g:3 * g]

    # pi = softmax(logits, -1)
    m = jnp.max(logits, axis=-1, keepdims=True)
    e = jnp.exp(logits - m)
    pi_ref[...] = e * pl.reciprocal(jnp.sum(e, axis=-1, keepdims=True),
                                    approx=True)
    # sigma = softplus(pre_sigma)  (PyTorch threshold=20 semantics)
    sp = jnp.log(1.0 + jnp.exp(jnp.minimum(pre_sigma, 20.0)))
    sigma_ref[...] = jnp.where(pre_sigma > 20.0, pre_sigma, sp)
    mu_ref[...] = mu
    xout_ref[...] = x


# ---------------------------------------------------------------------------
# Parameter init (deterministic, PyTorch-like fan-in uniform)
# ---------------------------------------------------------------------------
def init_linear_params(key, fan_in, fan_out):
    k1, k2 = jax.random.split(key)
    bound = 1.0 / math.sqrt(fan_in)
    w = jax.random.uniform(k1, (fan_in, fan_out), jnp.float32, -bound, bound)
    b = jax.random.uniform(k2, (fan_out,), jnp.float32, -bound, bound)
    return {"w": w, "b": b}


def init_egnn_params(key, in_node_nf, hidden_nf, in_edge_nf, n_layers, n_gaussians):
    keys = iter(jax.random.split(key, 64))
    p = {}
    p["embedding_in"] = init_linear_params(next(keys), in_node_nf, hidden_nf)
    p["gcl"] = []
    input_edge = 2 * hidden_nf + 1 + in_edge_nf
    for _ in range(n_layers):
        lp = {
            "edge1": init_linear_params(next(keys), input_edge, hidden_nf),
            "edge2": init_linear_params(next(keys), hidden_nf, hidden_nf),
            "node1": init_linear_params(next(keys), 2 * hidden_nf, hidden_nf),
            "node2": init_linear_params(next(keys), hidden_nf, hidden_nf),
            "coord1": init_linear_params(next(keys), hidden_nf, hidden_nf),
        }
        # coord_mlp final layer: Linear(hidden, 1, bias=False), xavier_uniform gain=0.001
        bound = 0.001 * math.sqrt(6.0 / (hidden_nf + 1))
        lp["coord2_w"] = jax.random.uniform(next(keys), (hidden_nf, 1),
                                            jnp.float32, -bound, bound)
        p["gcl"].append(lp)
    p["node_dec1"] = init_linear_params(next(keys), hidden_nf, hidden_nf)
    p["node_dec2"] = init_linear_params(next(keys), hidden_nf, hidden_nf)
    p["graph_dec"] = init_linear_params(next(keys), hidden_nf, hidden_nf)
    p["z_pi"] = init_linear_params(next(keys), hidden_nf, n_gaussians)
    p["z_sigma"] = init_linear_params(next(keys), hidden_nf, n_gaussians)
    p["z_mu"] = init_linear_params(next(keys), hidden_nf, n_gaussians)
    return p


def pack_params(params, hidden_nf, compute_dtype=jnp.bfloat16):
    """Split concat-weights, stack per-layer weights, cast MXU operands to bf16."""
    H = hidden_nf
    gcl = params["gcl"]

    def stack(fn):
        return jnp.stack([fn(lp) for lp in gcl], axis=0)

    mdt = compute_dtype
    return {
        "w_emb": params["embedding_in"]["w"].astype(mdt),
        "b_emb": params["embedding_in"]["b"].reshape(1, -1),
        # edge_mlp[0] split: [h_row | h_col | radial | edge_attr] rows
        "w_src": stack(lambda lp: lp["edge1"]["w"][:H]).astype(mdt),            # [L,H,H]
        "w_dst": stack(lambda lp: lp["edge1"]["w"][H:2 * H]).astype(mdt),       # [L,H,H]
        "w_rad": stack(lambda lp: lp["edge1"]["w"][2 * H:2 * H + 1]),           # [L,1,H] f32 (VPU)
        "w_eat": stack(lambda lp: lp["edge1"]["w"][2 * H + 1:]).astype(mdt),    # [L,Fe,H]
        "b_e1":  stack(lambda lp: lp["edge1"]["b"].reshape(1, H)),
        "w_e2":  stack(lambda lp: lp["edge2"]["w"]).astype(mdt),
        "b_e2":  stack(lambda lp: lp["edge2"]["b"].reshape(1, H)),
        # node_mlp[0] split: [h | agg] rows
        "w_n1h": stack(lambda lp: lp["node1"]["w"][:H]).astype(mdt),
        "w_n1a": stack(lambda lp: lp["node1"]["w"][H:]).astype(mdt),
        "b_n1":  stack(lambda lp: lp["node1"]["b"].reshape(1, H)),
        "w_n2":  stack(lambda lp: lp["node2"]["w"]).astype(mdt),
        "b_n2":  stack(lambda lp: lp["node2"]["b"].reshape(1, H)),
        "w_c1":  stack(lambda lp: lp["coord1"]["w"]).astype(mdt),
        "b_c1":  stack(lambda lp: lp["coord1"]["b"].reshape(1, H)),
        "w_c2":  stack(lambda lp: lp["coord2_w"].reshape(1, H)),                # [L,1,H] f32 (VPU)
        "w_nd1": params["node_dec1"]["w"].astype(mdt),
        "b_nd1": params["node_dec1"]["b"].reshape(1, -1),
        "w_nd2": params["node_dec2"]["w"].astype(mdt),
        "b_nd2": params["node_dec2"]["b"].reshape(1, -1),
        "w_gd":  params["graph_dec"]["w"].astype(mdt),
        "b_gd":  params["graph_dec"]["b"].reshape(1, -1),
        # fused MDN head weights: one [H, 3G] matmul
        "w_mdn": jnp.concatenate([params["z_pi"]["w"], params["z_sigma"]["w"],
                                  params["z_mu"]["w"]], axis=1).astype(mdt),
        "b_mdn": jnp.concatenate([params["z_pi"]["b"], params["z_sigma"]["b"],
                                  params["z_mu"]["b"]]).reshape(1, -1),
    }


# ---------------------------------------------------------------------------
# Forward: one fused pallas_call (jitted so the tiny one-hot setup fuses too)
# ---------------------------------------------------------------------------
@functools.partial(jax.jit, static_argnames=("n_nodes",))
def egnn_finetune_mdn_forward(packed, h, x, row, col, edge_attr, n_nodes):
    n_total = h.shape[0]
    batch = n_total // n_nodes
    n_gauss = packed["w_mdn"].shape[1] // 3

    # Graph structure as tiny dense one-hot operators (VMEM-resident in kernel);
    # gathers / scatter-add / segment-mean / graph pooling become MXU matmuls.
    # TODO(synk): for large graphs replace these O(N*E) one-hots with a tiled,
    # scalar-prefetch (row/col in SMEM) scatter to fit v7x's 64 MiB VMEM.
    node_iota = jnp.arange(n_total, dtype=row.dtype)
    g_row = (row[:, None] == node_iota[None, :]).astype(jnp.float32)    # [E, N]
    g_col = (col[:, None] == node_iota[None, :]).astype(jnp.float32)    # [E, N]
    scat = g_row.T                                                      # [N, E]
    counts = jnp.sum(scat, axis=1, keepdims=True)
    inv_counts = 1.0 / jnp.maximum(counts, 1.0)                         # [N, 1]
    pool = (node_iota[None, :] // n_nodes
            == jnp.arange(batch, dtype=row.dtype)[:, None]).astype(jnp.float32)

    x_pad = jnp.zeros((n_total, COORD_PAD), jnp.float32).at[:, :x.shape[1]].set(x)

    args = (
        h.astype(jnp.float32), x_pad, edge_attr.astype(jnp.float32),
        g_row, g_col, scat, inv_counts, pool,
        packed["w_emb"], packed["b_emb"],
        packed["w_src"], packed["w_dst"], packed["w_rad"], packed["w_eat"],
        packed["b_e1"], packed["w_e2"], packed["b_e2"],
        packed["w_n1h"], packed["w_n1a"], packed["b_n1"],
        packed["w_n2"], packed["b_n2"],
        packed["w_c1"], packed["b_c1"], packed["w_c2"],
        packed["w_nd1"], packed["b_nd1"], packed["w_nd2"], packed["b_nd2"],
        packed["w_gd"], packed["b_gd"], packed["w_mdn"], packed["b_mdn"],
    )

    out_shapes = (
        jax.ShapeDtypeStruct((batch, n_gauss), jnp.float32),   # pi
        jax.ShapeDtypeStruct((batch, n_gauss), jnp.float32),   # sigma
        jax.ShapeDtypeStruct((batch, n_gauss), jnp.float32),   # mu
        jax.ShapeDtypeStruct((n_total, COORD_PAD), jnp.float32),  # updated coords
    )

    pi, sigma, mu, x_out = pl.pallas_call(
        functools.partial(_egnn_fused_kernel, jnp.bfloat16),
        out_shape=out_shapes,
        in_specs=[VMEM] * len(args),
        out_specs=(VMEM, VMEM, VMEM, VMEM),
    )(*args)

    # Module returns (pi, sigma, mu); x_out kept for fidelity of the coord update.
    return pi, sigma, mu, x_out[:, :x.shape[1]]


# ---------------------------------------------------------------------------
# Driver
# ---------------------------------------------------------------------------
if __name__ == "__main__":
    in_node_nf, hidden_nf, in_edge_nf = 8, 32, 4
    n_layers, n_gaussians = 4, 3
    batch, n_nodes = 2, 8
    n_total = batch * n_nodes

    # fully-connected edges within each graph (no self loops)
    rows, cols = [], []
    for b in range(batch):
        for i in range(n_nodes):
            for j in range(n_nodes):
                if i != j:
                    rows.append(b * n_nodes + i)
                    cols.append(b * n_nodes + j)
    row = jnp.array(rows, dtype=jnp.int32)
    col = jnp.array(cols, dtype=jnp.int32)
    n_edges = int(row.shape[0])

    key = jax.random.PRNGKey(0)
    k_h, k_x, k_e, k_p = jax.random.split(key, 4)
    h = jax.random.normal(k_h, (n_total, in_node_nf), jnp.float32)
    x = jax.random.normal(k_x, (n_total, 3), jnp.float32)
    edge_attr = jax.random.normal(k_e, (n_edges, in_edge_nf), jnp.float32)

    params = init_egnn_params(k_p, in_node_nf, hidden_nf, in_edge_nf,
                              n_layers, n_gaussians)
    packed = pack_params(params, hidden_nf)

    pi, sigma, mu, x_new = egnn_finetune_mdn_forward(
        packed, h, x, row, col, edge_attr, n_nodes=n_nodes)
    jax.block_until_ready((pi, sigma, mu, x_new))

    assert pi.shape == (batch, n_gaussians)
    assert sigma.shape == (batch, n_gaussians)
    assert mu.shape == (batch, n_gaussians)
    assert x_new.shape == (n_total, 3)
    assert bool(jnp.all(jnp.isfinite(pi))) and bool(jnp.all(sigma > 0))
    assert bool(jnp.all(jnp.isfinite(mu))) and bool(jnp.all(jnp.isfinite(x_new)))
    print("KERNEL_OK")
</pallas_src>

<mosaic_0001>
module attributes {stable_mosaic.version = 11 : i64} {
  func.func @_egnn_fused_kernel(%arg0: memref<16x8xf32, #tpu.memory_space<vmem>>, %arg1: memref<16x8xf32, #tpu.memory_space<vmem>>, %arg2: memref<112x4xf32, #tpu.memory_space<vmem>>, %arg3: memref<112x16xf32, #tpu.memory_space<vmem>>, %arg4: memref<112x16xf32, #tpu.memory_space<vmem>>, %arg5: memref<16x112xf32, #tpu.memory_space<vmem>>, %arg6: memref<16x1xf32, #tpu.memory_space<vmem>>, %arg7: memref<2x16xf32, #tpu.memory_space<vmem>>, %arg8: memref<8x32xbf16, #tpu.memory_space<vmem>>, %arg9: memref<1x32xf32, #tpu.memory_space<vmem>>, %arg10: memref<4x32x32xbf16, #tpu.memory_space<vmem>>, %arg11: memref<4x32x32xbf16, #tpu.memory_space<vmem>>, %arg12: memref<4x1x32xf32, #tpu.memory_space<vmem>>, %arg13: memref<4x4x32xbf16, #tpu.memory_space<vmem>>, %arg14: memref<4x1x32xf32, #tpu.memory_space<vmem>>, %arg15: memref<4x32x32xbf16, #tpu.memory_space<vmem>>, %arg16: memref<4x1x32xf32, #tpu.memory_space<vmem>>, %arg17: memref<4x32x32xbf16, #tpu.memory_space<vmem>>, %arg18: memref<4x32x32xbf16, #tpu.memory_space<vmem>>, %arg19: memref<4x1x32xf32, #tpu.memory_space<vmem>>, %arg20: memref<4x32x32xbf16, #tpu.memory_space<vmem>>, %arg21: memref<4x1x32xf32, #tpu.memory_space<vmem>>, %arg22: memref<4x32x32xbf16, #tpu.memory_space<vmem>>, %arg23: memref<4x1x32xf32, #tpu.memory_space<vmem>>, %arg24: memref<4x1x32xf32, #tpu.memory_space<vmem>>, %arg25: memref<32x32xbf16, #tpu.memory_space<vmem>>, %arg26: memref<1x32xf32, #tpu.memory_space<vmem>>, %arg27: memref<32x32xbf16, #tpu.memory_space<vmem>>, %arg28: memref<1x32xf32, #tpu.memory_space<vmem>>, %arg29: memref<32x32xbf16, #tpu.memory_space<vmem>>, %arg30: memref<1x32xf32, #tpu.memory_space<vmem>>, %arg31: memref<32x9xbf16, #tpu.memory_space<vmem>>, %arg32: memref<1x9xf32, #tpu.memory_space<vmem>>, %arg33: memref<2x3xf32, #tpu.memory_space<vmem>>, %arg34: memref<2x3xf32, #tpu.memory_space<vmem>>, %arg35: memref<2x3xf32, #tpu.memory_space<vmem>>, %arg36: memref<16x8xf32, #tpu.memory_space<vmem>>) attributes {dimension_semantics = [], scalar_prefetch = 0 : i64, scratch_operands = 0 : i64, tpu.core_type = #tpu.core_type<tc>} {
    %c0 = arith.constant 0 : index
    %c0_0 = arith.constant 0 : index
    %0 = vector.load %arg3[%c0, %c0_0] : memref<112x16xf32, #tpu.memory_space<vmem>>, vector<112x16xf32>
    %c0_1 = arith.constant 0 : index
    %c0_2 = arith.constant 0 : index
    %1 = vector.load %arg4[%c0_1, %c0_2] : memref<112x16xf32, #tpu.memory_space<vmem>>, vector<112x16xf32>
    %c0_3 = arith.constant 0 : index
    %c0_4 = arith.constant 0 : index
    %2 = vector.load %arg5[%c0_3, %c0_4] : memref<16x112xf32, #tpu.memory_space<vmem>>, vector<16x112xf32>
    %c0_5 = arith.constant 0 : index
    %c0_6 = arith.constant 0 : index
    %3 = vector.load %arg6[%c0_5, %c0_6] : memref<16x1xf32, #tpu.memory_space<vmem>>, vector<16x1xf32>
    %c0_7 = arith.constant 0 : index
    %c0_8 = arith.constant 0 : index
    %4 = vector.load %arg2[%c0_7, %c0_8] : memref<112x4xf32, #tpu.memory_space<vmem>>, vector<112x4xf32>
    %c0_9 = arith.constant 0 : index
    %c0_10 = arith.constant 0 : index
    %5 = vector.load %arg1[%c0_9, %c0_10] : memref<16x8xf32, #tpu.memory_space<vmem>>, vector<16x8xf32>
    %cst = arith.constant dense<0.000000e+00> : vector<112x8xf32>
    %6 = tpu.matmul %0, %5, %cst {dimension_numbers = #tpu.dot_dimension_numbers<[1], [0], [0], [1], [0, 0, 1, 1], [], []>} : vector<112x16xf32>, vector<16x8xf32>, vector<112x8xf32> -> vector<112x8xf32>
    %cst_11 = arith.constant dense<0.000000e+00> : vector<112x8xf32>
    %7 = tpu.matmul %1, %5, %cst_11 {dimension_numbers = #tpu.dot_dimension_numbers<[1], [0], [0], [1], [0, 0, 1, 1], [], []>} : vector<112x16xf32>, vector<16x8xf32>, vector<112x8xf32> -> vector<112x8xf32>
    %8 = arith.subf %6, %7 : vector<112x8xf32>
    %9 = arith.mulf %8, %8 : vector<112x8xf32>
    %cst_12 = arith.constant dense<0.000000e+00> : vector<112xf32>
    %10 = vector.multi_reduction <add>, %9, %cst_12 [1] : vector<112x8xf32> to vector<112xf32>
    %11 = vector.shape_cast %10 : vector<112xf32> to vector<112x1xf32>
    %c0_13 = arith.constant 0 : index
    %c0_14 = arith.constant 0 : index
    %12 = vector.load %arg0[%c0_13, %c0_14] : memref<16x8xf32, #tpu.memory_space<vmem>>, vector<16x8xf32>
    %c0_15 = arith.constant 0 : index
    %c0_16 = arith.constant 0 : index
    %13 = vector.load %arg8[%c0_15, %c0_16] : memref<8x32xbf16, #tpu.memory_space<vmem>>, vector<8x32xbf16>
    %14 = arith.truncf %12 : vector<16x8xf32> to vector<16x8xbf16>
    %cst_17 = arith.constant dense<0.000000e+00> : vector<16x32xf32>
    %15 = tpu.matmul %14, %13, %cst_17 {dimension_numbers = #tpu.dot_dimension_numbers<[1], [0], [0], [1], [0, 0, 1, 1], [], []>} : vector<16x8xbf16>, vector<8x32xbf16>, vector<16x32xf32> -> vector<16x32xf32>
    %c0_18 = arith.constant 0 : index
    %c0_19 = arith.constant 0 : index
    %16 = vector.load %arg9[%c0_18, %c0_19] : memref<1x32xf32, #tpu.memory_space<vmem>>, vector<1x32xf32>
    %17 = vector.broadcast %16 : vector<1x32xf32> to vector<16x32xf32>
    %18 = arith.addf %15, %17 : vector<16x32xf32>
    %c0_20 = arith.constant 0 : index
    %c0_21 = arith.constant 0 : index
    %c0_22 = arith.constant 0 : index
    %19 = vector.load %arg10[%c0_20, %c0_21, %c0_22] : memref<4x32x32xbf16, #tpu.memory_space<vmem>>, vector<1x32x32xbf16>
    %20 = vector.shape_cast %19 : vector<1x32x32xbf16> to vector<32x32xbf16>
    %21 = arith.truncf %18 : vector<16x32xf32> to vector<16x32xbf16>
    %cst_23 = arith.constant dense<0.000000e+00> : vector<16x32xf32>
    %22 = tpu.matmul %21, %20, %cst_23 {dimension_numbers = #tpu.dot_dimension_numbers<[1], [0], [0], [1], [0, 0, 1, 1], [], []>} : vector<16x32xbf16>, vector<32x32xbf16>, vector<16x32xf32> -> vector<16x32xf32>
    %c0_24 = arith.constant 0 : index
    %c0_25 = arith.constant 0 : index
    %c0_26 = arith.constant 0 : index
    %23 = vector.load %arg11[%c0_24, %c0_25, %c0_26] : memref<4x32x32xbf16, #tpu.memory_space<vmem>>, vector<1x32x32xbf16>
    %24 = vector.shape_cast %23 : vector<1x32x32xbf16> to vector<32x32xbf16>
    %25 = arith.truncf %18 : vector<16x32xf32> to vector<16x32xbf16>
    %cst_27 = arith.constant dense<0.000000e+00> : vector<16x32xf32>
    %26 = tpu.matmul %25, %24, %cst_27 {dimension_numbers = #tpu.dot_dimension_numbers<[1], [0], [0], [1], [0, 0, 1, 1], [], []>} : vector<16x32xbf16>, vector<32x32xbf16>, vector<16x32xf32> -> vector<16x32xf32>
    %27 = arith.truncf %0 : vector<112x16xf32> to vector<112x16xbf16>
    %28 = arith.truncf %22 : vector<16x32xf32> to vector<16x32xbf16>
    %cst_28 = arith.constant dense<0.000000e+00> : vector<112x32xf32>
    %29 = tpu.matmul %27, %28, %cst_28 {dimension_numbers = #tpu.dot_dimension_numbers<[1], [0], [0], [1], [0, 0, 1, 1], [], []>} : vector<112x16xbf16>, vector<16x32xbf16>, vector<112x32xf32> -> vector<112x32xf32>
    %30 = arith.truncf %1 : vector<112x16xf32> to vector<112x16xbf16>
    %31 = arith.truncf %26 : vector<16x32xf32> to vector<16x32xbf16>
    %cst_29 = arith.constant dense<0.000000e+00> : vector<112x32xf32>
    %32 = tpu.matmul %30, %31, %cst_29 {dimension_numbers = #tpu.dot_dimension_numbers<[1], [0], [0], [1], [0, 0, 1, 1], [], []>} : vector<112x16xbf16>, vector<16x32xbf16>, vector<112x32xf32> -> vector<112x32xf32>
    %33 = arith.addf %29, %32 : vector<112x32xf32>
    %c0_30 = arith.constant 0 : index
    %c0_31 = arith.constant 0 : index
    %c0_32 = arith.constant 0 : index
    %34 = vector.load %arg12[%c0_30, %c0_31, %c0_32] : memref<4x1x32xf32, #tpu.memory_space<vmem>>, vector<1x1x32xf32>
    %35 = vector.shape_cast %34 : vector<1x1x32xf32> to vector<1x32xf32>
    %36 = vector.broadcast %11 : vector<112x1xf32> to vector<112x32xf32>
    %37 = vector.broadcast %35 : vector<1x32xf32> to vector<112x32xf32>
    %38 = arith.mulf %36, %37 : vector<112x32xf32>
    %39 = arith.addf %33, %38 : vector<112x32xf32>
    %c0_33 = arith.constant 0 : index
    %c0_34 = arith.constant 0 : index
    %c0_35 = arith.constant 0 : index
    %40 = vector.load %arg13[%c0_33, %c0_34, %c0_35] : memref<4x4x32xbf16, #tpu.memory_space<vmem>>, vector<1x4x32xbf16>
    %41 = vector.shape_cast %40 : vector<1x4x32xbf16> to vector<4x32xbf16>
    %42 = arith.truncf %4 : vector<112x4xf32> to vector<112x4xbf16>
    %cst_36 = arith.constant dense<0.000000e+00> : vector<112x32xf32>
    %43 = tpu.matmul %42, %41, %cst_36 {dimension_numbers = #tpu.dot_dimension_numbers<[1], [0], [0], [1], [0, 0, 1, 1], [], []>} : vector<112x4xbf16>, vector<4x32xbf16>, vector<112x32xf32> -> vector<112x32xf32>
    %44 = arith.addf %39, %43 : vector<112x32xf32>
    %c0_37 = arith.constant 0 : index
    %c0_38 = arith.constant 0 : index
    %c0_39 = arith.constant 0 : index
    %45 = vector.load %arg14[%c0_37, %c0_38, %c0_39] : memref<4x1x32xf32, #tpu.memory_space<vmem>>, vector<1x1x32xf32>
    %46 = vector.shape_cast %45 : vector<1x1x32xf32> to vector<1x32xf32>
    %47 = vector.broadcast %46 : vector<1x32xf32> to vector<112x32xf32>
    %48 = arith.addf %44, %47 : vector<112x32xf32>
    %49 = arith.negf %48 : vector<112x32xf32>
    %50 = math.exp %49 : vector<112x32xf32>
    %cst_40 = arith.constant 1.000000e+00 : f32
    %51 = vector.broadcast %cst_40 : f32 to vector<112x32xf32>
    %52 = arith.addf %51, %50 : vector<112x32xf32>
    %53 = arith.divf %51, %52 : vector<112x32xf32>
    %54 = arith.mulf %48, %53 : vector<112x32xf32>
    %c0_41 = arith.constant 0 : index
    %c0_42 = arith.constant 0 : index
    %c0_43 = arith.constant 0 : index
    %55 = vector.load %arg15[%c0_41, %c0_42, %c0_43] : memref<4x32x32xbf16, #tpu.memory_space<vmem>>, vector<1x32x32xbf16>
    %56 = vector.shape_cast %55 : vector<1x32x32xbf16> to vector<32x32xbf16>
    %57 = arith.truncf %54 : vector<112x32xf32> to vector<112x32xbf16>
    %cst_44 = arith.constant dense<0.000000e+00> : vector<112x32xf32>
    %58 = tpu.matmul %57, %56, %cst_44 {dimension_numbers = #tpu.dot_dimension_numbers<[1], [0], [0], [1], [0, 0, 1, 1], [], []>} : vector<112x32xbf16>, vector<32x32xbf16>, vector<112x32xf32> -> vector<112x32xf32>
    %c0_45 = arith.constant 0 : index
    %c0_46 = arith.constant 0 : index
    %c0_47 = arith.constant 0 : index
    %59 = vector.load %arg16[%c0_45, %c0_46, %c0_47] : memref<4x1x32xf32, #tpu.memory_space<vmem>>, vector<1x1x32xf32>
    %60 = vector.shape_cast %59 : vector<1x1x32xf32> to vector<1x32xf32>
    %61 = vector.broadcast %60 : vector<1x32xf32> to vector<112x32xf32>
    %62 = arith.addf %58, %61 : vector<112x32xf32>
    %63 = arith.negf %62 : vector<112x32xf32>
    %64 = math.exp %63 : vector<112x32xf32>
    %cst_48 = arith.constant 1.000000e+00 : f32
    %65 = vector.broadcast %cst_48 : f32 to vector<112x32xf32>
    %66 = arith.addf %65, %64 : vector<112x32xf32>
    %67 = arith.divf %65, %66 : vector<112x32xf32>
    %68 = arith.mulf %62, %67 : vector<112x32xf32>
    %69 = arith.truncf %2 : vector<16x112xf32> to vector<16x112xbf16>
    %70 = arith.truncf %68 : vector<112x32xf32> to vector<112x32xbf16>
    %cst_49 = arith.constant dense<0.000000e+00> : vector<16x32xf32>
    %71 = tpu.matmul %69, %70, %cst_49 {dimension_numbers = #tpu.dot_dimension_numbers<[1], [0], [0], [1], [0, 0, 1, 1], [], []>} : vector<16x112xbf16>, vector<112x32xbf16>, vector<16x32xf32> -> vector<16x32xf32>
    %c0_50 = arith.constant 0 : index
    %c0_51 = arith.constant 0 : index
    %c0_52 = arith.constant 0 : index
    %72 = vector.load %arg17[%c0_50, %c0_51, %c0_52] : memref<4x32x32xbf16, #tpu.memory_space<vmem>>, vector<1x32x32xbf16>
    %73 = vector.shape_cast %72 : vector<1x32x32xbf16> to vector<32x32xbf16>
    %74 = arith.truncf %18 : vector<16x32xf32> to vector<16x32xbf16>
    %cst_53 = arith.constant dense<0.000000e+00> : vector<16x32xf32>
    %75 = tpu.matmul %74, %73, %cst_53 {dimension_numbers = #tpu.dot_dimension_numbers<[1], [0], [0], [1], [0, 0, 1, 1], [], []>} : vector<16x32xbf16>, vector<32x32xbf16>, vector<16x32xf32> -> vector<16x32xf32>
    %c0_54 = arith.constant 0 : index
    %c0_55 = arith.constant 0 : index
    %c0_56 = arith.constant 0 : index
    %76 = vector.load %arg18[%c0_54, %c0_55, %c0_56] : memref<4x32x32xbf16, #tpu.memory_space<vmem>>, vector<1x32x32xbf16>
    %77 = vector.shape_cast %76 : vector<1x32x32xbf16> to vector<32x32xbf16>
    %78 = arith.truncf %71 : vector<16x32xf32> to vector<16x32xbf16>
    %cst_57 = arith.constant dense<0.000000e+00> : vector<16x32xf32>
    %79 = tpu.matmul %78, %77, %cst_57 {dimension_numbers = #tpu.dot_dimension_numbers<[1], [0], [0], [1], [0, 0, 1, 1], [], []>} : vector<16x32xbf16>, vector<32x32xbf16>, vector<16x32xf32> -> vector<16x32xf32>
    %80 = arith.addf %75, %79 : vector<16x32xf32>
    %c0_58 = arith.constant 0 : index
    %c0_59 = arith.constant 0 : index
    %c0_60 = arith.constant 0 : index
    %81 = vector.load %arg19[%c0_58, %c0_59, %c0_60] : memref<4x1x32xf32, #tpu.memory_space<vmem>>, vector<1x1x32xf32>
    %82 = vector.shape_cast %81 : vector<1x1x32xf32> to vector<1x32xf32>
    %83 = vector.broadcast %82 : vector<1x32xf32> to vector<16x32xf32>
    %84 = arith.addf %80, %83 : vector<16x32xf32>
    %85 = arith.negf %84 : vector<16x32xf32>
    %86 = math.exp %85 : vector<16x32xf32>
    %cst_61 = arith.constant 1.000000e+00 : f32
    %87 = vector.broadcast %cst_61 : f32 to vector<16x32xf32>
    %88 = arith.addf %87, %86 : vector<16x32xf32>
    %89 = arith.divf %87, %88 : vector<16x32xf32>
    %90 = arith.mulf %84, %89 : vector<16x32xf32>
    %c0_62 = arith.constant 0 : index
    %c0_63 = arith.constant 0 : index
    %c0_64 = arith.constant 0 : index
    %91 = vector.load %arg20[%c0_62, %c0_63, %c0_64] : memref<4x32x32xbf16, #tpu.memory_space<vmem>>, vector<1x32x32xbf16>
    %92 = vector.shape_cast %91 : vector<1x32x32xbf16> to vector<32x32xbf16>
    %93 = arith.truncf %90 : vector<16x32xf32> to vector<16x32xbf16>
    %cst_65 = arith.constant dense<0.000000e+00> : vector<16x32xf32>
    %94 = tpu.matmul %93, %92, %cst_65 {dimension_numbers = #tpu.dot_dimension_numbers<[1], [0], [0], [1], [0, 0, 1, 1], [], []>} : vector<16x32xbf16>, vector<32x32xbf16>, vector<16x32xf32> -> vector<16x32xf32>
    %95 = arith.addf %18, %94 : vector<16x32xf32>
    %c0_66 = arith.constant 0 : index
    %c0_67 = arith.constant 0 : index
    %c0_68 = arith.constant 0 : index
    %96 = vector.load %arg21[%c0_66, %c0_67, %c0_68] : memref<4x1x32xf32, #tpu.memory_space<vmem>>, vector<1x1x32xf32>
    %97 = vector.shape_cast %96 : vector<1x1x32xf32> to vector<1x32xf32>
    %98 = vector.broadcast %97 : vector<1x32xf32> to vector<16x32xf32>
    %99 = arith.addf %95, %98 : vector<16x32xf32>
    %c1 = arith.constant 1 : index
    %c0_69 = arith.constant 0 : index
    %c0_70 = arith.constant 0 : index
    %100 = vector.load %arg10[%c1, %c0_69, %c0_70] : memref<4x32x32xbf16, #tpu.memory_space<vmem>>, vector<1x32x32xbf16>
    %101 = vector.shape_cast %100 : vector<1x32x32xbf16> to vector<32x32xbf16>
    %102 = arith.truncf %99 : vector<16x32xf32> to vector<16x32xbf16>
    %cst_71 = arith.constant dense<0.000000e+00> : vector<16x32xf32>
    %103 = tpu.matmul %102, %101, %cst_71 {dimension_numbers = #tpu.dot_dimension_numbers<[1], [0], [0], [1], [0, 0, 1, 1], [], []>} : vector<16x32xbf16>, vector<32x32xbf16>, vector<16x32xf32> -> vector<16x32xf32>
    %c1_72 = arith.constant 1 : index
    %c0_73 = arith.constant 0 : index
    %c0_74 = arith.constant 0 : index
    %104 = vector.load %arg11[%c1_72, %c0_73, %c0_74] : memref<4x32x32xbf16, #tpu.memory_space<vmem>>, vector<1x32x32xbf16>
    %105 = vector.shape_cast %104 : vector<1x32x32xbf16> to vector<32x32xbf16>
    %106 = arith.truncf %99 : vector<16x32xf32> to vector<16x32xbf16>
    %cst_75 = arith.constant dense<0.000000e+00> : vector<16x32xf32>
    %107 = tpu.matmul %106, %105, %cst_75 {dimension_numbers = #tpu.dot_dimension_numbers<[1], [0], [0], [1], [0, 0, 1, 1], [], []>} : vector<16x32xbf16>, vector<32x32xbf16>, vector<16x32xf32> -> vector<16x32xf32>
    %108 = arith.truncf %0 : vector<112x16xf32> to vector<112x16xbf16>
    %109 = arith.truncf %103 : vector<16x32xf32> to vector<16x32xbf16>
    %cst_76 = arith.constant dense<0.000000e+00> : vector<112x32xf32>
    %110 = tpu.matmul %108, %109, %cst_76 {dimension_numbers = #tpu.dot_dimension_numbers<[1], [0], [0], [1], [0, 0, 1, 1], [], []>} : vector<112x16xbf16>, vector<16x32xbf16>, vector<112x32xf32> -> vector<112x32xf32>
    %111 = arith.truncf %1 : vector<112x16xf32> to vector<112x16xbf16>
    %112 = arith.truncf %107 : vector<16x32xf32> to vector<16x32xbf16>
    %cst_77 = arith.constant dense<0.000000e+00> : vector<112x32xf32>
    %113 = tpu.matmul %111, %112, %cst_77 {dimension_numbers = #tpu.dot_dimension_numbers<[1], [0], [0], [1], [0, 0, 1, 1], [], []>} : vector<112x16xbf16>, vector<16x32xbf16>, vector<112x32xf32> -> vector<112x32xf32>
    %114 = arith.addf %110, %113 : vector<112x32xf32>
    %c1_78 = arith.constant 1 : index
    %c0_79 = arith.constant 0 : index
    %c0_80 = arith.constant 0 : index
    %115 = vector.load %arg12[%c1_78, %c0_79, %c0_80] : memref<4x1x32xf32, #tpu.memory_space<vmem>>, vector<1x1x32xf32>
    %116 = vector.shape_cast %115 : vector<1x1x32xf32> to vector<1x32xf32>
    %117 = vector.broadcast %11 : vector<112x1xf32> to vector<112x32xf32>
    %118 = vector.broadcast %116 : vector<1x32xf32> to vector<112x32xf32>
    %119 = arith.mulf %117, %118 : vector<112x32xf32>
    %120 = arith.addf %114, %119 : vector<112x32xf32>
    %c1_81 = arith.constant 1 : index
    %c0_82 = arith.constant 0 : index
    %c0_83 = arith.constant 0 : index
    %121 = vector.load %arg13[%c1_81, %c0_82, %c0_83] : memref<4x4x32xbf16, #tpu.memory_space<vmem>>, vector<1x4x32xbf16>
    %122 = vector.shape_cast %121 : vector<1x4x32xbf16> to vector<4x32xbf16>
    %123 = arith.truncf %4 : vector<112x4xf32> to vector<112x4xbf16>
    %cst_84 = arith.constant dense<0.000000e+00> : vector<112x32xf32>
    %124 = tpu.matmul %123, %122, %cst_84 {dimension_numbers = #tpu.dot_dimension_numbers<[1], [0], [0], [1], [0, 0, 1, 1], [], []>} : vector<112x4xbf16>, vector<4x32xbf16>, vector<112x32xf32> -> vector<112x32xf32>
    %125 = arith.addf %120, %124 : vector<112x32xf32>
    %c1_85 = arith.constant 1 : index
    %c0_86 = arith.constant 0 : index
    %c0_87 = arith.constant 0 : index
    %126 = vector.load %arg14[%c1_85, %c0_86, %c0_87] : memref<4x1x32xf32, #tpu.memory_space<vmem>>, vector<1x1x32xf32>
    %127 = vector.shape_cast %126 : vector<1x1x32xf32> to vector<1x32xf32>
    %128 = vector.broadcast %127 : vector<1x32xf32> to vector<112x32xf32>
    %129 = arith.addf %125, %128 : vector<112x32xf32>
    %130 = arith.negf %129 : vector<112x32xf32>
    %131 = math.exp %130 : vector<112x32xf32>
    %cst_88 = arith.constant 1.000000e+00 : f32
    %132 = vector.broadcast %cst_88 : f32 to vector<112x32xf32>
    %133 = arith.addf %132, %131 : vector<112x32xf32>
    %134 = arith.divf %132, %133 : vector<112x32xf32>
    %135 = arith.mulf %129, %134 : vector<112x32xf32>
    %c1_89 = arith.constant 1 : index
    %c0_90 = arith.constant 0 : index
    %c0_91 = arith.constant 0 : index
    %136 = vector.load %arg15[%c1_89, %c0_90, %c0_91] : memref<4x32x32xbf16, #tpu.memory_space<vmem>>, vector<1x32x32xbf16>
    %137 = vector.shape_cast %136 : vector<1x32x32xbf16> to vector<32x32xbf16>
    %138 = arith.truncf %135 : vector<112x32xf32> to vector<112x32xbf16>
    %cst_92 = arith.constant dense<0.000000e+00> : vector<112x32xf32>
    %139 = tpu.matmul %138, %137, %cst_92 {dimension_numbers = #tpu.dot_dimension_numbers<[1], [0], [0], [1], [0, 0, 1, 1], [], []>} : vector<112x32xbf16>, vector<32x32xbf16>, vector<112x32xf32> -> vector<112x32xf32>
    %c1_93 = arith.constant 1 : index
    %c0_94 = arith.constant 0 : index
    %c0_95 = arith.constant 0 : index
    %140 = vector.load %arg16[%c1_93, %c0_94, %c0_95] : memref<4x1x32xf32, #tpu.memory_space<vmem>>, vector<1x1x32xf32>
    %141 = vector.shape_cast %140 : vector<1x1x32xf32> to vector<1x32xf32>
    %142 = vector.broadcast %141 : vector<1x32xf32> to vector<112x32xf32>
    %143 = arith.addf %139, %142 : vector<112x32xf32>
    %144 = arith.negf %143 : vector<112x32xf32>
    %145 = math.exp %144 : vector<112x32xf32>
    %cst_96 = arith.constant 1.000000e+00 : f32
    %146 = vector.broadcast %cst_96 : f32 to vector<112x32xf32>
    %147 = arith.addf %146, %145 : vector<112x32xf32>
    %148 = arith.divf %146, %147 : vector<112x32xf32>
    %149 = arith.mulf %143, %148 : vector<112x32xf32>
    %150 = arith.truncf %2 : vector<16x112xf32> to vector<16x112xbf16>
    %151 = arith.truncf %149 : vector<112x32xf32> to vector<112x32xbf16>
    %cst_97 = arith.constant dense<0.000000e+00> : vector<16x32xf32>
    %152 = tpu.matmul %150, %151, %cst_97 {dimension_numbers = #tpu.dot_dimension_numbers<[1], [0], [0], [1], [0, 0, 1, 1], [], []>} : vector<16x112xbf16>, vector<112x32xbf16>, vector<16x32xf32> -> vector<16x32xf32>
    %c1_98 = arith.constant 1 : index
    %c0_99 = arith.constant 0 : index
    %c0_100 = arith.constant 0 : index
    %153 = vector.load %arg17[%c1_98, %c0_99, %c0_100] : memref<4x32x32xbf16, #tpu.memory_space<vmem>>, vector<1x32x32xbf16>
    %154 = vector.shape_cast %153 : vector<1x32x32xbf16> to vector<32x32xbf16>
    %155 = arith.truncf %99 : vector<16x32xf32> to vector<16x32xbf16>
    %cst_101 = arith.constant dense<0.000000e+00> : vector<16x32xf32>
    %156 = tpu.matmul %155, %154, %cst_101 {dimension_numbers = #tpu.dot_dimension_numbers<[1], [0], [0], [1], [0, 0, 1, 1], [], []>} : vector<16x32xbf16>, vector<32x32xbf16>, vector<16x32xf32> -> vector<16x32xf32>
    %c1_102 = arith.constant 1 : index
    %c0_103 = arith.constant 0 : index
    %c0_104 = arith.constant 0 : index
    %157 = vector.load %arg18[%c1_102, %c0_103, %c0_104] : memref<4x32x32xbf16, #tpu.memory_space<vmem>>, vector<1x32x32xbf16>
    %158 = vector.shape_cast %157 : vector<1x32x32xbf16> to vector<32x32xbf16>
    %159 = arith.truncf %152 : vector<16x32xf32> to vector<16x32xbf16>
    %cst_105 = arith.constant dense<0.000000e+00> : vector<16x32xf32>
    %160 = tpu.matmul %159, %158, %cst_105 {dimension_numbers = #tpu.dot_dimension_numbers<[1], [0], [0], [1], [0, 0, 1, 1], [], []>} : vector<16x32xbf16>, vector<32x32xbf16>, vector<16x32xf32> -> vector<16x32xf32>
    %161 = arith.addf %156, %160 : vector<16x32xf32>
    %c1_106 = arith.constant 1 : index
    %c0_107 = arith.constant 0 : index
    %c0_108 = arith.constant 0 : index
    %162 = vector.load %arg19[%c1_106, %c0_107, %c0_108] : memref<4x1x32xf32, #tpu.memory_space<vmem>>, vector<1x1x32xf32>
    %163 = vector.shape_cast %162 : vector<1x1x32xf32> to vector<1x32xf32>
    %164 = vector.broadcast %163 : vector<1x32xf32> to vector<16x32xf32>
    %165 = arith.addf %161, %164 : vector<16x32xf32>
    %166 = arith.negf %165 : vector<16x32xf32>
    %167 = math.exp %166 : vector<16x32xf32>
    %cst_109 = arith.constant 1.000000e+00 : f32
    %168 = vector.broadcast %cst_109 : f32 to vector<16x32xf32>
    %169 = arith.addf %168, %167 : vector<16x32xf32>
    %170 = arith.divf %168, %169 : vector<16x32xf32>
    %171 = arith.mulf %165, %170 : vector<16x32xf32>
    %c1_110 = arith.constant 1 : index
    %c0_111 = arith.constant 0 : index
    %c0_112 = arith.constant 0 : index
    %172 = vector.load %arg20[%c1_110, %c0_111, %c0_112] : memref<4x32x32xbf16, #tpu.memory_space<vmem>>, vector<1x32x32xbf16>
    %173 = vector.shape_cast %172 : vector<1x32x32xbf16> to vector<32x32xbf16>
    %174 = arith.truncf %171 : vector<16x32xf32> to vector<16x32xbf16>
    %cst_113 = arith.constant dense<0.000000e+00> : vector<16x32xf32>
    %175 = tpu.matmul %174, %173, %cst_113 {dimension_numbers = #tpu.dot_dimension_numbers<[1], [0], [0], [1], [0, 0, 1, 1], [], []>} : vector<16x32xbf16>, vector<32x32xbf16>, vector<16x32xf32> -> vector<16x32xf32>
    %176 = arith.addf %99, %175 : vector<16x32xf32>
    %c1_114 = arith.constant 1 : index
    %c0_115 = arith.constant 0 : index
    %c0_116 = arith.constant 0 : index
    %177 = vector.load %arg21[%c1_114, %c0_115, %c0_116] : memref<4x1x32xf32, #tpu.memory_space<vmem>>, vector<1x1x32xf32>
    %178 = vector.shape_cast %177 : vector<1x1x32xf32> to vector<1x32xf32>
    %179 = vector.broadcast %178 : vector<1x32xf32> to vector<16x32xf32>
    %180 = arith.addf %176, %179 : vector<16x32xf32>
    %c2 = arith.constant 2 : index
    %c0_117 = arith.constant 0 : index
    %c0_118 = arith.constant 0 : index
    %181 = vector.load %arg10[%c2, %c0_117, %c0_118] : memref<4x32x32xbf16, #tpu.memory_space<vmem>>, vector<1x32x32xbf16>
    %182 = vector.shape_cast %181 : vector<1x32x32xbf16> to vector<32x32xbf16>
    %183 = arith.truncf %180 : vector<16x32xf32> to vector<16x32xbf16>
    %cst_119 = arith.constant dense<0.000000e+00> : vector<16x32xf32>
    %184 = tpu.matmul %183, %182, %cst_119 {dimension_numbers = #tpu.dot_dimension_numbers<[1], [0], [0], [1], [0, 0, 1, 1], [], []>} : vector<16x32xbf16>, vector<32x32xbf16>, vector<16x32xf32> -> vector<16x32xf32>
    %c2_120 = arith.constant 2 : index
    %c0_121 = arith.constant 0 : index
    %c0_122 = arith.constant 0 : index
    %185 = vector.load %arg11[%c2_120, %c0_121, %c0_122] : memref<4x32x32xbf16, #tpu.memory_space<vmem>>, vector<1x32x32xbf16>
    %186 = vector.shape_cast %185 : vector<1x32x32xbf16> to vector<32x32xbf16>
    %187 = arith.truncf %180 : vector<16x32xf32> to vector<16x32xbf16>
    %cst_123 = arith.constant dense<0.000000e+00> : vector<16x32xf32>
    %188 = tpu.matmul %187, %186, %cst_123 {dimension_numbers = #tpu.dot_dimension_numbers<[1], [0], [0], [1], [0, 0, 1, 1], [], []>} : vector<16x32xbf16>, vector<32x32xbf16>, vector<16x32xf32> -> vector<16x32xf32>
    %189 = arith.truncf %0 : vector<112x16xf32> to vector<112x16xbf16>
    %190 = arith.truncf %184 : vector<16x32xf32> to vector<16x32xbf16>
    %cst_124 = arith.constant dense<0.000000e+00> : vector<112x32xf32>
    %191 = tpu.matmul %189, %190, %cst_124 {dimension_numbers = #tpu.dot_dimension_numbers<[1], [0], [0], [1], [0, 0, 1, 1], [], []>} : vector<112x16xbf16>, vector<16x32xbf16>, vector<112x32xf32> -> vector<112x32xf32>
    %192 = arith.truncf %1 : vector<112x16xf32> to vector<112x16xbf16>
    %193 = arith.truncf %188 : vector<16x32xf32> to vector<16x32xbf16>
    %cst_125 = arith.constant dense<0.000000e+00> : vector<112x32xf32>
    %194 = tpu.matmul %192, %193, %cst_125 {dimension_numbers = #tpu.dot_dimension_numbers<[1], [0], [0], [1], [0, 0, 1, 1], [], []>} : vector<112x16xbf16>, vector<16x32xbf16>, vector<112x32xf32> -> vector<112x32xf32>
    %195 = arith.addf %191, %194 : vector<112x32xf32>
    %c2_126 = arith.constant 2 : index
    %c0_127 = arith.constant 0 : index
    %c0_128 = arith.constant 0 : index
    %196 = vector.load %arg12[%c2_126, %c0_127, %c0_128] : memref<4x1x32xf32, #tpu.memory_space<vmem>>, vector<1x1x32xf32>
    %197 = vector.shape_cast %196 : vector<1x1x32xf32> to vector<1x32xf32>
    %198 = vector.broadcast %11 : vector<112x1xf32> to vector<112x32xf32>
    %199 = vector.broadcast %197 : vector<1x32xf32> to vector<112x32xf32>
    %200 = arith.mulf %198, %199 : vector<112x32xf32>
    %201 = arith.addf %195, %200 : vector<112x32xf32>
    %c2_129 = arith.constant 2 : index
    %c0_130 = arith.constant 0 : index
    %c0_131 = arith.constant 0 : index
    %202 = vector.load %arg13[%c2_129, %c0_130, %c0_131] : memref<4x4x32xbf16, #tpu.memory_space<vmem>>, vector<1x4x32xbf16>
    %203 = vector.shape_cast %202 : vector<1x4x32xbf16> to vector<4x32xbf16>
    %204 = arith.truncf %4 : vector<112x4xf32> to vector<112x4xbf16>
    %cst_132 = arith.constant dense<0.000000e+00> : vector<112x32xf32>
    %205 = tpu.matmul %204, %203, %cst_132 {dimension_numbers = #tpu.dot_dimension_numbers<[1], [0], [0], [1], [0, 0, 1, 1], [], []>} : vector<112x4xbf16>, vector<4x32xbf16>, vector<112x32xf32> -> vector<112x32xf32>
    %206 = arith.addf %201, %205 : vector<112x32xf32>
    %c2_133 = arith.constant 2 : index
    %c0_134 = arith.constant 0 : index
    %c0_135 = arith.constant 0 : index
    %207 = vector.load %arg14[%c2_133, %c0_134, %c0_135] : memref<4x1x32xf32, #tpu.memory_space<vmem>>, vector<1x1x32xf32>
    %208 = vector.shape_cast %207 : vector<1x1x32xf32> to vector<1x32xf32>
    %209 = vector.broadcast %208 : vector<1x32xf32> to vector<112x32xf32>
    %210 = arith.addf %206, %209 : vector<112x32xf32>
    %211 = arith.negf %210 : vector<112x32xf32>
    %212 = math.exp %211 : vector<112x32xf32>
    %cst_136 = arith.constant 1.000000e+00 : f32
    %213 = vector.broadcast %cst_136 : f32 to vector<112x32xf32>
    %214 = arith.addf %213, %212 : vector<112x32xf32>
    %215 = arith.divf %213, %214 : vector<112x32xf32>
    %216 = arith.mulf %210, %215 : vector<112x32xf32>
    %c2_137 = arith.constant 2 : index
    %c0_138 = arith.constant 0 : index
    %c0_139 = arith.constant 0 : index
    %217 = vector.load %arg15[%c2_137, %c0_138, %c0_139] : memref<4x32x32xbf16, #tpu.memory_space<vmem>>, vector<1x32x32xbf16>
    %218 = vector.shape_cast %217 : vector<1x32x32xbf16> to vector<32x32xbf16>
    %219 = arith.truncf %216 : vector<112x32xf32> to vector<112x32xbf16>
    %cst_140 = arith.constant dense<0.000000e+00> : vector<112x32xf32>
    %220 = tpu.matmul %219, %218, %cst_140 {dimension_numbers = #tpu.dot_dimension_numbers<[1], [0], [0], [1], [0, 0, 1, 1], [], []>} : vector<112x32xbf16>, vector<32x32xbf16>, vector<112x32xf32> -> vector<112x32xf32>
    %c2_141 = arith.constant 2 : index
    %c0_142 = arith.constant 0 : index
    %c0_143 = arith.constant 0 : index
    %221 = vector.load %arg16[%c2_141, %c0_142, %c0_143] : memref<4x1x32xf32, #tpu.memory_space<vmem>>, vector<1x1x32xf32>
    %222 = vector.shape_cast %221 : vector<1x1x32xf32> to vector<1x32xf32>
    %223 = vector.broadcast %222 : vector<1x32xf32> to vector<112x32xf32>
    %224 = arith.addf %220, %223 : vector<112x32xf32>
    %225 = arith.negf %224 : vector<112x32xf32>
    %226 = math.exp %225 : vector<112x32xf32>
    %cst_144 = arith.constant 1.000000e+00 : f32
    %227 = vector.broadcast %cst_144 : f32 to vector<112x32xf32>
    %228 = arith.addf %227, %226 : vector<112x32xf32>
    %229 = arith.divf %227, %228 : vector<112x32xf32>
    %230 = arith.mulf %224, %229 : vector<112x32xf32>
    %231 = arith.truncf %2 : vector<16x112xf32> to vector<16x112xbf16>
    %232 = arith.truncf %230 : vector<112x32xf32> to vector<112x32xbf16>
    %cst_145 = arith.constant dense<0.000000e+00> : vector<16x32xf32>
    %233 = tpu.matmul %231, %232, %cst_145 {dimension_numbers = #tpu.dot_dimension_numbers<[1], [0], [0], [1], [0, 0, 1, 1], [], []>} : vector<16x112xbf16>, vector<112x32xbf16>, vector<16x32xf32> -> vector<16x32xf32>
    %c2_146 = arith.constant 2 : index
    %c0_147 = arith.constant 0 : index
    %c0_148 = arith.constant 0 : index
    %234 = vector.load %arg17[%c2_146, %c0_147, %c0_148] : memref<4x32x32xbf16, #tpu.memory_space<vmem>>, vector<1x32x32xbf16>
    %235 = vector.shape_cast %234 : vector<1x32x32xbf16> to vector<32x32xbf16>
    %236 = arith.truncf %180 : vector<16x32xf32> to vector<16x32xbf16>
    %cst_149 = arith.constant dense<0.000000e+00> : vector<16x32xf32>
    %237 = tpu.matmul %236, %235, %cst_149 {dimension_numbers = #tpu.dot_dimension_numbers<[1], [0], [0], [1], [0, 0, 1, 1], [], []>} : vector<16x32xbf16>, vector<32x32xbf16>, vector<16x32xf32> -> vector<16x32xf32>
    %c2_150 = arith.constant 2 : index
    %c0_151 = arith.constant 0 : index
    %c0_152 = arith.constant 0 : index
    %238 = vector.load %arg18[%c2_150, %c0_151, %c0_152] : memref<4x32x32xbf16, #tpu.memory_space<vmem>>, vector<1x32x32xbf16>
    %239 = vector.shape_cast %238 : vector<1x32x32xbf16> to vector<32x32xbf16>
    %240 = arith.truncf %233 : vector<16x32xf32> to vector<16x32xbf16>
    %cst_153 = arith.constant dense<0.000000e+00> : vector<16x32xf32>
    %241 = tpu.matmul %240, %239, %cst_153 {dimension_numbers = #tpu.dot_dimension_numbers<[1], [0], [0], [1], [0, 0, 1, 1], [], []>} : vector<16x32xbf16>, vector<32x32xbf16>, vector<16x32xf32> -> vector<16x32xf32>
    %242 = arith.addf %237, %241 : vector<16x32xf32>
    %c2_154 = arith.constant 2 : index
    %c0_155 = arith.constant 0 : index
    %c0_156 = arith.constant 0 : index
    %243 = vector.load %arg19[%c2_154, %c0_155, %c0_156] : memref<4x1x32xf32, #tpu.memory_space<vmem>>, vector<1x1x32xf32>
    %244 = vector.shape_cast %243 : vector<1x1x32xf32> to vector<1x32xf32>
    %245 = vector.broadcast %244 : vector<1x32xf32> to vector<16x32xf32>
    %246 = arith.addf %242, %245 : vector<16x32xf32>
    %247 = arith.negf %246 : vector<16x32xf32>
    %248 = math.exp %247 : vector<16x32xf32>
    %cst_157 = arith.constant 1.000000e+00 : f32
    %249 = vector.broadcast %cst_157 : f32 to vector<16x32xf32>
    %250 = arith.addf %249, %248 : vector<16x32xf32>
    %251 = arith.divf %249, %250 : vector<16x32xf32>
    %252 = arith.mulf %246, %251 : vector<16x32xf32>
    %c2_158 = arith.constant 2 : index
    %c0_159 = arith.constant 0 : index
    %c0_160 = arith.constant 0 : index
    %253 = vector.load %arg20[%c2_158, %c0_159, %c0_160] : memref<4x32x32xbf16, #tpu.memory_space<vmem>>, vector<1x32x32xbf16>
    %254 = vector.shape_cast %253 : vector<1x32x32xbf16> to vector<32x32xbf16>
    %255 = arith.truncf %252 : vector<16x32xf32> to vector<16x32xbf16>
    %cst_161 = arith.constant dense<0.000000e+00> : vector<16x32xf32>
    %256 = tpu.matmul %255, %254, %cst_161 {dimension_numbers = #tpu.dot_dimension_numbers<[1], [0], [0], [1], [0, 0, 1, 1], [], []>} : vector<16x32xbf16>, vector<32x32xbf16>, vector<16x32xf32> -> vector<16x32xf32>
    %257 = arith.addf %180, %256 : vector<16x32xf32>
    %c2_162 = arith.constant 2 : index
    %c0_163 = arith.constant 0 : index
    %c0_164 = arith.constant 0 : index
    %258 = vector.load %arg21[%c2_162, %c0_163, %c0_164] : memref<4x1x32xf32, #tpu.memory_space<vmem>>, vector<1x1x32xf32>
    %259 = vector.shape_cast %258 : vector<1x1x32xf32> to vector<1x32xf32>
    %260 = vector.broadcast %259 : vector<1x32xf32> to vector<16x32xf32>
    %261 = arith.addf %257, %260 : vector<16x32xf32>
    %c3 = arith.constant 3 : index
    %c0_165 = arith.constant 0 : index
    %c0_166 = arith.constant 0 : index
    %262 = vector.load %arg10[%c3, %c0_165, %c0_166] : memref<4x32x32xbf16, #tpu.memory_space<vmem>>, vector<1x32x32xbf16>
    %263 = vector.shape_cast %262 : vector<1x32x32xbf16> to vector<32x32xbf16>
    %264 = arith.truncf %261 : vector<16x32xf32> to vector<16x32xbf16>
    %cst_167 = arith.constant dense<0.000000e+00> : vector<16x32xf32>
    %265 = tpu.matmul %264, %263, %cst_167 {dimension_numbers = #tpu.dot_dimension_numbers<[1], [0], [0], [1], [0, 0, 1, 1], [], []>} : vector<16x32xbf16>, vector<32x32xbf16>, vector<16x32xf32> -> vector<16x32xf32>
    %c3_168 = arith.constant 3 : index
    %c0_169 = arith.constant 0 : index
    %c0_170 = arith.constant 0 : index
    %266 = vector.load %arg11[%c3_168, %c0_169, %c0_170] : memref<4x32x32xbf16, #tpu.memory_space<vmem>>, vector<1x32x32xbf16>
    %267 = vector.shape_cast %266 : vector<1x32x32xbf16> to vector<32x32xbf16>
    %268 = arith.truncf %261 : vector<16x32xf32> to vector<16x32xbf16>
    %cst_171 = arith.constant dense<0.000000e+00> : vector<16x32xf32>
    %269 = tpu.matmul %268, %267, %cst_171 {dimension_numbers = #tpu.dot_dimension_numbers<[1], [0], [0], [1], [0, 0, 1, 1], [], []>} : vector<16x32xbf16>, vector<32x32xbf16>, vector<16x32xf32> -> vector<16x32xf32>
    %270 = arith.truncf %0 : vector<112x16xf32> to vector<112x16xbf16>
    %271 = arith.truncf %265 : vector<16x32xf32> to vector<16x32xbf16>
    %cst_172 = arith.constant dense<0.000000e+00> : vector<112x32xf32>
    %272 = tpu.matmul %270, %271, %cst_172 {dimension_numbers = #tpu.dot_dimension_numbers<[1], [0], [0], [1], [0, 0, 1, 1], [], []>} : vector<112x16xbf16>, vector<16x32xbf16>, vector<112x32xf32> -> vector<112x32xf32>
    %273 = arith.truncf %1 : vector<112x16xf32> to vector<112x16xbf16>
    %274 = arith.truncf %269 : vector<16x32xf32> to vector<16x32xbf16>
    %cst_173 = arith.constant dense<0.000000e+00> : vector<112x32xf32>
    %275 = tpu.matmul %273, %274, %cst_173 {dimension_numbers = #tpu.dot_dimension_numbers<[1], [0], [0], [1], [0, 0, 1, 1], [], []>} : vector<112x16xbf16>, vector<16x32xbf16>, vector<112x32xf32> -> vector<112x32xf32>
    %276 = arith.addf %272, %275 : vector<112x32xf32>
    %c3_174 = arith.constant 3 : index
    %c0_175 = arith.constant 0 : index
    %c0_176 = arith.constant 0 : index
    %277 = vector.load %arg12[%c3_174, %c0_175, %c0_176] : memref<4x1x32xf32, #tpu.memory_space<vmem>>, vector<1x1x32xf32>
    %278 = vector.shape_cast %277 : vector<1x1x32xf32> to vector<1x32xf32>
    %279 = vector.broadcast %11 : vector<112x1xf32> to vector<112x32xf32>
    %280 = vector.broadcast %278 : vector<1x32xf32> to vector<112x32xf32>
    %281 = arith.mulf %279, %280 : vector<112x32xf32>
    %282 = arith.addf %276, %281 : vector<112x32xf32>
    %c3_177 = arith.constant 3 : index
    %c0_178 = arith.constant 0 : index
    %c0_179 = arith.constant 0 : index
    %283 = vector.load %arg13[%c3_177, %c0_178, %c0_179] : memref<4x4x32xbf16, #tpu.memory_space<vmem>>, vector<1x4x32xbf16>
    %284 = vector.shape_cast %283 : vector<1x4x32xbf16> to vector<4x32xbf16>
    %285 = arith.truncf %4 : vector<112x4xf32> to vector<112x4xbf16>
    %cst_180 = arith.constant dense<0.000000e+00> : vector<112x32xf32>
    %286 = tpu.matmul %285, %284, %cst_180 {dimension_numbers = #tpu.dot_dimension_numbers<[1], [0], [0], [1], [0, 0, 1, 1], [], []>} : vector<112x4xbf16>, vector<4x32xbf16>, vector<112x32xf32> -> vector<112x32xf32>
    %287 = arith.addf %282, %286 : vector<112x32xf32>
    %c3_181 = arith.constant 3 : index
    %c0_182 = arith.constant 0 : index
    %c0_183 = arith.constant 0 : index
    %288 = vector.load %arg14[%c3_181, %c0_182, %c0_183] : memref<4x1x32xf32, #tpu.memory_space<vmem>>, vector<1x1x32xf32>
    %289 = vector.shape_cast %288 : vector<1x1x32xf32> to vector<1x32xf32>
    %290 = vector.broadcast %289 : vector<1x32xf32> to vector<112x32xf32>
    %291 = arith.addf %287, %290 : vector<112x32xf32>
    %292 = arith.negf %291 : vector<112x32xf32>
    %293 = math.exp %292 : vector<112x32xf32>
    %cst_184 = arith.constant 1.000000e+00 : f32
    %294 = vector.broadcast %cst_184 : f32 to vector<112x32xf32>
    %295 = arith.addf %294, %293 : vector<112x32xf32>
    %296 = arith.divf %294, %295 : vector<112x32xf32>
    %297 = arith.mulf %291, %296 : vector<112x32xf32>
    %c3_185 = arith.constant 3 : index
    %c0_186 = arith.constant 0 : index
    %c0_187 = arith.constant 0 : index
    %298 = vector.load %arg15[%c3_185, %c0_186, %c0_187] : memref<4x32x32xbf16, #tpu.memory_space<vmem>>, vector<1x32x32xbf16>
    %299 = vector.shape_cast %298 : vector<1x32x32xbf16> to vector<32x32xbf16>
    %300 = arith.truncf %297 : vector<112x32xf32> to vector<112x32xbf16>
    %cst_188 = arith.constant dense<0.000000e+00> : vector<112x32xf32>
    %301 = tpu.matmul %300, %299, %cst_188 {dimension_numbers = #tpu.dot_dimension_numbers<[1], [0], [0], [1], [0, 0, 1, 1], [], []>} : vector<112x32xbf16>, vector<32x32xbf16>, vector<112x32xf32> -> vector<112x32xf32>
    %c3_189 = arith.constant 3 : index
    %c0_190 = arith.constant 0 : index
    %c0_191 = arith.constant 0 : index
    %302 = vector.load %arg16[%c3_189, %c0_190, %c0_191] : memref<4x1x32xf32, #tpu.memory_space<vmem>>, vector<1x1x32xf32>
    %303 = vector.shape_cast %302 : vector<1x1x32xf32> to vector<1x32xf32>
    %304 = vector.broadcast %303 : vector<1x32xf32> to vector<112x32xf32>
    %305 = arith.addf %301, %304 : vector<112x32xf32>
    %306 = arith.negf %305 : vector<112x32xf32>
    %307 = math.exp %306 : vector<112x32xf32>
    %cst_192 = arith.constant 1.000000e+00 : f32
    %308 = vector.broadcast %cst_192 : f32 to vector<112x32xf32>
    %309 = arith.addf %308, %307 : vector<112x32xf32>
    %310 = arith.divf %308, %309 : vector<112x32xf32>
    %311 = arith.mulf %305, %310 : vector<112x32xf32>
    %c3_193 = arith.constant 3 : index
    %c0_194 = arith.constant 0 : index
    %c0_195 = arith.constant 0 : index
    %312 = vector.load %arg22[%c3_193, %c0_194, %c0_195] : memref<4x32x32xbf16, #tpu.memory_space<vmem>>, vector<1x32x32xbf16>
    %313 = vector.shape_cast %312 : vector<1x32x32xbf16> to vector<32x32xbf16>
    %314 = arith.truncf %311 : vector<112x32xf32> to vector<112x32xbf16>
    %cst_196 = arith.constant dense<0.000000e+00> : vector<112x32xf32>
    %315 = tpu.matmul %314, %313, %cst_196 {dimension_numbers = #tpu.dot_dimension_numbers<[1], [0], [0], [1], [0, 0, 1, 1], [], []>} : vector<112x32xbf16>, vector<32x32xbf16>, vector<112x32xf32> -> vector<112x32xf32>
    %c3_197 = arith.constant 3 : index
    %c0_198 = arith.constant 0 : index
    %c0_199 = arith.constant 0 : index
    %316 = vector.load %arg23[%c3_197, %c0_198, %c0_199] : memref<4x1x32xf32, #tpu.memory_space<vmem>>, vector<1x1x32xf32>
    %317 = vector.shape_cast %316 : vector<1x1x32xf32> to vector<1x32xf32>
    %318 = vector.broadcast %317 : vector<1x32xf32> to vector<112x32xf32>
    %319 = arith.addf %315, %318 : vector<112x32xf32>
    %320 = arith.negf %319 : vector<112x32xf32>
    %321 = math.exp %320 : vector<112x32xf32>
    %cst_200 = arith.constant 1.000000e+00 : f32
    %322 = vector.broadcast %cst_200 : f32 to vector<112x32xf32>
    %323 = arith.addf %322, %321 : vector<112x32xf32>
    %324 = arith.divf %322, %323 : vector<112x32xf32>
    %325 = arith.mulf %319, %324 : vector<112x32xf32>
    %c3_201 = arith.constant 3 : index
    %c0_202 = arith.constant 0 : index
    %c0_203 = arith.constant 0 : index
    %326 = vector.load %arg24[%c3_201, %c0_202, %c0_203] : memref<4x1x32xf32, #tpu.memory_space<vmem>>, vector<1x1x32xf32>
    %327 = vector.shape_cast %326 : vector<1x1x32xf32> to vector<1x32xf32>
    %328 = vector.broadcast %327 : vector<1x32xf32> to vector<112x32xf32>
    %329 = arith.mulf %325, %328 : vector<112x32xf32>
    %cst_204 = arith.constant dense<0.000000e+00> : vector<112xf32>
    %330 = vector.multi_reduction <add>, %329, %cst_204 [1] : vector<112x32xf32> to vector<112xf32>
    %331 = vector.shape_cast %330 : vector<112xf32> to vector<112x1xf32>
    %332 = vector.broadcast %331 : vector<112x1xf32> to vector<112x8xf32>
    %333 = arith.mulf %8, %332 : vector<112x8xf32>
    %cst_205 = arith.constant dense<0.000000e+00> : vector<16x8xf32>
    %334 = tpu.matmul %2, %333, %cst_205 {dimension_numbers = #tpu.dot_dimension_numbers<[1], [0], [0], [1], [0, 0, 1, 1], [], []>} : vector<16x112xf32>, vector<112x8xf32>, vector<16x8xf32> -> vector<16x8xf32>
    %335 = vector.broadcast %3 : vector<16x1xf32> to vector<16x8xf32>
    %336 = arith.mulf %334, %335 : vector<16x8xf32>
    %337 = arith.addf %5, %336 : vector<16x8xf32>
    %338 = arith.truncf %2 : vector<16x112xf32> to vector<16x112xbf16>
    %339 = arith.truncf %311 : vector<112x32xf32> to vector<112x32xbf16>
    %cst_206 = arith.constant dense<0.000000e+00> : vector<16x32xf32>
    %340 = tpu.matmul %338, %339, %cst_206 {dimension_numbers = #tpu.dot_dimension_numbers<[1], [0], [0], [1], [0, 0, 1, 1], [], []>} : vector<16x112xbf16>, vector<112x32xbf16>, vector<16x32xf32> -> vector<16x32xf32>
    %c3_207 = arith.constant 3 : index
    %c0_208 = arith.constant 0 : index
    %c0_209 = arith.constant 0 : index
    %341 = vector.load %arg17[%c3_207, %c0_208, %c0_209] : memref<4x32x32xbf16, #tpu.memory_space<vmem>>, vector<1x32x32xbf16>
    %342 = vector.shape_cast %341 : vector<1x32x32xbf16> to vector<32x32xbf16>
    %343 = arith.truncf %261 : vector<16x32xf32> to vector<16x32xbf16>
    %cst_210 = arith.constant dense<0.000000e+00> : vector<16x32xf32>
    %344 = tpu.matmul %343, %342, %cst_210 {dimension_numbers = #tpu.dot_dimension_numbers<[1], [0], [0], [1], [0, 0, 1, 1], [], []>} : vector<16x32xbf16>, vector<32x32xbf16>, vector<16x32xf32> -> vector<16x32xf32>
    %c3_211 = arith.constant 3 : index
    %c0_212 = arith.constant 0 : index
    %c0_213 = arith.constant 0 : index
    %345 = vector.load %arg18[%c3_211, %c0_212, %c0_213] : memref<4x32x32xbf16, #tpu.memory_space<vmem>>, vector<1x32x32xbf16>
    %346 = vector.shape_cast %345 : vector<1x32x32xbf16> to vector<32x32xbf16>
    %347 = arith.truncf %340 : vector<16x32xf32> to vector<16x32xbf16>
    %cst_214 = arith.constant dense<0.000000e+00> : vector<16x32xf32>
    %348 = tpu.matmul %347, %346, %cst_214 {dimension_numbers = #tpu.dot_dimension_numbers<[1], [0], [0], [1], [0, 0, 1, 1], [], []>} : vector<16x32xbf16>, vector<32x32xbf16>, vector<16x32xf32> -> vector<16x32xf32>
    %349 = arith.addf %344, %348 : vector<16x32xf32>
    %c3_215 = arith.constant 3 : index
    %c0_216 = arith.constant 0 : index
    %c0_217 = arith.constant 0 : index
    %350 = vector.load %arg19[%c3_215, %c0_216, %c0_217] : memref<4x1x32xf32, #tpu.memory_space<vmem>>, vector<1x1x32xf32>
    %351 = vector.shape_cast %350 : vector<1x1x32xf32> to vector<1x32xf32>
    %352 = vector.broadcast %351 : vector<1x32xf32> to vector<16x32xf32>
    %353 = arith.addf %349, %352 : vector<16x32xf32>
    %354 = arith.negf %353 : vector<16x32xf32>
    %355 = math.exp %354 : vector<16x32xf32>
    %cst_218 = arith.constant 1.000000e+00 : f32
    %356 = vector.broadcast %cst_218 : f32 to vector<16x32xf32>
    %357 = arith.addf %356, %355 : vector<16x32xf32>
    %358 = arith.divf %356, %357 : vector<16x32xf32>
    %359 = arith.mulf %353, %358 : vector<16x32xf32>
    %c3_219 = arith.constant 3 : index
    %c0_220 = arith.constant 0 : index
    %c0_221 = arith.constant 0 : index
    %360 = vector.load %arg20[%c3_219, %c0_220, %c0_221] : memref<4x32x32xbf16, #tpu.memory_space<vmem>>, vector<1x32x32xbf16>
    %361 = vector.shape_cast %360 : vector<1x32x32xbf16> to vector<32x32xbf16>
    %362 = arith.truncf %359 : vector<16x32xf32> to vector<16x32xbf16>
    %cst_222 = arith.constant dense<0.000000e+00> : vector<16x32xf32>
    %363 = tpu.matmul %362, %361, %cst_222 {dimension_numbers = #tpu.dot_dimension_numbers<[1], [0], [0], [1], [0, 0, 1, 1], [], []>} : vector<16x32xbf16>, vector<32x32xbf16>, vector<16x32xf32> -> vector<16x32xf32>
    %364 = arith.addf %261, %363 : vector<16x32xf32>
    %c3_223 = arith.constant 3 : index
    %c0_224 = arith.constant 0 : index
    %c0_225 = arith.constant 0 : index
    %365 = vector.load %arg21[%c3_223, %c0_224, %c0_225] : memref<4x1x32xf32, #tpu.memory_space<vmem>>, vector<1x1x32xf32>
    %366 = vector.shape_cast %365 : vector<1x1x32xf32> to vector<1x32xf32>
    %367 = vector.broadcast %366 : vector<1x32xf32> to vector<16x32xf32>
    %368 = arith.addf %364, %367 : vector<16x32xf32>
    %c0_226 = arith.constant 0 : index
    %c0_227 = arith.constant 0 : index
    %369 = vector.load %arg25[%c0_226, %c0_227] : memref<32x32xbf16, #tpu.memory_space<vmem>>, vector<32x32xbf16>
    %370 = arith.truncf %368 : vector<16x32xf32> to vector<16x32xbf16>
    %cst_228 = arith.constant dense<0.000000e+00> : vector<16x32xf32>
    %371 = tpu.matmul %370, %369, %cst_228 {dimension_numbers = #tpu.dot_dimension_numbers<[1], [0], [0], [1], [0, 0, 1, 1], [], []>} : vector<16x32xbf16>, vector<32x32xbf16>, vector<16x32xf32> -> vector<16x32xf32>
    %c0_229 = arith.constant 0 : index
    %c0_230 = arith.constant 0 : index
    %372 = vector.load %arg26[%c0_229, %c0_230] : memref<1x32xf32, #tpu.memory_space<vmem>>, vector<1x32xf32>
    %373 = vector.broadcast %372 : vector<1x32xf32> to vector<16x32xf32>
    %374 = arith.addf %371, %373 : vector<16x32xf32>
    %375 = arith.negf %374 : vector<16x32xf32>
    %376 = math.exp %375 : vector<16x32xf32>
    %cst_231 = arith.constant 1.000000e+00 : f32
    %377 = vector.broadcast %cst_231 : f32 to vector<16x32xf32>
    %378 = arith.addf %377, %376 : vector<16x32xf32>
    %379 = arith.divf %377, %378 : vector<16x32xf32>
    %380 = arith.mulf %374, %379 : vector<16x32xf32>
    %c0_232 = arith.constant 0 : index
    %c0_233 = arith.constant 0 : index
    %381 = vector.load %arg27[%c0_232, %c0_233] : memref<32x32xbf16, #tpu.memory_space<vmem>>, vector<32x32xbf16>
    %382 = arith.truncf %380 : vector<16x32xf32> to vector<16x32xbf16>
    %cst_234 = arith.constant dense<0.000000e+00> : vector<16x32xf32>
    %383 = tpu.matmul %382, %381, %cst_234 {dimension_numbers = #tpu.dot_dimension_numbers<[1], [0], [0], [1], [0, 0, 1, 1], [], []>} : vector<16x32xbf16>, vector<32x32xbf16>, vector<16x32xf32> -> vector<16x32xf32>
    %c0_235 = arith.constant 0 : index
    %c0_236 = arith.constant 0 : index
    %384 = vector.load %arg28[%c0_235, %c0_236] : memref<1x32xf32, #tpu.memory_space<vmem>>, vector<1x32xf32>
    %385 = vector.broadcast %384 : vector<1x32xf32> to vector<16x32xf32>
    %386 = arith.addf %383, %385 : vector<16x32xf32>
    %c0_237 = arith.constant 0 : index
    %c0_238 = arith.constant 0 : index
    %387 = vector.load %arg7[%c0_237, %c0_238] : memref<2x16xf32, #tpu.memory_space<vmem>>, vector<2x16xf32>
    %388 = arith.truncf %387 : vector<2x16xf32> to vector<2x16xbf16>
    %389 = arith.truncf %386 : vector<16x32xf32> to vector<16x32xbf16>
    %cst_239 = arith.constant dense<0.000000e+00> : vector<2x32xf32>
    %390 = tpu.matmul %388, %389, %cst_239 {dimension_numbers = #tpu.dot_dimension_numbers<[1], [0], [0], [1], [0, 0, 1, 1], [], []>} : vector<2x16xbf16>, vector<16x32xbf16>, vector<2x32xf32> -> vector<2x32xf32>
    %c0_240 = arith.constant 0 : index
    %c0_241 = arith.constant 0 : index
    %391 = vector.load %arg29[%c0_240, %c0_241] : memref<32x32xbf16, #tpu.memory_space<vmem>>, vector<32x32xbf16>
    %392 = arith.truncf %390 : vector<2x32xf32> to vector<2x32xbf16>
    %cst_242 = arith.constant dense<0.000000e+00> : vector<2x32xf32>
    %393 = tpu.matmul %392, %391, %cst_242 {dimension_numbers = #tpu.dot_dimension_numbers<[1], [0], [0], [1], [0, 0, 1, 1], [], []>} : vector<2x32xbf16>, vector<32x32xbf16>, vector<2x32xf32> -> vector<2x32xf32>
    %c0_243 = arith.constant 0 : index
    %c0_244 = arith.constant 0 : index
    %394 = vector.load %arg30[%c0_243, %c0_244] : memref<1x32xf32, #tpu.memory_space<vmem>>, vector<1x32xf32>
    %395 = vector.broadcast %394 : vector<1x32xf32> to vector<2x32xf32>
    %396 = arith.addf %393, %395 : vector<2x32xf32>
    %397 = arith.negf %396 : vector<2x32xf32>
    %398 = math.exp %397 : vector<2x32xf32>
    %cst_245 = arith.constant 1.000000e+00 : f32
    %399 = vector.broadcast %cst_245 : f32 to vector<2x32xf32>
    %400 = arith.addf %399, %398 : vector<2x32xf32>
    %401 = arith.divf %399, %400 : vector<2x32xf32>
    %402 = arith.mulf %396, %401 : vector<2x32xf32>
    %c0_246 = arith.constant 0 : index
    %c0_247 = arith.constant 0 : index
    %403 = vector.load %arg31[%c0_246, %c0_247] : memref<32x9xbf16, #tpu.memory_space<vmem>>, vector<32x9xbf16>
    %404 = arith.truncf %402 : vector<2x32xf32> to vector<2x32xbf16>
    %cst_248 = arith.constant dense<0.000000e+00> : vector<2x9xf32>
    %405 = tpu.matmul %404, %403, %cst_248 {dimension_numbers = #tpu.dot_dimension_numbers<[1], [0], [0], [1], [0, 0, 1, 1], [], []>} : vector<2x32xbf16>, vector<32x9xbf16>, vector<2x9xf32> -> vector<2x9xf32>
    %c0_249 = arith.constant 0 : index
    %c0_250 = arith.constant 0 : index
    %406 = vector.load %arg32[%c0_249, %c0_250] : memref<1x9xf32, #tpu.memory_space<vmem>>, vector<1x9xf32>
    %407 = vector.broadcast %406 : vector<1x9xf32> to vector<2x9xf32>
    %408 = arith.addf %405, %407 : vector<2x9xf32>
    %409 = vector.extract_strided_slice %408 {offsets = [0, 0], sizes = [2, 3], strides = [1, 1]} : vector<2x9xf32> to vector<2x3xf32>
    %410 = vector.extract_strided_slice %408 {offsets = [0, 3], sizes = [2, 3], strides = [1, 1]} : vector<2x9xf32> to vector<2x3xf32>
    %411 = vector.extract_strided_slice %408 {offsets = [0, 6], sizes = [2, 3], strides = [1, 1]} : vector<2x9xf32> to vector<2x3xf32>
    %cst_251 = arith.constant dense<0xFF800000> : vector<2xf32>
    %412 = vector.multi_reduction <maximumf>, %409, %cst_251 [1] : vector<2x3xf32> to vector<2xf32>
    %413 = vector.shape_cast %412 : vector<2xf32> to vector<2x1xf32>
    %414 = vector.broadcast %413 : vector<2x1xf32> to vector<2x3xf32>
    %415 = arith.subf %409, %414 : vector<2x3xf32>
    %416 = math.exp %415 : vector<2x3xf32>
    %cst_252 = arith.constant dense<0.000000e+00> : vector<2xf32>
    %417 = vector.multi_reduction <add>, %416, %cst_252 [1] : vector<2x3xf32> to vector<2xf32>
    %418 = vector.shape_cast %417 : vector<2xf32> to vector<2x1xf32>
    %419 = tpu.reciprocal %418 {approx = true} : vector<2x1xf32> -> vector<2x1xf32>
    %420 = vector.broadcast %419 : vector<2x1xf32> to vector<2x3xf32>
    %421 = arith.mulf %416, %420 : vector<2x3xf32>
    %c0_253 = arith.constant 0 : index
    %c0_254 = arith.constant 0 : index
    %422 = vector.load %arg33[%c0_253, %c0_254] : memref<2x3xf32, #tpu.memory_space<vmem>>, vector<2x3xf32>
    tpu.vector_store %arg33[%c0_253, %c0_254], %421 {strides = array<i32>} : memref<2x3xf32, #tpu.memory_space<vmem>>, vector<2x3xf32>,
    %cst_255 = arith.constant 2.000000e+01 : f32
    %423 = vector.broadcast %cst_255 : f32 to vector<2x3xf32>
    %424 = arith.minimumf %410, %423 : vector<2x3xf32>
    %425 = math.exp %424 : vector<2x3xf32>
    %cst_256 = arith.constant 1.000000e+00 : f32
    %426 = vector.broadcast %cst_256 : f32 to vector<2x3xf32>
    %427 = arith.addf %426, %425 : vector<2x3xf32>
    %428 = math.log %427 : vector<2x3xf32>
    %cst_257 = arith.constant 2.000000e+01 : f32
    %429 = vector.broadcast %cst_257 : f32 to vector<2x3xf32>
    %430 = arith.cmpf ogt, %410, %429 : vector<2x3xf32>
    %431 = arith.select %430, %410, %428 : vector<2x3xi1>, vector<2x3xf32>
    %c0_258 = arith.constant 0 : index
    %c0_259 = arith.constant 0 : index
    %432 = vector.load %arg34[%c0_258, %c0_259] : memref<2x3xf32, #tpu.memory_space<vmem>>, vector<2x3xf32>
    tpu.vector_store %arg34[%c0_258, %c0_259], %431 {strides = array<i32>} : memref<2x3xf32, #tpu.memory_space<vmem>>, vector<2x3xf32>,
    %c0_260 = arith.constant 0 : index
    %c0_261 = arith.constant 0 : index
    %433 = vector.load %arg35[%c0_260, %c0_261] : memref<2x3xf32, #tpu.memory_space<vmem>>, vector<2x3xf32>
    tpu.vector_store %arg35[%c0_260, %c0_261], %411 {strides = array<i32>} : memref<2x3xf32, #tpu.memory_space<vmem>>, vector<2x3xf32>,
    %c0_262 = arith.constant 0 : index
    %c0_263 = arith.constant 0 : index
    %434 = vector.load %arg36[%c0_262, %c0_263] : memref<16x8xf32, #tpu.memory_space<vmem>>, vector<16x8xf32>
    tpu.vector_store %arg36[%c0_262, %c0_263], %337 {strides = array<i32>} : memref<16x8xf32, #tpu.memory_space<vmem>>, vector<16x8xf32>,
    return
  }
}

</mosaic_0001>

<llo_original>
// kernel: egnn_finetune_mdn_forward.1
$region0: #{egnn_finetune_mdn_forward.1}
  #allocation0 [shape = 'u32[]', space=smem, size = 0x4, offset = 0x4, fixed_abs, tag = 'smem constant byte address 0x4 - core index']
  #allocation1 [shape = 'u32[144,128]{1,0:T(1,128)}', space=vmem, size = 0x12000, scoped, tag = 'internal scratch']
  %s0 = inlined_call_operand.smem [shape: u32[37], index: -1, kind: input, shape index: {}]
  %s1 = sld [smem:[%s0]]
  %s2 = scalar_lea.smem %s0, 1
  %s3 = sld [smem:[%s2]]
  %s4 = scalar_lea.smem %s0, 2
  %s5 = sld [smem:[%s4]]
  %s6 = scalar_lea.smem %s0, 3
  %s7 = sld [smem:[%s6]]
  %s8 = scalar_lea.smem %s0, 4
  %s9 = sld [smem:[%s8]]
  %s10 = scalar_lea.smem %s0, 5
  %s11 = sld [smem:[%s10]]
  %s12 = scalar_lea.smem %s0, 6
  %s13 = sld [smem:[%s12]]
  %s14 = scalar_lea.smem %s0, 7
  %s15 = sld [smem:[%s14]]
  %s16 = scalar_lea.smem %s0, 8
  %s17 = sld [smem:[%s16]]
  %s18 = scalar_lea.smem %s0, 9
  %s19 = sld [smem:[%s18]]
  %s20 = scalar_lea.smem %s0, 10
  %s21 = sld [smem:[%s20]]
  %s22 = scalar_lea.smem %s0, 11
  %s23 = sld [smem:[%s22]]
  %s24 = scalar_lea.smem %s0, 12
  %s25 = sld [smem:[%s24]]
  %s26 = scalar_lea.smem %s0, 13
  %s27 = sld [smem:[%s26]]
  %s28 = scalar_lea.smem %s0, 14
  %s29 = sld [smem:[%s28]]
  %s30 = scalar_lea.smem %s0, 15
  %s31 = sld [smem:[%s30]]
  %s32 = scalar_lea.smem %s0, 16
  %s33 = sld [smem:[%s32]]
  %s34 = scalar_lea.smem %s0, 17
  %s35 = sld [smem:[%s34]]
  %s36 = scalar_lea.smem %s0, 18
  %s37 = sld [smem:[%s36]]
  %s38 = scalar_lea.smem %s0, 19
  %s39 = sld [smem:[%s38]]
  %s40 = scalar_lea.smem %s0, 20
  %s41 = sld [smem:[%s40]]
  %s42 = scalar_lea.smem %s0, 21
  %s43 = sld [smem:[%s42]]
  %s44 = scalar_lea.smem %s0, 22
  %s45 = sld [smem:[%s44]]
  %s46 = scalar_lea.smem %s0, 23
  %s47 = sld [smem:[%s46]]
  %s48 = scalar_lea.smem %s0, 24
  %s49 = sld [smem:[%s48]]
  %s50 = scalar_lea.smem %s0, 25
  %s51 = sld [smem:[%s50]]
  %s52 = scalar_lea.smem %s0, 26
  %s53 = sld [smem:[%s52]]
  %s54 = scalar_lea.smem %s0, 27
  %s55 = sld [smem:[%s54]]
  %s56 = scalar_lea.smem %s0, 28
  %s57 = sld [smem:[%s56]]
  %s58 = scalar_lea.smem %s0, 29
  %s59 = sld [smem:[%s58]]
  %s60 = scalar_lea.smem %s0, 30
  %s61 = sld [smem:[%s60]]
  %s62 = scalar_lea.smem %s0, 31
  %s63 = sld [smem:[%s62]]
  %s64 = scalar_lea.smem %s0, 32
  %s65 = sld [smem:[%s64]]
  %s66 = scalar_lea.smem %s0, 33
  %s67 = sld [smem:[%s66]]
  %s68 = scalar_lea.smem %s0, 34
  %s69 = sld [smem:[%s68]]
  %s70 = scalar_lea.smem %s0, 35
  %s71 = sld [smem:[%s70]]
  %s72 = scalar_lea.smem %s0, 36
  %s73 = sld [smem:[%s72]]
  %74 = xla_tuple %s67, %s69, %s71, %s73
  %s75 = sld [smem:[#allocation0]]
  $region202: #{egnn_finetune_mdn_forward.1} parent=0
    _
  %s77 = ssub.s32 1, %s75
  %s78 = scalar_select 0, %s77, %s75
  $region1: #{egnn_finetune_mdn_forward.1} parent=0
    #allocation2 [shape = 'u8[512]{0}', space=vmem, size = 0x400, scoped, tag = 'input window, operand 9, single buffered']
    #allocation3 [shape = 's32[1]{0}', space=sflag, size = 0x4, scoped, tag = 'scoped memory for egnn_finetune_mdn_forward.1']
    #allocation4 [shape = 's32[1]{0}', space=sflag, size = 0x4, scoped, tag = 'scoped memory for egnn_finetune_mdn_forward.1']
    #allocation5 [shape = 'u8[2048]{0}', space=vmem, size = 0x800, scoped, tag = 'input window, operand 14, single buffered']
    #allocation6 [shape = 's32[1]{0}', space=sflag, size = 0x4, scoped, tag = 'scoped memory for egnn_finetune_mdn_forward.1']
    #allocation7 [shape = 'u8[2048]{0}', space=vmem, size = 0x800, scoped, tag = 'input window, operand 16, single buffered']
    #allocation8 [shape = 'u8[2048]{0}', space=vmem, size = 0x800, scoped, tag = 'input window, operand 19, single buffered']
    #allocation9 [shape = 's32[1]{0}', space=sflag, size = 0x4, scoped, tag = 'scoped memory for egnn_finetune_mdn_forward.1']
    #allocation10 [shape = 'u8[2048]{0}', space=vmem, size = 0x800, scoped, tag = 'input window, operand 21, single buffered']
    #allocation11 [shape = 'u8[2048]{0}', space=vmem, size = 0x800, scoped, tag = 'input window, operand 23, single buffered']
    #allocation12 [shape = 's32[1]{0}', space=sflag, size = 0x4, scoped, tag = 'scoped memory for egnn_finetune_mdn_forward.1']
    #allocation13 [shape = 'u8[2048]{0}', space=vmem, size = 0x800, scoped, tag = 'input window, operand 24, single buffered']
    #allocation14 [shape = 'u8[512]{0}', space=vmem, size = 0x400, scoped, tag = 'input window, operand 30, single buffered']
    #allocation15 [shape = 's32[1]{0}', space=sflag, size = 0x4, scoped, tag = 'scoped memory for egnn_finetune_mdn_forward.1']
    #allocation16 [shape = 'u8[512]{0}', space=vmem, size = 0x400, scoped, tag = 'input window, operand 32, single buffered']
    #allocation17 [shape = 'u8[1024]{0}', space=vmem, size = 0x400, scoped, tag = 'output window, operand 0, single buffered']
    #allocation18 [shape = 'u8[1024]{0}', space=vmem, size = 0x400, scoped, tag = 'output window, operand 1, single buffered']
    #allocation19 [shape = 's32[1]{0}', space=sflag, size = 0x4, scoped, tag = 'scoped memory for egnn_finetune_mdn_forward.1']
    #allocation20 [shape = 'u8[1024]{0}', space=vmem, size = 0x400, scoped, tag = 'output window, operand 2, single buffered']
    %79 = vsyncpa [#allocation3], 0
    %80 = vsyncpa [#allocation6], 0
    %81 = vsyncpa [#allocation9], 0
    %82 = vsyncpa [#allocation12], 0
    %83 = vsyncpa [#allocation15], 0
    %84 = vsyncpa [#allocation4], 0
    %85 = vsyncpa [#allocation19], 0
    // Predicated region
    $region2: #{egnn_finetune_mdn_forward.1} parent=1 // pred_check
      _
    $region3: #{egnn_finetune_mdn_forward.1} parent=1 // pred_check_branch
      %87 = sbr.rel (0) target = $region5
    $region4: #{egnn_finetune_mdn_forward.1} parent=1 // pred_region
      _
    $region5: #{egnn_finetune_mdn_forward.1} parent=1 // pred_fallthru
      _
    // Predicated region
    $region6: #{egnn_finetune_mdn_forward.1} parent=1 // pred_check
      _
    $region7: #{egnn_finetune_mdn_forward.1} parent=1 // pred_check_branch
      %89 = sbr.rel (0) target = $region9
    $region8: #{egnn_finetune_mdn_forward.1} parent=1 // pred_region
      _
    $region9: #{egnn_finetune_mdn_forward.1} parent=1 // pred_fallthru
      _
    // Predicated region
    $region10: #{egnn_finetune_mdn_forward.1} parent=1 // pred_check
      _
    $region11: #{egnn_finetune_mdn_forward.1} parent=1 // pred_check_branch
      %91 = sbr.rel (0) target = $region13
    $region12: #{egnn_finetune_mdn_forward.1} parent=1 // pred_region
      _
    $region13: #{egnn_finetune_mdn_forward.1} parent=1 // pred_fallthru
      _
    // Predicated region
    $region14: #{egnn_finetune_mdn_forward.1} parent=1 // pred_check
      _
    $region15: #{egnn_finetune_mdn_forward.1} parent=1 // pred_check_branch
      %93 = sbr.rel (0) target = $region17
    $region16: #{egnn_finetune_mdn_forward.1} parent=1 // pred_region
      _
    $region17: #{egnn_finetune_mdn_forward.1} parent=1 // pred_fallthru
      _
    // Predicated region
    $region18: #{egnn_finetune_mdn_forward.1} parent=1 // pred_check
      _
    $region19: #{egnn_finetune_mdn_forward.1} parent=1 // pred_check_branch
      %95 = sbr.rel (0) target = $region21
    $region20: #{egnn_finetune_mdn_forward.1} parent=1 // pred_region
      _
    $region21: #{egnn_finetune_mdn_forward.1} parent=1 // pred_fallthru
      _
    // Predicated region
    $region22: #{egnn_finetune_mdn_forward.1} parent=1 // pred_check
      _
    $region23: #{egnn_finetune_mdn_forward.1} parent=1 // pred_check_branch
      %97 = sbr.rel (0) target = $region25
    $region24: #{egnn_finetune_mdn_forward.1} parent=1 // pred_region
      _
    $region25: #{egnn_finetune_mdn_forward.1} parent=1 // pred_fallthru
      _
    // Predicated region
    $region26: #{egnn_finetune_mdn_forward.1} parent=1 // pred_check
      _
    $region27: #{egnn_finetune_mdn_forward.1} parent=1 // pred_check_branch
      %99 = sbr.rel (0) target = $region29
    $region28: #{egnn_finetune_mdn_forward.1} parent=1 // pred_region
      _
    $region29: #{egnn_finetune_mdn_forward.1} parent=1 // pred_fallthru
      _
    // Predicated region
    $region30: #{egnn_finetune_mdn_forward.1} parent=1 // pred_check
      _
    $region31: #{egnn_finetune_mdn_forward.1} parent=1 // pred_check_branch
      %101 = sbr.rel (0) target = $region33
    $region32: #{egnn_finetune_mdn_forward.1} parent=1 // pred_region
      _
    $region33: #{egnn_finetune_mdn_forward.1} parent=1 // pred_fallthru
      _
    // Predicated region
    $region34: #{egnn_finetune_mdn_forward.1} parent=1 // pred_check
      _
    $region35: #{egnn_finetune_mdn_forward.1} parent=1 // pred_check_branch
      %103 = sbr.rel (0) target = $region37
    $region36: #{egnn_finetune_mdn_forward.1} parent=1 // pred_region
      _
    $region37: #{egnn_finetune_mdn_forward.1} parent=1 // pred_fallthru
      _
    // Predicated region
    $region38: #{egnn_finetune_mdn_forward.1} parent=1 // pred_check
      _
    $region39: #{egnn_finetune_mdn_forward.1} parent=1 // pred_check_branch
      %105 = sbr.rel (0) target = $region41
    $region40: #{egnn_finetune_mdn_forward.1} parent=1 // pred_region
      %s107 = ssub.s32 16, 16
      %108 = vsyncadd [#allocation3], %s107
      %s110 = sshll.u32 [#allocation2], 4
      %s111 = int_to_ptr.vmem [resolvable:$true] %s110
      %113 = dma.hbm_to_vmem [thread:$0]  %s19, 16, %s111, [#allocation3]
    $region41: #{egnn_finetune_mdn_forward.1} parent=1 // pred_fallthru
      _
    // Predicated region
    $region42: #{egnn_finetune_mdn_forward.1} parent=1 // pred_check
      _
    $region43: #{egnn_finetune_mdn_forward.1} parent=1 // pred_check_branch
      %115 = sbr.rel (0) target = $region45
    $region44: #{egnn_finetune_mdn_forward.1} parent=1 // pred_region
      _
    $region45: #{egnn_finetune_mdn_forward.1} parent=1 // pred_fallthru
      _
    // Predicated region
    $region46: #{egnn_finetune_mdn_forward.1} parent=1 // pred_check
      _
    $region47: #{egnn_finetune_mdn_forward.1} parent=1 // pred_check_branch
      %117 = sbr.rel (0) target = $region49
    $region48: #{egnn_finetune_mdn_forward.1} parent=1 // pred_region
      _
    $region49: #{egnn_finetune_mdn_forward.1} parent=1 // pred_fallthru
      _
    // Predicated region
    $region50: #{egnn_finetune_mdn_forward.1} parent=1 // pred_check
      _
    $region51: #{egnn_finetune_mdn_forward.1} parent=1 // pred_check_branch
      %119 = sbr.rel (0) target = $region53
    $region52: #{egnn_finetune_mdn_forward.1} parent=1 // pred_region
      _
    $region53: #{egnn_finetune_mdn_forward.1} parent=1 // pred_fallthru
      _
    // Predicated region
    $region54: #{egnn_finetune_mdn_forward.1} parent=1 // pred_check
      _
    $region55: #{egnn_finetune_mdn_forward.1} parent=1 // pred_check_branch
      %121 = sbr.rel (0) target = $region57
    $region56: #{egnn_finetune_mdn_forward.1} parent=1 // pred_region
      _
    $region57: #{egnn_finetune_mdn_forward.1} parent=1 // pred_fallthru
      _
    // Predicated region
    $region58: #{egnn_finetune_mdn_forward.1} parent=1 // pred_check
      _
    $region59: #{egnn_finetune_mdn_forward.1} parent=1 // pred_check_branch
      %123 = sbr.rel (0) target = $region61
    $region60: #{egnn_finetune_mdn_forward.1} parent=1 // pred_region
      %s125 = ssub.s32 64, 64
      %126 = vsyncadd [#allocation6], %s125
      %s127 = sshll.u32 [#allocation5], 4
      %s128 = int_to_ptr.vmem [resolvable:$true] %s127
      %133 = dma.hbm_to_vmem [thread:$0]  %s29, 64, %s128, [#allocation6], 16, 16, 1
    $region61: #{egnn_finetune_mdn_forward.1} parent=1 // pred_fallthru
      _
    // Predicated region
    $region62: #{egnn_finetune_mdn_forward.1} parent=1 // pred_check
      _
    $region63: #{egnn_finetune_mdn_forward.1} parent=1 // pred_check_branch
      %135 = sbr.rel (0) target = $region65
    $region64: #{egnn_finetune_mdn_forward.1} parent=1 // pred_region
      _
    $region65: #{egnn_finetune_mdn_forward.1} parent=1 // pred_fallthru
      _
    // Predicated region
    $region66: #{egnn_finetune_mdn_forward.1} parent=1 // pred_check
      _
    $region67: #{egnn_finetune_mdn_forward.1} parent=1 // pred_check_branch
      %137 = sbr.rel (0) target = $region69
    $region68: #{egnn_finetune_mdn_forward.1} parent=1 // pred_region
      %s139 = ssub.s32 64, 64
      %140 = vsyncadd [#allocation6], %s139
      %s141 = sshll.u32 [#allocation7], 4
      %s142 = int_to_ptr.vmem [resolvable:$true] %s141
      %147 = dma.hbm_to_vmem [thread:$0]  %s33, 64, %s142, [#allocation6], 16, 16, 1
    $region69: #{egnn_finetune_mdn_forward.1} parent=1 // pred_fallthru
      _
    // Predicated region
    $region70: #{egnn_finetune_mdn_forward.1} parent=1 // pred_check
      _
    $region71: #{egnn_finetune_mdn_forward.1} parent=1 // pred_check_branch
      %149 = sbr.rel (0) target = $region73
    $region72: #{egnn_finetune_mdn_forward.1} parent=1 // pred_region
      _
    $region73: #{egnn_finetune_mdn_forward.1} parent=1 // pred_fallthru
      _
    // Predicated region
    $region74: #{egnn_finetune_mdn_forward.1} parent=1 // pred_check
      _
    $region75: #{egnn_finetune_mdn_forward.1} parent=1 // pred_check_branch
      %151 = sbr.rel (0) target = $region77
    $region76: #{egnn_finetune_mdn_forward.1} parent=1 // pred_region
      _
    $region77: #{egnn_finetune_mdn_forward.1} parent=1 // pred_fallthru
      _
    // Predicated region
    $region78: #{egnn_finetune_mdn_forward.1} parent=1 // pred_check
      _
    $region79: #{egnn_finetune_mdn_forward.1} parent=1 // pred_check_branch
      %153 = sbr.rel (0) target = $region81
    $region80: #{egnn_finetune_mdn_forward.1} parent=1 // pred_region
      %s155 = ssub.s32 64, 64
      %156 = vsyncadd [#allocation9], %s155
      %s157 = sshll.u32 [#allocation8], 4
      %s158 = int_to_ptr.vmem [resolvable:$true] %s157
      %163 = dma.hbm_to_vmem [thread:$0]  %s39, 64, %s158, [#allocation9], 16, 16, 1
    $region81: #{egnn_finetune_mdn_forward.1} parent=1 // pred_fallthru
      _
    // Predicated region
    $region82: #{egnn_finetune_mdn_forward.1} parent=1 // pred_check
      _
    $region83: #{egnn_finetune_mdn_forward.1} parent=1 // pred_check_branch
      %165 = sbr.rel (0) target = $region85
    $region84: #{egnn_finetune_mdn_forward.1} parent=1 // pred_region
      _
    $region85: #{egnn_finetune_mdn_forward.1} parent=1 // pred_fallthru
      _
    // Predicated region
    $region86: #{egnn_finetune_mdn_forward.1} parent=1 // pred_check
      _
    $region87: #{egnn_finetune_mdn_forward.1} parent=1 // pred_check_branch
      %167 = sbr.rel (0) target = $region89
    $region88: #{egnn_finetune_mdn_forward.1} parent=1 // pred_region
      %s169 = ssub.s32 64, 64
      %170 = vsyncadd [#allocation9], %s169
      %s171 = sshll.u32 [#allocation10], 4
      %s172 = int_to_ptr.vmem [resolvable:$true] %s171
      %177 = dma.hbm_to_vmem [thread:$0]  %s43, 64, %s172, [#allocation9], 16, 16, 1
    $region89: #{egnn_finetune_mdn_forward.1} parent=1 // pred_fallthru
      _
    // Predicated region
    $region90: #{egnn_finetune_mdn_forward.1} parent=1 // pred_check
      _
    $region91: #{egnn_finetune_mdn_forward.1} parent=1 // pred_check_branch
      %179 = sbr.rel (0) target = $region93
    $region92: #{egnn_finetune_mdn_forward.1} parent=1 // pred_region
      _
    $region93: #{egnn_finetune_mdn_forward.1} parent=1 // pred_fallthru
      _
    // Predicated region
    $region94: #{egnn_finetune_mdn_forward.1} parent=1 // pred_check
      _
    $region95: #{egnn_finetune_mdn_forward.1} parent=1 // pred_check_branch
      %181 = sbr.rel (0) target = $region97
    $region96: #{egnn_finetune_mdn_forward.1} parent=1 // pred_region
      %s183 = ssub.s32 64, 64
      %184 = vsyncadd [#allocation12], %s183
      %s185 = sshll.u32 [#allocation11], 4
      %s186 = int_to_ptr.vmem [resolvable:$true] %s185
      %191 = dma.hbm_to_vmem [thread:$0]  %s47, 64, %s186, [#allocation12], 16, 16, 1
    $region97: #{egnn_finetune_mdn_forward.1} parent=1 // pred_fallthru
      _
    // Predicated region
    $region98: #{egnn_finetune_mdn_forward.1} parent=1 // pred_check
      _
    $region99: #{egnn_finetune_mdn_forward.1} parent=1 // pred_check_branch
      %193 = sbr.rel (0) target = $region101
    $region100: #{egnn_finetune_mdn_forward.1} parent=1 // pred_region
      %s195 = ssub.s32 64, 64
      %196 = vsyncadd [#allocation12], %s195
      %s197 = sshll.u32 [#allocation13], 4
      %s198 = int_to_ptr.vmem [resolvable:$true] %s197
      %203 = dma.hbm_to_vmem [thread:$0]  %s49, 64, %s198, [#allocation12], 16, 16, 1
    $region101: #{egnn_finetune_mdn_forward.1} parent=1 // pred_fallthru
      _
    // Predicated region
    $region102: #{egnn_finetune_mdn_forward.1} parent=1 // pred_check
      _
    $region103: #{egnn_finetune_mdn_forward.1} parent=1 // pred_check_branch
      %205 = sbr.rel (0) target = $region105
    $region104: #{egnn_finetune_mdn_forward.1} parent=1 // pred_region
      _
    $region105: #{egnn_finetune_mdn_forward.1} parent=1 // pred_fallthru
      _
    // Predicated region
    $region106: #{egnn_finetune_mdn_forward.1} parent=1 // pred_check
      _
    $region107: #{egnn_finetune_mdn_forward.1} parent=1 // pred_check_branch
      %207 = sbr.rel (0) target = $region109
    $region108: #{egnn_finetune_mdn_forward.1} parent=1 // pred_region
      _
    $region109: #{egnn_finetune_mdn_forward.1} parent=1 // pred_fallthru
      _
    // Predicated region
    $region110: #{egnn_finetune_mdn_forward.1} parent=1 // pred_check
      _
    $region111: #{egnn_finetune_mdn_forward.1} parent=1 // pred_check_branch
      %209 = sbr.rel (0) target = $region113
    $region112: #{egnn_finetune_mdn_forward.1} parent=1 // pred_region
      _
    $region113: #{egnn_finetune_mdn_forward.1} parent=1 // pred_fallthru
      _
    // Predicated region
    $region114: #{egnn_finetune_mdn_forward.1} parent=1 // pred_check
      _
    $region115: #{egnn_finetune_mdn_forward.1} parent=1 // pred_check_branch
      %211 = sbr.rel (0) target = $region117
    $region116: #{egnn_finetune_mdn_forward.1} parent=1 // pred_region
      _
    $region117: #{egnn_finetune_mdn_forward.1} parent=1 // pred_fallthru
      _
    // Predicated region
    $region118: #{egnn_finetune_mdn_forward.1} parent=1 // pred_check
      _
    $region119: #{egnn_finetune_mdn_forward.1} parent=1 // pred_check_branch
      %213 = sbr.rel (0) target = $region121
    $region120: #{egnn_finetune_mdn_forward.1} parent=1 // pred_region
      _
    $region121: #{egnn_finetune_mdn_forward.1} parent=1 // pred_fallthru
      _
    // Predicated region
    $region122: #{egnn_finetune_mdn_forward.1} parent=1 // pred_check
      _
    $region123: #{egnn_finetune_mdn_forward.1} parent=1 // pred_check_branch
      %215 = sbr.rel (0) target = $region125
    $region124: #{egnn_finetune_mdn_forward.1} parent=1 // pred_region
      %s217 = ssub.s32 16, 16
      %218 = vsyncadd [#allocation15], %s217
      %s220 = sshll.u32 [#allocation14], 4
      %s221 = int_to_ptr.vmem [resolvable:$true] %s220
      %223 = dma.hbm_to_vmem [thread:$0]  %s61, 16, %s221, [#allocation15]
    $region125: #{egnn_finetune_mdn_forward.1} parent=1 // pred_fallthru
      _
    // Predicated region
    $region126: #{egnn_finetune_mdn_forward.1} parent=1 // pred_check
      _
    $region127: #{egnn_finetune_mdn_forward.1} parent=1 // pred_check_branch
      %225 = sbr.rel (0) target = $region129
    $region128: #{egnn_finetune_mdn_forward.1} parent=1 // pred_region
      _
    $region129: #{egnn_finetune_mdn_forward.1} parent=1 // pred_fallthru
      _
    // Predicated region
    $region130: #{egnn_finetune_mdn_forward.1} parent=1 // pred_check
      _
    $region131: #{egnn_finetune_mdn_forward.1} parent=1 // pred_check_branch
      %227 = sbr.rel (0) target = $region133
    $region132: #{egnn_finetune_mdn_forward.1} parent=1 // pred_region
      %s229 = ssub.s32 16, 16
      %230 = vsyncadd [#allocation15], %s229
      %s232 = sshll.u32 [#allocation16], 4
      %s233 = int_to_ptr.vmem [resolvable:$true] %s232
      %235 = dma.hbm_to_vmem [thread:$0]  %s65, 16, %s233, [#allocation15]
    $region133: #{egnn_finetune_mdn_forward.1} parent=1 // pred_fallthru
      _
    // Predicated region
    $region134: #{egnn_finetune_mdn_forward.1} parent=1 // pred_check
      _
    $region135: #{egnn_finetune_mdn_forward.1} parent=1 // pred_check_branch
      %237 = sbr.rel (0) target = $region137
    $region136: #{egnn_finetune_mdn_forward.1} parent=1 // pred_region
      %238 = dma.done [#allocation3], 16
    $region137: #{egnn_finetune_mdn_forward.1} parent=1 // pred_fallthru
      _
    // Predicated region
    $region138: #{egnn_finetune_mdn_forward.1} parent=1 // pred_check
      _
    $region139: #{egnn_finetune_mdn_forward.1} parent=1 // pred_check_branch
      %240 = sbr.rel (0) target = $region141
    $region140: #{egnn_finetune_mdn_forward.1} parent=1 // pred_region
      %241 = dma.done [#allocation6], 64
    $region141: #{egnn_finetune_mdn_forward.1} parent=1 // pred_fallthru
      _
    // Predicated region
    $region142: #{egnn_finetune_mdn_forward.1} parent=1 // pred_check
      _
    $region143: #{egnn_finetune_mdn_forward.1} parent=1 // pred_check_branch
      %243 = sbr.rel (0) target = $region145
    $region144: #{egnn_finetune_mdn_forward.1} parent=1 // pred_region
      %244 = dma.done [#allocation6], 64
    $region145: #{egnn_finetune_mdn_forward.1} parent=1 // pred_fallthru
      _
    // Predicated region
    $region146: #{egnn_finetune_mdn_forward.1} parent=1 // pred_check
      _
    $region147: #{egnn_finetune_mdn_forward.1} parent=1 // pred_check_branch
      %246 = sbr.rel (0) target = $region149
    $region148: #{egnn_finetune_mdn_forward.1} parent=1 // pred_region
      %247 = dma.done [#allocation9], 64
    $region149: #{egnn_finetune_mdn_forward.1} parent=1 // pred_fallthru
      _
    // Predicated region
    $region150: #{egnn_finetune_mdn_forward.1} parent=1 // pred_check
      _
    $region151: #{egnn_finetune_mdn_forward.1} parent=1 // pred_check_branch
      %249 = sbr.rel (0) target = $region153
    $region152: #{egnn_finetune_mdn_forward.1} parent=1 // pred_region
      %250 = dma.done [#allocation9], 64
    $region153: #{egnn_finetune_mdn_forward.1} parent=1 // pred_fallthru
      _
    // Predicated region
    $region154: #{egnn_finetune_mdn_forward.1} parent=1 // pred_check
      _
    $region155: #{egnn_finetune_mdn_forward.1} parent=1 // pred_check_branch
      %252 = sbr.rel (0) target = $region157
    $region156: #{egnn_finetune_mdn_forward.1} parent=1 // pred_region
      %253 = dma.done [#allocation12], 64
    $region157: #{egnn_finetune_mdn_forward.1} parent=1 // pred_fallthru
      _
    // Predicated region
    $region158: #{egnn_finetune_mdn_forward.1} parent=1 // pred_check
      _
    $region159: #{egnn_finetune_mdn_forward.1} parent=1 // pred_check_branch
      %255 = sbr.rel (0) target = $region161
    $region160: #{egnn_finetune_mdn_forward.1} parent=1 // pred_region
      %256 = dma.done [#allocation12], 64
    $region161: #{egnn_finetune_mdn_forward.1} parent=1 // pred_fallthru
      _
    // Predicated region
    $region162: #{egnn_finetune_mdn_forward.1} parent=1 // pred_check
      _
    $region163: #{egnn_finetune_mdn_forward.1} parent=1 // pred_check_branch
      %258 = sbr.rel (0) target = $region165
    $region164: #{egnn_finetune_mdn_forward.1} parent=1 // pred_region
      %259 = dma.done [#allocation15], 16
    $region165: #{egnn_finetune_mdn_forward.1} parent=1 // pred_fallthru
      _
    // Predicated region
    $region166: #{egnn_finetune_mdn_forward.1} parent=1 // pred_check
      _
    $region167: #{egnn_finetune_mdn_forward.1} parent=1 // pred_check_branch
      %261 = sbr.rel (0) target = $region169
    $region168: #{egnn_finetune_mdn_forward.1} parent=1 // pred_region
      %262 = dma.done [#allocation15], 16
    $region169: #{egnn_finetune_mdn_forward.1} parent=1 // pred_fallthru
      _
    %v264 = vld [vmem:[%s7] sm:$0xff]
    %v265 = vld [vmem:[%s7 + $0x8] sm:$0xff]
    %v266 = vld [vmem:[%s7 + $0x10] sm:$0xff]
    %v267 = vld [vmem:[%s7 + $0x18] sm:$0xff]
    %v268 = vld [vmem:[%s7 + $0x20] sm:$0xff]
    %v269 = vld [vmem:[%s7 + $0x28] sm:$0xff]
    %v270 = vld [vmem:[%s7 + $0x30] sm:$0xff]
    %v271 = vld [vmem:[%s7 + $0x38] sm:$0xff]
    %v272 = vld [vmem:[%s7 + $0x40] sm:$0xff]
    %v273 = vld [vmem:[%s7 + $0x48] sm:$0xff]
    %v274 = vld [vmem:[%s7 + $0x50] sm:$0xff]
    %v275 = vld [vmem:[%s7 + $0x58] sm:$0xff]
    %v276 = vld [vmem:[%s7 + $0x60] sm:$0xff]
    %v277 = vld [vmem:[%s7 + $0x68] sm:$0xff]
    %v278 = vld [vmem:[%s9] sm:$0xff]
    %v279 = vld [vmem:[%s9 + $0x8] sm:$0xff]
    %v280 = vld [vmem:[%s9 + $0x10] sm:$0xff]
    %v281 = vld [vmem:[%s9 + $0x18] sm:$0xff]
    %v282 = vld [vmem:[%s9 + $0x20] sm:$0xff]
    %v283 = vld [vmem:[%s9 + $0x28] sm:$0xff]
    %v284 = vld [vmem:[%s9 + $0x30] sm:$0xff]
    %v285 = vld [vmem:[%s9 + $0x38] sm:$0xff]
    %v286 = vld [vmem:[%s9 + $0x40] sm:$0xff]
    %v287 = vld [vmem:[%s9 + $0x48] sm:$0xff]
    %v288 = vld [vmem:[%s9 + $0x50] sm:$0xff]
    %v289 = vld [vmem:[%s9 + $0x58] sm:$0xff]
    %v290 = vld [vmem:[%s9 + $0x60] sm:$0xff]
    %v291 = vld [vmem:[%s9 + $0x68] sm:$0xff]
    %v292 = vld [vmem:[%s11] sm:$0xff]
    %v293 = vld [vmem:[%s11 + $0x8] sm:$0xff]
    %v294 = vld [vmem:[%s13] sm:$0xff]
    %v295 = vld [vmem:[%s13 + $0x8] sm:$0xff]
    %v296 = vld [vmem:[%s5] sm:$0xff]
    %v297 = vld [vmem:[%s5 + $0x8] sm:$0xff]
    %v298 = vld [vmem:[%s5 + $0x10] sm:$0xff]
    %v299 = vld [vmem:[%s5 + $0x18] sm:$0xff]
    %v300 = vld [vmem:[%s5 + $0x20] sm:$0xff]
    %v301 = vld [vmem:[%s5 + $0x28] sm:$0xff]
    %v302 = vld [vmem:[%s5 + $0x30] sm:$0xff]
    %v303 = vld [vmem:[%s5 + $0x38] sm:$0xff]
    %v304 = vld [vmem:[%s5 + $0x40] sm:$0xff]
    %v305 = vld [vmem:[%s5 + $0x48] sm:$0xff]
    %v306 = vld [vmem:[%s5 + $0x50] sm:$0xff]
    %v307 = vld [vmem:[%s5 + $0x58] sm:$0xff]
    %v308 = vld [vmem:[%s5 + $0x60] sm:$0xff]
    %v309 = vld [vmem:[%s5 + $0x68] sm:$0xff]
    %v310 = vld [vmem:[%s3] sm:$0xff]
    %v311 = vld [vmem:[%s3 + $0x8] sm:$0xff]
    %vm312 = vcmask 130048
    %v314 = vsel %vm312, %v264, 0
    %v317 = vsel %vm312, %v265, 0
    %v320 = vsel %vm312, %v266, 0
    %v323 = vsel %vm312, %v267, 0
    %v326 = vsel %vm312, %v268, 0
    %v329 = vsel %vm312, %v269, 0
    %v332 = vsel %vm312, %v270, 0
    %v335 = vsel %vm312, %v271, 0
    %v338 = vsel %vm312, %v272, 0
    %v341 = vsel %vm312, %v273, 0
    %v344 = vsel %vm312, %v274, 0
    %v347 = vsel %vm312, %v275, 0
    %v350 = vsel %vm312, %v276, 0
    %v353 = vsel %vm312, %v277, 0
    %355 = vmatprep.subr.mxu0 0.0
    %356 = vmatpush1.msra.mxu0 0.0
    %357 = vmatprep.subr.mxu0 0.0
    %358 = vmatpush1.msra.mxu0 0.0
    %359 = vmatprep.subr.mxu0 0.0
    %360 = vmatpush1.msra.mxu0 0.0
    %361 = vmatprep.subr.mxu0 0.0
    %362 = vmatpush1.msra.mxu0 0.0
    %363 = vmatprep.subr.mxu0 0.0
    %364 = vmatpush1.msra.mxu0 0.0
    %365 = vmatprep.subr.mxu0 0.0
    %366 = vmatpush1.msra.mxu0 0.0
    %367 = vmatprep.subr.mxu0 0.0
    %368 = vmatpush1.msra.mxu0 0.0
    %369 = vmatprep.subr.mxu0 0.0
    %370 = vmatpush1.msra.mxu0 0.0
    %371 = vmatprep.subr.mxu0 0.0
    %372 = vmatpush1.msra.mxu0 0.0
    %373 = vmatprep.subr.mxu0 0.0
    %374 = vmatpush1.msra.mxu0 0.0
    %375 = vmatprep.subr.mxu0 0.0
    %376 = vmatpush1.msra.mxu0 0.0
    %377 = vmatprep.subr.mxu0 0.0
    %378 = vmatpush1.msra.mxu0 0.0
    %379 = vmatprep.subr.mxu0 0.0
    %380 = vmatpush1.msra.mxu0 0.0
    %381 = vmatprep.subr.mxu0 0.0
    %382 = vmatpush1.msra.mxu0 0.0
    %383 = vmatprep.subr.mxu0 0.0
    %384 = vmatpush1.msra.mxu0 %v311
    %385 = vmatprep.subr.mxu0 0.0
    %386 = vmatpush1.msra.mxu0 %v310
    %387 = vmatprep.subr.mxu0 0.0
    %388 = vmatpush2.msra.mxu0 0.0
    %389 = vmatprep.subr.mxu0 0.0
    %390 = vmatpush2.msra.mxu0 0.0
    %391 = vmatprep.subr.mxu0 0.0
    %392 = vmatpush2.msra.mxu0 0.0
    %393 = vmatprep.subr.mxu0 0.0
    %394 = vmatpush2.msra.mxu0 0.0
    %395 = vmatprep.subr.mxu0 0.0
    %396 = vmatpush2.msra.mxu0 0.0
    %397 = vmatprep.subr.mxu0 0.0
    %398 = vmatpush2.msra.mxu0 0.0
    %399 = vmatprep.subr.mxu0 0.0
    %400 = vmatpush2.msra.mxu0 0.0
    %401 = vmatprep.subr.mxu0 0.0
    %402 = vmatpush2.msra.mxu0 0.0
    %403 = vmatprep.subr.mxu0 0.0
    %404 = vmatpush2.msra.mxu0 0.0
    %405 = vmatprep.subr.mxu0 0.0
    %406 = vmatpush2.msra.mxu0 0.0
    %407 = vmatprep.subr.mxu0 0.0
    %408 = vmatpush2.msra.mxu0 0.0
    %409 = vmatprep.subr.mxu0 0.0
    %410 = vmatpush2.msra.mxu0 0.0
    %411 = vmatprep.subr.mxu0 0.0
    %412 = vmatpush2.msra.mxu0 0.0
    %413 = vmatprep.subr.mxu0 0.0
    %414 = vmatpush2.msra.mxu0 0.0
    %415 = vmatprep.subr.mxu0 0.0
    %416 = vmatpush2.msra.mxu0 0.0
    %417 = vmatprep.subr.mxu0 0.0
    %418 = vmatpush2.msra.mxu0 0.0
    %419 = vmatprep.mubr.f32.mxu0 0.0
    %420 = vmatmul.mubr.f32.gmra.mxu0 %v314
    %v421 = vpop.f32.mrf.mxu0
    %v422 = vadd.f32 0.0, %v421
    %v423 = vpop.f32.mrf.mxu0
    %424 = vmatprep.mubr.f32.mxu0 0.0
    %425 = vmatmul.mubr.f32.gmra.mxu0 %v317
    %v426 = vpop.f32.mrf.mxu0
    %v427 = vadd.f32 0.0, %v426
    %v428 = vpop.f32.mrf.mxu0
    %429 = vmatprep.mubr.f32.mxu0 0.0
    %430 = vmatmul.mubr.f32.gmra.mxu0 %v320
    %v431 = vpop.f32.mrf.mxu0
    %v432 = vadd.f32 0.0, %v431
    %v433 = vpop.f32.mrf.mxu0
    %434 = vmatprep.mubr.f32.mxu0 0.0
    %435 = vmatmul.mubr.f32.gmra.mxu0 %v323
    %v436 = vpop.f32.mrf.mxu0
    %v437 = vadd.f32 0.0, %v436
    %v438 = vpop.f32.mrf.mxu0
    %439 = vmatprep.mubr.f32.mxu0 0.0
    %440 = vmatmul.mubr.f32.gmra.mxu0 %v326
    %v441 = vpop.f32.mrf.mxu0
    %v442 = vadd.f32 0.0, %v441
    %v443 = vpop.f32.mrf.mxu0
    %444 = vmatprep.mubr.f32.mxu0 0.0
    %445 = vmatmul.mubr.f32.gmra.mxu0 %v329
    %v446 = vpop.f32.mrf.mxu0
    %v447 = vadd.f32 0.0, %v446
    %v448 = vpop.f32.mrf.mxu0
    %449 = vmatprep.mubr.f32.mxu0 0.0
    %450 = vmatmul.mubr.f32.gmra.mxu0 %v332
    %v451 = vpop.f32.mrf.mxu0
    %v452 = vadd.f32 0.0, %v451
    %v453 = vpop.f32.mrf.mxu0
    %454 = vmatprep.mubr.f32.mxu0 0.0
    %455 = vmatmul.mubr.f32.gmra.mxu0 %v335
    %v456 = vpop.f32.mrf.mxu0
    %v457 = vadd.f32 0.0, %v456
    %v458 = vpop.f32.mrf.mxu0
    %459 = vmatprep.mubr.f32.mxu0 0.0
    %460 = vmatmul.mubr.f32.gmra.mxu0 %v338
    %v461 = vpop.f32.mrf.mxu0
    %v462 = vadd.f32 0.0, %v461
    %v463 = vpop.f32.mrf.mxu0
    %464 = vmatprep.mubr.f32.mxu0 0.0
    %465 = vmatmul.mubr.f32.gmra.mxu0 %v341
    %v466 = vpop.f32.mrf.mxu0
    %v467 = vadd.f32 0.0, %v466
    %v468 = vpop.f32.mrf.mxu0
    %469 = vmatprep.mubr.f32.mxu0 0.0
    %470 = vmatmul.mubr.f32.gmra.mxu0 %v344
    %v471 = vpop.f32.mrf.mxu0
    %v472 = vadd.f32 0.0, %v471
    %v473 = vpop.f32.mrf.mxu0
    %474 = vmatprep.mubr.f32.mxu0 0.0
    %475 = vmatmul.mubr.f32.gmra.mxu0 %v347
    %v476 = vpop.f32.mrf.mxu0
    %v477 = vadd.f32 0.0, %v476
    %v478 = vpop.f32.mrf.mxu0
    %479 = vmatprep.mubr.f32.mxu0 0.0
    %480 = vmatmul.mubr.f32.gmra.mxu0 %v350
    %v481 = vpop.f32.mrf.mxu0
    %v482 = vadd.f32 0.0, %v481
    %v483 = vpop.f32.mrf.mxu0
    %484 = vmatprep.mubr.f32.mxu0 0.0
    %485 = vmatmul.mubr.f32.gmra.mxu0 %v353
    %v486 = vpop.f32.mrf.mxu0
    %v487 = vadd.f32 0.0, %v486
    %v488 = vpop.f32.mrf.mxu0
    %489 = vdwg.mxu0
    %v491 = vsel %vm312, %v278, 0
    %v494 = vsel %vm312, %v279, 0
    %v497 = vsel %vm312, %v280, 0
    %v500 = vsel %vm312, %v281, 0
    %v503 = vsel %vm312, %v282, 0
    %v506 = vsel %vm312, %v283, 0
    %v509 = vsel %vm312, %v284, 0
    %v512 = vsel %vm312, %v285, 0
    %v515 = vsel %vm312, %v286, 0
    %v518 = vsel %vm312, %v287, 0
    %v521 = vsel %vm312, %v288, 0
    %v524 = vsel %vm312, %v289, 0
    %v527 = vsel %vm312, %v290, 0
    %v530 = vsel %vm312, %v291, 0
    %532 = vmatprep.subr.mxu0 0.0
    %533 = vmatpush1.msra.mxu0 0.0
    %534 = vmatprep.subr.mxu0 0.0
    %535 = vmatpush1.msra.mxu0 0.0
    %536 = vmatprep.subr.mxu0 0.0
    %537 = vmatpush1.msra.mxu0 0.0
    %538 = vmatprep.subr.mxu0 0.0
    %539 = vmatpush1.msra.mxu0 0.0
    %540 = vmatprep.subr.mxu0 0.0
    %541 = vmatpush1.msra.mxu0 0.0
    %542 = vmatprep.subr.mxu0 0.0
    %543 = vmatpush1.msra.mxu0 0.0
    %544 = vmatprep.subr.mxu0 0.0
    %545 = vmatpush1.msra.mxu0 0.0
    %546 = vmatprep.subr.mxu0 0.0
    %547 = vmatpush1.msra.mxu0 0.0
    %548 = vmatprep.subr.mxu0 0.0
    %549 = vmatpush1.msra.mxu0 0.0
    %550 = vmatprep.subr.mxu0 0.0
    %551 = vmatpush1.msra.mxu0 0.0
    %552 = vmatprep.subr.mxu0 0.0
    %553 = vmatpush1.msra.mxu0 0.0
    %554 = vmatprep.subr.mxu0 0.0
    %555 = vmatpush1.msra.mxu0 0.0
    %556 = vmatprep.subr.mxu0 0.0
    %557 = vmatpush1.msra.mxu0 0.0
    %558 = vmatprep.subr.mxu0 0.0
    %559 = vmatpush1.msra.mxu0 0.0
    %560 = vmatprep.subr.mxu0 0.0
    %561 = vmatpush1.msra.mxu0 %v311
    %562 = vmatprep.subr.mxu0 0.0
    %563 = vmatpush1.msra.mxu0 %v310
    %564 = vmatprep.subr.mxu0 0.0
    %565 = vmatpush2.msra.mxu0 0.0
    %566 = vmatprep.subr.mxu0 0.0
    %567 = vmatpush2.msra.mxu0 0.0
    %568 = vmatprep.subr.mxu0 0.0
    %569 = vmatpush2.msra.mxu0 0.0
    %570 = vmatprep.subr.mxu0 0.0
    %571 = vmatpush2.msra.mxu0 0.0
    %572 = vmatprep.subr.mxu0 0.0
    %573 = vmatpush2.msra.mxu0 0.0
    %574 = vmatprep.subr.mxu0 0.0
    %575 = vmatpush2.msra.mxu0 0.0
    %576 = vmatprep.subr.mxu0 0.0
    %577 = vmatpush2.msra.mxu0 0.0
    %578 = vmatprep.subr.mxu0 0.0
    %579 = vmatpush2.msra.mxu0 0.0
    %580 = vmatprep.subr.mxu0 0.0
    %581 = vmatpush2.msra.mxu0 0.0
    %582 = vmatprep.subr.mxu0 0.0
    %583 = vmatpush2.msra.mxu0 0.0
    %584 = vmatprep.subr.mxu0 0.0
    %585 = vmatpush2.msra.mxu0 0.0
    %586 = vmatprep.subr.mxu0 0.0
    %587 = vmatpush2.msra.mxu0 0.0
    %588 = vmatprep.subr.mxu0 0.0
    %589 = vmatpush2.msra.mxu0 0.0
    %590 = vmatprep.subr.mxu0 0.0
    %591 = vmatpush2.msra.mxu0 0.0
    %592 = vmatprep.subr.mxu0 0.0
    %593 = vmatpush2.msra.mxu0 0.0
    %594 = vmatprep.subr.mxu0 0.0
    %595 = vmatpush2.msra.mxu0 0.0
    %596 = vmatprep.mubr.f32.mxu0 0.0
    %597 = vmatmul.mubr.f32.gmra.mxu0 %v491
    %v598 = vpop.f32.mrf.mxu0
    %v599 = vadd.f32 0.0, %v598
    %v600 = vpop.f32.mrf.mxu0
    %601 = vmatprep.mubr.f32.mxu0 0.0
    %602 = vmatmul.mubr.f32.gmra.mxu0 %v494
    %v603 = vpop.f32.mrf.mxu0
    %v604 = vadd.f32 0.0, %v603
    %v605 = vpop.f32.mrf.mxu0
    %606 = vmatprep.mubr.f32.mxu0 0.0
    %607 = vmatmul.mubr.f32.gmra.mxu0 %v497
    %v608 = vpop.f32.mrf.mxu0
    %v609 = vadd.f32 0.0, %v608
    %v610 = vpop.f32.mrf.mxu0
    %611 = vmatprep.mubr.f32.mxu0 0.0
    %612 = vmatmul.mubr.f32.gmra.mxu0 %v500
    %v613 = vpop.f32.mrf.mxu0
    %v614 = vadd.f32 0.0, %v613
    %v615 = vpop.f32.mrf.mxu0
    %616 = vmatprep.mubr.f32.mxu0 0.0
    %617 = vmatmul.mubr.f32.gmra.mxu0 %v503
    %v618 = vpop.f32.mrf.mxu0
    %v619 = vadd.f32 0.0, %v618
    %v620 = vpop.f32.mrf.mxu0
    %621 = vmatprep.mubr.f32.mxu0 0.0
    %622 = vmatmul.mubr.f32.gmra.mxu0 %v506
    %v623 = vpop.f32.mrf.mxu0
    %v624 = vadd.f32 0.0, %v623
    %v625 = vpop.f32.mrf.mxu0
    %626 = vmatprep.mubr.f32.mxu0 0.0
    %627 = vmatmul.mubr.f32.gmra.mxu0 %v509
    %v628 = vpop.f32.mrf.mxu0
    %v629 = vadd.f32 0.0, %v628
    %v630 = vpop.f32.mrf.mxu0
    %631 = vmatprep.mubr.f32.mxu0 0.0
    %632 = vmatmul.mubr.f32.gmra.mxu0 %v512
    %v633 = vpop.f32.mrf.mxu0
    %v634 = vadd.f32 0.0, %v633
    %v635 = vpop.f32.mrf.mxu0
    %636 = vmatprep.mubr.f32.mxu0 0.0
    %637 = vmatmul.mubr.f32.gmra.mxu0 %v515
    %v638 = vpop.f32.mrf.mxu0
    %v639 = vadd.f32 0.0, %v638
    %v640 = vpop.f32.mrf.mxu0
    %641 = vmatprep.mubr.f32.mxu0 0.0
    %642 = vmatmul.mubr.f32.gmra.mxu0 %v518
    %v643 = vpop.f32.mrf.mxu0
    %v644 = vadd.f32 0.0, %v643
    %v645 = vpop.f32.mrf.mxu0
    %646 = vmatprep.mubr.f32.mxu0 0.0
    %647 = vmatmul.mubr.f32.gmra.mxu0 %v521
    %v648 = vpop.f32.mrf.mxu0
    %v649 = vadd.f32 0.0, %v648
    %v650 = vpop.f32.mrf.mxu0
    %651 = vmatprep.mubr.f32.mxu0 0.0
    %652 = vmatmul.mubr.f32.gmra.mxu0 %v524
    %v653 = vpop.f32.mrf.mxu0
    %v654 = vadd.f32 0.0, %v653
    %v655 = vpop.f32.mrf.mxu0
    %656 = vmatprep.mubr.f32.mxu0 0.0
    %657 = vmatmul.mubr.f32.gmra.mxu0 %v527
    %v658 = vpop.f32.mrf.mxu0
    %v659 = vadd.f32 0.0, %v658
    %v660 = vpop.f32.mrf.mxu0
    %661 = vmatprep.mubr.f32.mxu0 0.0
    %662 = vmatmul.mubr.f32.gmra.mxu0 %v530
    %v663 = vpop.f32.mrf.mxu0
    %v664 = vadd.f32 0.0, %v663
    %v665 = vpop.f32.mrf.mxu0
    %666 = vdwg.mxu0
    %v667 = vsub.f32 %v422, %v599
    %v668 = vsub.f32 %v427, %v604
    %v669 = vsub.f32 %v432, %v609
    %v670 = vsub.f32 %v437, %v614
    %v671 = vsub.f32 %v442, %v619
    %v672 = vsub.f32 %v447, %v624
    %v673 = vsub.f32 %v452, %v629
    %v674 = vsub.f32 %v457, %v634
    %v675 = vsub.f32 %v462, %v639
    %v676 = vsub.f32 %v467, %v644
    %v677 = vsub.f32 %v472, %v649
    %v678 = vsub.f32 %v477, %v654
    %v679 = vsub.f32 %v482, %v659
    %v680 = vsub.f32 %v487, %v664
    %v681 = vmul.f32 %v667, %v667
    %v682 = vmul.f32 %v668, %v668
    %v683 = vmul.f32 %v669, %v669
    %v684 = vmul.f32 %v670, %v670
    %v685 = vmul.f32 %v671, %v671
    %v686 = vmul.f32 %v672, %v672
    %v687 = vmul.f32 %v673, %v673
    %v688 = vmul.f32 %v674, %v674
    %v689 = vmul.f32 %v675, %v675
    %v690 = vmul.f32 %v676, %v676
    %v691 = vmul.f32 %v677, %v677
    %v692 = vmul.f32 %v678, %v678
    %v693 = vmul.f32 %v679, %v679
    %v694 = vmul.f32 %v680, %v680
    %vm695 = vcmask 64512
    %v696 = vsel %vm695, %v681, 0.0
    %697 = vadd.xlane.f32.xlu0 %v696
    %v698 = vpop.xlane.xlu0 %697
    %v699 = vsel %vm695, %v682, 0.0
    %700 = vadd.xlane.f32.xlu0 %v699
    %v701 = vpop.xlane.xlu0 %700
    %v702 = vsel %vm695, %v683, 0.0
    %703 = vadd.xlane.f32.xlu0 %v702
    %v704 = vpop.xlane.xlu0 %703
    %v705 = vsel %vm695, %v684, 0.0
    %706 = vadd.xlane.f32.xlu0 %v705
    %v707 = vpop.xlane.xlu0 %706
    %v708 = vsel %vm695, %v685, 0.0
    %709 = vadd.xlane.f32.xlu0 %v708
    %v710 = vpop.xlane.xlu0 %709
    %v711 = vsel %vm695, %v686, 0.0
    %712 = vadd.xlane.f32.xlu0 %v711
    %v713 = vpop.xlane.xlu0 %712
    %v714 = vsel %vm695, %v687, 0.0
    %715 = vadd.xlane.f32.xlu0 %v714
    %v716 = vpop.xlane.xlu0 %715
    %v717 = vsel %vm695, %v688, 0.0
    %718 = vadd.xlane.f32.xlu0 %v717
    %v719 = vpop.xlane.xlu0 %718
    %v720 = vsel %vm695, %v689, 0.0
    %721 = vadd.xlane.f32.xlu0 %v720
    %v722 = vpop.xlane.xlu0 %721
    %v723 = vsel %vm695, %v690, 0.0
    %724 = vadd.xlane.f32.xlu0 %v723
    %v725 = vpop.xlane.xlu0 %724
    %v726 = vsel %vm695, %v691, 0.0
    %727 = vadd.xlane.f32.xlu0 %v726
    %v728 = vpop.xlane.xlu0 %727
    %v729 = vsel %vm695, %v692, 0.0
    %730 = vadd.xlane.f32.xlu0 %v729
    %v731 = vpop.xlane.xlu0 %730
    %v732 = vsel %vm695, %v693, 0.0
    %733 = vadd.xlane.f32.xlu0 %v732
    %v734 = vpop.xlane.xlu0 %733
    %v735 = vsel %vm695, %v694, 0.0
    %736 = vadd.xlane.f32.xlu0 %v735
    %v737 = vpop.xlane.xlu0 %736
    %v738 = vld [vmem:[%s1] sm:$0xff]
    %v739 = vld [vmem:[%s1 + $0x8] sm:$0xff]
    %v740 = vld [vmem:[%s17] sm:$0xf]
    %v741 = vpack.c.bf16 %v739, %v738
    %v742 = vld [vmem:[#allocation2] sm:$0x1]
    %v744 = vlaneseq
    %v745 = vshrl.u32 %v744, 7
    %v746 = vsub.s32 0, %v745
    %v747 = vrot.slane %v742, %v746
    %v750 = vsel %vm695, %v741, 0
    %vm752 = vcmask 1043456
    %v754 = vsel %vm752, %v740, 0
    %756 = vmatprep.subr.bf16.mxu0 0
    %757 = vmatpush1.bf16.msra.mxu0 0
    %758 = vmatprep.subr.bf16.mxu0 0
    %759 = vmatpush1.bf16.msra.mxu0 0
    %760 = vmatprep.subr.bf16.mxu0 0
    %761 = vmatpush1.bf16.msra.mxu0 0
    %762 = vmatprep.subr.bf16.mxu0 0
    %763 = vmatpush1.bf16.msra.mxu0 0
    %764 = vmatprep.subr.bf16.mxu0 0
    %765 = vmatpush1.bf16.msra.mxu0 0
    %766 = vmatprep.subr.bf16.mxu0 0
    %767 = vmatpush1.bf16.msra.mxu0 0
    %768 = vmatprep.subr.bf16.mxu0 0
    %769 = vmatpush1.bf16.msra.mxu0 0
    %770 = vmatprep.subr.bf16.mxu0 0
    %771 = vmatpush1.bf16.msra.mxu0 %v754
    %772 = vmatprep.subr.bf16.mxu0 0
    %773 = vmatpush2.bf16.msra.mxu0 0
    %774 = vmatprep.subr.bf16.mxu0 0
    %775 = vmatpush2.bf16.msra.mxu0 0
    %776 = vmatprep.subr.bf16.mxu0 0
    %777 = vmatpush2.bf16.msra.mxu0 0
    %778 = vmatprep.subr.bf16.mxu0 0
    %779 = vmatpush2.bf16.msra.mxu0 0
    %780 = vmatprep.subr.bf16.mxu0 0
    %781 = vmatpush2.bf16.msra.mxu0 0
    %782 = vmatprep.subr.bf16.mxu0 0
    %783 = vmatpush2.bf16.msra.mxu0 0
    %784 = vmatprep.subr.bf16.mxu0 0
    %785 = vmatpush2.bf16.msra.mxu0 0
    %786 = vmatprep.subr.bf16.mxu0 0
    %787 = vmatpush2.bf16.msra.mxu0 0
    %788 = vmatprep.mubr.bf16.mxu0 0
    %789 = vmatmul.mubr.bf16.gmra.mxu0 %v750
    %v790 = vpop.f32.mrf.mxu0
    %v791 = vadd.f32 %v747, %v790
    %v792 = vpop.f32.mrf.mxu0
    %v793 = vpop.f32.mrf.mxu0
    %v794 = vadd.f32 %v747, %v793
    %v795 = vpop.f32.mrf.mxu0
    %796 = vdwg.mxu0
    %v797 = vld [vmem:[%s21] sm:$0xf]
    %v798 = vld [vmem:[%s21 + $0x4] sm:$0xf]
    %v799 = vld [vmem:[%s21 + $0x8] sm:$0xf]
    %v800 = vld [vmem:[%s21 + $0xc] sm:$0xf]
    %v801 = vpack.c.bf16 %v794, %v791
    %v806 = vunpack.c.l.b16 %v797
    %v807 = vunpack.c.l.b16 %v798
    %v808 = vunpack.c.l.b16 %v799
    %v809 = vunpack.c.l.b16 %v800
    %v810 = vpack.c.b16 %v807, %v806
    %v811 = vpack.c.b16 %v809, %v808
    %vm814 = vcmask 261120
    %v816 = vsel %vm814, %v801, 0
    %818 = vmatprep.subr.bf16.mxu0 0
    %819 = vmatpush1.bf16.msra.mxu0 0
    %820 = vmatprep.subr.bf16.mxu0 0
    %821 = vmatpush1.bf16.msra.mxu0 0
    %822 = vmatprep.subr.bf16.mxu0 0
    %823 = vmatpush1.bf16.msra.mxu0 0
    %824 = vmatprep.subr.bf16.mxu0 0
    %825 = vmatpush1.bf16.msra.mxu0 0
    %826 = vmatprep.subr.bf16.mxu0 0
    %827 = vmatpush1.bf16.msra.mxu0 0
    %828 = vmatprep.subr.bf16.mxu0 0
    %829 = vmatpush1.bf16.msra.mxu0 0
    %830 = vmatprep.subr.bf16.mxu0 0
    %831 = vmatpush1.bf16.msra.mxu0 %v811
    %832 = vmatprep.subr.bf16.mxu0 0
    %833 = vmatpush1.bf16.msra.mxu0 %v810
    %834 = vmatprep.subr.bf16.mxu0 0
    %835 = vmatpush2.bf16.msra.mxu0 0
    %836 = vmatprep.subr.bf16.mxu0 0
    %837 = vmatpush2.bf16.msra.mxu0 0
    %838 = vmatprep.subr.bf16.mxu0 0
    %839 = vmatpush2.bf16.msra.mxu0 0
    %840 = vmatprep.subr.bf16.mxu0 0
    %841 = vmatpush2.bf16.msra.mxu0 0
    %842 = vmatprep.subr.bf16.mxu0 0
    %843 = vmatpush2.bf16.msra.mxu0 0
    %844 = vmatprep.subr.bf16.mxu0 0
    %845 = vmatpush2.bf16.msra.mxu0 0
    %846 = vmatprep.subr.bf16.mxu0 0
    %847 = vmatpush2.bf16.msra.mxu0 0
    %848 = vmatprep.subr.bf16.mxu0 0
    %849 = vmatpush2.bf16.msra.mxu0 0
    %850 = vmatprep.mubr.bf16.mxu0 0
    %851 = vmatmul.mubr.bf16.gmra.mxu0 %v816
    %v852 = vpop.f32.mrf.mxu0
    %v853 = vadd.f32 0.0, %v852
    %v854 = vpop.f32.mrf.mxu0
    %v855 = vpop.f32.mrf.mxu0
    %v856 = vadd.f32 0.0, %v855
    %v857 = vpop.f32.mrf.mxu0
    %858 = vdwg.mxu0
    %v859 = vld [vmem:[%s23] sm:$0xf]
    %v860 = vld [vmem:[%s23 + $0x4] sm:$0xf]
    %v861 = vld [vmem:[%s23 + $0x8] sm:$0xf]
    %v862 = vld [vmem:[%s23 + $0xc] sm:$0xf]
    %v867 = vunpack.c.l.b16 %v859
    %v868 = vunpack.c.l.b16 %v860
    %v869 = vunpack.c.l.b16 %v861
    %v870 = vunpack.c.l.b16 %v862
    %v871 = vpack.c.b16 %v868, %v867
    %v872 = vpack.c.b16 %v870, %v869
    %875 = vmatprep.subr.bf16.mxu0 0
    %876 = vmatpush1.bf16.msra.mxu0 0
    %877 = vmatprep.subr.bf16.mxu0 0
    %878 = vmatpush1.bf16.msra.mxu0 0
    %879 = vmatprep.subr.bf16.mxu0 0
    %880 = vmatpush1.bf16.msra.mxu0 0
    %881 = vmatprep.subr.bf16.mxu0 0
    %882 = vmatpush1.bf16.msra.mxu0 0
    %883 = vmatprep.subr.bf16.mxu0 0
    %884 = vmatpush1.bf16.msra.mxu0 0
    %885 = vmatprep.subr.bf16.mxu0 0
    %886 = vmatpush1.bf16.msra.mxu0 0
    %887 = vmatprep.subr.bf16.mxu0 0
    %888 = vmatpush1.bf16.msra.mxu0 %v872
    %889 = vmatprep.subr.bf16.mxu0 0
    %890 = vmatpush1.bf16.msra.mxu0 %v871
    %891 = vmatprep.subr.bf16.mxu0 0
    %892 = vmatpush2.bf16.msra.mxu0 0
    %893 = vmatprep.subr.bf16.mxu0 0
    %894 = vmatpush2.bf16.msra.mxu0 0
    %895 = vmatprep.subr.bf16.mxu0 0
    %896 = vmatpush2.bf16.msra.mxu0 0
    %897 = vmatprep.subr.bf16.mxu0 0
    %898 = vmatpush2.bf16.msra.mxu0 0
    %899 = vmatprep.subr.bf16.mxu0 0
    %900 = vmatpush2.bf16.msra.mxu0 0
    %901 = vmatprep.subr.bf16.mxu0 0
    %902 = vmatpush2.bf16.msra.mxu0 0
    %903 = vmatprep.subr.bf16.mxu0 0
    %904 = vmatpush2.bf16.msra.mxu0 0
    %905 = vmatprep.subr.bf16.mxu0 0
    %906 = vmatpush2.bf16.msra.mxu0 0
    %907 = vmatprep.mubr.bf16.mxu0 0
    %908 = vmatmul.mubr.bf16.gmra.mxu0 %v816
    %v909 = vpop.f32.mrf.mxu0
    %v910 = vadd.f32 0.0, %v909
    %v911 = vpop.f32.mrf.mxu0
    %v912 = vpop.f32.mrf.mxu0
    %v913 = vadd.f32 0.0, %v912
    %v914 = vpop.f32.mrf.mxu0
    %915 = vdwg.mxu0
    %v916 = vpack.c.bf16 %v265, %v264
    %v917 = vpack.c.bf16 %v267, %v266
    %v918 = vpack.c.bf16 %v269, %v268
    %v919 = vpack.c.bf16 %v271, %v270
    %v920 = vpack.c.bf16 %v273, %v272
    %v921 = vpack.c.bf16 %v275, %v274
    %v922 = vpack.c.bf16 %v277, %v276
    %v923 = vpack.c.bf16 %v856, %v853
    %v924 = vpack.c.bf16 %v279, %v278
    %v925 = vpack.c.bf16 %v281, %v280
    %v926 = vpack.c.bf16 %v283, %v282
    %v927 = vpack.c.bf16 %v285, %v284
    %v928 = vpack.c.bf16 %v287, %v286
    %v929 = vpack.c.bf16 %v289, %v288
    %v930 = vpack.c.bf16 %v291, %v290
    %v931 = vpack.c.bf16 %v913, %v910
    %v933 = vsel %vm312, %v924, 0
    %v936 = vsel %vm312, %v925, 0
    %v939 = vsel %vm312, %v926, 0
    %v942 = vsel %vm312, %v927, 0
    %v945 = vsel %vm312, %v928, 0
    %v948 = vsel %vm312, %v929, 0
    %v951 = vsel %vm312, %v930, 0
    %953 = vmatprep.subr.bf16.mxu0 0
    %954 = vmatpush1.bf16.msra.mxu0 0
    %955 = vmatprep.subr.bf16.mxu0 0
    %956 = vmatpush1.bf16.msra.mxu0 0
    %957 = vmatprep.subr.bf16.mxu0 0
    %958 = vmatpush1.bf16.msra.mxu0 0
    %959 = vmatprep.subr.bf16.mxu0 0
    %960 = vmatpush1.bf16.msra.mxu0 0
    %961 = vmatprep.subr.bf16.mxu0 0
    %962 = vmatpush1.bf16.msra.mxu0 0
    %963 = vmatprep.subr.bf16.mxu0 0
    %964 = vmatpush1.bf16.msra.mxu0 0
    %965 = vmatprep.subr.bf16.mxu0 0
    %966 = vmatpush1.bf16.msra.mxu0 0
    %967 = vmatprep.subr.bf16.mxu0 0
    %968 = vmatpush1.bf16.msra.mxu0 %v931
    %969 = vmatprep.subr.bf16.mxu0 0
    %970 = vmatpush2.bf16.msra.mxu0 0
    %971 = vmatprep.subr.bf16.mxu0 0
    %972 = vmatpush2.bf16.msra.mxu0 0
    %973 = vmatprep.subr.bf16.mxu0 0
    %974 = vmatpush2.bf16.msra.mxu0 0
    %975 = vmatprep.subr.bf16.mxu0 0
    %976 = vmatpush2.bf16.msra.mxu0 0
    %977 = vmatprep.subr.bf16.mxu0 0
    %978 = vmatpush2.bf16.msra.mxu0 0
    %979 = vmatprep.subr.bf16.mxu0 0
    %980 = vmatpush2.bf16.msra.mxu0 0
    %981 = vmatprep.subr.bf16.mxu0 0
    %982 = vmatpush2.bf16.msra.mxu0 0
    %983 = vmatprep.subr.bf16.mxu0 0
    %984 = vmatpush2.bf16.msra.mxu0 0
    %985 = vmatprep.mubr.bf16.mxu0 0
    %986 = vmatmul.mubr.bf16.gmra.mxu0 %v933
    %v987 = vpop.f32.mrf.mxu0
    %v988 = vadd.f32 0.0, %v987
    %v989 = vpop.f32.mrf.mxu0
    %v990 = vpop.f32.mrf.mxu0
    %v991 = vadd.f32 0.0, %v990
    %v992 = vpop.f32.mrf.mxu0
    %993 = vmatprep.mubr.bf16.mxu0 0
    %994 = vmatmul.mubr.bf16.gmra.mxu0 %v936
    %v995 = vpop.f32.mrf.mxu0
    %v996 = vadd.f32 0.0, %v995
    %v997 = vpop.f32.mrf.mxu0
    %v998 = vpop.f32.mrf.mxu0
    %v999 = vadd.f32 0.0, %v998
    %v1000 = vpop.f32.mrf.mxu0
    %1001 = vmatprep.mubr.bf16.mxu0 0
    %1002 = vmatmul.mubr.bf16.gmra.mxu0 %v939
    %v1003 = vpop.f32.mrf.mxu0
    %v1004 = vadd.f32 0.0, %v1003
    %v1005 = vpop.f32.mrf.mxu0
    %v1006 = vpop.f32.mrf.mxu0
    %v1007 = vadd.f32 0.0, %v1006
    %v1008 = vpop.f32.mrf.mxu0
    %1009 = vmatprep.mubr.bf16.mxu0 0
    %1010 = vmatmul.mubr.bf16.gmra.mxu0 %v942
    %v1011 = vpop.f32.mrf.mxu0
    %v1012 = vadd.f32 0.0, %v1011
    %v1013 = vpop.f32.mrf.mxu0
    %v1014 = vpop.f32.mrf.mxu0
    %v1015 = vadd.f32 0.0, %v1014
    %v1016 = vpop.f32.mrf.mxu0
    %1017 = vmatprep.mubr.bf16.mxu0 0
    %1018 = vmatmul.mubr.bf16.gmra.mxu0 %v945
    %v1019 = vpop.f32.mrf.mxu0
    %v1020 = vadd.f32 0.0, %v1019
    %v1021 = vpop.f32.mrf.mxu0
    %v1022 = vpop.f32.mrf.mxu0
    %v1023 = vadd.f32 0.0, %v1022
    %v1024 = vpop.f32.mrf.mxu0
    %1025 = vmatprep.mubr.bf16.mxu0 0
    %1026 = vmatmul.mubr.bf16.gmra.mxu0 %v948
    %v1027 = vpop.f32.mrf.mxu0
    %v1028 = vadd.f32 0.0, %v1027
    %v1029 = vpop.f32.mrf.mxu0
    %v1030 = vpop.f32.mrf.mxu0
    %v1031 = vadd.f32 0.0, %v1030
    %v1032 = vpop.f32.mrf.mxu0
    %1033 = vmatprep.mubr.bf16.mxu0 0
    %1034 = vmatmul.mubr.bf16.gmra.mxu0 %v951
    %v1035 = vpop.f32.mrf.mxu0
    %v1036 = vadd.f32 0.0, %v1035
    %v1037 = vpop.f32.mrf.mxu0
    %v1038 = vpop.f32.mrf.mxu0
    %v1039 = vadd.f32 0.0, %v1038
    %v1040 = vpop.f32.mrf.mxu0
    %1041 = vdwg.mxu0
    %v1043 = vsel %vm312, %v916, 0
    %v1046 = vsel %vm312, %v917, 0
    %v1049 = vsel %vm312, %v918, 0
    %v1052 = vsel %vm312, %v919, 0
    %v1055 = vsel %vm312, %v920, 0
    %v1058 = vsel %vm312, %v921, 0
    %v1061 = vsel %vm312, %v922, 0
    %1063 = vmatprep.subr.bf16.mxu0 0
    %1064 = vmatpush1.bf16.msra.mxu0 0
    %1065 = vmatprep.subr.bf16.mxu0 0
    %1066 = vmatpush1.bf16.msra.mxu0 0
    %1067 = vmatprep.subr.bf16.mxu0 0
    %1068 = vmatpush1.bf16.msra.mxu0 0
    %1069 = vmatprep.subr.bf16.mxu0 0
    %1070 = vmatpush1.bf16.msra.mxu0 0
    %1071 = vmatprep.subr.bf16.mxu0 0
    %1072 = vmatpush1.bf16.msra.mxu0 0
    %1073 = vmatprep.subr.bf16.mxu0 0
    %1074 = vmatpush1.bf16.msra.mxu0 0
    %1075 = vmatprep.subr.bf16.mxu0 0
    %1076 = vmatpush1.bf16.msra.mxu0 0
    %1077 = vmatprep.subr.bf16.mxu0 0
    %1078 = vmatpush1.bf16.msra.mxu0 %v923
    %1079 = vmatprep.subr.bf16.mxu0 0
    %1080 = vmatpush2.bf16.msra.mxu0 0
    %1081 = vmatprep.subr.bf16.mxu0 0
    %1082 = vmatpush2.bf16.msra.mxu0 0
    %1083 = vmatprep.subr.bf16.mxu0 0
    %1084 = vmatpush2.bf16.msra.mxu0 0
    %1085 = vmatprep.subr.bf16.mxu0 0
    %1086 = vmatpush2.bf16.msra.mxu0 0
    %1087 = vmatprep.subr.bf16.mxu0 0
    %1088 = vmatpush2.bf16.msra.mxu0 0
    %1089 = vmatprep.subr.bf16.mxu0 0
    %1090 = vmatpush2.bf16.msra.mxu0 0
    %1091 = vmatprep.subr.bf16.mxu0 0
    %1092 = vmatpush2.bf16.msra.mxu0 0
    %1093 = vmatprep.subr.bf16.mxu0 0
    %1094 = vmatpush2.bf16.msra.mxu0 0
    %1095 = vmatprep.mubr.bf16.mxu0 0
    %1096 = vmatmul.mubr.bf16.gmra.mxu0 %v1043
    %v1097 = vpop.f32.mrf.mxu0
    %v1098 = vadd.f32 %v988, %v1097
    %v1099 = vpop.f32.mrf.mxu0
    %v1100 = vpop.f32.mrf.mxu0
    %v1101 = vadd.f32 %v991, %v1100
    %v1102 = vpop.f32.mrf.mxu0
    %1103 = vmatprep.mubr.bf16.mxu0 0
    %1104 = vmatmul.mubr.bf16.gmra.mxu0 %v1046
    %v1105 = vpop.f32.mrf.mxu0
    %v1106 = vadd.f32 %v996, %v1105
    %v1107 = vpop.f32.mrf.mxu0
    %v1108 = vpop.f32.mrf.mxu0
    %v1109 = vadd.f32 %v999, %v1108
    %v1110 = vpop.f32.mrf.mxu0
    %1111 = vmatprep.mubr.bf16.mxu0 0
    %1112 = vmatmul.mubr.bf16.gmra.mxu0 %v1049
    %v1113 = vpop.f32.mrf.mxu0
    %v1114 = vadd.f32 %v1004, %v1113
    %v1115 = vpop.f32.mrf.mxu0
    %v1116 = vpop.f32.mrf.mxu0
    %v1117 = vadd.f32 %v1007, %v1116
    %v1118 = vpop.f32.mrf.mxu0
    %1119 = vmatprep.mubr.bf16.mxu0 0
    %1120 = vmatmul.mubr.bf16.gmra.mxu0 %v1052
    %v1121 = vpop.f32.mrf.mxu0
    %v1122 = vadd.f32 %v1012, %v1121
    %v1123 = vpop.f32.mrf.mxu0
    %v1124 = vpop.f32.mrf.mxu0
    %v1125 = vadd.f32 %v1015, %v1124
    %v1126 = vpop.f32.mrf.mxu0
    %1127 = vmatprep.mubr.bf16.mxu0 0
    %1128 = vmatmul.mubr.bf16.gmra.mxu0 %v1055
    %v1129 = vpop.f32.mrf.mxu0
    %v1130 = vadd.f32 %v1020, %v1129
    %v1131 = vpop.f32.mrf.mxu0
    %v1132 = vpop.f32.mrf.mxu0
    %v1133 = vadd.f32 %v1023, %v1132
    %v1134 = vpop.f32.mrf.mxu0
    %1135 = vmatprep.mubr.bf16.mxu0 0
    %1136 = vmatmul.mubr.bf16.gmra.mxu0 %v1058
    %v1137 = vpop.f32.mrf.mxu0
    %v1138 = vadd.f32 %v1028, %v1137
    %v1139 = vpop.f32.mrf.mxu0
    %v1140 = vpop.f32.mrf.mxu0
    %v1141 = vadd.f32 %v1031, %v1140
    %v1142 = vpop.f32.mrf.mxu0
    %1143 = vmatprep.mubr.bf16.mxu0 0
    %1144 = vmatmul.mubr.bf16.gmra.mxu0 %v1061
    %v1145 = vpop.f32.mrf.mxu0
    %v1146 = vadd.f32 %v1036, %v1145
    %v1147 = vpop.f32.mrf.mxu0
    %v1148 = vpop.f32.mrf.mxu0
    %v1149 = vadd.f32 %v1039, %v1148
    %v1150 = vpop.f32.mrf.mxu0
    %1151 = vdwg.mxu0
    %v1152 = vld [vmem:[%s25] sm:$0x1]
    %v1154 = vlaneseq
    %v1155 = vshrl.u32 %v1154, 7
    %v1156 = vsub.s32 0, %v1155
    %v1157 = vrot.slane %v1152, %v1156
    %v1159 = vmul.f32 %v698, %v1157
    %v1160 = vmul.f32 %v701, %v1157
    %v1161 = vmul.f32 %v704, %v1157
    %v1162 = vmul.f32 %v707, %v1157
    %v1163 = vmul.f32 %v710, %v1157
    %v1164 = vmul.f32 %v713, %v1157
    %v1165 = vmul.f32 %v716, %v1157
    %v1166 = vmul.f32 %v719, %v1157
    %v1167 = vmul.f32 %v722, %v1157
    %v1168 = vmul.f32 %v725, %v1157
    %v1169 = vmul.f32 %v728, %v1157
    %v1170 = vmul.f32 %v731, %v1157
    %v1171 = vmul.f32 %v734, %v1157
    %v1172 = vmul.f32 %v737, %v1157
    %v1173 = vadd.f32 %v1098, %v1159
    %v1174 = vadd.f32 %v1101, %v1160
    %v1175 = vadd.f32 %v1106, %v1161
    %v1176 = vadd.f32 %v1109, %v1162
    %v1177 = vadd.f32 %v1114, %v1163
    %v1178 = vadd.f32 %v1117, %v1164
    %v1179 = vadd.f32 %v1122, %v1165
    %v1180 = vadd.f32 %v1125, %v1166
    %v1181 = vadd.f32 %v1130, %v1167
    %v1182 = vadd.f32 %v1133, %v1168
    %v1183 = vadd.f32 %v1138, %v1169
    %v1184 = vadd.f32 %v1141, %v1170
    %v1185 = vadd.f32 %v1146, %v1171
    %v1186 = vadd.f32 %v1149, %v1172
    %v1187 = vld [vmem:[%s27] sm:$0x3]
    %v1188 = vpack.c.bf16 %v297, %v296
    %v1189 = vpack.c.bf16 %v299, %v298
    %v1190 = vpack.c.bf16 %v301, %v300
    %v1191 = vpack.c.bf16 %v303, %v302
    %v1192 = vpack.c.bf16 %v305, %v304
    %v1193 = vpack.c.bf16 %v307, %v306
    %v1194 = vpack.c.bf16 %v309, %v308
    %vm1195 = vcmask 31744
    %v1197 = vsel %vm1195, %v1188, 0
    %v1200 = vsel %vm1195, %v1189, 0
    %v1203 = vsel %vm1195, %v1190, 0
    %v1206 = vsel %vm1195, %v1191, 0
    %v1209 = vsel %vm1195, %v1192, 0
    %v1212 = vsel %vm1195, %v1193, 0
    %v1215 = vsel %vm1195, %v1194, 0
    %vm1217 = vcmask 1041408
    %v1219 = vsel %vm1217, %v1187, 0
    %1221 = vmatprep.subr.bf16.mxu0 0
    %1222 = vmatpush1.bf16.msra.mxu0 0
    %1223 = vmatprep.subr.bf16.mxu0 0
    %1224 = vmatpush1.bf16.msra.mxu0 0
    %1225 = vmatprep.subr.bf16.mxu0 0
    %1226 = vmatpush1.bf16.msra.mxu0 0
    %1227 = vmatprep.subr.bf16.mxu0 0
    %1228 = vmatpush1.bf16.msra.mxu0 0
    %1229 = vmatprep.subr.bf16.mxu0 0
    %1230 = vmatpush1.bf16.msra.mxu0 0
    %1231 = vmatprep.subr.bf16.mxu0 0
    %1232 = vmatpush1.bf16.msra.mxu0 0
    %1233 = vmatprep.subr.bf16.mxu0 0
    %1234 = vmatpush1.bf16.msra.mxu0 0
    %1235 = vmatprep.subr.bf16.mxu0 0
    %1236 = vmatpush1.bf16.msra.mxu0 %v1219
    %1237 = vmatprep.subr.bf16.mxu0 0
    %1238 = vmatpush2.bf16.msra.mxu0 0
    %1239 = vmatprep.subr.bf16.mxu0 0
    %1240 = vmatpush2.bf16.msra.mxu0 0
    %1241 = vmatprep.subr.bf16.mxu0 0
    %1242 = vmatpush2.bf16.msra.mxu0 0
    %1243 = vmatprep.subr.bf16.mxu0 0
    %1244 = vmatpush2.bf16.msra.mxu0 0
    %1245 = vmatprep.subr.bf16.mxu0 0
    %1246 = vmatpush2.bf16.msra.mxu0 0
    %1247 = vmatprep.subr.bf16.mxu0 0
    %1248 = vmatpush2.bf16.msra.mxu0 0
    %1249 = vmatprep.subr.bf16.mxu0 0
    %1250 = vmatpush2.bf16.msra.mxu0 0
    %1251 = vmatprep.subr.bf16.mxu0 0
    %1252 = vmatpush2.bf16.msra.mxu0 0
    %1253 = vmatprep.mubr.bf16.mxu0 0
    %1254 = vmatmul.mubr.bf16.gmra.mxu0 %v1197
    %v1255 = vpop.f32.mrf.mxu0
    %v1256 = vadd.f32 0.0, %v1255
    %v1257 = vpop.f32.mrf.mxu0
    %v1258 = vpop.f32.mrf.mxu0
    %v1259 = vadd.f32 0.0, %v1258
    %v1260 = vpop.f32.mrf.mxu0
    %1261 = vmatprep.mubr.bf16.mxu0 0
    %1262 = vmatmul.mubr.bf16.gmra.mxu0 %v1200
    %v1263 = vpop.f32.mrf.mxu0
    %v1264 = vadd.f32 0.0, %v1263
    %v1265 = vpop.f32.mrf.mxu0
    %v1266 = vpop.f32.mrf.mxu0
    %v1267 = vadd.f32 0.0, %v1266
    %v1268 = vpop.f32.mrf.mxu0
    %1269 = vmatprep.mubr.bf16.mxu0 0
    %1270 = vmatmul.mubr.bf16.gmra.mxu0 %v1203
    %v1271 = vpop.f32.mrf.mxu0
    %v1272 = vadd.f32 0.0, %v1271
    %v1273 = vpop.f32.mrf.mxu0
    %v1274 = vpop.f32.mrf.mxu0
    %v1275 = vadd.f32 0.0, %v1274
    %v1276 = vpop.f32.mrf.mxu0
    %1277 = vmatprep.mubr.bf16.mxu0 0
    %1278 = vmatmul.mubr.bf16.gmra.mxu0 %v1206
    %v1279 = vpop.f32.mrf.mxu0
    %v1280 = vadd.f32 0.0, %v1279
    %v1281 = vpop.f32.mrf.mxu0
    %v1282 = vpop.f32.mrf.mxu0
    %v1283 = vadd.f32 0.0, %v1282
    %v1284 = vpop.f32.mrf.mxu0
    %1285 = vmatprep.mubr.bf16.mxu0 0
    %1286 = vmatmul.mubr.bf16.gmra.mxu0 %v1209
    %v1287 = vpop.f32.mrf.mxu0
    %v1288 = vadd.f32 0.0, %v1287
    %v1289 = vpop.f32.mrf.mxu0
    %v1290 = vpop.f32.mrf.mxu0
    %v1291 = vadd.f32 0.0, %v1290
    %v1292 = vpop.f32.mrf.mxu0
    %1293 = vmatprep.mubr.bf16.mxu0 0
    %1294 = vmatmul.mubr.bf16.gmra.mxu0 %v1212
    %v1295 = vpop.f32.mrf.mxu0
    %v1296 = vadd.f32 0.0, %v1295
    %v1297 = vpop.f32.mrf.mxu0
    %v1298 = vpop.f32.mrf.mxu0
    %v1299 = vadd.f32 0.0, %v1298
    %v1300 = vpop.f32.mrf.mxu0
    %1301 = vmatprep.mubr.bf16.mxu0 0
    %1302 = vmatmul.mubr.bf16.gmra.mxu0 %v1215
    %v1303 = vpop.f32.mrf.mxu0
    %v1304 = vadd.f32 0.0, %v1303
    %v1305 = vpop.f32.mrf.mxu0
    %v1306 = vpop.f32.mrf.mxu0
    %v1307 = vadd.f32 0.0, %v1306
    %v1308 = vpop.f32.mrf.mxu0
    %1309 = vdwg.mxu0
    %v1310 = vadd.f32 %v1173, %v1256
    %v1311 = vadd.f32 %v1174, %v1259
    %v1312 = vadd.f32 %v1175, %v1264
    %v1313 = vadd.f32 %v1176, %v1267
    %v1314 = vadd.f32 %v1177, %v1272
    %v1315 = vadd.f32 %v1178, %v1275
    %v1316 = vadd.f32 %v1179, %v1280
    %v1317 = vadd.f32 %v1180, %v1283
    %v1318 = vadd.f32 %v1181, %v1288
    %v1319 = vadd.f32 %v1182, %v1291
    %v1320 = vadd.f32 %v1183, %v1296
    %v1321 = vadd.f32 %v1184, %v1299
    %v1322 = vadd.f32 %v1185, %v1304
    %v1323 = vadd.f32 %v1186, %v1307
    %v1324 = vld [vmem:[#allocation5] sm:$0x1]
    %v1326 = vlaneseq
    %v1327 = vshrl.u32 %v1326, 7
    %v1328 = vsub.s32 0, %v1327
    %v1329 = vrot.slane %v1324, %v1328
    %v1331 = vadd.f32 %v1310, %v1329
    %v1332 = vadd.f32 %v1311, %v1329
    %v1333 = vadd.f32 %v1312, %v1329
    %v1334 = vadd.f32 %v1313, %v1329
    %v1335 = vadd.f32 %v1314, %v1329
    %v1336 = vadd.f32 %v1315, %v1329
    %v1337 = vadd.f32 %v1316, %v1329
    %v1338 = vadd.f32 %v1317, %v1329
    %v1339 = vadd.f32 %v1318, %v1329
    %v1340 = vadd.f32 %v1319, %v1329
    %v1341 = vadd.f32 %v1320, %v1329
    %v1342 = vadd.f32 %v1321, %v1329
    %v1343 = vadd.f32 %v1322, %v1329
    %v1344 = vadd.f32 %v1323, %v1329
    %v1345 = vxor.u32 %v1331, 2147483648
    %v1346 = vxor.u32 %v1332, 2147483648
    %v1347 = vxor.u32 %v1333, 2147483648
    %v1348 = vxor.u32 %v1334, 2147483648
    %v1349 = vxor.u32 %v1335, 2147483648
    %v1350 = vxor.u32 %v1336, 2147483648
    %v1351 = vxor.u32 %v1337, 2147483648
    %v1352 = vxor.u32 %v1338, 2147483648
    %v1353 = vxor.u32 %v1339, 2147483648
    %v1354 = vxor.u32 %v1340, 2147483648
    %v1355 = vxor.u32 %v1341, 2147483648
    %v1356 = vxor.u32 %v1342, 2147483648
    %v1357 = vxor.u32 %v1343, 2147483648
    %v1358 = vxor.u32 %v1344, 2147483648
    %v1359 = vmul.f32 %v1345, 1.442695
    %v1360 = vpow.pop %v1359
    %v1361 = vmul.f32 %v1346, 1.442695
    %v1362 = vpow.pop %v1361
    %v1363 = vmul.f32 %v1347, 1.442695
    %v1364 = vpow.pop %v1363
    %v1365 = vmul.f32 %v1348, 1.442695
    %v1366 = vpow.pop %v1365
    %v1367 = vmul.f32 %v1349, 1.442695
    %v1368 = vpow.pop %v1367
    %v1369 = vmul.f32 %v1350, 1.442695
    %v1370 = vpow.pop %v1369
    %v1371 = vmul.f32 %v1351, 1.442695
    %v1372 = vpow.pop %v1371
    %v1373 = vmul.f32 %v1352, 1.442695
    %v1374 = vpow.pop %v1373
    %v1375 = vmul.f32 %v1353, 1.442695
    %v1376 = vpow.pop %v1375
    %v1377 = vmul.f32 %v1354, 1.442695
    %v1378 = vpow.pop %v1377
    %v1379 = vmul.f32 %v1355, 1.442695
    %v1380 = vpow.pop %v1379
    %v1381 = vmul.f32 %v1356, 1.442695
    %v1382 = vpow.pop %v1381
    %v1383 = vmul.f32 %v1357, 1.442695
    %v1384 = vpow.pop %v1383
    %v1385 = vmul.f32 %v1358, 1.442695
    %v1386 = vpow.pop %v1385
    %v1387 = vadd.f32 %v1360, 1.0
    %v1388 = vadd.f32 %v1362, 1.0
    %v1389 = vadd.f32 %v1364, 1.0
    %v1390 = vadd.f32 %v1366, 1.0
    %v1391 = vadd.f32 %v1368, 1.0
    %v1392 = vadd.f32 %v1370, 1.0
    %v1393 = vadd.f32 %v1372, 1.0
    %v1394 = vadd.f32 %v1374, 1.0
    %v1395 = vadd.f32 %v1376, 1.0
    %v1396 = vadd.f32 %v1378, 1.0
    %v1397 = vadd.f32 %v1380, 1.0
    %v1398 = vadd.f32 %v1382, 1.0
    %v1399 = vadd.f32 %v1384, 1.0
    %v1400 = vadd.f32 %v1386, 1.0
    %v1401 = vrcp.pop %v1387
    %v1402 = vmul.f32 1.0, %v1401
    %v1403 = vrcp.pop %v1388
    %v1404 = vmul.f32 1.0, %v1403
    %v1405 = vrcp.pop %v1389
    %v1406 = vmul.f32 1.0, %v1405
    %v1407 = vrcp.pop %v1390
    %v1408 = vmul.f32 1.0, %v1407
    %v1409 = vrcp.pop %v1391
    %v1410 = vmul.f32 1.0, %v1409
    %v1411 = vrcp.pop %v1392
    %v1412 = vmul.f32 1.0, %v1411
    %v1413 = vrcp.pop %v1393
    %v1414 = vmul.f32 1.0, %v1413
    %v1415 = vrcp.pop %v1394
    %v1416 = vmul.f32 1.0, %v1415
    %v1417 = vrcp.pop %v1395
    %v1418 = vmul.f32 1.0, %v1417
    %v1419 = vrcp.pop %v1396
    %v1420 = vmul.f32 1.0, %v1419
    %v1421 = vrcp.pop %v1397
    %v1422 = vmul.f32 1.0, %v1421
    %v1423 = vrcp.pop %v1398
    %v1424 = vmul.f32 1.0, %v1423
    %v1425 = vrcp.pop %v1399
    %v1426 = vmul.f32 1.0, %v1425
    %v1427 = vrcp.pop %v1400
    %v1428 = vmul.f32 1.0, %v1427
    %v1429 = vmul.f32 %v1331, %v1402
    %v1430 = vmul.f32 %v1332, %v1404
    %v1431 = vmul.f32 %v1333, %v1406
    %v1432 = vmul.f32 %v1334, %v1408
    %v1433 = vmul.f32 %v1335, %v1410
    %v1434 = vmul.f32 %v1336, %v1412
    %v1435 = vmul.f32 %v1337, %v1414
    %v1436 = vmul.f32 %v1338, %v1416
    %v1437 = vmul.f32 %v1339, %v1418
    %v1438 = vmul.f32 %v1340, %v1420
    %v1439 = vmul.f32 %v1341, %v1422
    %v1440 = vmul.f32 %v1342, %v1424
    %v1441 = vmul.f32 %v1343, %v1426
    %v1442 = vmul.f32 %v1344, %v1428
    %v1443 = vld [vmem:[%s31] sm:$0xf]
    %v1444 = vld [vmem:[%s31 + $0x4] sm:$0xf]
    %v1445 = vld [vmem:[%s31 + $0x8] sm:$0xf]
    %v1446 = vld [vmem:[%s31 + $0xc] sm:$0xf]
    %v1447 = vpack.c.bf16 %v1430, %v1429
    %v1448 = vpack.c.bf16 %v1432, %v1431
    %v1449 = vpack.c.bf16 %v1434, %v1433
    %v1450 = vpack.c.bf16 %v1436, %v1435
    %v1451 = vpack.c.bf16 %v1438, %v1437
    %v1452 = vpack.c.bf16 %v1440, %v1439
    %v1453 = vpack.c.bf16 %v1442, %v1441
    %v1454 = vld [vmem:[#allocation7] sm:$0x1]
    %v1456 = vlaneseq
    %v1457 = vshrl.u32 %v1456, 7
    %v1458 = vsub.s32 0, %v1457
    %v1459 = vrot.slane %v1454, %v1458
    %v1465 = vunpack.c.l.b16 %v1443
    %v1466 = vunpack.c.l.b16 %v1444
    %v1467 = vunpack.c.l.b16 %v1445
    %v1468 = vunpack.c.l.b16 %v1446
    %v1469 = vpack.c.b16 %v1466, %v1465
    %v1470 = vpack.c.b16 %v1468, %v1467
    %v1474 = vsel %vm814, %v1447, 0
    %v1477 = vsel %vm814, %v1448, 0
    %v1480 = vsel %vm814, %v1449, 0
    %v1483 = vsel %vm814, %v1450, 0
    %v1486 = vsel %vm814, %v1451, 0
    %v1489 = vsel %vm814, %v1452, 0
    %v1492 = vsel %vm814, %v1453, 0
    %1494 = vmatprep.subr.bf16.mxu0 0
    %1495 = vmatpush1.bf16.msra.mxu0 0
    %1496 = vmatprep.subr.bf16.mxu0 0
    %1497 = vmatpush1.bf16.msra.mxu0 0
    %1498 = vmatprep.subr.bf16.mxu0 0
    %1499 = vmatpush1.bf16.msra.mxu0 0
    %1500 = vmatprep.subr.bf16.mxu0 0
    %1501 = vmatpush1.bf16.msra.mxu0 0
    %1502 = vmatprep.subr.bf16.mxu0 0
    %1503 = vmatpush1.bf16.msra.mxu0 0
    %1504 = vmatprep.subr.bf16.mxu0 0
    %1505 = vmatpush1.bf16.msra.mxu0 0
    %1506 = vmatprep.subr.bf16.mxu0 0
    %1507 = vmatpush1.bf16.msra.mxu0 %v1470
    %1508 = vmatprep.subr.bf16.mxu0 0
    %1509 = vmatpush1.bf16.msra.mxu0 %v1469
    %1510 = vmatprep.subr.bf16.mxu0 0
    %1511 = vmatpush2.bf16.msra.mxu0 0
    %1512 = vmatprep.subr.bf16.mxu0 0
    %1513 = vmatpush2.bf16.msra.mxu0 0
    %1514 = vmatprep.subr.bf16.mxu0 0
    %1515 = vmatpush2.bf16.msra.mxu0 0
    %1516 = vmatprep.subr.bf16.mxu0 0
    %1517 = vmatpush2.bf16.msra.mxu0 0
    %1518 = vmatprep.subr.bf16.mxu0 0
    %1519 = vmatpush2.bf16.msra.mxu0 0
    %1520 = vmatprep.subr.bf16.mxu0 0
    %1521 = vmatpush2.bf16.msra.mxu0 0
    %1522 = vmatprep.subr.bf16.mxu0 0
    %1523 = vmatpush2.bf16.msra.mxu0 0
    %1524 = vmatprep.subr.bf16.mxu0 0
    %1525 = vmatpush2.bf16.msra.mxu0 0
    %1526 = vmatprep.mubr.bf16.mxu0 0
    %1527 = vmatmul.mubr.bf16.gmra.mxu0 %v1474
    %v1528 = vpop.f32.mrf.mxu0
    %v1529 = vadd.f32 %v1459, %v1528
    %v1530 = vpop.f32.mrf.mxu0
    %v1531 = vpop.f32.mrf.mxu0
    %v1532 = vadd.f32 %v1459, %v1531
    %v1533 = vpop.f32.mrf.mxu0
    %1534 = vmatprep.mubr.bf16.mxu0 0
    %1535 = vmatmul.mubr.bf16.gmra.mxu0 %v1477
    %v1536 = vpop.f32.mrf.mxu0
    %v1537 = vadd.f32 %v1459, %v1536
    %v1538 = vpop.f32.mrf.mxu0
    %v1539 = vpop.f32.mrf.mxu0
    %v1540 = vadd.f32 %v1459, %v1539
    %v1541 = vpop.f32.mrf.mxu0
    %1542 = vmatprep.mubr.bf16.mxu0 0
    %1543 = vmatmul.mubr.bf16.gmra.mxu0 %v1480
    %v1544 = vpop.f32.mrf.mxu0
    %v1545 = vadd.f32 %v1459, %v1544
    %v1546 = vpop.f32.mrf.mxu0
    %v1547 = vpop.f32.mrf.mxu0
    %v1548 = vadd.f32 %v1459, %v1547
    %v1549 = vpop.f32.mrf.mxu0
    %1550 = vmatprep.mubr.bf16.mxu0 0
    %1551 = vmatmul.mubr.bf16.gmra.mxu0 %v1483
    %v1552 = vpop.f32.mrf.mxu0
    %v1553 = vadd.f32 %v1459, %v1552
    %v1554 = vpop.f32.mrf.mxu0
    %v1555 = vpop.f32.mrf.mxu0
    %v1556 = vadd.f32 %v1459, %v1555
    %v1557 = vpop.f32.mrf.mxu0
    %1558 = vmatprep.mubr.bf16.mxu0 0
    %1559 = vmatmul.mubr.bf16.gmra.mxu0 %v1486
    %v1560 = vpop.f32.mrf.mxu0
    %v1561 = vadd.f32 %v1459, %v1560
    %v1562 = vpop.f32.mrf.mxu0
    %v1563 = vpop.f32.mrf.mxu0
    %v1564 = vadd.f32 %v1459, %v1563
    %v1565 = vpop.f32.mrf.mxu0
    %1566 = vmatprep.mubr.bf16.mxu0 0
    %1567 = vmatmul.mubr.bf16.gmra.mxu0 %v1489
    %v1568 = vpop.f32.mrf.mxu0
    %v1569 = vadd.f32 %v1459, %v1568
    %v1570 = vpop.f32.mrf.mxu0
    %v1571 = vpop.f32.mrf.mxu0
    %v1572 = vadd.f32 %v1459, %v1571
    %v1573 = vpop.f32.mrf.mxu0
    %1574 = vmatprep.mubr.bf16.mxu0 0
    %1575 = vmatmul.mubr.bf16.gmra.mxu0 %v1492
    %v1576 = vpop.f32.mrf.mxu0
    %v1577 = vadd.f32 %v1459, %v1576
    %v1578 = vpop.f32.mrf.mxu0
    %v1579 = vpop.f32.mrf.mxu0
    %v1580 = vadd.f32 %v1459, %v1579
    %v1581 = vpop.f32.mrf.mxu0
    %1582 = vdwg.mxu0
    %v1583 = vxor.u32 %v1529, 2147483648
    %v1584 = vxor.u32 %v1532, 2147483648
    %v1585 = vxor.u32 %v1537, 2147483648
    %v1586 = vxor.u32 %v1540, 2147483648
    %v1587 = vxor.u32 %v1545, 2147483648
    %v1588 = vxor.u32 %v1548, 2147483648
    %v1589 = vxor.u32 %v1553, 2147483648
    %v1590 = vxor.u32 %v1556, 2147483648
    %v1591 = vxor.u32 %v1561, 2147483648
    %v1592 = vxor.u32 %v1564, 2147483648
    %v1593 = vxor.u32 %v1569, 2147483648
    %v1594 = vxor.u32 %v1572, 2147483648
    %v1595 = vxor.u32 %v1577, 2147483648
    %v1596 = vxor.u32 %v1580, 2147483648
    %v1597 = vmul.f32 %v1583, 1.442695
    %v1598 = vpow.pop %v1597
    %v1599 = vmul.f32 %v1584, 1.442695
    %v1600 = vpow.pop %v1599
    %v1601 = vmul.f32 %v1585, 1.442695
    %v1602 = vpow.pop %v1601
    %v1603 = vmul.f32 %v1586, 1.442695
    %v1604 = vpow.pop %v1603
    %v1605 = vmul.f32 %v1587, 1.442695
    %v1606 = vpow.pop %v1605
    %v1607 = vmul.f32 %v1588, 1.442695
    %v1608 = vpow.pop %v1607
    %v1609 = vmul.f32 %v1589, 1.442695
    %v1610 = vpow.pop %v1609
    %v1611 = vmul.f32 %v1590, 1.442695
    %v1612 = vpow.pop %v1611
    %v1613 = vmul.f32 %v1591, 1.442695
    %v1614 = vpow.pop %v1613
    %v1615 = vmul.f32 %v1592, 1.442695
    %v1616 = vpow.pop %v1615
    %v1617 = vmul.f32 %v1593, 1.442695
    %v1618 = vpow.pop %v1617
    %v1619 = vmul.f32 %v1594, 1.442695
    %v1620 = vpow.pop %v1619
    %v1621 = vmul.f32 %v1595, 1.442695
    %v1622 = vpow.pop %v1621
    %v1623 = vmul.f32 %v1596, 1.442695
    %v1624 = vpow.pop %v1623
    %v1625 = vadd.f32 %v1598, 1.0
    %v1626 = vadd.f32 %v1600, 1.0
    %v1627 = vadd.f32 %v1602, 1.0
    %v1628 = vadd.f32 %v1604, 1.0
    %v1629 = vadd.f32 %v1606, 1.0
    %v1630 = vadd.f32 %v1608, 1.0
    %v1631 = vadd.f32 %v1610, 1.0
    %v1632 = vadd.f32 %v1612, 1.0
    %v1633 = vadd.f32 %v1614, 1.0
    %v1634 = vadd.f32 %v1616, 1.0
    %v1635 = vadd.f32 %v1618, 1.0
    %v1636 = vadd.f32 %v1620, 1.0
    %v1637 = vadd.f32 %v1622, 1.0
    %v1638 = vadd.f32 %v1624, 1.0
    %v1639 = vrcp.pop %v1625
    %v1640 = vmul.f32 1.0, %v1639
    %v1641 = vrcp.pop %v1626
    %v1642 = vmul.f32 1.0, %v1641
    %v1643 = vrcp.pop %v1627
    %v1644 = vmul.f32 1.0, %v1643
    %v1645 = vrcp.pop %v1628
    %v1646 = vmul.f32 1.0, %v1645
    %v1647 = vrcp.pop %v1629
    %v1648 = vmul.f32 1.0, %v1647
    %v1649 = vrcp.pop %v1630
    %v1650 = vmul.f32 1.0, %v1649
    %v1651 = vrcp.pop %v1631
    %v1652 = vmul.f32 1.0, %v1651
    %v1653 = vrcp.pop %v1632
    %v1654 = vmul.f32 1.0, %v1653
    %v1655 = vrcp.pop %v1633
    %v1656 = vmul.f32 1.0, %v1655
    %v1657 = vrcp.pop %v1634
    %v1658 = vmul.f32 1.0, %v1657
    %v1659 = vrcp.pop %v1635
    %v1660 = vmul.f32 1.0, %v1659
    %v1661 = vrcp.pop %v1636
    %v1662 = vmul.f32 1.0, %v1661
    %v1663 = vrcp.pop %v1637
    %v1664 = vmul.f32 1.0, %v1663
    %v1665 = vrcp.pop %v1638
    %v1666 = vmul.f32 1.0, %v1665
    %v1667 = vmul.f32 %v1529, %v1640
    %v1668 = vmul.f32 %v1532, %v1642
    %v1669 = vmul.f32 %v1537, %v1644
    %v1670 = vmul.f32 %v1540, %v1646
    %v1671 = vmul.f32 %v1545, %v1648
    %v1672 = vmul.f32 %v1548, %v1650
    %v1673 = vmul.f32 %v1553, %v1652
    %v1674 = vmul.f32 %v1556, %v1654
    %v1675 = vmul.f32 %v1561, %v1656
    %v1676 = vmul.f32 %v1564, %v1658
    %v1677 = vmul.f32 %v1569, %v1660
    %v1678 = vmul.f32 %v1572, %v1662
    %v1679 = vmul.f32 %v1577, %v1664
    %v1680 = vmul.f32 %v1580, %v1666
    %v1681 = vpack.c.bf16 %v293, %v292
    %v1682 = vpack.c.bf16 %v1668, %v1667
    %v1683 = vpack.c.bf16 %v1670, %v1669
    %v1684 = vpack.c.bf16 %v1672, %v1671
    %v1685 = vpack.c.bf16 %v1674, %v1673
    %v1686 = vpack.c.bf16 %v1676, %v1675
    %v1687 = vpack.c.bf16 %v1678, %v1677
    %v1688 = vpack.c.bf16 %v1680, %v1679
    %vm1689 = vcmask 916480
    %v1691 = vsel %vm1689, %v1681, 0
    %1693 = vmatprep.subr.bf16.mxu0 0
    %1694 = vmatpush1.bf16.msra.mxu0 0
    %1695 = vmatprep.subr.bf16.mxu0 0
    %1696 = vmatpush1.bf16.msra.mxu0 %v1688
    %1697 = vmatprep.subr.bf16.mxu0 0
    %1698 = vmatpush1.bf16.msra.mxu0 %v1687
    %1699 = vmatprep.subr.bf16.mxu0 0
    %1700 = vmatpush1.bf16.msra.mxu0 %v1686
    %1701 = vmatprep.subr.bf16.mxu0 0
    %1702 = vmatpush1.bf16.msra.mxu0 %v1685
    %1703 = vmatprep.subr.bf16.mxu0 0
    %1704 = vmatpush1.bf16.msra.mxu0 %v1684
    %1705 = vmatprep.subr.bf16.mxu0 0
    %1706 = vmatpush1.bf16.msra.mxu0 %v1683
    %1707 = vmatprep.subr.bf16.mxu0 0
    %1708 = vmatpush1.bf16.msra.mxu0 %v1682
    %1709 = vmatprep.subr.bf16.mxu0 0
    %1710 = vmatpush2.bf16.msra.mxu0 0
    %1711 = vmatprep.subr.bf16.mxu0 0
    %1712 = vmatpush2.bf16.msra.mxu0 0
    %1713 = vmatprep.subr.bf16.mxu0 0
    %1714 = vmatpush2.bf16.msra.mxu0 0
    %1715 = vmatprep.subr.bf16.mxu0 0
    %1716 = vmatpush2.bf16.msra.mxu0 0
    %1717 = vmatprep.subr.bf16.mxu0 0
    %1718 = vmatpush2.bf16.msra.mxu0 0
    %1719 = vmatprep.subr.bf16.mxu0 0
    %1720 = vmatpush2.bf16.msra.mxu0 0
    %1721 = vmatprep.subr.bf16.mxu0 0
    %1722 = vmatpush2.bf16.msra.mxu0 0
    %1723 = vmatprep.subr.bf16.mxu0 0
    %1724 = vmatpush2.bf16.msra.mxu0 0
    %1725 = vmatprep.mubr.bf16.mxu0 0
    %1726 = vmatmul.mubr.bf16.gmra.mxu0 %v1691
    %v1727 = vpop.f32.mrf.mxu0
    %v1728 = vadd.f32 0.0, %v1727
    %v1729 = vpop.f32.mrf.mxu0
    %v1730 = vpop.f32.mrf.mxu0
    %v1731 = vadd.f32 0.0, %v1730
    %v1732 = vpop.f32.mrf.mxu0
    %1733 = vdwg.mxu0
    %v1734 = vld [vmem:[%s35] sm:$0xf]
    %v1735 = vld [vmem:[%s35 + $0x4] sm:$0xf]
    %v1736 = vld [vmem:[%s35 + $0x8] sm:$0xf]
    %v1737 = vld [vmem:[%s35 + $0xc] sm:$0xf]
    %v1738 = vld [vmem:[%s37] sm:$0xf]
    %v1739 = vld [vmem:[%s37 + $0x4] sm:$0xf]
    %v1740 = vld [vmem:[%s37 + $0x8] sm:$0xf]
    %v1741 = vld [vmem:[%s37 + $0xc] sm:$0xf]
    %v1742 = vpack.c.bf16 %v1731, %v1728
    %v1747 = vunpack.c.l.b16 %v1738
    %v1748 = vunpack.c.l.b16 %v1739
    %v1749 = vunpack.c.l.b16 %v1740
    %v1750 = vunpack.c.l.b16 %v1741
    %v1751 = vpack.c.b16 %v1748, %v1747
    %v1752 = vpack.c.b16 %v1750, %v1749
    %v1756 = vsel %vm814, %v1742, 0
    %1758 = vmatprep.subr.bf16.mxu0 0
    %1759 = vmatpush1.bf16.msra.mxu0 0
    %1760 = vmatprep.subr.bf16.mxu0 0
    %1761 = vmatpush1.bf16.msra.mxu0 0
    %1762 = vmatprep.subr.bf16.mxu0 0
    %1763 = vmatpush1.bf16.msra.mxu0 0
    %1764 = vmatprep.subr.bf16.mxu0 0
    %1765 = vmatpush1.bf16.msra.mxu0 0
    %1766 = vmatprep.subr.bf16.mxu0 0
    %1767 = vmatpush1.bf16.msra.mxu0 0
    %1768 = vmatprep.subr.bf16.mxu0 0
    %1769 = vmatpush1.bf16.msra.mxu0 0
    %1770 = vmatprep.subr.bf16.mxu0 0
    %1771 = vmatpush1.bf16.msra.mxu0 %v1752
    %1772 = vmatprep.subr.bf16.mxu0 0
    %1773 = vmatpush1.bf16.msra.mxu0 %v1751
    %1774 = vmatprep.subr.bf16.mxu0 0
    %1775 = vmatpush2.bf16.msra.mxu0 0
    %1776 = vmatprep.subr.bf16.mxu0 0
    %1777 = vmatpush2.bf16.msra.mxu0 0
    %1778 = vmatprep.subr.bf16.mxu0 0
    %1779 = vmatpush2.bf16.msra.mxu0 0
    %1780 = vmatprep.subr.bf16.mxu0 0
    %1781 = vmatpush2.bf16.msra.mxu0 0
    %1782 = vmatprep.subr.bf16.mxu0 0
    %1783 = vmatpush2.bf16.msra.mxu0 0
    %1784 = vmatprep.subr.bf16.mxu0 0
    %1785 = vmatpush2.bf16.msra.mxu0 0
    %1786 = vmatprep.subr.bf16.mxu0 0
    %1787 = vmatpush2.bf16.msra.mxu0 0
    %1788 = vmatprep.subr.bf16.mxu0 0
    %1789 = vmatpush2.bf16.msra.mxu0 0
    %1790 = vmatprep.mubr.bf16.mxu0 0
    %1791 = vmatmul.mubr.bf16.gmra.mxu0 %v1756
    %v1792 = vpop.f32.mrf.mxu0
    %v1793 = vadd.f32 0.0, %v1792
    %v1794 = vpop.f32.mrf.mxu0
    %v1795 = vpop.f32.mrf.mxu0
    %v1796 = vadd.f32 0.0, %v1795
    %v1797 = vpop.f32.mrf.mxu0
    %1798 = vdwg.mxu0
    %v1803 = vunpack.c.l.b16 %v1734
    %v1804 = vunpack.c.l.b16 %v1735
    %v1805 = vunpack.c.l.b16 %v1736
    %v1806 = vunpack.c.l.b16 %v1737
    %v1807 = vpack.c.b16 %v1804, %v1803
    %v1808 = vpack.c.b16 %v1806, %v1805
    %1811 = vmatprep.subr.bf16.mxu0 0
    %1812 = vmatpush1.bf16.msra.mxu0 0
    %1813 = vmatprep.subr.bf16.mxu0 0
    %1814 = vmatpush1.bf16.msra.mxu0 0
    %1815 = vmatprep.subr.bf16.mxu0 0
    %1816 = vmatpush1.bf16.msra.mxu0 0
    %1817 = vmatprep.subr.bf16.mxu0 0
    %1818 = vmatpush1.bf16.msra.mxu0 0
    %1819 = vmatprep.subr.bf16.mxu0 0
    %1820 = vmatpush1.bf16.msra.mxu0 0
    %1821 = vmatprep.subr.bf16.mxu0 0
    %1822 = vmatpush1.bf16.msra.mxu0 0
    %1823 = vmatprep.subr.bf16.mxu0 0
    %1824 = vmatpush1.bf16.msra.mxu0 %v1808
    %1825 = vmatprep.subr.bf16.mxu0 0
    %1826 = vmatpush1.bf16.msra.mxu0 %v1807
    %1827 = vmatprep.subr.bf16.mxu0 0
    %1828 = vmatpush2.bf16.msra.mxu0 0
    %1829 = vmatprep.subr.bf16.mxu0 0
    %1830 = vmatpush2.bf16.msra.mxu0 0
    %1831 = vmatprep.subr.bf16.mxu0 0
    %1832 = vmatpush2.bf16.msra.mxu0 0
    %1833 = vmatprep.subr.bf16.mxu0 0
    %1834 = vmatpush2.bf16.msra.mxu0 0
    %1835 = vmatprep.subr.bf16.mxu0 0
    %1836 = vmatpush2.bf16.msra.mxu0 0
    %1837 = vmatprep.subr.bf16.mxu0 0
    %1838 = vmatpush2.bf16.msra.mxu0 0
    %1839 = vmatprep.subr.bf16.mxu0 0
    %1840 = vmatpush2.bf16.msra.mxu0 0
    %1841 = vmatprep.subr.bf16.mxu0 0
    %1842 = vmatpush2.bf16.msra.mxu0 0
    %1843 = vmatprep.mubr.bf16.mxu0 0
    %1844 = vmatmul.mubr.bf16.gmra.mxu0 %v816
    %v1845 = vpop.f32.mrf.mxu0
    %v1846 = vadd.f32 %v1793, %v1845
    %v1847 = vpop.f32.mrf.mxu0
    %v1848 = vpop.f32.mrf.mxu0
    %v1849 = vadd.f32 %v1796, %v1848
    %v1850 = vpop.f32.mrf.mxu0
    %1851 = vdwg.mxu0
    %v1852 = vld [vmem:[#allocation8] sm:$0x1]
    %v1854 = vlaneseq
    %v1855 = vshrl.u32 %v1854, 7
    %v1856 = vsub.s32 0, %v1855
    %v1857 = vrot.slane %v1852, %v1856
    %v1859 = vadd.f32 %v1846, %v1857
    %v1860 = vadd.f32 %v1849, %v1857
    %v1861 = vxor.u32 %v1859, 2147483648
    %v1862 = vxor.u32 %v1860, 2147483648
    %v1863 = vmul.f32 %v1861, 1.442695
    %v1864 = vpow.pop %v1863
    %v1865 = vmul.f32 %v1862, 1.442695
    %v1866 = vpow.pop %v1865
    %v1867 = vadd.f32 %v1864, 1.0
    %v1868 = vadd.f32 %v1866, 1.0
    %v1869 = vrcp.pop %v1867
    %v1870 = vmul.f32 1.0, %v1869
    %v1871 = vrcp.pop %v1868
    %v1872 = vmul.f32 1.0, %v1871
    %v1873 = vmul.f32 %v1859, %v1870
    %v1874 = vmul.f32 %v1860, %v1872
    %v1875 = vld [vmem:[%s41] sm:$0xf]
    %v1876 = vld [vmem:[%s41 + $0x4] sm:$0xf]
    %v1877 = vld [vmem:[%s41 + $0x8] sm:$0xf]
    %v1878 = vld [vmem:[%s41 + $0xc] sm:$0xf]
    %v1879 = vpack.c.bf16 %v1874, %v1873
    %v1884 = vunpack.c.l.b16 %v1875
    %v1885 = vunpack.c.l.b16 %v1876
    %v1886 = vunpack.c.l.b16 %v1877
    %v1887 = vunpack.c.l.b16 %v1878
    %v1888 = vpack.c.b16 %v1885, %v1884
    %v1889 = vpack.c.b16 %v1887, %v1886
    %v1893 = vsel %vm814, %v1879, 0
    %1895 = vmatprep.subr.bf16.mxu0 0
    %1896 = vmatpush1.bf16.msra.mxu0 0
    %1897 = vmatprep.subr.bf16.mxu0 0
    %1898 = vmatpush1.bf16.msra.mxu0 0
    %1899 = vmatprep.subr.bf16.mxu0 0
    %1900 = vmatpush1.bf16.msra.mxu0 0
    %1901 = vmatprep.subr.bf16.mxu0 0
    %1902 = vmatpush1.bf16.msra.mxu0 0
    %1903 = vmatprep.subr.bf16.mxu0 0
    %1904 = vmatpush1.bf16.msra.mxu0 0
    %1905 = vmatprep.subr.bf16.mxu0 0
    %1906 = vmatpush1.bf16.msra.mxu0 0
    %1907 = vmatprep.subr.bf16.mxu0 0
    %1908 = vmatpush1.bf16.msra.mxu0 %v1889
    %1909 = vmatprep.subr.bf16.mxu0 0
    %1910 = vmatpush1.bf16.msra.mxu0 %v1888
    %1911 = vmatprep.subr.bf16.mxu0 0
    %1912 = vmatpush2.bf16.msra.mxu0 0
    %1913 = vmatprep.subr.bf16.mxu0 0
    %1914 = vmatpush2.bf16.msra.mxu0 0
    %1915 = vmatprep.subr.bf16.mxu0 0
    %1916 = vmatpush2.bf16.msra.mxu0 0
    %1917 = vmatprep.subr.bf16.mxu0 0
    %1918 = vmatpush2.bf16.msra.mxu0 0
    %1919 = vmatprep.subr.bf16.mxu0 0
    %1920 = vmatpush2.bf16.msra.mxu0 0
    %1921 = vmatprep.subr.bf16.mxu0 0
    %1922 = vmatpush2.bf16.msra.mxu0 0
    %1923 = vmatprep.subr.bf16.mxu0 0
    %1924 = vmatpush2.bf16.msra.mxu0 0
    %1925 = vmatprep.subr.bf16.mxu0 0
    %1926 = vmatpush2.bf16.msra.mxu0 0
    %1927 = vmatprep.mubr.bf16.mxu0 0
    %1928 = vmatmul.mubr.bf16.gmra.mxu0 %v1893
    %v1929 = vpop.f32.mrf.mxu0
    %v1930 = vadd.f32 0.0, %v1929
    %v1931 = vpop.f32.mrf.mxu0
    %v1932 = vpop.f32.mrf.mxu0
    %v1933 = vadd.f32 0.0, %v1932
    %v1934 = vpop.f32.mrf.mxu0
    %1935 = vdwg.mxu0
    %v1936 = vadd.f32 %v791, %v1930
    %v1937 = vadd.f32 %v794, %v1933
    %v1938 = vld [vmem:[#allocation10] sm:$0x1]
    %v1940 = vlaneseq
    %v1941 = vshrl.u32 %v1940, 7
    %v1942 = vsub.s32 0, %v1941
    %v1943 = vrot.slane %v1938, %v1942
    %v1945 = vadd.f32 %v1936, %v1943
    %v1946 = vadd.f32 %v1937, %v1943
    %s1947 = scalar_lea.vmem %s21, 16
    %v1948 = vld [vmem:[%s1947] sm:$0xf]
    %v1949 = vld [vmem:[%s1947 + $0x4] sm:$0xf]
    %v1950 = vld [vmem:[%s1947 + $0x8] sm:$0xf]
    %v1951 = vld [vmem:[%s1947 + $0xc] sm:$0xf]
    %v1952 = vpack.c.bf16 %v1946, %v1945
    %v1957 = vunpack.c.l.b16 %v1948
    %v1958 = vunpack.c.l.b16 %v1949
    %v1959 = vunpack.c.l.b16 %v1950
    %v1960 = vunpack.c.l.b16 %v1951
    %v1961 = vpack.c.b16 %v1958, %v1957
    %v1962 = vpack.c.b16 %v1960, %v1959
    %v1966 = vsel %vm814, %v1952, 0
    %1968 = vmatprep.subr.bf16.mxu0 0
    %1969 = vmatpush1.bf16.msra.mxu0 0
    %1970 = vmatprep.subr.bf16.mxu0 0
    %1971 = vmatpush1.bf16.msra.mxu0 0
    %1972 = vmatprep.subr.bf16.mxu0 0
    %1973 = vmatpush1.bf16.msra.mxu0 0
    %1974 = vmatprep.subr.bf16.mxu0 0
    %1975 = vmatpush1.bf16.msra.mxu0 0
    %1976 = vmatprep.subr.bf16.mxu0 0
    %1977 = vmatpush1.bf16.msra.mxu0 0
    %1978 = vmatprep.subr.bf16.mxu0 0
    %1979 = vmatpush1.bf16.msra.mxu0 0
    %1980 = vmatprep.subr.bf16.mxu0 0
    %1981 = vmatpush1.bf16.msra.mxu0 %v1962
    %1982 = vmatprep.subr.bf16.mxu0 0
    %1983 = vmatpush1.bf16.msra.mxu0 %v1961
    %1984 = vmatprep.subr.bf16.mxu0 0
    %1985 = vmatpush2.bf16.msra.mxu0 0
    %1986 = vmatprep.subr.bf16.mxu0 0
    %1987 = vmatpush2.bf16.msra.mxu0 0
    %1988 = vmatprep.subr.bf16.mxu0 0
    %1989 = vmatpush2.bf16.msra.mxu0 0
    %1990 = vmatprep.subr.bf16.mxu0 0
    %1991 = vmatpush2.bf16.msra.mxu0 0
    %1992 = vmatprep.subr.bf16.mxu0 0
    %1993 = vmatpush2.bf16.msra.mxu0 0
    %1994 = vmatprep.subr.bf16.mxu0 0
    %1995 = vmatpush2.bf16.msra.mxu0 0
    %1996 = vmatprep.subr.bf16.mxu0 0
    %1997 = vmatpush2.bf16.msra.mxu0 0
    %1998 = vmatprep.subr.bf16.mxu0 0
    %1999 = vmatpush2.bf16.msra.mxu0 0
    %2000 = vmatprep.mubr.bf16.mxu0 0
    %2001 = vmatmul.mubr.bf16.gmra.mxu0 %v1966
    %v2002 = vpop.f32.mrf.mxu0
    %v2003 = vadd.f32 0.0, %v2002
    %v2004 = vpop.f32.mrf.mxu0
    %v2005 = vpop.f32.mrf.mxu0
    %v2006 = vadd.f32 0.0, %v2005
    %v2007 = vpop.f32.mrf.mxu0
    %2008 = vdwg.mxu0
    %s2009 = scalar_lea.vmem %s23, 16
    %v2010 = vld [vmem:[%s2009] sm:$0xf]
    %v2011 = vld [vmem:[%s2009 + $0x4] sm:$0xf]
    %v2012 = vld [vmem:[%s2009 + $0x8] sm:$0xf]
    %v2013 = vld [vmem:[%s2009 + $0xc] sm:$0xf]
    %v2018 = vunpack.c.l.b16 %v2010
    %v2019 = vunpack.c.l.b16 %v2011
    %v2020 = vunpack.c.l.b16 %v2012
    %v2021 = vunpack.c.l.b16 %v2013
    %v2022 = vpack.c.b16 %v2019, %v2018
    %v2023 = vpack.c.b16 %v2021, %v2020
    %2026 = vmatprep.subr.bf16.mxu0 0
    %2027 = vmatpush1.bf16.msra.mxu0 0
    %2028 = vmatprep.subr.bf16.mxu0 0
    %2029 = vmatpush1.bf16.msra.mxu0 0
    %2030 = vmatprep.subr.bf16.mxu0 0
    %2031 = vmatpush1.bf16.msra.mxu0 0
    %2032 = vmatprep.subr.bf16.mxu0 0
    %2033 = vmatpush1.bf16.msra.mxu0 0
    %2034 = vmatprep.subr.bf16.mxu0 0
    %2035 = vmatpush1.bf16.msra.mxu0 0
    %2036 = vmatprep.subr.bf16.mxu0 0
    %2037 = vmatpush1.bf16.msra.mxu0 0
    %2038 = vmatprep.subr.bf16.mxu0 0
    %2039 = vmatpush1.bf16.msra.mxu0 %v2023
    %2040 = vmatprep.subr.bf16.mxu0 0
    %2041 = vmatpush1.bf16.msra.mxu0 %v2022
    %2042 = vmatprep.subr.bf16.mxu0 0
    %2043 = vmatpush2.bf16.msra.mxu0 0
    %2044 = vmatprep.subr.bf16.mxu0 0
    %2045 = vmatpush2.bf16.msra.mxu0 0
    %2046 = vmatprep.subr.bf16.mxu0 0
    %2047 = vmatpush2.bf16.msra.mxu0 0
    %2048 = vmatprep.subr.bf16.mxu0 0
    %2049 = vmatpush2.bf16.msra.mxu0 0
    %2050 = vmatprep.subr.bf16.mxu0 0
    %2051 = vmatpush2.bf16.msra.mxu0 0
    %2052 = vmatprep.subr.bf16.mxu0 0
    %2053 = vmatpush2.bf16.msra.mxu0 0
    %2054 = vmatprep.subr.bf16.mxu0 0
    %2055 = vmatpush2.bf16.msra.mxu0 0
    %2056 = vmatprep.subr.bf16.mxu0 0
    %2057 = vmatpush2.bf16.msra.mxu0 0
    %2058 = vmatprep.mubr.bf16.mxu0 0
    %2059 = vmatmul.mubr.bf16.gmra.mxu0 %v1966
    %v2060 = vpop.f32.mrf.mxu0
    %v2061 = vadd.f32 0.0, %v2060
    %v2062 = vpop.f32.mrf.mxu0
    %v2063 = vpop.f32.mrf.mxu0
    %v2064 = vadd.f32 0.0, %v2063
    %v2065 = vpop.f32.mrf.mxu0
    %2066 = vdwg.mxu0
    %v2067 = vpack.c.bf16 %v2006, %v2003
    %v2068 = vpack.c.bf16 %v2064, %v2061
    %2069 = vmatprep.subr.bf16.mxu0 0
    %2070 = vmatpush1.bf16.msra.mxu0 0
    %2071 = vmatprep.subr.bf16.mxu0 0
    %2072 = vmatpush1.bf16.msra.mxu0 0
    %2073 = vmatprep.subr.bf16.mxu0 0
    %2074 = vmatpush1.bf16.msra.mxu0 0
    %2075 = vmatprep.subr.bf16.mxu0 0
    %2076 = vmatpush1.bf16.msra.mxu0 0
    %2077 = vmatprep.subr.bf16.mxu0 0
    %2078 = vmatpush1.bf16.msra.mxu0 0
    %2079 = vmatprep.subr.bf16.mxu0 0
    %2080 = vmatpush1.bf16.msra.mxu0 0
    %2081 = vmatprep.subr.bf16.mxu0 0
    %2082 = vmatpush1.bf16.msra.mxu0 0
    %2083 = vmatprep.subr.bf16.mxu0 0
    %2084 = vmatpush1.bf16.msra.mxu0 %v2068
    %2085 = vmatprep.subr.bf16.mxu0 0
    %2086 = vmatpush2.bf16.msra.mxu0 0
    %2087 = vmatprep.subr.bf16.mxu0 0
    %2088 = vmatpush2.bf16.msra.mxu0 0
    %2089 = vmatprep.subr.bf16.mxu0 0
    %2090 = vmatpush2.bf16.msra.mxu0 0
    %2091 = vmatprep.subr.bf16.mxu0 0
    %2092 = vmatpush2.bf16.msra.mxu0 0
    %2093 = vmatprep.subr.bf16.mxu0 0
    %2094 = vmatpush2.bf16.msra.mxu0 0
    %2095 = vmatprep.subr.bf16.mxu0 0
    %2096 = vmatpush2.bf16.msra.mxu0 0
    %2097 = vmatprep.subr.bf16.mxu0 0
    %2098 = vmatpush2.bf16.msra.mxu0 0
    %2099 = vmatprep.subr.bf16.mxu0 0
    %2100 = vmatpush2.bf16.msra.mxu0 0
    %2101 = vmatprep.mubr.bf16.mxu0 0
    %2102 = vmatmul.mubr.bf16.gmra.mxu0 %v933
    %v2103 = vpop.f32.mrf.mxu0
    %v2104 = vadd.f32 0.0, %v2103
    %v2105 = vpop.f32.mrf.mxu0
    %v2106 = vpop.f32.mrf.mxu0
    %v2107 = vadd.f32 0.0, %v2106
    %v2108 = vpop.f32.mrf.mxu0
    %2109 = vmatprep.mubr.bf16.mxu0 0
    %2110 = vmatmul.mubr.bf16.gmra.mxu0 %v936
    %v2111 = vpop.f32.mrf.mxu0
    %v2112 = vadd.f32 0.0, %v2111
    %v2113 = vpop.f32.mrf.mxu0
    %v2114 = vpop.f32.mrf.mxu0
    %v2115 = vadd.f32 0.0, %v2114
    %v2116 = vpop.f32.mrf.mxu0
    %2117 = vmatprep.mubr.bf16.mxu0 0
    %2118 = vmatmul.mubr.bf16.gmra.mxu0 %v939
    %v2119 = vpop.f32.mrf.mxu0
    %v2120 = vadd.f32 0.0, %v2119
    %v2121 = vpop.f32.mrf.mxu0
    %v2122 = vpop.f32.mrf.mxu0
    %v2123 = vadd.f32 0.0, %v2122
    %v2124 = vpop.f32.mrf.mxu0
    %2125 = vmatprep.mubr.bf16.mxu0 0
    %2126 = vmatmul.mubr.bf16.gmra.mxu0 %v942
    %v2127 = vpop.f32.mrf.mxu0
    %v2128 = vadd.f32 0.0, %v2127
    %v2129 = vpop.f32.mrf.mxu0
    %v2130 = vpop.f32.mrf.mxu0
    %v2131 = vadd.f32 0.0, %v2130
    %v2132 = vpop.f32.mrf.mxu0
    %2133 = vmatprep.mubr.bf16.mxu0 0
    %2134 = vmatmul.mubr.bf16.gmra.mxu0 %v945
    %v2135 = vpop.f32.mrf.mxu0
    %v2136 = vadd.f32 0.0, %v2135
    %v2137 = vpop.f32.mrf.mxu0
    %v2138 = vpop.f32.mrf.mxu0
    %v2139 = vadd.f32 0.0, %v2138
    %v2140 = vpop.f32.mrf.mxu0
    %2141 = vmatprep.mubr.bf16.mxu0 0
    %2142 = vmatmul.mubr.bf16.gmra.mxu0 %v948
    %v2143 = vpop.f32.mrf.mxu0
    %v2144 = vadd.f32 0.0, %v2143
    %v2145 = vpop.f32.mrf.mxu0
    %v2146 = vpop.f32.mrf.mxu0
    %v2147 = vadd.f32 0.0, %v2146
    %v2148 = vpop.f32.mrf.mxu0
    %2149 = vmatprep.mubr.bf16.mxu0 0
    %2150 = vmatmul.mubr.bf16.gmra.mxu0 %v951
    %v2151 = vpop.f32.mrf.mxu0
    %v2152 = vadd.f32 0.0, %v2151
    %v2153 = vpop.f32.mrf.mxu0
    %v2154 = vpop.f32.mrf.mxu0
    %v2155 = vadd.f32 0.0, %v2154
    %v2156 = vpop.f32.mrf.mxu0
    %2157 = vdwg.mxu0
    %2158 = vmatprep.subr.bf16.mxu0 0
    %2159 = vmatpush1.bf16.msra.mxu0 0
    %2160 = vmatprep.subr.bf16.mxu0 0
    %2161 = vmatpush1.bf16.msra.mxu0 0
    %2162 = vmatprep.subr.bf16.mxu0 0
    %2163 = vmatpush1.bf16.msra.mxu0 0
    %2164 = vmatprep.subr.bf16.mxu0 0
    %2165 = vmatpush1.bf16.msra.mxu0 0
    %2166 = vmatprep.subr.bf16.mxu0 0
    %2167 = vmatpush1.bf16.msra.mxu0 0
    %2168 = vmatprep.subr.bf16.mxu0 0
    %2169 = vmatpush1.bf16.msra.mxu0 0
    %2170 = vmatprep.subr.bf16.mxu0 0
    %2171 = vmatpush1.bf16.msra.mxu0 0
    %2172 = vmatprep.subr.bf16.mxu0 0
    %2173 = vmatpush1.bf16.msra.mxu0 %v2067
    %2174 = vmatprep.subr.bf16.mxu0 0
    %2175 = vmatpush2.bf16.msra.mxu0 0
    %2176 = vmatprep.subr.bf16.mxu0 0
    %2177 = vmatpush2.bf16.msra.mxu0 0
    %2178 = vmatprep.subr.bf16.mxu0 0
    %2179 = vmatpush2.bf16.msra.mxu0 0
    %2180 = vmatprep.subr.bf16.mxu0 0
    %2181 = vmatpush2.bf16.msra.mxu0 0
    %2182 = vmatprep.subr.bf16.mxu0 0
    %2183 = vmatpush2.bf16.msra.mxu0 0
    %2184 = vmatprep.subr.bf16.mxu0 0
    %2185 = vmatpush2.bf16.msra.mxu0 0
    %2186 = vmatprep.subr.bf16.mxu0 0
    %2187 = vmatpush2.bf16.msra.mxu0 0
    %2188 = vmatprep.subr.bf16.mxu0 0
    %2189 = vmatpush2.bf16.msra.mxu0 0
    %2190 = vmatprep.mubr.bf16.mxu0 0
    %2191 = vmatmul.mubr.bf16.gmra.mxu0 %v1043
    %v2192 = vpop.f32.mrf.mxu0
    %v2193 = vadd.f32 %v2104, %v2192
    %v2194 = vpop.f32.mrf.mxu0
    %v2195 = vpop.f32.mrf.mxu0
    %v2196 = vadd.f32 %v2107, %v2195
    %v2197 = vpop.f32.mrf.mxu0
    %2198 = vmatprep.mubr.bf16.mxu0 0
    %2199 = vmatmul.mubr.bf16.gmra.mxu0 %v1046
    %v2200 = vpop.f32.mrf.mxu0
    %v2201 = vadd.f32 %v2112, %v2200
    %v2202 = vpop.f32.mrf.mxu0
    %v2203 = vpop.f32.mrf.mxu0
    %v2204 = vadd.f32 %v2115, %v2203
    %v2205 = vpop.f32.mrf.mxu0
    %2206 = vmatprep.mubr.bf16.mxu0 0
    %2207 = vmatmul.mubr.bf16.gmra.mxu0 %v1049
    %v2208 = vpop.f32.mrf.mxu0
    %v2209 = vadd.f32 %v2120, %v2208
    %v2210 = vpop.f32.mrf.mxu0
    %v2211 = vpop.f32.mrf.mxu0
    %v2212 = vadd.f32 %v2123, %v2211
    %v2213 = vpop.f32.mrf.mxu0
    %2214 = vmatprep.mubr.bf16.mxu0 0
    %2215 = vmatmul.mubr.bf16.gmra.mxu0 %v1052
    %v2216 = vpop.f32.mrf.mxu0
    %v2217 = vadd.f32 %v2128, %v2216
    %v2218 = vpop.f32.mrf.mxu0
    %v2219 = vpop.f32.mrf.mxu0
    %v2220 = vadd.f32 %v2131, %v2219
    %v2221 = vpop.f32.mrf.mxu0
    %2222 = vmatprep.mubr.bf16.mxu0 0
    %2223 = vmatmul.mubr.bf16.gmra.mxu0 %v1055
    %v2224 = vpop.f32.mrf.mxu0
    %v2225 = vadd.f32 %v2136, %v2224
    %v2226 = vpop.f32.mrf.mxu0
    %v2227 = vpop.f32.mrf.mxu0
    %v2228 = vadd.f32 %v2139, %v2227
    %v2229 = vpop.f32.mrf.mxu0
    %2230 = vmatprep.mubr.bf16.mxu0 0
    %2231 = vmatmul.mubr.bf16.gmra.mxu0 %v1058
    %v2232 = vpop.f32.mrf.mxu0
    %v2233 = vadd.f32 %v2144, %v2232
    %v2234 = vpop.f32.mrf.mxu0
    %v2235 = vpop.f32.mrf.mxu0
    %v2236 = vadd.f32 %v2147, %v2235
    %v2237 = vpop.f32.mrf.mxu0
    %2238 = vmatprep.mubr.bf16.mxu0 0
    %2239 = vmatmul.mubr.bf16.gmra.mxu0 %v1061
    %v2240 = vpop.f32.mrf.mxu0
    %v2241 = vadd.f32 %v2152, %v2240
    %v2242 = vpop.f32.mrf.mxu0
    %v2243 = vpop.f32.mrf.mxu0
    %v2244 = vadd.f32 %v2155, %v2243
    %v2245 = vpop.f32.mrf.mxu0
    %2246 = vdwg.mxu0
    %s2247 = scalar_lea.vmem %s25, 1
    %v2248 = vld [vmem:[%s2247] sm:$0x1]
    %v2250 = vlaneseq
    %v2251 = vshrl.u32 %v2250, 7
    %v2252 = vsub.s32 0, %v2251
    %v2253 = vrot.slane %v2248, %v2252
    %v2255 = vmul.f32 %v698, %v2253
    %v2256 = vmul.f32 %v701, %v2253
    %v2257 = vmul.f32 %v704, %v2253
    %v2258 = vmul.f32 %v707, %v2253
    %v2259 = vmul.f32 %v710, %v2253
    %v2260 = vmul.f32 %v713, %v2253
    %v2261 = vmul.f32 %v716, %v2253
    %v2262 = vmul.f32 %v719, %v2253
    %v2263 = vmul.f32 %v722, %v2253
    %v2264 = vmul.f32 %v725, %v2253
    %v2265 = vmul.f32 %v728, %v2253
    %v2266 = vmul.f32 %v731, %v2253
    %v2267 = vmul.f32 %v734, %v2253
    %v2268 = vmul.f32 %v737, %v2253
    %v2269 = vadd.f32 %v2193, %v2255
    %v2270 = vadd.f32 %v2196, %v2256
    %v2271 = vadd.f32 %v2201, %v2257
    %v2272 = vadd.f32 %v2204, %v2258
    %v2273 = vadd.f32 %v2209, %v2259
    %v2274 = vadd.f32 %v2212, %v2260
    %v2275 = vadd.f32 %v2217, %v2261
    %v2276 = vadd.f32 %v2220, %v2262
    %v2277 = vadd.f32 %v2225, %v2263
    %v2278 = vadd.f32 %v2228, %v2264
    %v2279 = vadd.f32 %v2233, %v2265
    %v2280 = vadd.f32 %v2236, %v2266
    %v2281 = vadd.f32 %v2241, %v2267
    %v2282 = vadd.f32 %v2244, %v2268
    %s2283 = scalar_lea.vmem %s27, 2
    %v2284 = vld [vmem:[%s2283] sm:$0x3]
    %v2286 = vsel %vm1217, %v2284, 0
    %2288 = vmatprep.subr.bf16.mxu0 0
    %2289 = vmatpush1.bf16.msra.mxu0 0
    %2290 = vmatprep.subr.bf16.mxu0 0
    %2291 = vmatpush1.bf16.msra.mxu0 0
    %2292 = vmatprep.subr.bf16.mxu0 0
    %2293 = vmatpush1.bf16.msra.mxu0 0
    %2294 = vmatprep.subr.bf16.mxu0 0
    %2295 = vmatpush1.bf16.msra.mxu0 0
    %2296 = vmatprep.subr.bf16.mxu0 0
    %2297 = vmatpush1.bf16.msra.mxu0 0
    %2298 = vmatprep.subr.bf16.mxu0 0
    %2299 = vmatpush1.bf16.msra.mxu0 0
    %2300 = vmatprep.subr.bf16.mxu0 0
    %2301 = vmatpush1.bf16.msra.mxu0 0
    %2302 = vmatprep.subr.bf16.mxu0 0
    %2303 = vmatpush1.bf16.msra.mxu0 %v2286
    %2304 = vmatprep.subr.bf16.mxu0 0
    %2305 = vmatpush2.bf16.msra.mxu0 0
    %2306 = vmatprep.subr.bf16.mxu0 0
    %2307 = vmatpush2.bf16.msra.mxu0 0
    %2308 = vmatprep.subr.bf16.mxu0 0
    %2309 = vmatpush2.bf16.msra.mxu0 0
    %2310 = vmatprep.subr.bf16.mxu0 0
    %2311 = vmatpush2.bf16.msra.mxu0 0
    %2312 = vmatprep.subr.bf16.mxu0 0
    %2313 = vmatpush2.bf16.msra.mxu0 0
    %2314 = vmatprep.subr.bf16.mxu0 0
    %2315 = vmatpush2.bf16.msra.mxu0 0
    %2316 = vmatprep.subr.bf16.mxu0 0
    %2317 = vmatpush2.bf16.msra.mxu0 0
    %2318 = vmatprep.subr.bf16.mxu0 0
    %2319 = vmatpush2.bf16.msra.mxu0 0
    %2320 = vmatprep.mubr.bf16.mxu0 0
    %2321 = vmatmul.mubr.bf16.gmra.mxu0 %v1197
    %v2322 = vpop.f32.mrf.mxu0
    %v2323 = vadd.f32 0.0, %v2322
    %v2324 = vpop.f32.mrf.mxu0
    %v2325 = vpop.f32.mrf.mxu0
    %v2326 = vadd.f32 0.0, %v2325
    %v2327 = vpop.f32.mrf.mxu0
    %2328 = vmatprep.mubr.bf16.mxu0 0
    %2329 = vmatmul.mubr.bf16.gmra.mxu0 %v1200
    %v2330 = vpop.f32.mrf.mxu0
    %v2331 = vadd.f32 0.0, %v2330
    %v2332 = vpop.f32.mrf.mxu0
    %v2333 = vpop.f32.mrf.mxu0
    %v2334 = vadd.f32 0.0, %v2333
    %v2335 = vpop.f32.mrf.mxu0
    %2336 = vmatprep.mubr.bf16.mxu0 0
    %2337 = vmatmul.mubr.bf16.gmra.mxu0 %v1203
    %v2338 = vpop.f32.mrf.mxu0
    %v2339 = vadd.f32 0.0, %v2338
    %v2340 = vpop.f32.mrf.mxu0
    %v2341 = vpop.f32.mrf.mxu0
    %v2342 = vadd.f32 0.0, %v2341
    %v2343 = vpop.f32.mrf.mxu0
    %2344 = vmatprep.mubr.bf16.mxu0 0
    %2345 = vmatmul.mubr.bf16.gmra.mxu0 %v1206
    %v2346 = vpop.f32.mrf.mxu0
    %v2347 = vadd.f32 0.0, %v2346
    %v2348 = vpop.f32.mrf.mxu0
    %v2349 = vpop.f32.mrf.mxu0
    %v2350 = vadd.f32 0.0, %v2349
    %v2351 = vpop.f32.mrf.mxu0
    %2352 = vmatprep.mubr.bf16.mxu0 0
    %2353 = vmatmul.mubr.bf16.gmra.mxu0 %v1209
    %v2354 = vpop.f32.mrf.mxu0
    %v2355 = vadd.f32 0.0, %v2354
    %v2356 = vpop.f32.mrf.mxu0
    %v2357 = vpop.f32.mrf.mxu0
    %v2358 = vadd.f32 0.0, %v2357
    %v2359 = vpop.f32.mrf.mxu0
    %2360 = vmatprep.mubr.bf16.mxu0 0
    %2361 = vmatmul.mubr.bf16.gmra.mxu0 %v1212
    %v2362 = vpop.f32.mrf.mxu0
    %v2363 = vadd.f32 0.0, %v2362
    %v2364 = vpop.f32.mrf.mxu0
    %v2365 = vpop.f32.mrf.mxu0
    %v2366 = vadd.f32 0.0, %v2365
    %v2367 = vpop.f32.mrf.mxu0
    %2368 = vmatprep.mubr.bf16.mxu0 0
    %2369 = vmatmul.mubr.bf16.gmra.mxu0 %v1215
    %v2370 = vpop.f32.mrf.mxu0
    %v2371 = vadd.f32 0.0, %v2370
    %v2372 = vpop.f32.mrf.mxu0
    %v2373 = vpop.f32.mrf.mxu0
    %v2374 = vadd.f32 0.0, %v2373
    %v2375 = vpop.f32.mrf.mxu0
    %2376 = vdwg.mxu0
    %v2377 = vadd.f32 %v2269, %v2323
    %v2378 = vadd.f32 %v2270, %v2326
    %v2379 = vadd.f32 %v2271, %v2331
    %v2380 = vadd.f32 %v2272, %v2334
    %v2381 = vadd.f32 %v2273, %v2339
    %v2382 = vadd.f32 %v2274, %v2342
    %v2383 = vadd.f32 %v2275, %v2347
    %v2384 = vadd.f32 %v2276, %v2350
    %v2385 = vadd.f32 %v2277, %v2355
    %v2386 = vadd.f32 %v2278, %v2358
    %v2387 = vadd.f32 %v2279, %v2363
    %v2388 = vadd.f32 %v2280, %v2366
    %v2389 = vadd.f32 %v2281, %v2371
    %v2390 = vadd.f32 %v2282, %v2374
    %s2391 = scalar_lea.vmem [#allocation5], 1
    %v2392 = vld [vmem:[%s2391] sm:$0x1]
    %v2394 = vlaneseq
    %v2395 = vshrl.u32 %v2394, 7
    %v2396 = vsub.s32 0, %v2395
    %v2397 = vrot.slane %v2392, %v2396
    %v2399 = vadd.f32 %v2377, %v2397
    %v2400 = vadd.f32 %v2378, %v2397
    %v2401 = vadd.f32 %v2379, %v2397
    %v2402 = vadd.f32 %v2380, %v2397
    %v2403 = vadd.f32 %v2381, %v2397
    %v2404 = vadd.f32 %v2382, %v2397
    %v2405 = vadd.f32 %v2383, %v2397
    %v2406 = vadd.f32 %v2384, %v2397
    %v2407 = vadd.f32 %v2385, %v2397
    %v2408 = vadd.f32 %v2386, %v2397
    %v2409 = vadd.f32 %v2387, %v2397
    %v2410 = vadd.f32 %v2388, %v2397
    %v2411 = vadd.f32 %v2389, %v2397
    %v2412 = vadd.f32 %v2390, %v2397
    %v2413 = vxor.u32 %v2399, 2147483648
    %v2414 = vxor.u32 %v2400, 2147483648
    %v2415 = vxor.u32 %v2401, 2147483648
    %v2416 = vxor.u32 %v2402, 2147483648
    %v2417 = vxor.u32 %v2403, 2147483648
    %v2418 = vxor.u32 %v2404, 2147483648
    %v2419 = vxor.u32 %v2405, 2147483648
    %v2420 = vxor.u32 %v2406, 2147483648
    %v2421 = vxor.u32 %v2407, 2147483648
    %v2422 = vxor.u32 %v2408, 2147483648
    %v2423 = vxor.u32 %v2409, 2147483648
    %v2424 = vxor.u32 %v2410, 2147483648
    %v2425 = vxor.u32 %v2411, 2147483648
    %v2426 = vxor.u32 %v2412, 2147483648
    %v2427 = vmul.f32 %v2413, 1.442695
    %v2428 = vpow.pop %v2427
    %v2429 = vmul.f32 %v2414, 1.442695
    %v2430 = vpow.pop %v2429
    %v2431 = vmul.f32 %v2415, 1.442695
    %v2432 = vpow.pop %v2431
    %v2433 = vmul.f32 %v2416, 1.442695
    %v2434 = vpow.pop %v2433
    %v2435 = vmul.f32 %v2417, 1.442695
    %v2436 = vpow.pop %v2435
    %v2437 = vmul.f32 %v2418, 1.442695
    %v2438 = vpow.pop %v2437
    %v2439 = vmul.f32 %v2419, 1.442695
    %v2440 = vpow.pop %v2439
    %v2441 = vmul.f32 %v2420, 1.442695
    %v2442 = vpow.pop %v2441
    %v2443 = vmul.f32 %v2421, 1.442695
    %v2444 = vpow.pop %v2443
    %v2445 = vmul.f32 %v2422, 1.442695
    %v2446 = vpow.pop %v2445
    %v2447 = vmul.f32 %v2423, 1.442695
    %v2448 = vpow.pop %v2447
    %v2449 = vmul.f32 %v2424, 1.442695
    %v2450 = vpow.pop %v2449
    %v2451 = vmul.f32 %v2425, 1.442695
    %v2452 = vpow.pop %v2451
    %v2453 = vmul.f32 %v2426, 1.442695
    %v2454 = vpow.pop %v2453
    %v2455 = vadd.f32 %v2428, 1.0
    %v2456 = vadd.f32 %v2430, 1.0
    %v2457 = vadd.f32 %v2432, 1.0
    %v2458 = vadd.f32 %v2434, 1.0
    %v2459 = vadd.f32 %v2436, 1.0
    %v2460 = vadd.f32 %v2438, 1.0
    %v2461 = vadd.f32 %v2440, 1.0
    %v2462 = vadd.f32 %v2442, 1.0
    %v2463 = vadd.f32 %v2444, 1.0
    %v2464 = vadd.f32 %v2446, 1.0
    %v2465 = vadd.f32 %v2448, 1.0
    %v2466 = vadd.f32 %v2450, 1.0
    %v2467 = vadd.f32 %v2452, 1.0
    %v2468 = vadd.f32 %v2454, 1.0
    %v2469 = vrcp.pop %v2455
    %v2470 = vmul.f32 1.0, %v2469
    %v2471 = vrcp.pop %v2456
    %v2472 = vmul.f32 1.0, %v2471
    %v2473 = vrcp.pop %v2457
    %v2474 = vmul.f32 1.0, %v2473
    %v2475 = vrcp.pop %v2458
    %v2476 = vmul.f32 1.0, %v2475
    %v2477 = vrcp.pop %v2459
    %v2478 = vmul.f32 1.0, %v2477
    %v2479 = vrcp.pop %v2460
    %v2480 = vmul.f32 1.0, %v2479
    %v2481 = vrcp.pop %v2461
    %v2482 = vmul.f32 1.0, %v2481
    %v2483 = vrcp.pop %v2462
    %v2484 = vmul.f32 1.0, %v2483
    %v2485 = vrcp.pop %v2463
    %v2486 = vmul.f32 1.0, %v2485
    %v2487 = vrcp.pop %v2464
    %v2488 = vmul.f32 1.0, %v2487
    %v2489 = vrcp.pop %v2465
    %v2490 = vmul.f32 1.0, %v2489
    %v2491 = vrcp.pop %v2466
    %v2492 = vmul.f32 1.0, %v2491
    %v2493 = vrcp.pop %v2467
    %v2494 = vmul.f32 1.0, %v2493
    %v2495 = vrcp.pop %v2468
    %v2496 = vmul.f32 1.0, %v2495
    %v2497 = vmul.f32 %v2399, %v2470
    %v2498 = vmul.f32 %v2400, %v2472
    %v2499 = vmul.f32 %v2401, %v2474
    %v2500 = vmul.f32 %v2402, %v2476
    %v2501 = vmul.f32 %v2403, %v2478
    %v2502 = vmul.f32 %v2404, %v2480
    %v2503 = vmul.f32 %v2405, %v2482
    %v2504 = vmul.f32 %v2406, %v2484
    %v2505 = vmul.f32 %v2407, %v2486
    %v2506 = vmul.f32 %v2408, %v2488
    %v2507 = vmul.f32 %v2409, %v2490
    %v2508 = vmul.f32 %v2410, %v2492
    %v2509 = vmul.f32 %v2411, %v2494
    %v2510 = vmul.f32 %v2412, %v2496
    %s2511 = scalar_lea.vmem %s31, 16
    %v2512 = vld [vmem:[%s2511] sm:$0xf]
    %v2513 = vld [vmem:[%s2511 + $0x4] sm:$0xf]
    %v2514 = vld [vmem:[%s2511 + $0x8] sm:$0xf]
    %v2515 = vld [vmem:[%s2511 + $0xc] sm:$0xf]
    %v2516 = vpack.c.bf16 %v2498, %v2497
    %v2517 = vpack.c.bf16 %v2500, %v2499
    %v2518 = vpack.c.bf16 %v2502, %v2501
    %v2519 = vpack.c.bf16 %v2504, %v2503
    %v2520 = vpack.c.bf16 %v2506, %v2505
    %v2521 = vpack.c.bf16 %v2508, %v2507
    %v2522 = vpack.c.bf16 %v2510, %v2509
    %s2523 = scalar_lea.vmem [#allocation7], 1
    %v2524 = vld [vmem:[%s2523] sm:$0x1]
    %v2526 = vlaneseq
    %v2527 = vshrl.u32 %v2526, 7
    %v2528 = vsub.s32 0, %v2527
    %v2529 = vrot.slane %v2524, %v2528
    %v2535 = vunpack.c.l.b16 %v2512
    %v2536 = vunpack.c.l.b16 %v2513
    %v2537 = vunpack.c.l.b16 %v2514
    %v2538 = vunpack.c.l.b16 %v2515
    %v2539 = vpack.c.b16 %v2536, %v2535
    %v2540 = vpack.c.b16 %v2538, %v2537
    %v2544 = vsel %vm814, %v2516, 0
    %v2547 = vsel %vm814, %v2517, 0
    %v2550 = vsel %vm814, %v2518, 0
    %v2553 = vsel %vm814, %v2519, 0
    %v2556 = vsel %vm814, %v2520, 0
    %v2559 = vsel %vm814, %v2521, 0
    %v2562 = vsel %vm814, %v2522, 0
    %2564 = vmatprep.subr.bf16.mxu0 0
    %2565 = vmatpush1.bf16.msra.mxu0 0
    %2566 = vmatprep.subr.bf16.mxu0 0
    %2567 = vmatpush1.bf16.msra.mxu0 0
    %2568 = vmatprep.subr.bf16.mxu0 0
    %2569 = vmatpush1.bf16.msra.mxu0 0
    %2570 = vmatprep.subr.bf16.mxu0 0
    %2571 = vmatpush1.bf16.msra.mxu0 0
    %2572 = vmatprep.subr.bf16.mxu0 0
    %2573 = vmatpush1.bf16.msra.mxu0 0
    %2574 = vmatprep.subr.bf16.mxu0 0
    %2575 = vmatpush1.bf16.msra.mxu0 0
    %2576 = vmatprep.subr.bf16.mxu0 0
    %2577 = vmatpush1.bf16.msra.mxu0 %v2540
    %2578 = vmatprep.subr.bf16.mxu0 0
    %2579 = vmatpush1.bf16.msra.mxu0 %v2539
    %2580 = vmatprep.subr.bf16.mxu0 0
    %2581 = vmatpush2.bf16.msra.mxu0 0
    %2582 = vmatprep.subr.bf16.mxu0 0
    %2583 = vmatpush2.bf16.msra.mxu0 0
    %2584 = vmatprep.subr.bf16.mxu0 0
    %2585 = vmatpush2.bf16.msra.mxu0 0
    %2586 = vmatprep.subr.bf16.mxu0 0
    %2587 = vmatpush2.bf16.msra.mxu0 0
    %2588 = vmatprep.subr.bf16.mxu0 0
    %2589 = vmatpush2.bf16.msra.mxu0 0
    %2590 = vmatprep.subr.bf16.mxu0 0
    %2591 = vmatpush2.bf16.msra.mxu0 0
    %2592 = vmatprep.subr.bf16.mxu0 0
    %2593 = vmatpush2.bf16.msra.mxu0 0
    %2594 = vmatprep.subr.bf16.mxu0 0
    %2595 = vmatpush2.bf16.msra.mxu0 0
    %2596 = vmatprep.mubr.bf16.mxu0 0
    %2597 = vmatmul.mubr.bf16.gmra.mxu0 %v2544
    %v2598 = vpop.f32.mrf.mxu0
    %v2599 = vadd.f32 %v2529, %v2598
    %v2600 = vpop.f32.mrf.mxu0
    %v2601 = vpop.f32.mrf.mxu0
    %v2602 = vadd.f32 %v2529, %v2601
    %v2603 = vpop.f32.mrf.mxu0
    %2604 = vmatprep.mubr.bf16.mxu0 0
    %2605 = vmatmul.mubr.bf16.gmra.mxu0 %v2547
    %v2606 = vpop.f32.mrf.mxu0
    %v2607 = vadd.f32 %v2529, %v2606
    %v2608 = vpop.f32.mrf.mxu0
    %v2609 = vpop.f32.mrf.mxu0
    %v2610 = vadd.f32 %v2529, %v2609
    %v2611 = vpop.f32.mrf.mxu0
    %2612 = vmatprep.mubr.bf16.mxu0 0
    %2613 = vmatmul.mubr.bf16.gmra.mxu0 %v2550
    %v2614 = vpop.f32.mrf.mxu0
    %v2615 = vadd.f32 %v2529, %v2614
    %v2616 = vpop.f32.mrf.mxu0
    %v2617 = vpop.f32.mrf.mxu0
    %v2618 = vadd.f32 %v2529, %v2617
    %v2619 = vpop.f32.mrf.mxu0
    %2620 = vmatprep.mubr.bf16.mxu0 0
    %2621 = vmatmul.mubr.bf16.gmra.mxu0 %v2553
    %v2622 = vpop.f32.mrf.mxu0
    %v2623 = vadd.f32 %v2529, %v2622
    %v2624 = vpop.f32.mrf.mxu0
    %v2625 = vpop.f32.mrf.mxu0
    %v2626 = vadd.f32 %v2529, %v2625
    %v2627 = vpop.f32.mrf.mxu0
    %2628 = vmatprep.mubr.bf16.mxu0 0
    %2629 = vmatmul.mubr.bf16.gmra.mxu0 %v2556
    %v2630 = vpop.f32.mrf.mxu0
    %v2631 = vadd.f32 %v2529, %v2630
    %v2632 = vpop.f32.mrf.mxu0
    %v2633 = vpop.f32.mrf.mxu0
    %v2634 = vadd.f32 %v2529, %v2633
    %v2635 = vpop.f32.mrf.mxu0
    %2636 = vmatprep.mubr.bf16.mxu0 0
    %2637 = vmatmul.mubr.bf16.gmra.mxu0 %v2559
    %v2638 = vpop.f32.mrf.mxu0
    %v2639 = vadd.f32 %v2529, %v2638
    %v2640 = vpop.f32.mrf.mxu0
    %v2641 = vpop.f32.mrf.mxu0
    %v2642 = vadd.f32 %v2529, %v2641
    %v2643 = vpop.f32.mrf.mxu0
    %2644 = vmatprep.mubr.bf16.mxu0 0
    %2645 = vmatmul.mubr.bf16.gmra.mxu0 %v2562
    %v2646 = vpop.f32.mrf.mxu0
    %v2647 = vadd.f32 %v2529, %v2646
    %v2648 = vpop.f32.mrf.mxu0
    %v2649 = vpop.f32.mrf.mxu0
    %v2650 = vadd.f32 %v2529, %v2649
    %v2651 = vpop.f32.mrf.mxu0
    %2652 = vdwg.mxu0
    %v2653 = vxor.u32 %v2599, 2147483648
    %v2654 = vxor.u32 %v2602, 2147483648
    %v2655 = vxor.u32 %v2607, 2147483648
    %v2656 = vxor.u32 %v2610, 2147483648
    %v2657 = vxor.u32 %v2615, 2147483648
    %v2658 = vxor.u32 %v2618, 2147483648
    %v2659 = vxor.u32 %v2623, 2147483648
    %v2660 = vxor.u32 %v2626, 2147483648
    %v2661 = vxor.u32 %v2631, 2147483648
    %v2662 = vxor.u32 %v2634, 2147483648
    %v2663 = vxor.u32 %v2639, 2147483648
    %v2664 = vxor.u32 %v2642, 2147483648
    %v2665 = vxor.u32 %v2647, 2147483648
    %v2666 = vxor.u32 %v2650, 2147483648
    %v2667 = vmul.f32 %v2653, 1.442695
    %v2668 = vpow.pop %v2667
    %v2669 = vmul.f32 %v2654, 1.442695
    %v2670 = vpow.pop %v2669
    %v2671 = vmul.f32 %v2655, 1.442695
    %v2672 = vpow.pop %v2671
    %v2673 = vmul.f32 %v2656, 1.442695
    %v2674 = vpow.pop %v2673
    %v2675 = vmul.f32 %v2657, 1.442695
    %v2676 = vpow.pop %v2675
    %v2677 = vmul.f32 %v2658, 1.442695
    %v2678 = vpow.pop %v2677
    %v2679 = vmul.f32 %v2659, 1.442695
    %v2680 = vpow.pop %v2679
    %v2681 = vmul.f32 %v2660, 1.442695
    %v2682 = vpow.pop %v2681
    %v2683 = vmul.f32 %v2661, 1.442695
    %v2684 = vpow.pop %v2683
    %v2685 = vmul.f32 %v2662, 1.442695
    %v2686 = vpow.pop %v2685
    %v2687 = vmul.f32 %v2663, 1.442695
    %v2688 = vpow.pop %v2687
    %v2689 = vmul.f32 %v2664, 1.442695
    %v2690 = vpow.pop %v2689
    %v2691 = vmul.f32 %v2665, 1.442695
    %v2692 = vpow.pop %v2691
    %v2693 = vmul.f32 %v2666, 1.442695
    %v2694 = vpow.pop %v2693
    %v2695 = vadd.f32 %v2668, 1.0
    %v2696 = vadd.f32 %v2670, 1.0
    %v2697 = vadd.f32 %v2672, 1.0
    %v2698 = vadd.f32 %v2674, 1.0
    %v2699 = vadd.f32 %v2676, 1.0
    %v2700 = vadd.f32 %v2678, 1.0
    %v2701 = vadd.f32 %v2680, 1.0
    %v2702 = vadd.f32 %v2682, 1.0
    %v2703 = vadd.f32 %v2684, 1.0
    %v2704 = vadd.f32 %v2686, 1.0
    %v2705 = vadd.f32 %v2688, 1.0
    %v2706 = vadd.f32 %v2690, 1.0
    %v2707 = vadd.f32 %v2692, 1.0
    %v2708 = vadd.f32 %v2694, 1.0
    %v2709 = vrcp.pop %v2695
    %v2710 = vmul.f32 1.0, %v2709
    %v2711 = vrcp.pop %v2696
    %v2712 = vmul.f32 1.0, %v2711
    %v2713 = vrcp.pop %v2697
    %v2714 = vmul.f32 1.0, %v2713
    %v2715 = vrcp.pop %v2698
    %v2716 = vmul.f32 1.0, %v2715
    %v2717 = vrcp.pop %v2699
    %v2718 = vmul.f32 1.0, %v2717
    %v2719 = vrcp.pop %v2700
    %v2720 = vmul.f32 1.0, %v2719
    %v2721 = vrcp.pop %v2701
    %v2722 = vmul.f32 1.0, %v2721
    %v2723 = vrcp.pop %v2702
    %v2724 = vmul.f32 1.0, %v2723
    %v2725 = vrcp.pop %v2703
    %v2726 = vmul.f32 1.0, %v2725
    %v2727 = vrcp.pop %v2704
    %v2728 = vmul.f32 1.0, %v2727
    %v2729 = vrcp.pop %v2705
    %v2730 = vmul.f32 1.0, %v2729
    %v2731 = vrcp.pop %v2706
    %v2732 = vmul.f32 1.0, %v2731
    %v2733 = vrcp.pop %v2707
    %v2734 = vmul.f32 1.0, %v2733
    %v2735 = vrcp.pop %v2708
    %v2736 = vmul.f32 1.0, %v2735
    %v2737 = vmul.f32 %v2599, %v2710
    %v2738 = vmul.f32 %v2602, %v2712
    %v2739 = vmul.f32 %v2607, %v2714
    %v2740 = vmul.f32 %v2610, %v2716
    %v2741 = vmul.f32 %v2615, %v2718
    %v2742 = vmul.f32 %v2618, %v2720
    %v2743 = vmul.f32 %v2623, %v2722
    %v2744 = vmul.f32 %v2626, %v2724
    %v2745 = vmul.f32 %v2631, %v2726
    %v2746 = vmul.f32 %v2634, %v2728
    %v2747 = vmul.f32 %v2639, %v2730
    %v2748 = vmul.f32 %v2642, %v2732
    %v2749 = vmul.f32 %v2647, %v2734
    %v2750 = vmul.f32 %v2650, %v2736
    %v2751 = vpack.c.bf16 %v2738, %v2737
    %v2752 = vpack.c.bf16 %v2740, %v2739
    %v2753 = vpack.c.bf16 %v2742, %v2741
    %v2754 = vpack.c.bf16 %v2744, %v2743
    %v2755 = vpack.c.bf16 %v2746, %v2745
    %v2756 = vpack.c.bf16 %v2748, %v2747
    %v2757 = vpack.c.bf16 %v2750, %v2749
    %2758 = vmatprep.subr.bf16.mxu0 0
    %2759 = vmatpush1.bf16.msra.mxu0 0
    %2760 = vmatprep.subr.bf16.mxu0 0
    %2761 = vmatpush1.bf16.msra.mxu0 %v2757
    %2762 = vmatprep.subr.bf16.mxu0 0
    %2763 = vmatpush1.bf16.msra.mxu0 %v2756
    %2764 = vmatprep.subr.bf16.mxu0 0
    %2765 = vmatpush1.bf16.msra.mxu0 %v2755
    %2766 = vmatprep.subr.bf16.mxu0 0
    %2767 = vmatpush1.bf16.msra.mxu0 %v2754
    %2768 = vmatprep.subr.bf16.mxu0 0
    %2769 = vmatpush1.bf16.msra.mxu0 %v2753
    %2770 = vmatprep.subr.bf16.mxu0 0
    %2771 = vmatpush1.bf16.msra.mxu0 %v2752
    %2772 = vmatprep.subr.bf16.mxu0 0
    %2773 = vmatpush1.bf16.msra.mxu0 %v2751
    %2774 = vmatprep.subr.bf16.mxu0 0
    %2775 = vmatpush2.bf16.msra.mxu0 0
    %2776 = vmatprep.subr.bf16.mxu0 0
    %2777 = vmatpush2.bf16.msra.mxu0 0
    %2778 = vmatprep.subr.bf16.mxu0 0
    %2779 = vmatpush2.bf16.msra.mxu0 0
    %2780 = vmatprep.subr.bf16.mxu0 0
    %2781 = vmatpush2.bf16.msra.mxu0 0
    %2782 = vmatprep.subr.bf16.mxu0 0
    %2783 = vmatpush2.bf16.msra.mxu0 0
    %2784 = vmatprep.subr.bf16.mxu0 0
    %2785 = vmatpush2.bf16.msra.mxu0 0
    %2786 = vmatprep.subr.bf16.mxu0 0
    %2787 = vmatpush2.bf16.msra.mxu0 0
    %2788 = vmatprep.subr.bf16.mxu0 0
    %2789 = vmatpush2.bf16.msra.mxu0 0
    %2790 = vmatprep.mubr.bf16.mxu0 0
    %2791 = vmatmul.mubr.bf16.gmra.mxu0 %v1691
    %v2792 = vpop.f32.mrf.mxu0
    %v2793 = vadd.f32 0.0, %v2792
    %v2794 = vpop.f32.mrf.mxu0
    %v2795 = vpop.f32.mrf.mxu0
    %v2796 = vadd.f32 0.0, %v2795
    %v2797 = vpop.f32.mrf.mxu0
    %2798 = vdwg.mxu0
    %s2799 = scalar_lea.vmem %s35, 16
    %v2800 = vld [vmem:[%s2799] sm:$0xf]
    %v2801 = vld [vmem:[%s2799 + $0x4] sm:$0xf]
    %v2802 = vld [vmem:[%s2799 + $0x8] sm:$0xf]
    %v2803 = vld [vmem:[%s2799 + $0xc] sm:$0xf]
    %s2804 = scalar_lea.vmem %s37, 16
    %v2805 = vld [vmem:[%s2804] sm:$0xf]
    %v2806 = vld [vmem:[%s2804 + $0x4] sm:$0xf]
    %v2807 = vld [vmem:[%s2804 + $0x8] sm:$0xf]
    %v2808 = vld [vmem:[%s2804 + $0xc] sm:$0xf]
    %v2809 = vpack.c.bf16 %v2796, %v2793
    %v2814 = vunpack.c.l.b16 %v2805
    %v2815 = vunpack.c.l.b16 %v2806
    %v2816 = vunpack.c.l.b16 %v2807
    %v2817 = vunpack.c.l.b16 %v2808
    %v2818 = vpack.c.b16 %v2815, %v2814
    %v2819 = vpack.c.b16 %v2817, %v2816
    %v2823 = vsel %vm814, %v2809, 0
    %2825 = vmatprep.subr.bf16.mxu0 0
    %2826 = vmatpush1.bf16.msra.mxu0 0
    %2827 = vmatprep.subr.bf16.mxu0 0
    %2828 = vmatpush1.bf16.msra.mxu0 0
    %2829 = vmatprep.subr.bf16.mxu0 0
    %2830 = vmatpush1.bf16.msra.mxu0 0
    %2831 = vmatprep.subr.bf16.mxu0 0
    %2832 = vmatpush1.bf16.msra.mxu0 0
    %2833 = vmatprep.subr.bf16.mxu0 0
    %2834 = vmatpush1.bf16.msra.mxu0 0
    %2835 = vmatprep.subr.bf16.mxu0 0
    %2836 = vmatpush1.bf16.msra.mxu0 0
    %2837 = vmatprep.subr.bf16.mxu0 0
    %2838 = vmatpush1.bf16.msra.mxu0 %v2819
    %2839 = vmatprep.subr.bf16.mxu0 0
    %2840 = vmatpush1.bf16.msra.mxu0 %v2818
    %2841 = vmatprep.subr.bf16.mxu0 0
    %2842 = vmatpush2.bf16.msra.mxu0 0
    %2843 = vmatprep.subr.bf16.mxu0 0
    %2844 = vmatpush2.bf16.msra.mxu0 0
    %2845 = vmatprep.subr.bf16.mxu0 0
    %2846 = vmatpush2.bf16.msra.mxu0 0
    %2847 = vmatprep.subr.bf16.mxu0 0
    %2848 = vmatpush2.bf16.msra.mxu0 0
    %2849 = vmatprep.subr.bf16.mxu0 0
    %2850 = vmatpush2.bf16.msra.mxu0 0
    %2851 = vmatprep.subr.bf16.mxu0 0
    %2852 = vmatpush2.bf16.msra.mxu0 0
    %2853 = vmatprep.subr.bf16.mxu0 0
    %2854 = vmatpush2.bf16.msra.mxu0 0
    %2855 = vmatprep.subr.bf16.mxu0 0
    %2856 = vmatpush2.bf16.msra.mxu0 0
    %2857 = vmatprep.mubr.bf16.mxu0 0
    %2858 = vmatmul.mubr.bf16.gmra.mxu0 %v2823
    %v2859 = vpop.f32.mrf.mxu0
    %v2860 = vadd.f32 0.0, %v2859
    %v2861 = vpop.f32.mrf.mxu0
    %v2862 = vpop.f32.mrf.mxu0
    %v2863 = vadd.f32 0.0, %v2862
    %v2864 = vpop.f32.mrf.mxu0
    %2865 = vdwg.mxu0
    %v2870 = vunpack.c.l.b16 %v2800
    %v2871 = vunpack.c.l.b16 %v2801
    %v2872 = vunpack.c.l.b16 %v2802
    %v2873 = vunpack.c.l.b16 %v2803
    %v2874 = vpack.c.b16 %v2871, %v2870
    %v2875 = vpack.c.b16 %v2873, %v2872
    %2878 = vmatprep.subr.bf16.mxu0 0
    %2879 = vmatpush1.bf16.msra.mxu0 0
    %2880 = vmatprep.subr.bf16.mxu0 0
    %2881 = vmatpush1.bf16.msra.mxu0 0
    %2882 = vmatprep.subr.bf16.mxu0 0
    %2883 = vmatpush1.bf16.msra.mxu0 0
    %2884 = vmatprep.subr.bf16.mxu0 0
    %2885 = vmatpush1.bf16.msra.mxu0 0
    %2886 = vmatprep.subr.bf16.mxu0 0
    %2887 = vmatpush1.bf16.msra.mxu0 0
    %2888 = vmatprep.subr.bf16.mxu0 0
    %2889 = vmatpush1.bf16.msra.mxu0 0
    %2890 = vmatprep.subr.bf16.mxu0 0
    %2891 = vmatpush1.bf16.msra.mxu0 %v2875
    %2892 = vmatprep.subr.bf16.mxu0 0
    %2893 = vmatpush1.bf16.msra.mxu0 %v2874
    %2894 = vmatprep.subr.bf16.mxu0 0
    %2895 = vmatpush2.bf16.msra.mxu0 0
    %2896 = vmatprep.subr.bf16.mxu0 0
    %2897 = vmatpush2.bf16.msra.mxu0 0
    %2898 = vmatprep.subr.bf16.mxu0 0
    %2899 = vmatpush2.bf16.msra.mxu0 0
    %2900 = vmatprep.subr.bf16.mxu0 0
    %2901 = vmatpush2.bf16.msra.mxu0 0
    %2902 = vmatprep.subr.bf16.mxu0 0
    %2903 = vmatpush2.bf16.msra.mxu0 0
    %2904 = vmatprep.subr.bf16.mxu0 0
    %2905 = vmatpush2.bf16.msra.mxu0 0
    %2906 = vmatprep.subr.bf16.mxu0 0
    %2907 = vmatpush2.bf16.msra.mxu0 0
    %2908 = vmatprep.subr.bf16.mxu0 0
    %2909 = vmatpush2.bf16.msra.mxu0 0
    %2910 = vmatprep.mubr.bf16.mxu0 0
    %2911 = vmatmul.mubr.bf16.gmra.mxu0 %v1966
    %v2912 = vpop.f32.mrf.mxu0
    %v2913 = vadd.f32 %v2860, %v2912
    %v2914 = vpop.f32.mrf.mxu0
    %v2915 = vpop.f32.mrf.mxu0
    %v2916 = vadd.f32 %v2863, %v2915
    %v2917 = vpop.f32.mrf.mxu0
    %2918 = vdwg.mxu0
    %s2919 = scalar_lea.vmem [#allocation8], 1
    %v2920 = vld [vmem:[%s2919] sm:$0x1]
    %v2922 = vlaneseq
    %v2923 = vshrl.u32 %v2922, 7
    %v2924 = vsub.s32 0, %v2923
    %v2925 = vrot.slane %v2920, %v2924
    %v2927 = vadd.f32 %v2913, %v2925
    %v2928 = vadd.f32 %v2916, %v2925
    %v2929 = vxor.u32 %v2927, 2147483648
    %v2930 = vxor.u32 %v2928, 2147483648
    %v2931 = vmul.f32 %v2929, 1.442695
    %v2932 = vpow.pop %v2931
    %v2933 = vmul.f32 %v2930, 1.442695
    %v2934 = vpow.pop %v2933
    %v2935 = vadd.f32 %v2932, 1.0
    %v2936 = vadd.f32 %v2934, 1.0
    %v2937 = vrcp.pop %v2935
    %v2938 = vmul.f32 1.0, %v2937
    %v2939 = vrcp.pop %v2936
    %v2940 = vmul.f32 1.0, %v2939
    %v2941 = vmul.f32 %v2927, %v2938
    %v2942 = vmul.f32 %v2928, %v2940
    %s2943 = scalar_lea.vmem %s41, 16
    %v2944 = vld [vmem:[%s2943] sm:$0xf]
    %v2945 = vld [vmem:[%s2943 + $0x4] sm:$0xf]
    %v2946 = vld [vmem:[%s2943 + $0x8] sm:$0xf]
    %v2947 = vld [vmem:[%s2943 + $0xc] sm:$0xf]
    %v2948 = vpack.c.bf16 %v2942, %v2941
    %v2953 = vunpack.c.l.b16 %v2944
    %v2954 = vunpack.c.l.b16 %v2945
    %v2955 = vunpack.c.l.b16 %v2946
    %v2956 = vunpack.c.l.b16 %v2947
    %v2957 = vpack.c.b16 %v2954, %v2953
    %v2958 = vpack.c.b16 %v2956, %v2955
    %v2962 = vsel %vm814, %v2948, 0
    %2964 = vmatprep.subr.bf16.mxu0 0
    %2965 = vmatpush1.bf16.msra.mxu0 0
    %2966 = vmatprep.subr.bf16.mxu0 0
    %2967 = vmatpush1.bf16.msra.mxu0 0
    %2968 = vmatprep.subr.bf16.mxu0 0
    %2969 = vmatpush1.bf16.msra.mxu0 0
    %2970 = vmatprep.subr.bf16.mxu0 0
    %2971 = vmatpush1.bf16.msra.mxu0 0
    %2972 = vmatprep.subr.bf16.mxu0 0
    %2973 = vmatpush1.bf16.msra.mxu0 0
    %2974 = vmatprep.subr.bf16.mxu0 0
    %2975 = vmatpush1.bf16.msra.mxu0 0
    %2976 = vmatprep.subr.bf16.mxu0 0
    %2977 = vmatpush1.bf16.msra.mxu0 %v2958
    %2978 = vmatprep.subr.bf16.mxu0 0
    %2979 = vmatpush1.bf16.msra.mxu0 %v2957
    %2980 = vmatprep.subr.bf16.mxu0 0
    %2981 = vmatpush2.bf16.msra.mxu0 0
    %2982 = vmatprep.subr.bf16.mxu0 0
    %2983 = vmatpush2.bf16.msra.mxu0 0
    %2984 = vmatprep.subr.bf16.mxu0 0
    %2985 = vmatpush2.bf16.msra.mxu0 0
    %2986 = vmatprep.subr.bf16.mxu0 0
    %2987 = vmatpush2.bf16.msra.mxu0 0
    %2988 = vmatprep.subr.bf16.mxu0 0
    %2989 = vmatpush2.bf16.msra.mxu0 0
    %2990 = vmatprep.subr.bf16.mxu0 0
    %2991 = vmatpush2.bf16.msra.mxu0 0
    %2992 = vmatprep.subr.bf16.mxu0 0
    %2993 = vmatpush2.bf16.msra.mxu0 0
    %2994 = vmatprep.subr.bf16.mxu0 0
    %2995 = vmatpush2.bf16.msra.mxu0 0
    %2996 = vmatprep.mubr.bf16.mxu0 0
    %2997 = vmatmul.mubr.bf16.gmra.mxu0 %v2962
    %v2998 = vpop.f32.mrf.mxu0
    %v2999 = vadd.f32 0.0, %v2998
    %v3000 = vpop.f32.mrf.mxu0
    %v3001 = vpop.f32.mrf.mxu0
    %v3002 = vadd.f32 0.0, %v3001
    %v3003 = vpop.f32.mrf.mxu0
    %3004 = vdwg.mxu0
    %v3005 = vadd.f32 %v1945, %v2999
    %v3006 = vadd.f32 %v1946, %v3002
    %s3007 = scalar_lea.vmem [#allocation10], 1
    %v3008 = vld [vmem:[%s3007] sm:$0x1]
    %v3010 = vlaneseq
    %v3011 = vshrl.u32 %v3010, 7
    %v3012 = vsub.s32 0, %v3011
    %v3013 = vrot.slane %v3008, %v3012
    %v3015 = vadd.f32 %v3005, %v3013
    %v3016 = vadd.f32 %v3006, %v3013
    %s3017 = scalar_lea.vmem %s21, 32
    %v3018 = vld [vmem:[%s3017] sm:$0xf]
    %v3019 = vld [vmem:[%s3017 + $0x4] sm:$0xf]
    %v3020 = vld [vmem:[%s3017 + $0x8] sm:$0xf]
    %v3021 = vld [vmem:[%s3017 + $0xc] sm:$0xf]
    %v3022 = vpack.c.bf16 %v3016, %v3015
    %v3027 = vunpack.c.l.b16 %v3018
    %v3028 = vunpack.c.l.b16 %v3019
    %v3029 = vunpack.c.l.b16 %v3020
    %v3030 = vunpack.c.l.b16 %v3021
    %v3031 = vpack.c.b16 %v3028, %v3027
    %v3032 = vpack.c.b16 %v3030, %v3029
    %v3036 = vsel %vm814, %v3022, 0
    %3038 = vmatprep.subr.bf16.mxu0 0
    %3039 = vmatpush1.bf16.msra.mxu0 0
    %3040 = vmatprep.subr.bf16.mxu0 0
    %3041 = vmatpush1.bf16.msra.mxu0 0
    %3042 = vmatprep.subr.bf16.mxu0 0
    %3043 = vmatpush1.bf16.msra.mxu0 0
    %3044 = vmatprep.subr.bf16.mxu0 0
    %3045 = vmatpush1.bf16.msra.mxu0 0
    %3046 = vmatprep.subr.bf16.mxu0 0
    %3047 = vmatpush1.bf16.msra.mxu0 0
    %3048 = vmatprep.subr.bf16.mxu0 0
    %3049 = vmatpush1.bf16.msra.mxu0 0
    %3050 = vmatprep.subr.bf16.mxu0 0
    %3051 = vmatpush1.bf16.msra.mxu0 %v3032
    %3052 = vmatprep.subr.bf16.mxu0 0
    %3053 = vmatpush1.bf16.msra.mxu0 %v3031
    %3054 = vmatprep.subr.bf16.mxu0 0
    %3055 = vmatpush2.bf16.msra.mxu0 0
    %3056 = vmatprep.subr.bf16.mxu0 0
    %3057 = vmatpush2.bf16.msra.mxu0 0
    %3058 = vmatprep.subr.bf16.mxu0 0
    %3059 = vmatpush2.bf16.msra.mxu0 0
    %3060 = vmatprep.subr.bf16.mxu0 0
    %3061 = vmatpush2.bf16.msra.mxu0 0
    %3062 = vmatprep.subr.bf16.mxu0 0
    %3063 = vmatpush2.bf16.msra.mxu0 0
    %3064 = vmatprep.subr.bf16.mxu0 0
    %3065 = vmatpush2.bf16.msra.mxu0 0
    %3066 = vmatprep.subr.bf16.mxu0 0
    %3067 = vmatpush2.bf16.msra.mxu0 0
    %3068 = vmatprep.subr.bf16.mxu0 0
    %3069 = vmatpush2.bf16.msra.mxu0 0
    %3070 = vmatprep.mubr.bf16.mxu0 0
    %3071 = vmatmul.mubr.bf16.gmra.mxu0 %v3036
    %v3072 = vpop.f32.mrf.mxu0
    %v3073 = vadd.f32 0.0, %v3072
    %v3074 = vpop.f32.mrf.mxu0
    %v3075 = vpop.f32.mrf.mxu0
    %v3076 = vadd.f32 0.0, %v3075
    %v3077 = vpop.f32.mrf.mxu0
    %3078 = vdwg.mxu0
    %s3079 = scalar_lea.vmem %s23, 32
    %v3080 = vld [vmem:[%s3079] sm:$0xf]
    %v3081 = vld [vmem:[%s3079 + $0x4] sm:$0xf]
    %v3082 = vld [vmem:[%s3079 + $0x8] sm:$0xf]
    %v3083 = vld [vmem:[%s3079 + $0xc] sm:$0xf]
    %v3088 = vunpack.c.l.b16 %v3080
    %v3089 = vunpack.c.l.b16 %v3081
    %v3090 = vunpack.c.l.b16 %v3082
    %v3091 = vunpack.c.l.b16 %v3083
    %v3092 = vpack.c.b16 %v3089, %v3088
    %v3093 = vpack.c.b16 %v3091, %v3090
    %3096 = vmatprep.subr.bf16.mxu0 0
    %3097 = vmatpush1.bf16.msra.mxu0 0
    %3098 = vmatprep.subr.bf16.mxu0 0
    %3099 = vmatpush1.bf16.msra.mxu0 0
    %3100 = vmatprep.subr.bf16.mxu0 0
    %3101 = vmatpush1.bf16.msra.mxu0 0
    %3102 = vmatprep.subr.bf16.mxu0 0
    %3103 = vmatpush1.bf16.msra.mxu0 0
    %3104 = vmatprep.subr.bf16.mxu0 0
    %3105 = vmatpush1.bf16.msra.mxu0 0
    %3106 = vmatprep.subr.bf16.mxu0 0
    %3107 = vmatpush1.bf16.msra.mxu0 0
    %3108 = vmatprep.subr.bf16.mxu0 0
    %3109 = vmatpush1.bf16.msra.mxu0 %v3093
    %3110 = vmatprep.subr.bf16.mxu0 0
    %3111 = vmatpush1.bf16.msra.mxu0 %v3092
    %3112 = vmatprep.subr.bf16.mxu0 0
    %3113 = vmatpush2.bf16.msra.mxu0 0
    %3114 = vmatprep.subr.bf16.mxu0 0
    %3115 = vmatpush2.bf16.msra.mxu0 0
    %3116 = vmatprep.subr.bf16.mxu0 0
    %3117 = vmatpush2.bf16.msra.mxu0 0
    %3118 = vmatprep.subr.bf16.mxu0 0
    %3119 = vmatpush2.bf16.msra.mxu0 0
    %3120 = vmatprep.subr.bf16.mxu0 0
    %3121 = vmatpush2.bf16.msra.mxu0 0
    %3122 = vmatprep.subr.bf16.mxu0 0
    %3123 = vmatpush2.bf16.msra.mxu0 0
    %3124 = vmatprep.subr.bf16.mxu0 0
    %3125 = vmatpush2.bf16.msra.mxu0 0
    %3126 = vmatprep.subr.bf16.mxu0 0
    %3127 = vmatpush2.bf16.msra.mxu0 0
    %3128 = vmatprep.mubr.bf16.mxu0 0
    %3129 = vmatmul.mubr.bf16.gmra.mxu0 %v3036
    %v3130 = vpop.f32.mrf.mxu0
    %v3131 = vadd.f32 0.0, %v3130
    %v3132 = vpop.f32.mrf.mxu0
    %v3133 = vpop.f32.mrf.mxu0
    %v3134 = vadd.f32 0.0, %v3133
    %v3135 = vpop.f32.mrf.mxu0
    %3136 = vdwg.mxu0
    %v3137 = vpack.c.bf16 %v3076, %v3073
    %v3138 = vpack.c.bf16 %v3134, %v3131
    %3139 = vmatprep.subr.bf16.mxu0 0
    %3140 = vmatpush1.bf16.msra.mxu0 0
    %3141 = vmatprep.subr.bf16.mxu0 0
    %3142 = vmatpush1.bf16.msra.mxu0 0
    %3143 = vmatprep.subr.bf16.mxu0 0
    %3144 = vmatpush1.bf16.msra.mxu0 0
    %3145 = vmatprep.subr.bf16.mxu0 0
    %3146 = vmatpush1.bf16.msra.mxu0 0
    %3147 = vmatprep.subr.bf16.mxu0 0
    %3148 = vmatpush1.bf16.msra.mxu0 0
    %3149 = vmatprep.subr.bf16.mxu0 0
    %3150 = vmatpush1.bf16.msra.mxu0 0
    %3151 = vmatprep.subr.bf16.mxu0 0
    %3152 = vmatpush1.bf16.msra.mxu0 0
    %3153 = vmatprep.subr.bf16.mxu0 0
    %3154 = vmatpush1.bf16.msra.mxu0 %v3138
    %3155 = vmatprep.subr.bf16.mxu0 0
    %3156 = vmatpush2.bf16.msra.mxu0 0
    %3157 = vmatprep.subr.bf16.mxu0 0
    %3158 = vmatpush2.bf16.msra.mxu0 0
    %3159 = vmatprep.subr.bf16.mxu0 0
    %3160 = vmatpush2.bf16.msra.mxu0 0
    %3161 = vmatprep.subr.bf16.mxu0 0
    %3162 = vmatpush2.bf16.msra.mxu0 0
    %3163 = vmatprep.subr.bf16.mxu0 0
    %3164 = vmatpush2.bf16.msra.mxu0 0
    %3165 = vmatprep.subr.bf16.mxu0 0
    %3166 = vmatpush2.bf16.msra.mxu0 0
    %3167 = vmatprep.subr.bf16.mxu0 0
    %3168 = vmatpush2.bf16.msra.mxu0 0
    %3169 = vmatprep.subr.bf16.mxu0 0
    %3170 = vmatpush2.bf16.msra.mxu0 0
    %3171 = vmatprep.mubr.bf16.mxu0 0
    %3172 = vmatmul.mubr.bf16.gmra.mxu0 %v933
    %v3173 = vpop.f32.mrf.mxu0
    %v3174 = vadd.f32 0.0, %v3173
    %v3175 = vpop.f32.mrf.mxu0
    %v3176 = vpop.f32.mrf.mxu0
    %v3177 = vadd.f32 0.0, %v3176
    %v3178 = vpop.f32.mrf.mxu0
    %3179 = vmatprep.mubr.bf16.mxu0 0
    %3180 = vmatmul.mubr.bf16.gmra.mxu0 %v936
    %v3181 = vpop.f32.mrf.mxu0
    %v3182 = vadd.f32 0.0, %v3181
    %v3183 = vpop.f32.mrf.mxu0
    %v3184 = vpop.f32.mrf.mxu0
    %v3185 = vadd.f32 0.0, %v3184
    %v3186 = vpop.f32.mrf.mxu0
    %3187 = vmatprep.mubr.bf16.mxu0 0
    %3188 = vmatmul.mubr.bf16.gmra.mxu0 %v939
    %v3189 = vpop.f32.mrf.mxu0
    %v3190 = vadd.f32 0.0, %v3189
    %v3191 = vpop.f32.mrf.mxu0
    %v3192 = vpop.f32.mrf.mxu0
    %v3193 = vadd.f32 0.0, %v3192
    %v3194 = vpop.f32.mrf.mxu0
    %3195 = vmatprep.mubr.bf16.mxu0 0
    %3196 = vmatmul.mubr.bf16.gmra.mxu0 %v942
    %v3197 = vpop.f32.mrf.mxu0
    %v3198 = vadd.f32 0.0, %v3197
    %v3199 = vpop.f32.mrf.mxu0
    %v3200 = vpop.f32.mrf.mxu0
    %v3201 = vadd.f32 0.0, %v3200
    %v3202 = vpop.f32.mrf.mxu0
    %3203 = vmatprep.mubr.bf16.mxu0 0
    %3204 = vmatmul.mubr.bf16.gmra.mxu0 %v945
    %v3205 = vpop.f32.mrf.mxu0
    %v3206 = vadd.f32 0.0, %v3205
    %v3207 = vpop.f32.mrf.mxu0
    %v3208 = vpop.f32.mrf.mxu0
    %v3209 = vadd.f32 0.0, %v3208
    %v3210 = vpop.f32.mrf.mxu0
    %3211 = vmatprep.mubr.bf16.mxu0 0
    %3212 = vmatmul.mubr.bf16.gmra.mxu0 %v948
    %v3213 = vpop.f32.mrf.mxu0
    %v3214 = vadd.f32 0.0, %v3213
    %v3215 = vpop.f32.mrf.mxu0
    %v3216 = vpop.f32.mrf.mxu0
    %v3217 = vadd.f32 0.0, %v3216
    %v3218 = vpop.f32.mrf.mxu0
    %3219 = vmatprep.mubr.bf16.mxu0 0
    %3220 = vmatmul.mubr.bf16.gmra.mxu0 %v951
    %v3221 = vpop.f32.mrf.mxu0
    %v3222 = vadd.f32 0.0, %v3221
    %v3223 = vpop.f32.mrf.mxu0
    %v3224 = vpop.f32.mrf.mxu0
    %v3225 = vadd.f32 0.0, %v3224
    %v3226 = vpop.f32.mrf.mxu0
    %3227 = vdwg.mxu0
    %3228 = vmatprep.subr.bf16.mxu0 0
    %3229 = vmatpush1.bf16.msra.mxu0 0
    %3230 = vmatprep.subr.bf16.mxu0 0
    %3231 = vmatpush1.bf16.msra.mxu0 0
    %3232 = vmatprep.subr.bf16.mxu0 0
    %3233 = vmatpush1.bf16.msra.mxu0 0
    %3234 = vmatprep.subr.bf16.mxu0 0
    %3235 = vmatpush1.bf16.msra.mxu0 0
    %3236 = vmatprep.subr.bf16.mxu0 0
    %3237 = vmatpush1.bf16.msra.mxu0 0
    %3238 = vmatprep.subr.bf16.mxu0 0
    %3239 = vmatpush1.bf16.msra.mxu0 0
    %3240 = vmatprep.subr.bf16.mxu0 0
    %3241 = vmatpush1.bf16.msra.mxu0 0
    %3242 = vmatprep.subr.bf16.mxu0 0
    %3243 = vmatpush1.bf16.msra.mxu0 %v3137
    %3244 = vmatprep.subr.bf16.mxu0 0
    %3245 = vmatpush2.bf16.msra.mxu0 0
    %3246 = vmatprep.subr.bf16.mxu0 0
    %3247 = vmatpush2.bf16.msra.mxu0 0
    %3248 = vmatprep.subr.bf16.mxu0 0
    %3249 = vmatpush2.bf16.msra.mxu0 0
    %3250 = vmatprep.subr.bf16.mxu0 0
    %3251 = vmatpush2.bf16.msra.mxu0 0
    %3252 = vmatprep.subr.bf16.mxu0 0
    %3253 = vmatpush2.bf16.msra.mxu0 0
    %3254 = vmatprep.subr.bf16.mxu0 0
    %3255 = vmatpush2.bf16.msra.mxu0 0
    %3256 = vmatprep.subr.bf16.mxu0 0
    %3257 = vmatpush2.bf16.msra.mxu0 0
    %3258 = vmatprep.subr.bf16.mxu0 0
    %3259 = vmatpush2.bf16.msra.mxu0 0
    %3260 = vmatprep.mubr.bf16.mxu0 0
    %3261 = vmatmul.mubr.bf16.gmra.mxu0 %v1043
    %v3262 = vpop.f32.mrf.mxu0
    %v3263 = vadd.f32 %v3174, %v3262
    %v3264 = vpop.f32.mrf.mxu0
    %v3265 = vpop.f32.mrf.mxu0
    %v3266 = vadd.f32 %v3177, %v3265
    %v3267 = vpop.f32.mrf.mxu0
    %3268 = vmatprep.mubr.bf16.mxu0 0
    %3269 = vmatmul.mubr.bf16.gmra.mxu0 %v1046
    %v3270 = vpop.f32.mrf.mxu0
    %v3271 = vadd.f32 %v3182, %v3270
    %v3272 = vpop.f32.mrf.mxu0
    %v3273 = vpop.f32.mrf.mxu0
    %v3274 = vadd.f32 %v3185, %v3273
    %v3275 = vpop.f32.mrf.mxu0
    %3276 = vmatprep.mubr.bf16.mxu0 0
    %3277 = vmatmul.mubr.bf16.gmra.mxu0 %v1049
    %v3278 = vpop.f32.mrf.mxu0
    %v3279 = vadd.f32 %v3190, %v3278
    %v3280 = vpop.f32.mrf.mxu0
    %v3281 = vpop.f32.mrf.mxu0
    %v3282 = vadd.f32 %v3193, %v3281
    %v3283 = vpop.f32.mrf.mxu0
    %3284 = vmatprep.mubr.bf16.mxu0 0
    %3285 = vmatmul.mubr.bf16.gmra.mxu0 %v1052
    %v3286 = vpop.f32.mrf.mxu0
    %v3287 = vadd.f32 %v3198, %v3286
    %v3288 = vpop.f32.mrf.mxu0
    %v3289 = vpop.f32.mrf.mxu0
    %v3290 = vadd.f32 %v3201, %v3289
    %v3291 = vpop.f32.mrf.mxu0
    %3292 = vmatprep.mubr.bf16.mxu0 0
    %3293 = vmatmul.mubr.bf16.gmra.mxu0 %v1055
    %v3294 = vpop.f32.mrf.mxu0
    %v3295 = vadd.f32 %v3206, %v3294
    %v3296 = vpop.f32.mrf.mxu0
    %v3297 = vpop.f32.mrf.mxu0
    %v3298 = vadd.f32 %v3209, %v3297
    %v3299 = vpop.f32.mrf.mxu0
    %3300 = vmatprep.mubr.bf16.mxu0 0
    %3301 = vmatmul.mubr.bf16.gmra.mxu0 %v1058
    %v3302 = vpop.f32.mrf.mxu0
    %v3303 = vadd.f32 %v3214, %v3302
    %v3304 = vpop.f32.mrf.mxu0
    %v3305 = vpop.f32.mrf.mxu0
    %v3306 = vadd.f32 %v3217, %v3305
    %v3307 = vpop.f32.mrf.mxu0
    %3308 = vmatprep.mubr.bf16.mxu0 0
    %3309 = vmatmul.mubr.bf16.gmra.mxu0 %v1061
    %v3310 = vpop.f32.mrf.mxu0
    %v3311 = vadd.f32 %v3222, %v3310
    %v3312 = vpop.f32.mrf.mxu0
    %v3313 = vpop.f32.mrf.mxu0
    %v3314 = vadd.f32 %v3225, %v3313
    %v3315 = vpop.f32.mrf.mxu0
    %3316 = vdwg.mxu0
    %s3317 = scalar_lea.vmem %s25, 2
    %v3318 = vld [vmem:[%s3317] sm:$0x1]
    %v3320 = vlaneseq
    %v3321 = vshrl.u32 %v3320, 7
    %v3322 = vsub.s32 0, %v3321
    %v3323 = vrot.slane %v3318, %v3322
    %v3325 = vmul.f32 %v698, %v3323
    %v3326 = vmul.f32 %v701, %v3323
    %v3327 = vmul.f32 %v704, %v3323
    %v3328 = vmul.f32 %v707, %v3323
    %v3329 = vmul.f32 %v710, %v3323
    %v3330 = vmul.f32 %v713, %v3323
    %v3331 = vmul.f32 %v716, %v3323
    %v3332 = vmul.f32 %v719, %v3323
    %v3333 = vmul.f32 %v722, %v3323
    %v3334 = vmul.f32 %v725, %v3323
    %v3335 = vmul.f32 %v728, %v3323
    %v3336 = vmul.f32 %v731, %v3323
    %v3337 = vmul.f32 %v734, %v3323
    %v3338 = vmul.f32 %v737, %v3323
    %v3339 = vadd.f32 %v3263, %v3325
    %v3340 = vadd.f32 %v3266, %v3326
    %v3341 = vadd.f32 %v3271, %v3327
    %v3342 = vadd.f32 %v3274, %v3328
    %v3343 = vadd.f32 %v3279, %v3329
    %v3344 = vadd.f32 %v3282, %v3330
    %v3345 = vadd.f32 %v3287, %v3331
    %v3346 = vadd.f32 %v3290, %v3332
    %v3347 = vadd.f32 %v3295, %v3333
    %v3348 = vadd.f32 %v3298, %v3334
    %v3349 = vadd.f32 %v3303, %v3335
    %v3350 = vadd.f32 %v3306, %v3336
    %v3351 = vadd.f32 %v3311, %v3337
    %v3352 = vadd.f32 %v3314, %v3338
    %s3353 = scalar_lea.vmem %s27, 4
    %v3354 = vld [vmem:[%s3353] sm:$0x3]
    %v3356 = vsel %vm1217, %v3354, 0
    %3358 = vmatprep.subr.bf16.mxu0 0
    %3359 = vmatpush1.bf16.msra.mxu0 0
    %3360 = vmatprep.subr.bf16.mxu0 0
    %3361 = vmatpush1.bf16.msra.mxu0 0
    %3362 = vmatprep.subr.bf16.mxu0 0
    %3363 = vmatpush1.bf16.msra.mxu0 0
    %3364 = vmatprep.subr.bf16.mxu0 0
    %3365 = vmatpush1.bf16.msra.mxu0 0
    %3366 = vmatprep.subr.bf16.mxu0 0
    %3367 = vmatpush1.bf16.msra.mxu0 0
    %3368 = vmatprep.subr.bf16.mxu0 0
    %3369 = vmatpush1.bf16.msra.mxu0 0
    %3370 = vmatprep.subr.bf16.mxu0 0
    %3371 = vmatpush1.bf16.msra.mxu0 0
    %3372 = vmatprep.subr.bf16.mxu0 0
    %3373 = vmatpush1.bf16.msra.mxu0 %v3356
    %3374 = vmatprep.subr.bf16.mxu0 0
    %3375 = vmatpush2.bf16.msra.mxu0 0
    %3376 = vmatprep.subr.bf16.mxu0 0
    %3377 = vmatpush2.bf16.msra.mxu0 0
    %3378 = vmatprep.subr.bf16.mxu0 0
    %3379 = vmatpush2.bf16.msra.mxu0 0
    %3380 = vmatprep.subr.bf16.mxu0 0
    %3381 = vmatpush2.bf16.msra.mxu0 0
    %3382 = vmatprep.subr.bf16.mxu0 0
    %3383 = vmatpush2.bf16.msra.mxu0 0
    %3384 = vmatprep.subr.bf16.mxu0 0
    %3385 = vmatpush2.bf16.msra.mxu0 0
    %3386 = vmatprep.subr.bf16.mxu0 0
    %3387 = vmatpush2.bf16.msra.mxu0 0
    %3388 = vmatprep.subr.bf16.mxu0 0
    %3389 = vmatpush2.bf16.msra.mxu0 0
    %3390 = vmatprep.mubr.bf16.mxu0 0
    %3391 = vmatmul.mubr.bf16.gmra.mxu0 %v1197
    %v3392 = vpop.f32.mrf.mxu0
    %v3393 = vadd.f32 0.0, %v3392
    %v3394 = vpop.f32.mrf.mxu0
    %v3395 = vpop.f32.mrf.mxu0
    %v3396 = vadd.f32 0.0, %v3395
    %v3397 = vpop.f32.mrf.mxu0
    %3398 = vmatprep.mubr.bf16.mxu0 0
    %3399 = vmatmul.mubr.bf16.gmra.mxu0 %v1200
    %v3400 = vpop.f32.mrf.mxu0
    %v3401 = vadd.f32 0.0, %v3400
    %v3402 = vpop.f32.mrf.mxu0
    %v3403 = vpop.f32.mrf.mxu0
    %v3404 = vadd.f32 0.0, %v3403
    %v3405 = vpop.f32.mrf.mxu0
    %3406 = vmatprep.mubr.bf16.mxu0 0
    %3407 = vmatmul.mubr.bf16.gmra.mxu0 %v1203
    %v3408 = vpop.f32.mrf.mxu0
    %v3409 = vadd.f32 0.0, %v3408
    %v3410 = vpop.f32.mrf.mxu0
    %v3411 = vpop.f32.mrf.mxu0
    %v3412 = vadd.f32 0.0, %v3411
    %v3413 = vpop.f32.mrf.mxu0
    %3414 = vmatprep.mubr.bf16.mxu0 0
    %3415 = vmatmul.mubr.bf16.gmra.mxu0 %v1206
    %v3416 = vpop.f32.mrf.mxu0
    %v3417 = vadd.f32 0.0, %v3416
    %v3418 = vpop.f32.mrf.mxu0
    %v3419 = vpop.f32.mrf.mxu0
    %v3420 = vadd.f32 0.0, %v3419
    %v3421 = vpop.f32.mrf.mxu0
    %3422 = vmatprep.mubr.bf16.mxu0 0
    %3423 = vmatmul.mubr.bf16.gmra.mxu0 %v1209
    %v3424 = vpop.f32.mrf.mxu0
    %v3425 = vadd.f32 0.0, %v3424
    %v3426 = vpop.f32.mrf.mxu0
    %v3427 = vpop.f32.mrf.mxu0
    %v3428 = vadd.f32 0.0, %v3427
    %v3429 = vpop.f32.mrf.mxu0
    %3430 = vmatprep.mubr.bf16.mxu0 0
    %3431 = vmatmul.mubr.bf16.gmra.mxu0 %v1212
    %v3432 = vpop.f32.mrf.mxu0
    %v3433 = vadd.f32 0.0, %v3432
    %v3434 = vpop.f32.mrf.mxu0
    %v3435 = vpop.f32.mrf.mxu0
    %v3436 = vadd.f32 0.0, %v3435
    %v3437 = vpop.f32.mrf.mxu0
    %3438 = vmatprep.mubr.bf16.mxu0 0
    %3439 = vmatmul.mubr.bf16.gmra.mxu0 %v1215
    %v3440 = vpop.f32.mrf.mxu0
    %v3441 = vadd.f32 0.0, %v3440
    %v3442 = vpop.f32.mrf.mxu0
    %v3443 = vpop.f32.mrf.mxu0
    %v3444 = vadd.f32 0.0, %v3443
    %v3445 = vpop.f32.mrf.mxu0
    %3446 = vdwg.mxu0
    %v3447 = vadd.f32 %v3339, %v3393
    %v3448 = vadd.f32 %v3340, %v3396
    %v3449 = vadd.f32 %v3341, %v3401
    %v3450 = vadd.f32 %v3342, %v3404
    %v3451 = vadd.f32 %v3343, %v3409
    %v3452 = vadd.f32 %v3344, %v3412
    %v3453 = vadd.f32 %v3345, %v3417
    %v3454 = vadd.f32 %v3346, %v3420
    %v3455 = vadd.f32 %v3347, %v3425
    %v3456 = vadd.f32 %v3348, %v3428
    %v3457 = vadd.f32 %v3349, %v3433
    %v3458 = vadd.f32 %v3350, %v3436
    %v3459 = vadd.f32 %v3351, %v3441
    %v3460 = vadd.f32 %v3352, %v3444
    %s3461 = scalar_lea.vmem [#allocation5], 2
    %v3462 = vld [vmem:[%s3461] sm:$0x1]
    %v3464 = vlaneseq
    %v3465 = vshrl.u32 %v3464, 7
    %v3466 = vsub.s32 0, %v3465
    %v3467 = vrot.slane %v3462, %v3466
    %v3469 = vadd.f32 %v3447, %v3467
    %v3470 = vadd.f32 %v3448, %v3467
    %v3471 = vadd.f32 %v3449, %v3467
    %v3472 = vadd.f32 %v3450, %v3467
    %v3473 = vadd.f32 %v3451, %v3467
    %v3474 = vadd.f32 %v3452, %v3467
    %v3475 = vadd.f32 %v3453, %v3467
    %v3476 = vadd.f32 %v3454, %v3467
    %v3477 = vadd.f32 %v3455, %v3467
    %v3478 = vadd.f32 %v3456, %v3467
    %v3479 = vadd.f32 %v3457, %v3467
    %v3480 = vadd.f32 %v3458, %v3467
    %v3481 = vadd.f32 %v3459, %v3467
    %v3482 = vadd.f32 %v3460, %v3467
    %v3483 = vxor.u32 %v3469, 2147483648
    %v3484 = vxor.u32 %v3470, 2147483648
    %v3485 = vxor.u32 %v3471, 2147483648
    %v3486 = vxor.u32 %v3472, 2147483648
    %v3487 = vxor.u32 %v3473, 2147483648
    %v3488 = vxor.u32 %v3474, 2147483648
    %v3489 = vxor.u32 %v3475, 2147483648
    %v3490 = vxor.u32 %v3476, 2147483648
    %v3491 = vxor.u32 %v3477, 2147483648
    %v3492 = vxor.u32 %v3478, 2147483648
    %v3493 = vxor.u32 %v3479, 2147483648
    %v3494 = vxor.u32 %v3480, 2147483648
    %v3495 = vxor.u32 %v3481, 2147483648
    %v3496 = vxor.u32 %v3482, 2147483648
    %v3497 = vmul.f32 %v3483, 1.442695
    %v3498 = vpow.pop %v3497
    %v3499 = vmul.f32 %v3484, 1.442695
    %v3500 = vpow.pop %v3499
    %v3501 = vmul.f32 %v3485, 1.442695
    %v3502 = vpow.pop %v3501
    %v3503 = vmul.f32 %v3486, 1.442695
    %v3504 = vpow.pop %v3503
    %v3505 = vmul.f32 %v3487, 1.442695
    %v3506 = vpow.pop %v3505
    %v3507 = vmul.f32 %v3488, 1.442695
    %v3508 = vpow.pop %v3507
    %v3509 = vmul.f32 %v3489, 1.442695
    %v3510 = vpow.pop %v3509
    %v3511 = vmul.f32 %v3490, 1.442695
    %v3512 = vpow.pop %v3511
    %v3513 = vmul.f32 %v3491, 1.442695
    %v3514 = vpow.pop %v3513
    %v3515 = vmul.f32 %v3492, 1.442695
    %v3516 = vpow.pop %v3515
    %v3517 = vmul.f32 %v3493, 1.442695
    %v3518 = vpow.pop %v3517
    %v3519 = vmul.f32 %v3494, 1.442695
    %v3520 = vpow.pop %v3519
    %v3521 = vmul.f32 %v3495, 1.442695
    %v3522 = vpow.pop %v3521
    %v3523 = vmul.f32 %v3496, 1.442695
    %v3524 = vpow.pop %v3523
    %v3525 = vadd.f32 %v3498, 1.0
    %v3526 = vadd.f32 %v3500, 1.0
    %v3527 = vadd.f32 %v3502, 1.0
    %v3528 = vadd.f32 %v3504, 1.0
    %v3529 = vadd.f32 %v3506, 1.0
    %v3530 = vadd.f32 %v3508, 1.0
    %v3531 = vadd.f32 %v3510, 1.0
    %v3532 = vadd.f32 %v3512, 1.0
    %v3533 = vadd.f32 %v3514, 1.0
    %v3534 = vadd.f32 %v3516, 1.0
    %v3535 = vadd.f32 %v3518, 1.0
    %v3536 = vadd.f32 %v3520, 1.0
    %v3537 = vadd.f32 %v3522, 1.0
    %v3538 = vadd.f32 %v3524, 1.0
    %v3539 = vrcp.pop %v3525
    %v3540 = vmul.f32 1.0, %v3539
    %v3541 = vrcp.pop %v3526
    %v3542 = vmul.f32 1.0, %v3541
    %v3543 = vrcp.pop %v3527
    %v3544 = vmul.f32 1.0, %v3543
    %v3545 = vrcp.pop %v3528
    %v3546 = vmul.f32 1.0, %v3545
    %v3547 = vrcp.pop %v3529
    %v3548 = vmul.f32 1.0, %v3547
    %v3549 = vrcp.pop %v3530
    %v3550 = vmul.f32 1.0, %v3549
    %v3551 = vrcp.pop %v3531
    %v3552 = vmul.f32 1.0, %v3551
    %v3553 = vrcp.pop %v3532
    %v3554 = vmul.f32 1.0, %v3553
    %v3555 = vrcp.pop %v3533
    %v3556 = vmul.f32 1.0, %v3555
    %v3557 = vrcp.pop %v3534
    %v3558 = vmul.f32 1.0, %v3557
    %v3559 = vrcp.pop %v3535
    %v3560 = vmul.f32 1.0, %v3559
    %v3561 = vrcp.pop %v3536
    %v3562 = vmul.f32 1.0, %v3561
    %v3563 = vrcp.pop %v3537
    %v3564 = vmul.f32 1.0, %v3563
    %v3565 = vrcp.pop %v3538
    %v3566 = vmul.f32 1.0, %v3565
    %v3567 = vmul.f32 %v3469, %v3540
    %v3568 = vmul.f32 %v3470, %v3542
    %v3569 = vmul.f32 %v3471, %v3544
    %v3570 = vmul.f32 %v3472, %v3546
    %v3571 = vmul.f32 %v3473, %v3548
    %v3572 = vmul.f32 %v3474, %v3550
    %v3573 = vmul.f32 %v3475, %v3552
    %v3574 = vmul.f32 %v3476, %v3554
    %v3575 = vmul.f32 %v3477, %v3556
    %v3576 = vmul.f32 %v3478, %v3558
    %v3577 = vmul.f32 %v3479, %v3560
    %v3578 = vmul.f32 %v3480, %v3562
    %v3579 = vmul.f32 %v3481, %v3564
    %v3580 = vmul.f32 %v3482, %v3566
    %s3581 = scalar_lea.vmem %s31, 32
    %v3582 = vld [vmem:[%s3581] sm:$0xf]
    %v3583 = vld [vmem:[%s3581 + $0x4] sm:$0xf]
    %v3584 = vld [vmem:[%s3581 + $0x8] sm:$0xf]
    %v3585 = vld [vmem:[%s3581 + $0xc] sm:$0xf]
    %v3586 = vpack.c.bf16 %v3568, %v3567
    %v3587 = vpack.c.bf16 %v3570, %v3569
    %v3588 = vpack.c.bf16 %v3572, %v3571
    %v3589 = vpack.c.bf16 %v3574, %v3573
    %v3590 = vpack.c.bf16 %v3576, %v3575
    %v3591 = vpack.c.bf16 %v3578, %v3577
    %v3592 = vpack.c.bf16 %v3580, %v3579
    %s3593 = scalar_lea.vmem [#allocation7], 2
    %v3594 = vld [vmem:[%s3593] sm:$0x1]
    %v3596 = vlaneseq
    %v3597 = vshrl.u32 %v3596, 7
    %v3598 = vsub.s32 0, %v3597
    %v3599 = vrot.slane %v3594, %v3598
    %v3605 = vunpack.c.l.b16 %v3582
    %v3606 = vunpack.c.l.b16 %v3583
    %v3607 = vunpack.c.l.b16 %v3584
    %v3608 = vunpack.c.l.b16 %v3585
    %v3609 = vpack.c.b16 %v3606, %v3605
    %v3610 = vpack.c.b16 %v3608, %v3607
    %v3614 = vsel %vm814, %v3586, 0
    %v3617 = vsel %vm814, %v3587, 0
    %v3620 = vsel %vm814, %v3588, 0
    %v3623 = vsel %vm814, %v3589, 0
    %v3626 = vsel %vm814, %v3590, 0
    %v3629 = vsel %vm814, %v3591, 0
    %v3632 = vsel %vm814, %v3592, 0
    %3634 = vmatprep.subr.bf16.mxu0 0
    %3635 = vmatpush1.bf16.msra.mxu0 0
    %3636 = vmatprep.subr.bf16.mxu0 0
    %3637 = vmatpush1.bf16.msra.mxu0 0
    %3638 = vmatprep.subr.bf16.mxu0 0
    %3639 = vmatpush1.bf16.msra.mxu0 0
    %3640 = vmatprep.subr.bf16.mxu0 0
    %3641 = vmatpush1.bf16.msra.mxu0 0
    %3642 = vmatprep.subr.bf16.mxu0 0
    %3643 = vmatpush1.bf16.msra.mxu0 0
    %3644 = vmatprep.subr.bf16.mxu0 0
    %3645 = vmatpush1.bf16.msra.mxu0 0
    %3646 = vmatprep.subr.bf16.mxu0 0
    %3647 = vmatpush1.bf16.msra.mxu0 %v3610
    %3648 = vmatprep.subr.bf16.mxu0 0
    %3649 = vmatpush1.bf16.msra.mxu0 %v3609
    %3650 = vmatprep.subr.bf16.mxu0 0
    %3651 = vmatpush2.bf16.msra.mxu0 0
    %3652 = vmatprep.subr.bf16.mxu0 0
    %3653 = vmatpush2.bf16.msra.mxu0 0
    %3654 = vmatprep.subr.bf16.mxu0 0
    %3655 = vmatpush2.bf16.msra.mxu0 0
    %3656 = vmatprep.subr.bf16.mxu0 0
    %3657 = vmatpush2.bf16.msra.mxu0 0
    %3658 = vmatprep.subr.bf16.mxu0 0
    %3659 = vmatpush2.bf16.msra.mxu0 0
    %3660 = vmatprep.subr.bf16.mxu0 0
    %3661 = vmatpush2.bf16.msra.mxu0 0
    %3662 = vmatprep.subr.bf16.mxu0 0
    %3663 = vmatpush2.bf16.msra.mxu0 0
    %3664 = vmatprep.subr.bf16.mxu0 0
    %3665 = vmatpush2.bf16.msra.mxu0 0
    %3666 = vmatprep.mubr.bf16.mxu0 0
    %3667 = vmatmul.mubr.bf16.gmra.mxu0 %v3614
    %v3668 = vpop.f32.mrf.mxu0
    %v3669 = vadd.f32 %v3599, %v3668
    %v3670 = vpop.f32.mrf.mxu0
    %v3671 = vpop.f32.mrf.mxu0
    %v3672 = vadd.f32 %v3599, %v3671
    %v3673 = vpop.f32.mrf.mxu0
    %3674 = vmatprep.mubr.bf16.mxu0 0
    %3675 = vmatmul.mubr.bf16.gmra.mxu0 %v3617
    %v3676 = vpop.f32.mrf.mxu0
    %v3677 = vadd.f32 %v3599, %v3676
    %v3678 = vpop.f32.mrf.mxu0
    %v3679 = vpop.f32.mrf.mxu0
    %v3680 = vadd.f32 %v3599, %v3679
    %v3681 = vpop.f32.mrf.mxu0
    %3682 = vmatprep.mubr.bf16.mxu0 0
    %3683 = vmatmul.mubr.bf16.gmra.mxu0 %v3620
    %v3684 = vpop.f32.mrf.mxu0
    %v3685 = vadd.f32 %v3599, %v3684
    %v3686 = vpop.f32.mrf.mxu0
    %v3687 = vpop.f32.mrf.mxu0
    %v3688 = vadd.f32 %v3599, %v3687
    %v3689 = vpop.f32.mrf.mxu0
    %3690 = vmatprep.mubr.bf16.mxu0 0
    %3691 = vmatmul.mubr.bf16.gmra.mxu0 %v3623
    %v3692 = vpop.f32.mrf.mxu0
    %v3693 = vadd.f32 %v3599, %v3692
    %v3694 = vpop.f32.mrf.mxu0
    %v3695 = vpop.f32.mrf.mxu0
    %v3696 = vadd.f32 %v3599, %v3695
    %v3697 = vpop.f32.mrf.mxu0
    %3698 = vmatprep.mubr.bf16.mxu0 0
    %3699 = vmatmul.mubr.bf16.gmra.mxu0 %v3626
    %v3700 = vpop.f32.mrf.mxu0
    %v3701 = vadd.f32 %v3599, %v3700
    %v3702 = vpop.f32.mrf.mxu0
    %v3703 = vpop.f32.mrf.mxu0
    %v3704 = vadd.f32 %v3599, %v3703
    %v3705 = vpop.f32.mrf.mxu0
    %3706 = vmatprep.mubr.bf16.mxu0 0
    %3707 = vmatmul.mubr.bf16.gmra.mxu0 %v3629
    %v3708 = vpop.f32.mrf.mxu0
    %v3709 = vadd.f32 %v3599, %v3708
    %v3710 = vpop.f32.mrf.mxu0
    %v3711 = vpop.f32.mrf.mxu0
    %v3712 = vadd.f32 %v3599, %v3711
    %v3713 = vpop.f32.mrf.mxu0
    %3714 = vmatprep.mubr.bf16.mxu0 0
    %3715 = vmatmul.mubr.bf16.gmra.mxu0 %v3632
    %v3716 = vpop.f32.mrf.mxu0
    %v3717 = vadd.f32 %v3599, %v3716
    %v3718 = vpop.f32.mrf.mxu0
    %v3719 = vpop.f32.mrf.mxu0
    %v3720 = vadd.f32 %v3599, %v3719
    %v3721 = vpop.f32.mrf.mxu0
    %3722 = vdwg.mxu0
    %v3723 = vxor.u32 %v3669, 2147483648
    %v3724 = vxor.u32 %v3672, 2147483648
    %v3725 = vxor.u32 %v3677, 2147483648
    %v3726 = vxor.u32 %v3680, 2147483648
    %v3727 = vxor.u32 %v3685, 2147483648
    %v3728 = vxor.u32 %v3688, 2147483648
    %v3729 = vxor.u32 %v3693, 2147483648
    %v3730 = vxor.u32 %v3696, 2147483648
    %v3731 = vxor.u32 %v3701, 2147483648
    %v3732 = vxor.u32 %v3704, 2147483648
    %v3733 = vxor.u32 %v3709, 2147483648
    %v3734 = vxor.u32 %v3712, 2147483648
    %v3735 = vxor.u32 %v3717, 2147483648
    %v3736 = vxor.u32 %v3720, 2147483648
    %v3737 = vmul.f32 %v3723, 1.442695
    %v3738 = vpow.pop %v3737
    %v3739 = vmul.f32 %v3724, 1.442695
    %v3740 = vpow.pop %v3739
    %v3741 = vmul.f32 %v3725, 1.442695
    %v3742 = vpow.pop %v3741
    %v3743 = vmul.f32 %v3726, 1.442695
    %v3744 = vpow.pop %v3743
    %v3745 = vmul.f32 %v3727, 1.442695
    %v3746 = vpow.pop %v3745
    %v3747 = vmul.f32 %v3728, 1.442695
    %v3748 = vpow.pop %v3747
    %v3749 = vmul.f32 %v3729, 1.442695
    %v3750 = vpow.pop %v3749
    %v3751 = vmul.f32 %v3730, 1.442695
    %v3752 = vpow.pop %v3751
    %v3753 = vmul.f32 %v3731, 1.442695
    %v3754 = vpow.pop %v3753
    %v3755 = vmul.f32 %v3732, 1.442695
    %v3756 = vpow.pop %v3755
    %v3757 = vmul.f32 %v3733, 1.442695
    %v3758 = vpow.pop %v3757
    %v3759 = vmul.f32 %v3734, 1.442695
    %v3760 = vpow.pop %v3759
    %v3761 = vmul.f32 %v3735, 1.442695
    %v3762 = vpow.pop %v3761
    %v3763 = vmul.f32 %v3736, 1.442695
    %v3764 = vpow.pop %v3763
    %v3765 = vadd.f32 %v3738, 1.0
    %v3766 = vadd.f32 %v3740, 1.0
    %v3767 = vadd.f32 %v3742, 1.0
    %v3768 = vadd.f32 %v3744, 1.0
    %v3769 = vadd.f32 %v3746, 1.0
    %v3770 = vadd.f32 %v3748, 1.0
    %v3771 = vadd.f32 %v3750, 1.0
    %v3772 = vadd.f32 %v3752, 1.0
    %v3773 = vadd.f32 %v3754, 1.0
    %v3774 = vadd.f32 %v3756, 1.0
    %v3775 = vadd.f32 %v3758, 1.0
    %v3776 = vadd.f32 %v3760, 1.0
    %v3777 = vadd.f32 %v3762, 1.0
    %v3778 = vadd.f32 %v3764, 1.0
    %v3779 = vrcp.pop %v3765
    %v3780 = vmul.f32 1.0, %v3779
    %v3781 = vrcp.pop %v3766
    %v3782 = vmul.f32 1.0, %v3781
    %v3783 = vrcp.pop %v3767
    %v3784 = vmul.f32 1.0, %v3783
    %v3785 = vrcp.pop %v3768
    %v3786 = vmul.f32 1.0, %v3785
    %v3787 = vrcp.pop %v3769
    %v3788 = vmul.f32 1.0, %v3787
    %v3789 = vrcp.pop %v3770
    %v3790 = vmul.f32 1.0, %v3789
    %v3791 = vrcp.pop %v3771
    %v3792 = vmul.f32 1.0, %v3791
    %v3793 = vrcp.pop %v3772
    %v3794 = vmul.f32 1.0, %v3793
    %v3795 = vrcp.pop %v3773
    %v3796 = vmul.f32 1.0, %v3795
    %v3797 = vrcp.pop %v3774
    %v3798 = vmul.f32 1.0, %v3797
    %v3799 = vrcp.pop %v3775
    %v3800 = vmul.f32 1.0, %v3799
    %v3801 = vrcp.pop %v3776
    %v3802 = vmul.f32 1.0, %v3801
    %v3803 = vrcp.pop %v3777
    %v3804 = vmul.f32 1.0, %v3803
    %v3805 = vrcp.pop %v3778
    %v3806 = vmul.f32 1.0, %v3805
    %v3807 = vmul.f32 %v3669, %v3780
    %v3808 = vmul.f32 %v3672, %v3782
    %v3809 = vmul.f32 %v3677, %v3784
    %v3810 = vmul.f32 %v3680, %v3786
    %v3811 = vmul.f32 %v3685, %v3788
    %v3812 = vmul.f32 %v3688, %v3790
    %v3813 = vmul.f32 %v3693, %v3792
    %v3814 = vmul.f32 %v3696, %v3794
    %v3815 = vmul.f32 %v3701, %v3796
    %v3816 = vmul.f32 %v3704, %v3798
    %v3817 = vmul.f32 %v3709, %v3800
    %v3818 = vmul.f32 %v3712, %v3802
    %v3819 = vmul.f32 %v3717, %v3804
    %v3820 = vmul.f32 %v3720, %v3806
    %v3821 = vpack.c.bf16 %v3808, %v3807
    %v3822 = vpack.c.bf16 %v3810, %v3809
    %v3823 = vpack.c.bf16 %v3812, %v3811
    %v3824 = vpack.c.bf16 %v3814, %v3813
    %v3825 = vpack.c.bf16 %v3816, %v3815
    %v3826 = vpack.c.bf16 %v3818, %v3817
    %v3827 = vpack.c.bf16 %v3820, %v3819
    %3828 = vmatprep.subr.bf16.mxu0 0
    %3829 = vmatpush1.bf16.msra.mxu0 0
    %3830 = vmatprep.subr.bf16.mxu0 0
    %3831 = vmatpush1.bf16.msra.mxu0 %v3827
    %3832 = vmatprep.subr.bf16.mxu0 0
    %3833 = vmatpush1.bf16.msra.mxu0 %v3826
    %3834 = vmatprep.subr.bf16.mxu0 0
    %3835 = vmatpush1.bf16.msra.mxu0 %v3825
    %3836 = vmatprep.subr.bf16.mxu0 0
    %3837 = vmatpush1.bf16.msra.mxu0 %v3824
    %3838 = vmatprep.subr.bf16.mxu0 0
    %3839 = vmatpush1.bf16.msra.mxu0 %v3823
    %3840 = vmatprep.subr.bf16.mxu0 0
    %3841 = vmatpush1.bf16.msra.mxu0 %v3822
    %3842 = vmatprep.subr.bf16.mxu0 0
    %3843 = vmatpush1.bf16.msra.mxu0 %v3821
    %3844 = vmatprep.subr.bf16.mxu0 0
    %3845 = vmatpush2.bf16.msra.mxu0 0
    %3846 = vmatprep.subr.bf16.mxu0 0
    %3847 = vmatpush2.bf16.msra.mxu0 0
    %3848 = vmatprep.subr.bf16.mxu0 0
    %3849 = vmatpush2.bf16.msra.mxu0 0
    %3850 = vmatprep.subr.bf16.mxu0 0
    %3851 = vmatpush2.bf16.msra.mxu0 0
    %3852 = vmatprep.subr.bf16.mxu0 0
    %3853 = vmatpush2.bf16.msra.mxu0 0
    %3854 = vmatprep.subr.bf16.mxu0 0
    %3855 = vmatpush2.bf16.msra.mxu0 0
    %3856 = vmatprep.subr.bf16.mxu0 0
    %3857 = vmatpush2.bf16.msra.mxu0 0
    %3858 = vmatprep.subr.bf16.mxu0 0
    %3859 = vmatpush2.bf16.msra.mxu0 0
    %3860 = vmatprep.mubr.bf16.mxu0 0
    %3861 = vmatmul.mubr.bf16.gmra.mxu0 %v1691
    %v3862 = vpop.f32.mrf.mxu0
    %v3863 = vadd.f32 0.0, %v3862
    %v3864 = vpop.f32.mrf.mxu0
    %v3865 = vpop.f32.mrf.mxu0
    %v3866 = vadd.f32 0.0, %v3865
    %v3867 = vpop.f32.mrf.mxu0
    %3868 = vdwg.mxu0
    %s3869 = scalar_lea.vmem %s35, 32
    %v3870 = vld [vmem:[%s3869] sm:$0xf]
    %v3871 = vld [vmem:[%s3869 + $0x4] sm:$0xf]
    %v3872 = vld [vmem:[%s3869 + $0x8] sm:$0xf]
    %v3873 = vld [vmem:[%s3869 + $0xc] sm:$0xf]
    %s3874 = scalar_lea.vmem %s37, 32
    %v3875 = vld [vmem:[%s3874] sm:$0xf]
    %v3876 = vld [vmem:[%s3874 + $0x4] sm:$0xf]
    %v3877 = vld [vmem:[%s3874 + $0x8] sm:$0xf]
    %v3878 = vld [vmem:[%s3874 + $0xc] sm:$0xf]
    %v3879 = vpack.c.bf16 %v3866, %v3863
    %v3884 = vunpack.c.l.b16 %v3875
    %v3885 = vunpack.c.l.b16 %v3876
    %v3886 = vunpack.c.l.b16 %v3877
    %v3887 = vunpack.c.l.b16 %v3878
    %v3888 = vpack.c.b16 %v3885, %v3884
    %v3889 = vpack.c.b16 %v3887, %v3886
    %v3893 = vsel %vm814, %v3879, 0
    %3895 = vmatprep.subr.bf16.mxu0 0
    %3896 = vmatpush1.bf16.msra.mxu0 0
    %3897 = vmatprep.subr.bf16.mxu0 0
    %3898 = vmatpush1.bf16.msra.mxu0 0
    %3899 = vmatprep.subr.bf16.mxu0 0
    %3900 = vmatpush1.bf16.msra.mxu0 0
    %3901 = vmatprep.subr.bf16.mxu0 0
    %3902 = vmatpush1.bf16.msra.mxu0 0
    %3903 = vmatprep.subr.bf16.mxu0 0
    %3904 = vmatpush1.bf16.msra.mxu0 0
    %3905 = vmatprep.subr.bf16.mxu0 0
    %3906 = vmatpush1.bf16.msra.mxu0 0
    %3907 = vmatprep.subr.bf16.mxu0 0
    %3908 = vmatpush1.bf16.msra.mxu0 %v3889
    %3909 = vmatprep.subr.bf16.mxu0 0
    %3910 = vmatpush1.bf16.msra.mxu0 %v3888
    %3911 = vmatprep.subr.bf16.mxu0 0
    %3912 = vmatpush2.bf16.msra.mxu0 0
    %3913 = vmatprep.subr.bf16.mxu0 0
    %3914 = vmatpush2.bf16.msra.mxu0 0
    %3915 = vmatprep.subr.bf16.mxu0 0
    %3916 = vmatpush2.bf16.msra.mxu0 0
    %3917 = vmatprep.subr.bf16.mxu0 0
    %3918 = vmatpush2.bf16.msra.mxu0 0
    %3919 = vmatprep.subr.bf16.mxu0 0
    %3920 = vmatpush2.bf16.msra.mxu0 0
    %3921 = vmatprep.subr.bf16.mxu0 0
    %3922 = vmatpush2.bf16.msra.mxu0 0
    %3923 = vmatprep.subr.bf16.mxu0 0
    %3924 = vmatpush2.bf16.msra.mxu0 0
    %3925 = vmatprep.subr.bf16.mxu0 0
    %3926 = vmatpush2.bf16.msra.mxu0 0
    %3927 = vmatprep.mubr.bf16.mxu0 0
    %3928 = vmatmul.mubr.bf16.gmra.mxu0 %v3893
    %v3929 = vpop.f32.mrf.mxu0
    %v3930 = vadd.f32 0.0, %v3929
    %v3931 = vpop.f32.mrf.mxu0
    %v3932 = vpop.f32.mrf.mxu0
    %v3933 = vadd.f32 0.0, %v3932
    %v3934 = vpop.f32.mrf.mxu0
    %3935 = vdwg.mxu0
    %v3940 = vunpack.c.l.b16 %v3870
    %v3941 = vunpack.c.l.b16 %v3871
    %v3942 = vunpack.c.l.b16 %v3872
    %v3943 = vunpack.c.l.b16 %v3873
    %v3944 = vpack.c.b16 %v3941, %v3940
    %v3945 = vpack.c.b16 %v3943, %v3942
    %3948 = vmatprep.subr.bf16.mxu0 0
    %3949 = vmatpush1.bf16.msra.mxu0 0
    %3950 = vmatprep.subr.bf16.mxu0 0
    %3951 = vmatpush1.bf16.msra.mxu0 0
    %3952 = vmatprep.subr.bf16.mxu0 0
    %3953 = vmatpush1.bf16.msra.mxu0 0
    %3954 = vmatprep.subr.bf16.mxu0 0
    %3955 = vmatpush1.bf16.msra.mxu0 0
    %3956 = vmatprep.subr.bf16.mxu0 0
    %3957 = vmatpush1.bf16.msra.mxu0 0
    %3958 = vmatprep.subr.bf16.mxu0 0
    %3959 = vmatpush1.bf16.msra.mxu0 0
    %3960 = vmatprep.subr.bf16.mxu0 0
    %3961 = vmatpush1.bf16.msra.mxu0 %v3945
    %3962 = vmatprep.subr.bf16.mxu0 0
    %3963 = vmatpush1.bf16.msra.mxu0 %v3944
    %3964 = vmatprep.subr.bf16.mxu0 0
    %3965 = vmatpush2.bf16.msra.mxu0 0
    %3966 = vmatprep.subr.bf16.mxu0 0
    %3967 = vmatpush2.bf16.msra.mxu0 0
    %3968 = vmatprep.subr.bf16.mxu0 0
    %3969 = vmatpush2.bf16.msra.mxu0 0
    %3970 = vmatprep.subr.bf16.mxu0 0
    %3971 = vmatpush2.bf16.msra.mxu0 0
    %3972 = vmatprep.subr.bf16.mxu0 0
    %3973 = vmatpush2.bf16.msra.mxu0 0
    %3974 = vmatprep.subr.bf16.mxu0 0
    %3975 = vmatpush2.bf16.msra.mxu0 0
    %3976 = vmatprep.subr.bf16.mxu0 0
    %3977 = vmatpush2.bf16.msra.mxu0 0
    %3978 = vmatprep.subr.bf16.mxu0 0
    %3979 = vmatpush2.bf16.msra.mxu0 0
    %3980 = vmatprep.mubr.bf16.mxu0 0
    %3981 = vmatmul.mubr.bf16.gmra.mxu0 %v3036
    %v3982 = vpop.f32.mrf.mxu0
    %v3983 = vadd.f32 %v3930, %v3982
    %v3984 = vpop.f32.mrf.mxu0
    %v3985 = vpop.f32.mrf.mxu0
    %v3986 = vadd.f32 %v3933, %v3985
    %v3987 = vpop.f32.mrf.mxu0
    %3988 = vdwg.mxu0
    %s3989 = scalar_lea.vmem [#allocation8], 2
    %v3990 = vld [vmem:[%s3989] sm:$0x1]
    %v3992 = vlaneseq
    %v3993 = vshrl.u32 %v3992, 7
    %v3994 = vsub.s32 0, %v3993
    %v3995 = vrot.slane %v3990, %v3994
    %v3997 = vadd.f32 %v3983, %v3995
    %v3998 = vadd.f32 %v3986, %v3995
    %v3999 = vxor.u32 %v3997, 2147483648
    %v4000 = vxor.u32 %v3998, 2147483648
    %v4001 = vmul.f32 %v3999, 1.442695
    %v4002 = vpow.pop %v4001
    %v4003 = vmul.f32 %v4000, 1.442695
    %v4004 = vpow.pop %v4003
    %v4005 = vadd.f32 %v4002, 1.0
    %v4006 = vadd.f32 %v4004, 1.0
    %v4007 = vrcp.pop %v4005
    %v4008 = vmul.f32 1.0, %v4007
    %v4009 = vrcp.pop %v4006
    %v4010 = vmul.f32 1.0, %v4009
    %v4011 = vmul.f32 %v3997, %v4008
    %v4012 = vmul.f32 %v3998, %v4010
    %s4013 = scalar_lea.vmem %s41, 32
    %v4014 = vld [vmem:[%s4013] sm:$0xf]
    %v4015 = vld [vmem:[%s4013 + $0x4] sm:$0xf]
    %v4016 = vld [vmem:[%s4013 + $0x8] sm:$0xf]
    %v4017 = vld [vmem:[%s4013 + $0xc] sm:$0xf]
    %v4018 = vpack.c.bf16 %v4012, %v4011
    %v4023 = vunpack.c.l.b16 %v4014
    %v4024 = vunpack.c.l.b16 %v4015
    %v4025 = vunpack.c.l.b16 %v4016
    %v4026 = vunpack.c.l.b16 %v4017
    %v4027 = vpack.c.b16 %v4024, %v4023
    %v4028 = vpack.c.b16 %v4026, %v4025
    %v4032 = vsel %vm814, %v4018, 0
    %4034 = vmatprep.subr.bf16.mxu0 0
    %4035 = vmatpush1.bf16.msra.mxu0 0
    %4036 = vmatprep.subr.bf16.mxu0 0
    %4037 = vmatpush1.bf16.msra.mxu0 0
    %4038 = vmatprep.subr.bf16.mxu0 0
    %4039 = vmatpush1.bf16.msra.mxu0 0
    %4040 = vmatprep.subr.bf16.mxu0 0
    %4041 = vmatpush1.bf16.msra.mxu0 0
    %4042 = vmatprep.subr.bf16.mxu0 0
    %4043 = vmatpush1.bf16.msra.mxu0 0
    %4044 = vmatprep.subr.bf16.mxu0 0
    %4045 = vmatpush1.bf16.msra.mxu0 0
    %4046 = vmatprep.subr.bf16.mxu0 0
    %4047 = vmatpush1.bf16.msra.mxu0 %v4028
    %4048 = vmatprep.subr.bf16.mxu0 0
    %4049 = vmatpush1.bf16.msra.mxu0 %v4027
    %4050 = vmatprep.subr.bf16.mxu0 0
    %4051 = vmatpush2.bf16.msra.mxu0 0
    %4052 = vmatprep.subr.bf16.mxu0 0
    %4053 = vmatpush2.bf16.msra.mxu0 0
    %4054 = vmatprep.subr.bf16.mxu0 0
    %4055 = vmatpush2.bf16.msra.mxu0 0
    %4056 = vmatprep.subr.bf16.mxu0 0
    %4057 = vmatpush2.bf16.msra.mxu0 0
    %4058 = vmatprep.subr.bf16.mxu0 0
    %4059 = vmatpush2.bf16.msra.mxu0 0
    %4060 = vmatprep.subr.bf16.mxu0 0
    %4061 = vmatpush2.bf16.msra.mxu0 0
    %4062 = vmatprep.subr.bf16.mxu0 0
    %4063 = vmatpush2.bf16.msra.mxu0 0
    %4064 = vmatprep.subr.bf16.mxu0 0
    %4065 = vmatpush2.bf16.msra.mxu0 0
    %4066 = vmatprep.mubr.bf16.mxu0 0
    %4067 = vmatmul.mubr.bf16.gmra.mxu0 %v4032
    %v4068 = vpop.f32.mrf.mxu0
    %v4069 = vadd.f32 0.0, %v4068
    %v4070 = vpop.f32.mrf.mxu0
    %v4071 = vpop.f32.mrf.mxu0
    %v4072 = vadd.f32 0.0, %v4071
    %v4073 = vpop.f32.mrf.mxu0
    %4074 = vdwg.mxu0
    %v4075 = vadd.f32 %v3015, %v4069
    %v4076 = vadd.f32 %v3016, %v4072
    %s4077 = scalar_lea.vmem [#allocation10], 2
    %v4078 = vld [vmem:[%s4077] sm:$0x1]
    %v4080 = vlaneseq
    %v4081 = vshrl.u32 %v4080, 7
    %v4082 = vsub.s32 0, %v4081
    %v4083 = vrot.slane %v4078, %v4082
    %v4085 = vadd.f32 %v4075, %v4083
    %v4086 = vadd.f32 %v4076, %v4083
    %s4087 = scalar_lea.vmem %s21, 48
    %v4088 = vld [vmem:[%s4087] sm:$0xf]
    %v4089 = vld [vmem:[%s4087 + $0x4] sm:$0xf]
    %v4090 = vld [vmem:[%s4087 + $0x8] sm:$0xf]
    %v4091 = vld [vmem:[%s4087 + $0xc] sm:$0xf]
    %v4092 = vpack.c.bf16 %v4086, %v4085
    %v4097 = vunpack.c.l.b16 %v4088
    %v4098 = vunpack.c.l.b16 %v4089
    %v4099 = vunpack.c.l.b16 %v4090
    %v4100 = vunpack.c.l.b16 %v4091
    %v4101 = vpack.c.b16 %v4098, %v4097
    %v4102 = vpack.c.b16 %v4100, %v4099
    %v4106 = vsel %vm814, %v4092, 0
    %4108 = vmatprep.subr.bf16.mxu0 0
    %4109 = vmatpush1.bf16.msra.mxu0 0
    %4110 = vmatprep.subr.bf16.mxu0 0
    %4111 = vmatpush1.bf16.msra.mxu0 0
    %4112 = vmatprep.subr.bf16.mxu0 0
    %4113 = vmatpush1.bf16.msra.mxu0 0
    %4114 = vmatprep.subr.bf16.mxu0 0
    %4115 = vmatpush1.bf16.msra.mxu0 0
    %4116 = vmatprep.subr.bf16.mxu0 0
    %4117 = vmatpush1.bf16.msra.mxu0 0
    %4118 = vmatprep.subr.bf16.mxu0 0
    %4119 = vmatpush1.bf16.msra.mxu0 0
    %4120 = vmatprep.subr.bf16.mxu0 0
    %4121 = vmatpush1.bf16.msra.mxu0 %v4102
    %4122 = vmatprep.subr.bf16.mxu0 0
    %4123 = vmatpush1.bf16.msra.mxu0 %v4101
    %4124 = vmatprep.subr.bf16.mxu0 0
    %4125 = vmatpush2.bf16.msra.mxu0 0
    %4126 = vmatprep.subr.bf16.mxu0 0
    %4127 = vmatpush2.bf16.msra.mxu0 0
    %4128 = vmatprep.subr.bf16.mxu0 0
    %4129 = vmatpush2.bf16.msra.mxu0 0
    %4130 = vmatprep.subr.bf16.mxu0 0
    %4131 = vmatpush2.bf16.msra.mxu0 0
    %4132 = vmatprep.subr.bf16.mxu0 0
    %4133 = vmatpush2.bf16.msra.mxu0 0
    %4134 = vmatprep.subr.bf16.mxu0 0
    %4135 = vmatpush2.bf16.msra.mxu0 0
    %4136 = vmatprep.subr.bf16.mxu0 0
    %4137 = vmatpush2.bf16.msra.mxu0 0
    %4138 = vmatprep.subr.bf16.mxu0 0
    %4139 = vmatpush2.bf16.msra.mxu0 0
    %4140 = vmatprep.mubr.bf16.mxu0 0
    %4141 = vmatmul.mubr.bf16.gmra.mxu0 %v4106
    %v4142 = vpop.f32.mrf.mxu0
    %v4143 = vadd.f32 0.0, %v4142
    %v4144 = vpop.f32.mrf.mxu0
    %v4145 = vpop.f32.mrf.mxu0
    %v4146 = vadd.f32 0.0, %v4145
    %v4147 = vpop.f32.mrf.mxu0
    %4148 = vdwg.mxu0
    %s4149 = scalar_lea.vmem %s23, 48
    %v4150 = vld [vmem:[%s4149] sm:$0xf]
    %v4151 = vld [vmem:[%s4149 + $0x4] sm:$0xf]
    %v4152 = vld [vmem:[%s4149 + $0x8] sm:$0xf]
    %v4153 = vld [vmem:[%s4149 + $0xc] sm:$0xf]
    %v4158 = vunpack.c.l.b16 %v4150
    %v4159 = vunpack.c.l.b16 %v4151
    %v4160 = vunpack.c.l.b16 %v4152
    %v4161 = vunpack.c.l.b16 %v4153
    %v4162 = vpack.c.b16 %v4159, %v4158
    %v4163 = vpack.c.b16 %v4161, %v4160
    %4166 = vmatprep.subr.bf16.mxu0 0
    %4167 = vmatpush1.bf16.msra.mxu0 0
    %4168 = vmatprep.subr.bf16.mxu0 0
    %4169 = vmatpush1.bf16.msra.mxu0 0
    %4170 = vmatprep.subr.bf16.mxu0 0
    %4171 = vmatpush1.bf16.msra.mxu0 0
    %4172 = vmatprep.subr.bf16.mxu0 0
    %4173 = vmatpush1.bf16.msra.mxu0 0
    %4174 = vmatprep.subr.bf16.mxu0 0
    %4175 = vmatpush1.bf16.msra.mxu0 0
    %4176 = vmatprep.subr.bf16.mxu0 0
    %4177 = vmatpush1.bf16.msra.mxu0 0
    %4178 = vmatprep.subr.bf16.mxu0 0
    %4179 = vmatpush1.bf16.msra.mxu0 %v4163
    %4180 = vmatprep.subr.bf16.mxu0 0
    %4181 = vmatpush1.bf16.msra.mxu0 %v4162
    %4182 = vmatprep.subr.bf16.mxu0 0
    %4183 = vmatpush2.bf16.msra.mxu0 0
    %4184 = vmatprep.subr.bf16.mxu0 0
    %4185 = vmatpush2.bf16.msra.mxu0 0
    %4186 = vmatprep.subr.bf16.mxu0 0
    %4187 = vmatpush2.bf16.msra.mxu0 0
    %4188 = vmatprep.subr.bf16.mxu0 0
    %4189 = vmatpush2.bf16.msra.mxu0 0
    %4190 = vmatprep.subr.bf16.mxu0 0
    %4191 = vmatpush2.bf16.msra.mxu0 0
    %4192 = vmatprep.subr.bf16.mxu0 0
    %4193 = vmatpush2.bf16.msra.mxu0 0
    %4194 = vmatprep.subr.bf16.mxu0 0
    %4195 = vmatpush2.bf16.msra.mxu0 0
    %4196 = vmatprep.subr.bf16.mxu0 0
    %4197 = vmatpush2.bf16.msra.mxu0 0
    %4198 = vmatprep.mubr.bf16.mxu0 0
    %4199 = vmatmul.mubr.bf16.gmra.mxu0 %v4106
    %v4200 = vpop.f32.mrf.mxu0
    %v4201 = vadd.f32 0.0, %v4200
    %v4202 = vpop.f32.mrf.mxu0
    %v4203 = vpop.f32.mrf.mxu0
    %v4204 = vadd.f32 0.0, %v4203
    %v4205 = vpop.f32.mrf.mxu0
    %4206 = vdwg.mxu0
    %v4207 = vpack.c.bf16 %v4146, %v4143
    %v4208 = vpack.c.bf16 %v4204, %v4201
    %4209 = vmatprep.subr.bf16.mxu0 0
    %4210 = vmatpush1.bf16.msra.mxu0 0
    %4211 = vmatprep.subr.bf16.mxu0 0
    %4212 = vmatpush1.bf16.msra.mxu0 0
    %4213 = vmatprep.subr.bf16.mxu0 0
    %4214 = vmatpush1.bf16.msra.mxu0 0
    %4215 = vmatprep.subr.bf16.mxu0 0
    %4216 = vmatpush1.bf16.msra.mxu0 0
    %4217 = vmatprep.subr.bf16.mxu0 0
    %4218 = vmatpush1.bf16.msra.mxu0 0
    %4219 = vmatprep.subr.bf16.mxu0 0
    %4220 = vmatpush1.bf16.msra.mxu0 0
    %4221 = vmatprep.subr.bf16.mxu0 0
    %4222 = vmatpush1.bf16.msra.mxu0 0
    %4223 = vmatprep.subr.bf16.mxu0 0
    %4224 = vmatpush1.bf16.msra.mxu0 %v4208
    %4225 = vmatprep.subr.bf16.mxu0 0
    %4226 = vmatpush2.bf16.msra.mxu0 0
    %4227 = vmatprep.subr.bf16.mxu0 0
    %4228 = vmatpush2.bf16.msra.mxu0 0
    %4229 = vmatprep.subr.bf16.mxu0 0
    %4230 = vmatpush2.bf16.msra.mxu0 0
    %4231 = vmatprep.subr.bf16.mxu0 0
    %4232 = vmatpush2.bf16.msra.mxu0 0
    %4233 = vmatprep.subr.bf16.mxu0 0
    %4234 = vmatpush2.bf16.msra.mxu0 0
    %4235 = vmatprep.subr.bf16.mxu0 0
    %4236 = vmatpush2.bf16.msra.mxu0 0
    %4237 = vmatprep.subr.bf16.mxu0 0
    %4238 = vmatpush2.bf16.msra.mxu0 0
    %4239 = vmatprep.subr.bf16.mxu0 0
    %4240 = vmatpush2.bf16.msra.mxu0 0
    %4241 = vmatprep.mubr.bf16.mxu0 0
    %4242 = vmatmul.mubr.bf16.gmra.mxu0 %v933
    %v4243 = vpop.f32.mrf.mxu0
    %v4244 = vadd.f32 0.0, %v4243
    %v4245 = vpop.f32.mrf.mxu0
    %v4246 = vpop.f32.mrf.mxu0
    %v4247 = vadd.f32 0.0, %v4246
    %v4248 = vpop.f32.mrf.mxu0
    %4249 = vmatprep.mubr.bf16.mxu0 0
    %4250 = vmatmul.mubr.bf16.gmra.mxu0 %v936
    %v4251 = vpop.f32.mrf.mxu0
    %v4252 = vadd.f32 0.0, %v4251
    %v4253 = vpop.f32.mrf.mxu0
    %v4254 = vpop.f32.mrf.mxu0
    %v4255 = vadd.f32 0.0, %v4254
    %v4256 = vpop.f32.mrf.mxu0
    %4257 = vmatprep.mubr.bf16.mxu0 0
    %4258 = vmatmul.mubr.bf16.gmra.mxu0 %v939
    %v4259 = vpop.f32.mrf.mxu0
    %v4260 = vadd.f32 0.0, %v4259
    %v4261 = vpop.f32.mrf.mxu0
    %v4262 = vpop.f32.mrf.mxu0
    %v4263 = vadd.f32 0.0, %v4262
    %v4264 = vpop.f32.mrf.mxu0
    %4265 = vmatprep.mubr.bf16.mxu0 0
    %4266 = vmatmul.mubr.bf16.gmra.mxu0 %v942
    %v4267 = vpop.f32.mrf.mxu0
    %v4268 = vadd.f32 0.0, %v4267
    %v4269 = vpop.f32.mrf.mxu0
    %v4270 = vpop.f32.mrf.mxu0
    %v4271 = vadd.f32 0.0, %v4270
    %v4272 = vpop.f32.mrf.mxu0
    %4273 = vmatprep.mubr.bf16.mxu0 0
    %4274 = vmatmul.mubr.bf16.gmra.mxu0 %v945
    %v4275 = vpop.f32.mrf.mxu0
    %v4276 = vadd.f32 0.0, %v4275
    %v4277 = vpop.f32.mrf.mxu0
    %v4278 = vpop.f32.mrf.mxu0
    %v4279 = vadd.f32 0.0, %v4278
    %v4280 = vpop.f32.mrf.mxu0
    %4281 = vmatprep.mubr.bf16.mxu0 0
    %4282 = vmatmul.mubr.bf16.gmra.mxu0 %v948
    %v4283 = vpop.f32.mrf.mxu0
    %v4284 = vadd.f32 0.0, %v4283
    %v4285 = vpop.f32.mrf.mxu0
    %v4286 = vpop.f32.mrf.mxu0
    %v4287 = vadd.f32 0.0, %v4286
    %v4288 = vpop.f32.mrf.mxu0
    %4289 = vmatprep.mubr.bf16.mxu0 0
    %4290 = vmatmul.mubr.bf16.gmra.mxu0 %v951
    %v4291 = vpop.f32.mrf.mxu0
    %v4292 = vadd.f32 0.0, %v4291
    %v4293 = vpop.f32.mrf.mxu0
    %v4294 = vpop.f32.mrf.mxu0
    %v4295 = vadd.f32 0.0, %v4294
    %v4296 = vpop.f32.mrf.mxu0
    %4297 = vdwg.mxu0
    %4298 = vmatprep.subr.bf16.mxu0 0
    %4299 = vmatpush1.bf16.msra.mxu0 0
    %4300 = vmatprep.subr.bf16.mxu0 0
    %4301 = vmatpush1.bf16.msra.mxu0 0
    %4302 = vmatprep.subr.bf16.mxu0 0
    %4303 = vmatpush1.bf16.msra.mxu0 0
    %4304 = vmatprep.subr.bf16.mxu0 0
    %4305 = vmatpush1.bf16.msra.mxu0 0
    %4306 = vmatprep.subr.bf16.mxu0 0
    %4307 = vmatpush1.bf16.msra.mxu0 0
    %4308 = vmatprep.subr.bf16.mxu0 0
    %4309 = vmatpush1.bf16.msra.mxu0 0
    %4310 = vmatprep.subr.bf16.mxu0 0
    %4311 = vmatpush1.bf16.msra.mxu0 0
    %4312 = vmatprep.subr.bf16.mxu0 0
    %4313 = vmatpush1.bf16.msra.mxu0 %v4207
    %4314 = vmatprep.subr.bf16.mxu0 0
    %4315 = vmatpush2.bf16.msra.mxu0 0
    %4316 = vmatprep.subr.bf16.mxu0 0
    %4317 = vmatpush2.bf16.msra.mxu0 0
    %4318 = vmatprep.subr.bf16.mxu0 0
    %4319 = vmatpush2.bf16.msra.mxu0 0
    %4320 = vmatprep.subr.bf16.mxu0 0
    %4321 = vmatpush2.bf16.msra.mxu0 0
    %4322 = vmatprep.subr.bf16.mxu0 0
    %4323 = vmatpush2.bf16.msra.mxu0 0
    %4324 = vmatprep.subr.bf16.mxu0 0
    %4325 = vmatpush2.bf16.msra.mxu0 0
    %4326 = vmatprep.subr.bf16.mxu0 0
    %4327 = vmatpush2.bf16.msra.mxu0 0
    %4328 = vmatprep.subr.bf16.mxu0 0
    %4329 = vmatpush2.bf16.msra.mxu0 0
    %4330 = vmatprep.mubr.bf16.mxu0 0
    %4331 = vmatmul.mubr.bf16.gmra.mxu0 %v1043
    %v4332 = vpop.f32.mrf.mxu0
    %v4333 = vadd.f32 %v4244, %v4332
    %v4334 = vpop.f32.mrf.mxu0
    %v4335 = vpop.f32.mrf.mxu0
    %v4336 = vadd.f32 %v4247, %v4335
    %v4337 = vpop.f32.mrf.mxu0
    %4338 = vmatprep.mubr.bf16.mxu0 0
    %4339 = vmatmul.mubr.bf16.gmra.mxu0 %v1046
    %v4340 = vpop.f32.mrf.mxu0
    %v4341 = vadd.f32 %v4252, %v4340
    %v4342 = vpop.f32.mrf.mxu0
    %v4343 = vpop.f32.mrf.mxu0
    %v4344 = vadd.f32 %v4255, %v4343
    %v4345 = vpop.f32.mrf.mxu0
    %4346 = vmatprep.mubr.bf16.mxu0 0
    %4347 = vmatmul.mubr.bf16.gmra.mxu0 %v1049
    %v4348 = vpop.f32.mrf.mxu0
    %v4349 = vadd.f32 %v4260, %v4348
    %v4350 = vpop.f32.mrf.mxu0
    %v4351 = vpop.f32.mrf.mxu0
    %v4352 = vadd.f32 %v4263, %v4351
    %v4353 = vpop.f32.mrf.mxu0
    %4354 = vmatprep.mubr.bf16.mxu0 0
    %4355 = vmatmul.mubr.bf16.gmra.mxu0 %v1052
    %v4356 = vpop.f32.mrf.mxu0
    %v4357 = vadd.f32 %v4268, %v4356
    %v4358 = vpop.f32.mrf.mxu0
    %v4359 = vpop.f32.mrf.mxu0
    %v4360 = vadd.f32 %v4271, %v4359
    %v4361 = vpop.f32.mrf.mxu0
    %4362 = vmatprep.mubr.bf16.mxu0 0
    %4363 = vmatmul.mubr.bf16.gmra.mxu0 %v1055
    %v4364 = vpop.f32.mrf.mxu0
    %v4365 = vadd.f32 %v4276, %v4364
    %v4366 = vpop.f32.mrf.mxu0
    %v4367 = vpop.f32.mrf.mxu0
    %v4368 = vadd.f32 %v4279, %v4367
    %v4369 = vpop.f32.mrf.mxu0
    %4370 = vmatprep.mubr.bf16.mxu0 0
    %4371 = vmatmul.mubr.bf16.gmra.mxu0 %v1058
    %v4372 = vpop.f32.mrf.mxu0
    %v4373 = vadd.f32 %v4284, %v4372
    %v4374 = vpop.f32.mrf.mxu0
    %v4375 = vpop.f32.mrf.mxu0
    %v4376 = vadd.f32 %v4287, %v4375
    %v4377 = vpop.f32.mrf.mxu0
    %4378 = vmatprep.mubr.bf16.mxu0 0
    %4379 = vmatmul.mubr.bf16.gmra.mxu0 %v1061
    %v4380 = vpop.f32.mrf.mxu0
    %v4381 = vadd.f32 %v4292, %v4380
    %v4382 = vpop.f32.mrf.mxu0
    %v4383 = vpop.f32.mrf.mxu0
    %v4384 = vadd.f32 %v4295, %v4383
    %v4385 = vpop.f32.mrf.mxu0
    %4386 = vdwg.mxu0
    %s4387 = scalar_lea.vmem %s25, 3
    %v4388 = vld [vmem:[%s4387] sm:$0x1]
    %v4390 = vlaneseq
    %v4391 = vshrl.u32 %v4390, 7
    %v4392 = vsub.s32 0, %v4391
    %v4393 = vrot.slane %v4388, %v4392
    %v4395 = vmul.f32 %v698, %v4393
    %v4396 = vmul.f32 %v701, %v4393
    %v4397 = vmul.f32 %v704, %v4393
    %v4398 = vmul.f32 %v707, %v4393
    %v4399 = vmul.f32 %v710, %v4393
    %v4400 = vmul.f32 %v713, %v4393
    %v4401 = vmul.f32 %v716, %v4393
    %v4402 = vmul.f32 %v719, %v4393
    %v4403 = vmul.f32 %v722, %v4393
    %v4404 = vmul.f32 %v725, %v4393
    %v4405 = vmul.f32 %v728, %v4393
    %v4406 = vmul.f32 %v731, %v4393
    %v4407 = vmul.f32 %v734, %v4393
    %v4408 = vmul.f32 %v737, %v4393
    %v4409 = vadd.f32 %v4333, %v4395
    %v4410 = vadd.f32 %v4336, %v4396
    %v4411 = vadd.f32 %v4341, %v4397
    %v4412 = vadd.f32 %v4344, %v4398
    %v4413 = vadd.f32 %v4349, %v4399
    %v4414 = vadd.f32 %v4352, %v4400
    %v4415 = vadd.f32 %v4357, %v4401
    %v4416 = vadd.f32 %v4360, %v4402
    %v4417 = vadd.f32 %v4365, %v4403
    %v4418 = vadd.f32 %v4368, %v4404
    %v4419 = vadd.f32 %v4373, %v4405
    %v4420 = vadd.f32 %v4376, %v4406
    %v4421 = vadd.f32 %v4381, %v4407
    %v4422 = vadd.f32 %v4384, %v4408
    %s4423 = scalar_lea.vmem %s27, 6
    %v4424 = vld [vmem:[%s4423] sm:$0x3]
    %v4426 = vsel %vm1217, %v4424, 0
    %4428 = vmatprep.subr.bf16.mxu0 0
    %4429 = vmatpush1.bf16.msra.mxu0 0
    %4430 = vmatprep.subr.bf16.mxu0 0
    %4431 = vmatpush1.bf16.msra.mxu0 0
    %4432 = vmatprep.subr.bf16.mxu0 0
    %4433 = vmatpush1.bf16.msra.mxu0 0
    %4434 = vmatprep.subr.bf16.mxu0 0
    %4435 = vmatpush1.bf16.msra.mxu0 0
    %4436 = vmatprep.subr.bf16.mxu0 0
    %4437 = vmatpush1.bf16.msra.mxu0 0
    %4438 = vmatprep.subr.bf16.mxu0 0
    %4439 = vmatpush1.bf16.msra.mxu0 0
    %4440 = vmatprep.subr.bf16.mxu0 0
    %4441 = vmatpush1.bf16.msra.mxu0 0
    %4442 = vmatprep.subr.bf16.mxu0 0
    %4443 = vmatpush1.bf16.msra.mxu0 %v4426
    %4444 = vmatprep.subr.bf16.mxu0 0
    %4445 = vmatpush2.bf16.msra.mxu0 0
    %4446 = vmatprep.subr.bf16.mxu0 0
    %4447 = vmatpush2.bf16.msra.mxu0 0
    %4448 = vmatprep.subr.bf16.mxu0 0
    %4449 = vmatpush2.bf16.msra.mxu0 0
    %4450 = vmatprep.subr.bf16.mxu0 0
    %4451 = vmatpush2.bf16.msra.mxu0 0
    %4452 = vmatprep.subr.bf16.mxu0 0
    %4453 = vmatpush2.bf16.msra.mxu0 0
    %4454 = vmatprep.subr.bf16.mxu0 0
    %4455 = vmatpush2.bf16.msra.mxu0 0
    %4456 = vmatprep.subr.bf16.mxu0 0
    %4457 = vmatpush2.bf16.msra.mxu0 0
    %4458 = vmatprep.subr.bf16.mxu0 0
    %4459 = vmatpush2.bf16.msra.mxu0 0
    %4460 = vmatprep.mubr.bf16.mxu0 0
    %4461 = vmatmul.mubr.bf16.gmra.mxu0 %v1197
    %v4462 = vpop.f32.mrf.mxu0
    %v4463 = vadd.f32 0.0, %v4462
    %v4464 = vpop.f32.mrf.mxu0
    %v4465 = vpop.f32.mrf.mxu0
    %v4466 = vadd.f32 0.0, %v4465
    %v4467 = vpop.f32.mrf.mxu0
    %4468 = vmatprep.mubr.bf16.mxu0 0
    %4469 = vmatmul.mubr.bf16.gmra.mxu0 %v1200
    %v4470 = vpop.f32.mrf.mxu0
    %v4471 = vadd.f32 0.0, %v4470
    %v4472 = vpop.f32.mrf.mxu0
    %v4473 = vpop.f32.mrf.mxu0
    %v4474 = vadd.f32 0.0, %v4473
    %v4475 = vpop.f32.mrf.mxu0
    %4476 = vmatprep.mubr.bf16.mxu0 0
    %4477 = vmatmul.mubr.bf16.gmra.mxu0 %v1203
    %v4478 = vpop.f32.mrf.mxu0
    %v4479 = vadd.f32 0.0, %v4478
    %v4480 = vpop.f32.mrf.mxu0
    %v4481 = vpop.f32.mrf.mxu0
    %v4482 = vadd.f32 0.0, %v4481
    %v4483 = vpop.f32.mrf.mxu0
    %4484 = vmatprep.mubr.bf16.mxu0 0
    %4485 = vmatmul.mubr.bf16.gmra.mxu0 %v1206
    %v4486 = vpop.f32.mrf.mxu0
    %v4487 = vadd.f32 0.0, %v4486
    %v4488 = vpop.f32.mrf.mxu0
    %v4489 = vpop.f32.mrf.mxu0
    %v4490 = vadd.f32 0.0, %v4489
    %v4491 = vpop.f32.mrf.mxu0
    %4492 = vmatprep.mubr.bf16.mxu0 0
    %4493 = vmatmul.mubr.bf16.gmra.mxu0 %v1209
    %v4494 = vpop.f32.mrf.mxu0
    %v4495 = vadd.f32 0.0, %v4494
    %v4496 = vpop.f32.mrf.mxu0
    %v4497 = vpop.f32.mrf.mxu0
    %v4498 = vadd.f32 0.0, %v4497
    %v4499 = vpop.f32.mrf.mxu0
    %4500 = vmatprep.mubr.bf16.mxu0 0
    %4501 = vmatmul.mubr.bf16.gmra.mxu0 %v1212
    %v4502 = vpop.f32.mrf.mxu0
    %v4503 = vadd.f32 0.0, %v4502
    %v4504 = vpop.f32.mrf.mxu0
    %v4505 = vpop.f32.mrf.mxu0
    %v4506 = vadd.f32 0.0, %v4505
    %v4507 = vpop.f32.mrf.mxu0
    %4508 = vmatprep.mubr.bf16.mxu0 0
    %4509 = vmatmul.mubr.bf16.gmra.mxu0 %v1215
    %v4510 = vpop.f32.mrf.mxu0
    %v4511 = vadd.f32 0.0, %v4510
    %v4512 = vpop.f32.mrf.mxu0
    %v4513 = vpop.f32.mrf.mxu0
    %v4514 = vadd.f32 0.0, %v4513
    %v4515 = vpop.f32.mrf.mxu0
    %4516 = vdwg.mxu0
    %v4517 = vadd.f32 %v4409, %v4463
    %v4518 = vadd.f32 %v4410, %v4466
    %v4519 = vadd.f32 %v4411, %v4471
    %v4520 = vadd.f32 %v4412, %v4474
    %v4521 = vadd.f32 %v4413, %v4479
    %v4522 = vadd.f32 %v4414, %v4482
    %v4523 = vadd.f32 %v4415, %v4487
    %v4524 = vadd.f32 %v4416, %v4490
    %v4525 = vadd.f32 %v4417, %v4495
    %v4526 = vadd.f32 %v4418, %v4498
    %v4527 = vadd.f32 %v4419, %v4503
    %v4528 = vadd.f32 %v4420, %v4506
    %v4529 = vadd.f32 %v4421, %v4511
    %v4530 = vadd.f32 %v4422, %v4514
    %s4531 = scalar_lea.vmem [#allocation5], 3
    %v4532 = vld [vmem:[%s4531] sm:$0x1]
    %v4534 = vlaneseq
    %v4535 = vshrl.u32 %v4534, 7
    %v4536 = vsub.s32 0, %v4535
    %v4537 = vrot.slane %v4532, %v4536
    %v4539 = vadd.f32 %v4517, %v4537
    %v4540 = vadd.f32 %v4518, %v4537
    %v4541 = vadd.f32 %v4519, %v4537
    %v4542 = vadd.f32 %v4520, %v4537
    %v4543 = vadd.f32 %v4521, %v4537
    %v4544 = vadd.f32 %v4522, %v4537
    %v4545 = vadd.f32 %v4523, %v4537
    %v4546 = vadd.f32 %v4524, %v4537
    %v4547 = vadd.f32 %v4525, %v4537
    %v4548 = vadd.f32 %v4526, %v4537
    %v4549 = vadd.f32 %v4527, %v4537
    %v4550 = vadd.f32 %v4528, %v4537
    %v4551 = vadd.f32 %v4529, %v4537
    %v4552 = vadd.f32 %v4530, %v4537
    %v4553 = vxor.u32 %v4539, 2147483648
    %v4554 = vxor.u32 %v4540, 2147483648
    %v4555 = vxor.u32 %v4541, 2147483648
    %v4556 = vxor.u32 %v4542, 2147483648
    %v4557 = vxor.u32 %v4543, 2147483648
    %v4558 = vxor.u32 %v4544, 2147483648
    %v4559 = vxor.u32 %v4545, 2147483648
    %v4560 = vxor.u32 %v4546, 2147483648
    %v4561 = vxor.u32 %v4547, 2147483648
    %v4562 = vxor.u32 %v4548, 2147483648
    %v4563 = vxor.u32 %v4549, 2147483648
    %v4564 = vxor.u32 %v4550, 2147483648
    %v4565 = vxor.u32 %v4551, 2147483648
    %v4566 = vxor.u32 %v4552, 2147483648
    %v4567 = vmul.f32 %v4553, 1.442695
    %v4568 = vpow.pop %v4567
    %v4569 = vmul.f32 %v4554, 1.442695
    %v4570 = vpow.pop %v4569
    %v4571 = vmul.f32 %v4555, 1.442695
    %v4572 = vpow.pop %v4571
    %v4573 = vmul.f32 %v4556, 1.442695
    %v4574 = vpow.pop %v4573
    %v4575 = vmul.f32 %v4557, 1.442695
    %v4576 = vpow.pop %v4575
    %v4577 = vmul.f32 %v4558, 1.442695
    %v4578 = vpow.pop %v4577
    %v4579 = vmul.f32 %v4559, 1.442695
    %v4580 = vpow.pop %v4579
    %v4581 = vmul.f32 %v4560, 1.442695
    %v4582 = vpow.pop %v4581
    %v4583 = vmul.f32 %v4561, 1.442695
    %v4584 = vpow.pop %v4583
    %v4585 = vmul.f32 %v4562, 1.442695
    %v4586 = vpow.pop %v4585
    %v4587 = vmul.f32 %v4563, 1.442695
    %v4588 = vpow.pop %v4587
    %v4589 = vmul.f32 %v4564, 1.442695
    %v4590 = vpow.pop %v4589
    %v4591 = vmul.f32 %v4565, 1.442695
    %v4592 = vpow.pop %v4591
    %v4593 = vmul.f32 %v4566, 1.442695
    %v4594 = vpow.pop %v4593
    %v4595 = vadd.f32 %v4568, 1.0
    %v4596 = vadd.f32 %v4570, 1.0
    %v4597 = vadd.f32 %v4572, 1.0
    %v4598 = vadd.f32 %v4574, 1.0
    %v4599 = vadd.f32 %v4576, 1.0
    %v4600 = vadd.f32 %v4578, 1.0
    %v4601 = vadd.f32 %v4580, 1.0
    %v4602 = vadd.f32 %v4582, 1.0
    %v4603 = vadd.f32 %v4584, 1.0
    %v4604 = vadd.f32 %v4586, 1.0
    %v4605 = vadd.f32 %v4588, 1.0
    %v4606 = vadd.f32 %v4590, 1.0
    %v4607 = vadd.f32 %v4592, 1.0
    %v4608 = vadd.f32 %v4594, 1.0
    %v4609 = vrcp.pop %v4595
    %v4610 = vmul.f32 1.0, %v4609
    %v4611 = vrcp.pop %v4596
    %v4612 = vmul.f32 1.0, %v4611
    %v4613 = vrcp.pop %v4597
    %v4614 = vmul.f32 1.0, %v4613
    %v4615 = vrcp.pop %v4598
    %v4616 = vmul.f32 1.0, %v4615
    %v4617 = vrcp.pop %v4599
    %v4618 = vmul.f32 1.0, %v4617
    %v4619 = vrcp.pop %v4600
    %v4620 = vmul.f32 1.0, %v4619
    %v4621 = vrcp.pop %v4601
    %v4622 = vmul.f32 1.0, %v4621
    %v4623 = vrcp.pop %v4602
    %v4624 = vmul.f32 1.0, %v4623
    %v4625 = vrcp.pop %v4603
    %v4626 = vmul.f32 1.0, %v4625
    %v4627 = vrcp.pop %v4604
    %v4628 = vmul.f32 1.0, %v4627
    %v4629 = vrcp.pop %v4605
    %v4630 = vmul.f32 1.0, %v4629
    %v4631 = vrcp.pop %v4606
    %v4632 = vmul.f32 1.0, %v4631
    %v4633 = vrcp.pop %v4607
    %v4634 = vmul.f32 1.0, %v4633
    %v4635 = vrcp.pop %v4608
    %v4636 = vmul.f32 1.0, %v4635
    %v4637 = vmul.f32 %v4539, %v4610
    %v4638 = vmul.f32 %v4540, %v4612
    %v4639 = vmul.f32 %v4541, %v4614
    %v4640 = vmul.f32 %v4542, %v4616
    %v4641 = vmul.f32 %v4543, %v4618
    %v4642 = vmul.f32 %v4544, %v4620
    %v4643 = vmul.f32 %v4545, %v4622
    %v4644 = vmul.f32 %v4546, %v4624
    %v4645 = vmul.f32 %v4547, %v4626
    %v4646 = vmul.f32 %v4548, %v4628
    %v4647 = vmul.f32 %v4549, %v4630
    %v4648 = vmul.f32 %v4550, %v4632
    %v4649 = vmul.f32 %v4551, %v4634
    %v4650 = vmul.f32 %v4552, %v4636
    %s4651 = scalar_lea.vmem %s31, 48
    %v4652 = vld [vmem:[%s4651] sm:$0xf]
    %v4653 = vld [vmem:[%s4651 + $0x4] sm:$0xf]
    %v4654 = vld [vmem:[%s4651 + $0x8] sm:$0xf]
    %v4655 = vld [vmem:[%s4651 + $0xc] sm:$0xf]
    %v4656 = vpack.c.bf16 %v4638, %v4637
    %v4657 = vpack.c.bf16 %v4640, %v4639
    %v4658 = vpack.c.bf16 %v4642, %v4641
    %v4659 = vpack.c.bf16 %v4644, %v4643
    %v4660 = vpack.c.bf16 %v4646, %v4645
    %v4661 = vpack.c.bf16 %v4648, %v4647
    %v4662 = vpack.c.bf16 %v4650, %v4649
    %s4663 = scalar_lea.vmem [#allocation7], 3
    %v4664 = vld [vmem:[%s4663] sm:$0x1]
    %v4666 = vlaneseq
    %v4667 = vshrl.u32 %v4666, 7
    %v4668 = vsub.s32 0, %v4667
    %v4669 = vrot.slane %v4664, %v4668
    %v4675 = vunpack.c.l.b16 %v4652
    %v4676 = vunpack.c.l.b16 %v4653
    %v4677 = vunpack.c.l.b16 %v4654
    %v4678 = vunpack.c.l.b16 %v4655
    %v4679 = vpack.c.b16 %v4676, %v4675
    %v4680 = vpack.c.b16 %v4678, %v4677
    %v4684 = vsel %vm814, %v4656, 0
    %v4687 = vsel %vm814, %v4657, 0
    %v4690 = vsel %vm814, %v4658, 0
    %v4693 = vsel %vm814, %v4659, 0
    %v4696 = vsel %vm814, %v4660, 0
    %v4699 = vsel %vm814, %v4661, 0
    %v4702 = vsel %vm814, %v4662, 0
    %4704 = vmatprep.subr.bf16.mxu0 0
    %4705 = vmatpush1.bf16.msra.mxu0 0
    %4706 = vmatprep.subr.bf16.mxu0 0
    %4707 = vmatpush1.bf16.msra.mxu0 0
    %4708 = vmatprep.subr.bf16.mxu0 0
    %4709 = vmatpush1.bf16.msra.mxu0 0
    %4710 = vmatprep.subr.bf16.mxu0 0
    %4711 = vmatpush1.bf16.msra.mxu0 0
    %4712 = vmatprep.subr.bf16.mxu0 0
    %4713 = vmatpush1.bf16.msra.mxu0 0
    %4714 = vmatprep.subr.bf16.mxu0 0
    %4715 = vmatpush1.bf16.msra.mxu0 0
    %4716 = vmatprep.subr.bf16.mxu0 0
    %4717 = vmatpush1.bf16.msra.mxu0 %v4680
    %4718 = vmatprep.subr.bf16.mxu0 0
    %4719 = vmatpush1.bf16.msra.mxu0 %v4679
    %4720 = vmatprep.subr.bf16.mxu0 0
    %4721 = vmatpush2.bf16.msra.mxu0 0
    %4722 = vmatprep.subr.bf16.mxu0 0
    %4723 = vmatpush2.bf16.msra.mxu0 0
    %4724 = vmatprep.subr.bf16.mxu0 0
    %4725 = vmatpush2.bf16.msra.mxu0 0
    %4726 = vmatprep.subr.bf16.mxu0 0
    %4727 = vmatpush2.bf16.msra.mxu0 0
    %4728 = vmatprep.subr.bf16.mxu0 0
    %4729 = vmatpush2.bf16.msra.mxu0 0
    %4730 = vmatprep.subr.bf16.mxu0 0
    %4731 = vmatpush2.bf16.msra.mxu0 0
    %4732 = vmatprep.subr.bf16.mxu0 0
    %4733 = vmatpush2.bf16.msra.mxu0 0
    %4734 = vmatprep.subr.bf16.mxu0 0
    %4735 = vmatpush2.bf16.msra.mxu0 0
    %4736 = vmatprep.mubr.bf16.mxu0 0
    %4737 = vmatmul.mubr.bf16.gmra.mxu0 %v4684
    %v4738 = vpop.f32.mrf.mxu0
    %v4739 = vadd.f32 %v4669, %v4738
    %v4740 = vpop.f32.mrf.mxu0
    %v4741 = vpop.f32.mrf.mxu0
    %v4742 = vadd.f32 %v4669, %v4741
    %v4743 = vpop.f32.mrf.mxu0
    %4744 = vmatprep.mubr.bf16.mxu0 0
    %4745 = vmatmul.mubr.bf16.gmra.mxu0 %v4687
    %v4746 = vpop.f32.mrf.mxu0
    %v4747 = vadd.f32 %v4669, %v4746
    %v4748 = vpop.f32.mrf.mxu0
    %v4749 = vpop.f32.mrf.mxu0
    %v4750 = vadd.f32 %v4669, %v4749
    %v4751 = vpop.f32.mrf.mxu0
    %4752 = vmatprep.mubr.bf16.mxu0 0
    %4753 = vmatmul.mubr.bf16.gmra.mxu0 %v4690
    %v4754 = vpop.f32.mrf.mxu0
    %v4755 = vadd.f32 %v4669, %v4754
    %v4756 = vpop.f32.mrf.mxu0
    %v4757 = vpop.f32.mrf.mxu0
    %v4758 = vadd.f32 %v4669, %v4757
    %v4759 = vpop.f32.mrf.mxu0
    %4760 = vmatprep.mubr.bf16.mxu0 0
    %4761 = vmatmul.mubr.bf16.gmra.mxu0 %v4693
    %v4762 = vpop.f32.mrf.mxu0
    %v4763 = vadd.f32 %v4669, %v4762
    %v4764 = vpop.f32.mrf.mxu0
    %v4765 = vpop.f32.mrf.mxu0
    %v4766 = vadd.f32 %v4669, %v4765
    %v4767 = vpop.f32.mrf.mxu0
    %4768 = vmatprep.mubr.bf16.mxu0 0
    %4769 = vmatmul.mubr.bf16.gmra.mxu0 %v4696
    %v4770 = vpop.f32.mrf.mxu0
    %v4771 = vadd.f32 %v4669, %v4770
    %v4772 = vpop.f32.mrf.mxu0
    %v4773 = vpop.f32.mrf.mxu0
    %v4774 = vadd.f32 %v4669, %v4773
    %v4775 = vpop.f32.mrf.mxu0
    %4776 = vmatprep.mubr.bf16.mxu0 0
    %4777 = vmatmul.mubr.bf16.gmra.mxu0 %v4699
    %v4778 = vpop.f32.mrf.mxu0
    %v4779 = vadd.f32 %v4669, %v4778
    %v4780 = vpop.f32.mrf.mxu0
    %v4781 = vpop.f32.mrf.mxu0
    %v4782 = vadd.f32 %v4669, %v4781
    %v4783 = vpop.f32.mrf.mxu0
    %4784 = vmatprep.mubr.bf16.mxu0 0
    %4785 = vmatmul.mubr.bf16.gmra.mxu0 %v4702
    %v4786 = vpop.f32.mrf.mxu0
    %v4787 = vadd.f32 %v4669, %v4786
    %v4788 = vpop.f32.mrf.mxu0
    %v4789 = vpop.f32.mrf.mxu0
    %v4790 = vadd.f32 %v4669, %v4789
    %v4791 = vpop.f32.mrf.mxu0
    %4792 = vdwg.mxu0
    %v4793 = vxor.u32 %v4739, 2147483648
    %v4794 = vxor.u32 %v4742, 2147483648
    %v4795 = vxor.u32 %v4747, 2147483648
    %v4796 = vxor.u32 %v4750, 2147483648
    %v4797 = vxor.u32 %v4755, 2147483648
    %v4798 = vxor.u32 %v4758, 2147483648
    %v4799 = vxor.u32 %v4763, 2147483648
    %v4800 = vxor.u32 %v4766, 2147483648
    %v4801 = vxor.u32 %v4771, 2147483648
    %v4802 = vxor.u32 %v4774, 2147483648
    %v4803 = vxor.u32 %v4779, 2147483648
    %v4804 = vxor.u32 %v4782, 2147483648
    %v4805 = vxor.u32 %v4787, 2147483648
    %v4806 = vxor.u32 %v4790, 2147483648
    %v4807 = vmul.f32 %v4793, 1.442695
    %v4808 = vpow.pop %v4807
    %v4809 = vmul.f32 %v4794, 1.442695
    %v4810 = vpow.pop %v4809
    %v4811 = vmul.f32 %v4795, 1.442695
    %v4812 = vpow.pop %v4811
    %v4813 = vmul.f32 %v4796, 1.442695
    %v4814 = vpow.pop %v4813
    %v4815 = vmul.f32 %v4797, 1.442695
    %v4816 = vpow.pop %v4815
    %v4817 = vmul.f32 %v4798, 1.442695
    %v4818 = vpow.pop %v4817
    %v4819 = vmul.f32 %v4799, 1.442695
    %v4820 = vpow.pop %v4819
    %v4821 = vmul.f32 %v4800, 1.442695
    %v4822 = vpow.pop %v4821
    %v4823 = vmul.f32 %v4801, 1.442695
    %v4824 = vpow.pop %v4823
    %v4825 = vmul.f32 %v4802, 1.442695
    %v4826 = vpow.pop %v4825
    %v4827 = vmul.f32 %v4803, 1.442695
    %v4828 = vpow.pop %v4827
    %v4829 = vmul.f32 %v4804, 1.442695
    %v4830 = vpow.pop %v4829
    %v4831 = vmul.f32 %v4805, 1.442695
    %v4832 = vpow.pop %v4831
    %v4833 = vmul.f32 %v4806, 1.442695
    %v4834 = vpow.pop %v4833
    %v4835 = vadd.f32 %v4808, 1.0
    %v4836 = vadd.f32 %v4810, 1.0
    %v4837 = vadd.f32 %v4812, 1.0
    %v4838 = vadd.f32 %v4814, 1.0
    %v4839 = vadd.f32 %v4816, 1.0
    %v4840 = vadd.f32 %v4818, 1.0
    %v4841 = vadd.f32 %v4820, 1.0
    %v4842 = vadd.f32 %v4822, 1.0
    %v4843 = vadd.f32 %v4824, 1.0
    %v4844 = vadd.f32 %v4826, 1.0
    %v4845 = vadd.f32 %v4828, 1.0
    %v4846 = vadd.f32 %v4830, 1.0
    %v4847 = vadd.f32 %v4832, 1.0
    %v4848 = vadd.f32 %v4834, 1.0
    %v4849 = vrcp.pop %v4835
    %v4850 = vmul.f32 1.0, %v4849
    %v4851 = vrcp.pop %v4836
    %v4852 = vmul.f32 1.0, %v4851
    %v4853 = vrcp.pop %v4837
    %v4854 = vmul.f32 1.0, %v4853
    %v4855 = vrcp.pop %v4838
    %v4856 = vmul.f32 1.0, %v4855
    %v4857 = vrcp.pop %v4839
    %v4858 = vmul.f32 1.0, %v4857
    %v4859 = vrcp.pop %v4840
    %v4860 = vmul.f32 1.0, %v4859
    %v4861 = vrcp.pop %v4841
    %v4862 = vmul.f32 1.0, %v4861
    %v4863 = vrcp.pop %v4842
    %v4864 = vmul.f32 1.0, %v4863
    %v4865 = vrcp.pop %v4843
    %v4866 = vmul.f32 1.0, %v4865
    %v4867 = vrcp.pop %v4844
    %v4868 = vmul.f32 1.0, %v4867
    %v4869 = vrcp.pop %v4845
    %v4870 = vmul.f32 1.0, %v4869
    %v4871 = vrcp.pop %v4846
    %v4872 = vmul.f32 1.0, %v4871
    %v4873 = vrcp.pop %v4847
    %v4874 = vmul.f32 1.0, %v4873
    %v4875 = vrcp.pop %v4848
    %v4876 = vmul.f32 1.0, %v4875
    %v4877 = vmul.f32 %v4739, %v4850
    %v4878 = vmul.f32 %v4742, %v4852
    %v4879 = vmul.f32 %v4747, %v4854
    %v4880 = vmul.f32 %v4750, %v4856
    %v4881 = vmul.f32 %v4755, %v4858
    %v4882 = vmul.f32 %v4758, %v4860
    %v4883 = vmul.f32 %v4763, %v4862
    %v4884 = vmul.f32 %v4766, %v4864
    %v4885 = vmul.f32 %v4771, %v4866
    %v4886 = vmul.f32 %v4774, %v4868
    %v4887 = vmul.f32 %v4779, %v4870
    %v4888 = vmul.f32 %v4782, %v4872
    %v4889 = vmul.f32 %v4787, %v4874
    %v4890 = vmul.f32 %v4790, %v4876
    %s4891 = scalar_lea.vmem %s45, 48
    %v4892 = vld [vmem:[%s4891] sm:$0xf]
    %v4893 = vld [vmem:[%s4891 + $0x4] sm:$0xf]
    %v4894 = vld [vmem:[%s4891 + $0x8] sm:$0xf]
    %v4895 = vld [vmem:[%s4891 + $0xc] sm:$0xf]
    %v4896 = vpack.c.bf16 %v4878, %v4877
    %v4897 = vpack.c.bf16 %v4880, %v4879
    %v4898 = vpack.c.bf16 %v4882, %v4881
    %v4899 = vpack.c.bf16 %v4884, %v4883
    %v4900 = vpack.c.bf16 %v4886, %v4885
    %v4901 = vpack.c.bf16 %v4888, %v4887
    %v4902 = vpack.c.bf16 %v4890, %v4889
    %s4903 = scalar_lea.vmem [#allocation11], 3
    %v4904 = vld [vmem:[%s4903] sm:$0x1]
    %v4906 = vlaneseq
    %v4907 = vshrl.u32 %v4906, 7
    %v4908 = vsub.s32 0, %v4907
    %v4909 = vrot.slane %v4904, %v4908
    %v4915 = vunpack.c.l.b16 %v4892
    %v4916 = vunpack.c.l.b16 %v4893
    %v4917 = vunpack.c.l.b16 %v4894
    %v4918 = vunpack.c.l.b16 %v4895
    %v4919 = vpack.c.b16 %v4916, %v4915
    %v4920 = vpack.c.b16 %v4918, %v4917
    %v4924 = vsel %vm814, %v4896, 0
    %v4927 = vsel %vm814, %v4897, 0
    %v4930 = vsel %vm814, %v4898, 0
    %v4933 = vsel %vm814, %v4899, 0
    %v4936 = vsel %vm814, %v4900, 0
    %v4939 = vsel %vm814, %v4901, 0
    %v4942 = vsel %vm814, %v4902, 0
    %4944 = vmatprep.subr.bf16.mxu0 0
    %4945 = vmatpush1.bf16.msra.mxu0 0
    %4946 = vmatprep.subr.bf16.mxu0 0
    %4947 = vmatpush1.bf16.msra.mxu0 0
    %4948 = vmatprep.subr.bf16.mxu0 0
    %4949 = vmatpush1.bf16.msra.mxu0 0
    %4950 = vmatprep.subr.bf16.mxu0 0
    %4951 = vmatpush1.bf16.msra.mxu0 0
    %4952 = vmatprep.subr.bf16.mxu0 0
    %4953 = vmatpush1.bf16.msra.mxu0 0
    %4954 = vmatprep.subr.bf16.mxu0 0
    %4955 = vmatpush1.bf16.msra.mxu0 0
    %4956 = vmatprep.subr.bf16.mxu0 0
    %4957 = vmatpush1.bf16.msra.mxu0 %v4920
    %4958 = vmatprep.subr.bf16.mxu0 0
    %4959 = vmatpush1.bf16.msra.mxu0 %v4919
    %4960 = vmatprep.subr.bf16.mxu0 0
    %4961 = vmatpush2.bf16.msra.mxu0 0
    %4962 = vmatprep.subr.bf16.mxu0 0
    %4963 = vmatpush2.bf16.msra.mxu0 0
    %4964 = vmatprep.subr.bf16.mxu0 0
    %4965 = vmatpush2.bf16.msra.mxu0 0
    %4966 = vmatprep.subr.bf16.mxu0 0
    %4967 = vmatpush2.bf16.msra.mxu0 0
    %4968 = vmatprep.subr.bf16.mxu0 0
    %4969 = vmatpush2.bf16.msra.mxu0 0
    %4970 = vmatprep.subr.bf16.mxu0 0
    %4971 = vmatpush2.bf16.msra.mxu0 0
    %4972 = vmatprep.subr.bf16.mxu0 0
    %4973 = vmatpush2.bf16.msra.mxu0 0
    %4974 = vmatprep.subr.bf16.mxu0 0
    %4975 = vmatpush2.bf16.msra.mxu0 0
    %4976 = vmatprep.mubr.bf16.mxu0 0
    %4977 = vmatmul.mubr.bf16.gmra.mxu0 %v4924
    %v4978 = vpop.f32.mrf.mxu0
    %v4979 = vadd.f32 %v4909, %v4978
    %v4980 = vpop.f32.mrf.mxu0
    %v4981 = vpop.f32.mrf.mxu0
    %v4982 = vadd.f32 %v4909, %v4981
    %v4983 = vpop.f32.mrf.mxu0
    %4984 = vmatprep.mubr.bf16.mxu0 0
    %4985 = vmatmul.mubr.bf16.gmra.mxu0 %v4927
    %v4986 = vpop.f32.mrf.mxu0
    %v4987 = vadd.f32 %v4909, %v4986
    %v4988 = vpop.f32.mrf.mxu0
    %v4989 = vpop.f32.mrf.mxu0
    %v4990 = vadd.f32 %v4909, %v4989
    %v4991 = vpop.f32.mrf.mxu0
    %4992 = vmatprep.mubr.bf16.mxu0 0
    %4993 = vmatmul.mubr.bf16.gmra.mxu0 %v4930
    %v4994 = vpop.f32.mrf.mxu0
    %v4995 = vadd.f32 %v4909, %v4994
    %v4996 = vpop.f32.mrf.mxu0
    %v4997 = vpop.f32.mrf.mxu0
    %v4998 = vadd.f32 %v4909, %v4997
    %v4999 = vpop.f32.mrf.mxu0
    %5000 = vmatprep.mubr.bf16.mxu0 0
    %5001 = vmatmul.mubr.bf16.gmra.mxu0 %v4933
    %v5002 = vpop.f32.mrf.mxu0
    %v5003 = vadd.f32 %v4909, %v5002
    %v5004 = vpop.f32.mrf.mxu0
    %v5005 = vpop.f32.mrf.mxu0
    %v5006 = vadd.f32 %v4909, %v5005
    %v5007 = vpop.f32.mrf.mxu0
    %5008 = vmatprep.mubr.bf16.mxu0 0
    %5009 = vmatmul.mubr.bf16.gmra.mxu0 %v4936
    %v5010 = vpop.f32.mrf.mxu0
    %v5011 = vadd.f32 %v4909, %v5010
    %v5012 = vpop.f32.mrf.mxu0
    %v5013 = vpop.f32.mrf.mxu0
    %v5014 = vadd.f32 %v4909, %v5013
    %v5015 = vpop.f32.mrf.mxu0
    %5016 = vmatprep.mubr.bf16.mxu0 0
    %5017 = vmatmul.mubr.bf16.gmra.mxu0 %v4939
    %v5018 = vpop.f32.mrf.mxu0
    %v5019 = vadd.f32 %v4909, %v5018
    %v5020 = vpop.f32.mrf.mxu0
    %v5021 = vpop.f32.mrf.mxu0
    %v5022 = vadd.f32 %v4909, %v5021
    %v5023 = vpop.f32.mrf.mxu0
    %5024 = vmatprep.mubr.bf16.mxu0 0
    %5025 = vmatmul.mubr.bf16.gmra.mxu0 %v4942
    %v5026 = vpop.f32.mrf.mxu0
    %v5027 = vadd.f32 %v4909, %v5026
    %v5028 = vpop.f32.mrf.mxu0
    %v5029 = vpop.f32.mrf.mxu0
    %v5030 = vadd.f32 %v4909, %v5029
    %v5031 = vpop.f32.mrf.mxu0
    %5032 = vdwg.mxu0
    %v5033 = vxor.u32 %v4979, 2147483648
    %v5034 = vxor.u32 %v4982, 2147483648
    %v5035 = vxor.u32 %v4987, 2147483648
    %v5036 = vxor.u32 %v4990, 2147483648
    %v5037 = vxor.u32 %v4995, 2147483648
    %v5038 = vxor.u32 %v4998, 2147483648
    %v5039 = vxor.u32 %v5003, 2147483648
    %v5040 = vxor.u32 %v5006, 2147483648
    %v5041 = vxor.u32 %v5011, 2147483648
    %v5042 = vxor.u32 %v5014, 2147483648
    %v5043 = vxor.u32 %v5019, 2147483648
    %v5044 = vxor.u32 %v5022, 2147483648
    %v5045 = vxor.u32 %v5027, 2147483648
    %v5046 = vxor.u32 %v5030, 2147483648
    %v5047 = vmul.f32 %v5033, 1.442695
    %v5048 = vpow.pop %v5047
    %v5049 = vmul.f32 %v5034, 1.442695
    %v5050 = vpow.pop %v5049
    %v5051 = vmul.f32 %v5035, 1.442695
    %v5052 = vpow.pop %v5051
    %v5053 = vmul.f32 %v5036, 1.442695
    %v5054 = vpow.pop %v5053
    %v5055 = vmul.f32 %v5037, 1.442695
    %v5056 = vpow.pop %v5055
    %v5057 = vmul.f32 %v5038, 1.442695
    %v5058 = vpow.pop %v5057
    %v5059 = vmul.f32 %v5039, 1.442695
    %v5060 = vpow.pop %v5059
    %v5061 = vmul.f32 %v5040, 1.442695
    %v5062 = vpow.pop %v5061
    %v5063 = vmul.f32 %v5041, 1.442695
    %v5064 = vpow.pop %v5063
    %v5065 = vmul.f32 %v5042, 1.442695
    %v5066 = vpow.pop %v5065
    %v5067 = vmul.f32 %v5043, 1.442695
    %v5068 = vpow.pop %v5067
    %v5069 = vmul.f32 %v5044, 1.442695
    %v5070 = vpow.pop %v5069
    %v5071 = vmul.f32 %v5045, 1.442695
    %v5072 = vpow.pop %v5071
    %v5073 = vmul.f32 %v5046, 1.442695
    %v5074 = vpow.pop %v5073
    %v5075 = vadd.f32 %v5048, 1.0
    %v5076 = vadd.f32 %v5050, 1.0
    %v5077 = vadd.f32 %v5052, 1.0
    %v5078 = vadd.f32 %v5054, 1.0
    %v5079 = vadd.f32 %v5056, 1.0
    %v5080 = vadd.f32 %v5058, 1.0
    %v5081 = vadd.f32 %v5060, 1.0
    %v5082 = vadd.f32 %v5062, 1.0
    %v5083 = vadd.f32 %v5064, 1.0
    %v5084 = vadd.f32 %v5066, 1.0
    %v5085 = vadd.f32 %v5068, 1.0
    %v5086 = vadd.f32 %v5070, 1.0
    %v5087 = vadd.f32 %v5072, 1.0
    %v5088 = vadd.f32 %v5074, 1.0
    %v5089 = vrcp.pop %v5075
    %v5090 = vmul.f32 1.0, %v5089
    %v5091 = vrcp.pop %v5076
    %v5092 = vmul.f32 1.0, %v5091
    %v5093 = vrcp.pop %v5077
    %v5094 = vmul.f32 1.0, %v5093
    %v5095 = vrcp.pop %v5078
    %v5096 = vmul.f32 1.0, %v5095
    %v5097 = vrcp.pop %v5079
    %v5098 = vmul.f32 1.0, %v5097
    %v5099 = vrcp.pop %v5080
    %v5100 = vmul.f32 1.0, %v5099
    %v5101 = vrcp.pop %v5081
    %v5102 = vmul.f32 1.0, %v5101
    %v5103 = vrcp.pop %v5082
    %v5104 = vmul.f32 1.0, %v5103
    %v5105 = vrcp.pop %v5083
    %v5106 = vmul.f32 1.0, %v5105
    %v5107 = vrcp.pop %v5084
    %v5108 = vmul.f32 1.0, %v5107
    %v5109 = vrcp.pop %v5085
    %v5110 = vmul.f32 1.0, %v5109
    %v5111 = vrcp.pop %v5086
    %v5112 = vmul.f32 1.0, %v5111
    %v5113 = vrcp.pop %v5087
    %v5114 = vmul.f32 1.0, %v5113
    %v5115 = vrcp.pop %v5088
    %v5116 = vmul.f32 1.0, %v5115
    %v5117 = vmul.f32 %v4979, %v5090
    %v5118 = vmul.f32 %v4982, %v5092
    %v5119 = vmul.f32 %v4987, %v5094
    %v5120 = vmul.f32 %v4990, %v5096
    %v5121 = vmul.f32 %v4995, %v5098
    %v5122 = vmul.f32 %v4998, %v5100
    %v5123 = vmul.f32 %v5003, %v5102
    %v5124 = vmul.f32 %v5006, %v5104
    %v5125 = vmul.f32 %v5011, %v5106
    %v5126 = vmul.f32 %v5014, %v5108
    %v5127 = vmul.f32 %v5019, %v5110
    %v5128 = vmul.f32 %v5022, %v5112
    %v5129 = vmul.f32 %v5027, %v5114
    %v5130 = vmul.f32 %v5030, %v5116
    %s5131 = scalar_lea.vmem [#allocation13], 3
    %v5132 = vld [vmem:[%s5131] sm:$0x1]
    %v5134 = vlaneseq
    %v5135 = vshrl.u32 %v5134, 7
    %v5136 = vsub.s32 0, %v5135
    %v5137 = vrot.slane %v5132, %v5136
    %v5139 = vmul.f32 %v5117, %v5137
    %v5140 = vmul.f32 %v5118, %v5137
    %v5141 = vmul.f32 %v5119, %v5137
    %v5142 = vmul.f32 %v5120, %v5137
    %v5143 = vmul.f32 %v5121, %v5137
    %v5144 = vmul.f32 %v5122, %v5137
    %v5145 = vmul.f32 %v5123, %v5137
    %v5146 = vmul.f32 %v5124, %v5137
    %v5147 = vmul.f32 %v5125, %v5137
    %v5148 = vmul.f32 %v5126, %v5137
    %v5149 = vmul.f32 %v5127, %v5137
    %v5150 = vmul.f32 %v5128, %v5137
    %v5151 = vmul.f32 %v5129, %v5137
    %v5152 = vmul.f32 %v5130, %v5137
    %v5153 = vsel %vm814, %v5139, 0.0
    %5154 = vadd.xlane.f32.xlu0 %v5153
    %v5155 = vpop.xlane.xlu0 %5154
    %v5156 = vsel %vm814, %v5140, 0.0
    %5157 = vadd.xlane.f32.xlu0 %v5156
    %v5158 = vpop.xlane.xlu0 %5157
    %v5159 = vsel %vm814, %v5141, 0.0
    %5160 = vadd.xlane.f32.xlu0 %v5159
    %v5161 = vpop.xlane.xlu0 %5160
    %v5162 = vsel %vm814, %v5142, 0.0
    %5163 = vadd.xlane.f32.xlu0 %v5162
    %v5164 = vpop.xlane.xlu0 %5163
    %v5165 = vsel %vm814, %v5143, 0.0
    %5166 = vadd.xlane.f32.xlu0 %v5165
    %v5167 = vpop.xlane.xlu0 %5166
    %v5168 = vsel %vm814, %v5144, 0.0
    %5169 = vadd.xlane.f32.xlu0 %v5168
    %v5170 = vpop.xlane.xlu0 %5169
    %v5171 = vsel %vm814, %v5145, 0.0
    %5172 = vadd.xlane.f32.xlu0 %v5171
    %v5173 = vpop.xlane.xlu0 %5172
    %v5174 = vsel %vm814, %v5146, 0.0
    %5175 = vadd.xlane.f32.xlu0 %v5174
    %v5176 = vpop.xlane.xlu0 %5175
    %v5177 = vsel %vm814, %v5147, 0.0
    %5178 = vadd.xlane.f32.xlu0 %v5177
    %v5179 = vpop.xlane.xlu0 %5178
    %v5180 = vsel %vm814, %v5148, 0.0
    %5181 = vadd.xlane.f32.xlu0 %v5180
    %v5182 = vpop.xlane.xlu0 %5181
    %v5183 = vsel %vm814, %v5149, 0.0
    %5184 = vadd.xlane.f32.xlu0 %v5183
    %v5185 = vpop.xlane.xlu0 %5184
    %v5186 = vsel %vm814, %v5150, 0.0
    %5187 = vadd.xlane.f32.xlu0 %v5186
    %v5188 = vpop.xlane.xlu0 %5187
    %v5189 = vsel %vm814, %v5151, 0.0
    %5190 = vadd.xlane.f32.xlu0 %v5189
    %v5191 = vpop.xlane.xlu0 %5190
    %v5192 = vsel %vm814, %v5152, 0.0
    %5193 = vadd.xlane.f32.xlu0 %v5192
    %v5194 = vpop.xlane.xlu0 %5193
    %v5195 = vmul.f32 %v667, %v5155
    %v5196 = vmul.f32 %v668, %v5158
    %v5197 = vmul.f32 %v669, %v5161
    %v5198 = vmul.f32 %v670, %v5164
    %v5199 = vmul.f32 %v671, %v5167
    %v5200 = vmul.f32 %v672, %v5170
    %v5201 = vmul.f32 %v673, %v5173
    %v5202 = vmul.f32 %v674, %v5176
    %v5203 = vmul.f32 %v675, %v5179
    %v5204 = vmul.f32 %v676, %v5182
    %v5205 = vmul.f32 %v677, %v5185
    %v5206 = vmul.f32 %v678, %v5188
    %v5207 = vmul.f32 %v679, %v5191
    %v5208 = vmul.f32 %v680, %v5194
    %v5210 = vsel %vm1689, %v292, 0
    %v5213 = vsel %vm1689, %v293, 0
    %5215 = vmatprep.subr.mxu0 0.0
    %5216 = vmatpush1.msra.mxu0 0.0
    %5217 = vmatprep.subr.mxu0 0.0
    %5218 = vmatpush1.msra.mxu0 0.0
    %5219 = vmatprep.subr.mxu0 0.0
    %5220 = vmatpush1.msra.mxu0 %v5208
    %5221 = vmatprep.subr.mxu0 0.0
    %5222 = vmatpush1.msra.mxu0 %v5207
    %5223 = vmatprep.subr.mxu0 0.0
    %5224 = vmatpush1.msra.mxu0 %v5206
    %5225 = vmatprep.subr.mxu0 0.0
    %5226 = vmatpush1.msra.mxu0 %v5205
    %5227 = vmatprep.subr.mxu0 0.0
    %5228 = vmatpush1.msra.mxu0 %v5204
    %5229 = vmatprep.subr.mxu0 0.0
    %5230 = vmatpush1.msra.mxu0 %v5203
    %5231 = vmatprep.subr.mxu0 0.0
    %5232 = vmatpush1.msra.mxu0 %v5202
    %5233 = vmatprep.subr.mxu0 0.0
    %5234 = vmatpush1.msra.mxu0 %v5201
    %5235 = vmatprep.subr.mxu0 0.0
    %5236 = vmatpush1.msra.mxu0 %v5200
    %5237 = vmatprep.subr.mxu0 0.0
    %5238 = vmatpush1.msra.mxu0 %v5199
    %5239 = vmatprep.subr.mxu0 0.0
    %5240 = vmatpush1.msra.mxu0 %v5198
    %5241 = vmatprep.subr.mxu0 0.0
    %5242 = vmatpush1.msra.mxu0 %v5197
    %5243 = vmatprep.subr.mxu0 0.0
    %5244 = vmatpush1.msra.mxu0 %v5196
    %5245 = vmatprep.subr.mxu0 0.0
    %5246 = vmatpush1.msra.mxu0 %v5195
    %5247 = vmatprep.subr.mxu0 0.0
    %5248 = vmatpush2.msra.mxu0 0.0
    %5249 = vmatprep.subr.mxu0 0.0
    %5250 = vmatpush2.msra.mxu0 0.0
    %5251 = vmatprep.subr.mxu0 0.0
    %5252 = vmatpush2.msra.mxu0 0.0
    %5253 = vmatprep.subr.mxu0 0.0
    %5254 = vmatpush2.msra.mxu0 0.0
    %5255 = vmatprep.subr.mxu0 0.0
    %5256 = vmatpush2.msra.mxu0 0.0
    %5257 = vmatprep.subr.mxu0 0.0
    %5258 = vmatpush2.msra.mxu0 0.0
    %5259 = vmatprep.subr.mxu0 0.0
    %5260 = vmatpush2.msra.mxu0 0.0
    %5261 = vmatprep.subr.mxu0 0.0
    %5262 = vmatpush2.msra.mxu0 0.0
    %5263 = vmatprep.subr.mxu0 0.0
    %5264 = vmatpush2.msra.mxu0 0.0
    %5265 = vmatprep.subr.mxu0 0.0
    %5266 = vmatpush2.msra.mxu0 0.0
    %5267 = vmatprep.subr.mxu0 0.0
    %5268 = vmatpush2.msra.mxu0 0.0
    %5269 = vmatprep.subr.mxu0 0.0
    %5270 = vmatpush2.msra.mxu0 0.0
    %5271 = vmatprep.subr.mxu0 0.0
    %5272 = vmatpush2.msra.mxu0 0.0
    %5273 = vmatprep.subr.mxu0 0.0
    %5274 = vmatpush2.msra.mxu0 0.0
    %5275 = vmatprep.subr.mxu0 0.0
    %5276 = vmatpush2.msra.mxu0 0.0
    %5277 = vmatprep.subr.mxu0 0.0
    %5278 = vmatpush2.msra.mxu0 0.0
    %5279 = vmatprep.mubr.f32.mxu0 0.0
    %5280 = vmatmul.mubr.f32.gmra.mxu0 %v5210
    %v5281 = vpop.f32.mrf.mxu0
    %v5282 = vadd.f32 0.0, %v5281
    %v5283 = vpop.f32.mrf.mxu0
    %5284 = vmatprep.mubr.f32.mxu0 0.0
    %5285 = vmatmul.mubr.f32.gmra.mxu0 %v5213
    %v5286 = vpop.f32.mrf.mxu0
    %v5287 = vadd.f32 0.0, %v5286
    %v5288 = vpop.f32.mrf.mxu0
    %5289 = vdwg.mxu0
    %5291 = vset.pattern.permute.xlu0 0
    %5292 = vperm.xlu0 %5291, %v294
    %v5293 = vpop.permute.xlu0 %5292
    %5296 = vset.pattern.permute.xlu0 0
    %5297 = vperm.xlu0 %5296, %v295
    %v5298 = vpop.permute.xlu0 %5297
    %v5300 = vmul.f32 %v5282, %v5293
    %v5301 = vmul.f32 %v5287, %v5298
    %v5302 = vadd.f32 %v310, %v5300
    %v5303 = vadd.f32 %v311, %v5301
    %5304 = vmatprep.subr.bf16.mxu0 0
    %5305 = vmatpush1.bf16.msra.mxu0 0
    %5306 = vmatprep.subr.bf16.mxu0 0
    %5307 = vmatpush1.bf16.msra.mxu0 %v4902
    %5308 = vmatprep.subr.bf16.mxu0 0
    %5309 = vmatpush1.bf16.msra.mxu0 %v4901
    %5310 = vmatprep.subr.bf16.mxu0 0
    %5311 = vmatpush1.bf16.msra.mxu0 %v4900
    %5312 = vmatprep.subr.bf16.mxu0 0
    %5313 = vmatpush1.bf16.msra.mxu0 %v4899
    %5314 = vmatprep.subr.bf16.mxu0 0
    %5315 = vmatpush1.bf16.msra.mxu0 %v4898
    %5316 = vmatprep.subr.bf16.mxu0 0
    %5317 = vmatpush1.bf16.msra.mxu0 %v4897
    %5318 = vmatprep.subr.bf16.mxu0 0
    %5319 = vmatpush1.bf16.msra.mxu0 %v4896
    %5320 = vmatprep.subr.bf16.mxu0 0
    %5321 = vmatpush2.bf16.msra.mxu0 0
    %5322 = vmatprep.subr.bf16.mxu0 0
    %5323 = vmatpush2.bf16.msra.mxu0 0
    %5324 = vmatprep.subr.bf16.mxu0 0
    %5325 = vmatpush2.bf16.msra.mxu0 0
    %5326 = vmatprep.subr.bf16.mxu0 0
    %5327 = vmatpush2.bf16.msra.mxu0 0
    %5328 = vmatprep.subr.bf16.mxu0 0
    %5329 = vmatpush2.bf16.msra.mxu0 0
    %5330 = vmatprep.subr.bf16.mxu0 0
    %5331 = vmatpush2.bf16.msra.mxu0 0
    %5332 = vmatprep.subr.bf16.mxu0 0
    %5333 = vmatpush2.bf16.msra.mxu0 0
    %5334 = vmatprep.subr.bf16.mxu0 0
    %5335 = vmatpush2.bf16.msra.mxu0 0
    %5336 = vmatprep.mubr.bf16.mxu0 0
    %5337 = vmatmul.mubr.bf16.gmra.mxu0 %v1691
    %v5338 = vpop.f32.mrf.mxu0
    %v5339 = vadd.f32 0.0, %v5338
    %v5340 = vpop.f32.mrf.mxu0
    %v5341 = vpop.f32.mrf.mxu0
    %v5342 = vadd.f32 0.0, %v5341
    %v5343 = vpop.f32.mrf.mxu0
    %5344 = vdwg.mxu0
    %s5345 = scalar_lea.vmem %s35, 48
    %v5346 = vld [vmem:[%s5345] sm:$0xf]
    %v5347 = vld [vmem:[%s5345 + $0x4] sm:$0xf]
    %v5348 = vld [vmem:[%s5345 + $0x8] sm:$0xf]
    %v5349 = vld [vmem:[%s5345 + $0xc] sm:$0xf]
    %s5350 = scalar_lea.vmem %s37, 48
    %v5351 = vld [vmem:[%s5350] sm:$0xf]
    %v5352 = vld [vmem:[%s5350 + $0x4] sm:$0xf]
    %v5353 = vld [vmem:[%s5350 + $0x8] sm:$0xf]
    %v5354 = vld [vmem:[%s5350 + $0xc] sm:$0xf]
    %v5355 = vpack.c.bf16 %v5342, %v5339
    %v5360 = vunpack.c.l.b16 %v5351
    %v5361 = vunpack.c.l.b16 %v5352
    %v5362 = vunpack.c.l.b16 %v5353
    %v5363 = vunpack.c.l.b16 %v5354
    %v5364 = vpack.c.b16 %v5361, %v5360
    %v5365 = vpack.c.b16 %v5363, %v5362
    %v5369 = vsel %vm814, %v5355, 0
    %5371 = vmatprep.subr.bf16.mxu0 0
    %5372 = vmatpush1.bf16.msra.mxu0 0
    %5373 = vmatprep.subr.bf16.mxu0 0
    %5374 = vmatpush1.bf16.msra.mxu0 0
    %5375 = vmatprep.subr.bf16.mxu0 0
    %5376 = vmatpush1.bf16.msra.mxu0 0
    %5377 = vmatprep.subr.bf16.mxu0 0
    %5378 = vmatpush1.bf16.msra.mxu0 0
    %5379 = vmatprep.subr.bf16.mxu0 0
    %5380 = vmatpush1.bf16.msra.mxu0 0
    %5381 = vmatprep.subr.bf16.mxu0 0
    %5382 = vmatpush1.bf16.msra.mxu0 0
    %5383 = vmatprep.subr.bf16.mxu0 0
    %5384 = vmatpush1.bf16.msra.mxu0 %v5365
    %5385 = vmatprep.subr.bf16.mxu0 0
    %5386 = vmatpush1.bf16.msra.mxu0 %v5364
    %5387 = vmatprep.subr.bf16.mxu0 0
    %5388 = vmatpush2.bf16.msra.mxu0 0
    %5389 = vmatprep.subr.bf16.mxu0 0
    %5390 = vmatpush2.bf16.msra.mxu0 0
    %5391 = vmatprep.subr.bf16.mxu0 0
    %5392 = vmatpush2.bf16.msra.mxu0 0
    %5393 = vmatprep.subr.bf16.mxu0 0
    %5394 = vmatpush2.bf16.msra.mxu0 0
    %5395 = vmatprep.subr.bf16.mxu0 0
    %5396 = vmatpush2.bf16.msra.mxu0 0
    %5397 = vmatprep.subr.bf16.mxu0 0
    %5398 = vmatpush2.bf16.msra.mxu0 0
    %5399 = vmatprep.subr.bf16.mxu0 0
    %5400 = vmatpush2.bf16.msra.mxu0 0
    %5401 = vmatprep.subr.bf16.mxu0 0
    %5402 = vmatpush2.bf16.msra.mxu0 0
    %5403 = vmatprep.mubr.bf16.mxu0 0
    %5404 = vmatmul.mubr.bf16.gmra.mxu0 %v5369
    %v5405 = vpop.f32.mrf.mxu0
    %v5406 = vadd.f32 0.0, %v5405
    %v5407 = vpop.f32.mrf.mxu0
    %v5408 = vpop.f32.mrf.mxu0
    %v5409 = vadd.f32 0.0, %v5408
    %v5410 = vpop.f32.mrf.mxu0
    %5411 = vdwg.mxu0
    %v5416 = vunpack.c.l.b16 %v5346
    %v5417 = vunpack.c.l.b16 %v5347
    %v5418 = vunpack.c.l.b16 %v5348
    %v5419 = vunpack.c.l.b16 %v5349
    %v5420 = vpack.c.b16 %v5417, %v5416
    %v5421 = vpack.c.b16 %v5419, %v5418
    %5424 = vmatprep.subr.bf16.mxu0 0
    %5425 = vmatpush1.bf16.msra.mxu0 0
    %5426 = vmatprep.subr.bf16.mxu0 0
    %5427 = vmatpush1.bf16.msra.mxu0 0
    %5428 = vmatprep.subr.bf16.mxu0 0
    %5429 = vmatpush1.bf16.msra.mxu0 0
    %5430 = vmatprep.subr.bf16.mxu0 0
    %5431 = vmatpush1.bf16.msra.mxu0 0
    %5432 = vmatprep.subr.bf16.mxu0 0
    %5433 = vmatpush1.bf16.msra.mxu0 0
    %5434 = vmatprep.subr.bf16.mxu0 0
    %5435 = vmatpush1.bf16.msra.mxu0 0
    %5436 = vmatprep.subr.bf16.mxu0 0
    %5437 = vmatpush1.bf16.msra.mxu0 %v5421
    %5438 = vmatprep.subr.bf16.mxu0 0
    %5439 = vmatpush1.bf16.msra.mxu0 %v5420
    %5440 = vmatprep.subr.bf16.mxu0 0
    %5441 = vmatpush2.bf16.msra.mxu0 0
    %5442 = vmatprep.subr.bf16.mxu0 0
    %5443 = vmatpush2.bf16.msra.mxu0 0
    %5444 = vmatprep.subr.bf16.mxu0 0
    %5445 = vmatpush2.bf16.msra.mxu0 0
    %5446 = vmatprep.subr.bf16.mxu0 0
    %5447 = vmatpush2.bf16.msra.mxu0 0
    %5448 = vmatprep.subr.bf16.mxu0 0
    %5449 = vmatpush2.bf16.msra.mxu0 0
    %5450 = vmatprep.subr.bf16.mxu0 0
    %5451 = vmatpush2.bf16.msra.mxu0 0
    %5452 = vmatprep.subr.bf16.mxu0 0
    %5453 = vmatpush2.bf16.msra.mxu0 0
    %5454 = vmatprep.subr.bf16.mxu0 0
    %5455 = vmatpush2.bf16.msra.mxu0 0
    %5456 = vmatprep.mubr.bf16.mxu0 0
    %5457 = vmatmul.mubr.bf16.gmra.mxu0 %v4106
    %v5458 = vpop.f32.mrf.mxu0
    %v5459 = vadd.f32 %v5406, %v5458
    %v5460 = vpop.f32.mrf.mxu0
    %v5461 = vpop.f32.mrf.mxu0
    %v5462 = vadd.f32 %v5409, %v5461
    %v5463 = vpop.f32.mrf.mxu0
    %5464 = vdwg.mxu0
    %s5465 = scalar_lea.vmem [#allocation8], 3
    %v5466 = vld [vmem:[%s5465] sm:$0x1]
    %v5468 = vlaneseq
    %v5469 = vshrl.u32 %v5468, 7
    %v5470 = vsub.s32 0, %v5469
    %v5471 = vrot.slane %v5466, %v5470
    %v5473 = vadd.f32 %v5459, %v5471
    %v5474 = vadd.f32 %v5462, %v5471
    %v5475 = vxor.u32 %v5473, 2147483648
    %v5476 = vxor.u32 %v5474, 2147483648
    %v5477 = vmul.f32 %v5475, 1.442695
    %v5478 = vpow.pop %v5477
    %v5479 = vmul.f32 %v5476, 1.442695
    %v5480 = vpow.pop %v5479
    %v5481 = vadd.f32 %v5478, 1.0
    %v5482 = vadd.f32 %v5480, 1.0
    %v5483 = vrcp.pop %v5481
    %v5484 = vmul.f32 1.0, %v5483
    %v5485 = vrcp.pop %v5482
    %v5486 = vmul.f32 1.0, %v5485
    %v5487 = vmul.f32 %v5473, %v5484
    %v5488 = vmul.f32 %v5474, %v5486
    %s5489 = scalar_lea.vmem %s41, 48
    %v5490 = vld [vmem:[%s5489] sm:$0xf]
    %v5491 = vld [vmem:[%s5489 + $0x4] sm:$0xf]
    %v5492 = vld [vmem:[%s5489 + $0x8] sm:$0xf]
    %v5493 = vld [vmem:[%s5489 + $0xc] sm:$0xf]
    %v5494 = vpack.c.bf16 %v5488, %v5487
    %v5499 = vunpack.c.l.b16 %v5490
    %v5500 = vunpack.c.l.b16 %v5491
    %v5501 = vunpack.c.l.b16 %v5492
    %v5502 = vunpack.c.l.b16 %v5493
    %v5503 = vpack.c.b16 %v5500, %v5499
    %v5504 = vpack.c.b16 %v5502, %v5501
    %v5508 = vsel %vm814, %v5494, 0
    %5510 = vmatprep.subr.bf16.mxu0 0
    %5511 = vmatpush1.bf16.msra.mxu0 0
    %5512 = vmatprep.subr.bf16.mxu0 0
    %5513 = vmatpush1.bf16.msra.mxu0 0
    %5514 = vmatprep.subr.bf16.mxu0 0
    %5515 = vmatpush1.bf16.msra.mxu0 0
    %5516 = vmatprep.subr.bf16.mxu0 0
    %5517 = vmatpush1.bf16.msra.mxu0 0
    %5518 = vmatprep.subr.bf16.mxu0 0
    %5519 = vmatpush1.bf16.msra.mxu0 0
    %5520 = vmatprep.subr.bf16.mxu0 0
    %5521 = vmatpush1.bf16.msra.mxu0 0
    %5522 = vmatprep.subr.bf16.mxu0 0
    %5523 = vmatpush1.bf16.msra.mxu0 %v5504
    %5524 = vmatprep.subr.bf16.mxu0 0
    %5525 = vmatpush1.bf16.msra.mxu0 %v5503
    %5526 = vmatprep.subr.bf16.mxu0 0
    %5527 = vmatpush2.bf16.msra.mxu0 0
    %5528 = vmatprep.subr.bf16.mxu0 0
    %5529 = vmatpush2.bf16.msra.mxu0 0
    %5530 = vmatprep.subr.bf16.mxu0 0
    %5531 = vmatpush2.bf16.msra.mxu0 0
    %5532 = vmatprep.subr.bf16.mxu0 0
    %5533 = vmatpush2.bf16.msra.mxu0 0
    %5534 = vmatprep.subr.bf16.mxu0 0
    %5535 = vmatpush2.bf16.msra.mxu0 0
    %5536 = vmatprep.subr.bf16.mxu0 0
    %5537 = vmatpush2.bf16.msra.mxu0 0
    %5538 = vmatprep.subr.bf16.mxu0 0
    %5539 = vmatpush2.bf16.msra.mxu0 0
    %5540 = vmatprep.subr.bf16.mxu0 0
    %5541 = vmatpush2.bf16.msra.mxu0 0
    %5542 = vmatprep.mubr.bf16.mxu0 0
    %5543 = vmatmul.mubr.bf16.gmra.mxu0 %v5508
    %v5544 = vpop.f32.mrf.mxu0
    %v5545 = vadd.f32 0.0, %v5544
    %v5546 = vpop.f32.mrf.mxu0
    %v5547 = vpop.f32.mrf.mxu0
    %v5548 = vadd.f32 0.0, %v5547
    %v5549 = vpop.f32.mrf.mxu0
    %5550 = vdwg.mxu0
    %v5551 = vadd.f32 %v4085, %v5545
    %v5552 = vadd.f32 %v4086, %v5548
    %s5553 = scalar_lea.vmem [#allocation10], 3
    %v5554 = vld [vmem:[%s5553] sm:$0x1]
    %v5556 = vlaneseq
    %v5557 = vshrl.u32 %v5556, 7
    %v5558 = vsub.s32 0, %v5557
    %v5559 = vrot.slane %v5554, %v5558
    %v5561 = vadd.f32 %v5551, %v5559
    %v5562 = vadd.f32 %v5552, %v5559
    %v5563 = vld [vmem:[%s51] sm:$0xf]
    %v5564 = vld [vmem:[%s51 + $0x4] sm:$0xf]
    %v5565 = vld [vmem:[%s51 + $0x8] sm:$0xf]
    %v5566 = vld [vmem:[%s51 + $0xc] sm:$0xf]
    %v5567 = vpack.c.bf16 %v5562, %v5561
    %v5568 = vld [vmem:[%s53] sm:$0x1]
    %v5570 = vlaneseq
    %v5571 = vshrl.u32 %v5570, 7
    %v5572 = vsub.s32 0, %v5571
    %v5573 = vrot.slane %v5568, %v5572
    %v5579 = vunpack.c.l.b16 %v5563
    %v5580 = vunpack.c.l.b16 %v5564
    %v5581 = vunpack.c.l.b16 %v5565
    %v5582 = vunpack.c.l.b16 %v5566
    %v5583 = vpack.c.b16 %v5580, %v5579
    %v5584 = vpack.c.b16 %v5582, %v5581
    %v5588 = vsel %vm814, %v5567, 0
    %5590 = vmatprep.subr.bf16.mxu0 0
    %5591 = vmatpush1.bf16.msra.mxu0 0
    %5592 = vmatprep.subr.bf16.mxu0 0
    %5593 = vmatpush1.bf16.msra.mxu0 0
    %5594 = vmatprep.subr.bf16.mxu0 0
    %5595 = vmatpush1.bf16.msra.mxu0 0
    %5596 = vmatprep.subr.bf16.mxu0 0
    %5597 = vmatpush1.bf16.msra.mxu0 0
    %5598 = vmatprep.subr.bf16.mxu0 0
    %5599 = vmatpush1.bf16.msra.mxu0 0
    %5600 = vmatprep.subr.bf16.mxu0 0
    %5601 = vmatpush1.bf16.msra.mxu0 0
    %5602 = vmatprep.subr.bf16.mxu0 0
    %5603 = vmatpush1.bf16.msra.mxu0 %v5584
    %5604 = vmatprep.subr.bf16.mxu0 0
    %5605 = vmatpush1.bf16.msra.mxu0 %v5583
    %5606 = vmatprep.subr.bf16.mxu0 0
    %5607 = vmatpush2.bf16.msra.mxu0 0
    %5608 = vmatprep.subr.bf16.mxu0 0
    %5609 = vmatpush2.bf16.msra.mxu0 0
    %5610 = vmatprep.subr.bf16.mxu0 0
    %5611 = vmatpush2.bf16.msra.mxu0 0
    %5612 = vmatprep.subr.bf16.mxu0 0
    %5613 = vmatpush2.bf16.msra.mxu0 0
    %5614 = vmatprep.subr.bf16.mxu0 0
    %5615 = vmatpush2.bf16.msra.mxu0 0
    %5616 = vmatprep.subr.bf16.mxu0 0
    %5617 = vmatpush2.bf16.msra.mxu0 0
    %5618 = vmatprep.subr.bf16.mxu0 0
    %5619 = vmatpush2.bf16.msra.mxu0 0
    %5620 = vmatprep.subr.bf16.mxu0 0
    %5621 = vmatpush2.bf16.msra.mxu0 0
    %5622 = vmatprep.mubr.bf16.mxu0 0
    %5623 = vmatmul.mubr.bf16.gmra.mxu0 %v5588
    %v5624 = vpop.f32.mrf.mxu0
    %v5625 = vadd.f32 %v5573, %v5624
    %v5626 = vpop.f32.mrf.mxu0
    %v5627 = vpop.f32.mrf.mxu0
    %v5628 = vadd.f32 %v5573, %v5627
    %v5629 = vpop.f32.mrf.mxu0
    %5630 = vdwg.mxu0
    %v5631 = vxor.u32 %v5625, 2147483648
    %v5632 = vxor.u32 %v5628, 2147483648
    %v5633 = vmul.f32 %v5631, 1.442695
    %v5634 = vpow.pop %v5633
    %v5635 = vmul.f32 %v5632, 1.442695
    %v5636 = vpow.pop %v5635
    %v5637 = vadd.f32 %v5634, 1.0
    %v5638 = vadd.f32 %v5636, 1.0
    %v5639 = vrcp.pop %v5637
    %v5640 = vmul.f32 1.0, %v5639
    %v5641 = vrcp.pop %v5638
    %v5642 = vmul.f32 1.0, %v5641
    %v5643 = vmul.f32 %v5625, %v5640
    %v5644 = vmul.f32 %v5628, %v5642
    %v5645 = vld [vmem:[%s55] sm:$0xf]
    %v5646 = vld [vmem:[%s55 + $0x4] sm:$0xf]
    %v5647 = vld [vmem:[%s55 + $0x8] sm:$0xf]
    %v5648 = vld [vmem:[%s55 + $0xc] sm:$0xf]
    %v5649 = vpack.c.bf16 %v5644, %v5643
    %v5650 = vld [vmem:[%s57] sm:$0x1]
    %v5652 = vlaneseq
    %v5653 = vshrl.u32 %v5652, 7
    %v5654 = vsub.s32 0, %v5653
    %v5655 = vrot.slane %v5650, %v5654
    %v5661 = vunpack.c.l.b16 %v5645
    %v5662 = vunpack.c.l.b16 %v5646
    %v5663 = vunpack.c.l.b16 %v5647
    %v5664 = vunpack.c.l.b16 %v5648
    %v5665 = vpack.c.b16 %v5662, %v5661
    %v5666 = vpack.c.b16 %v5664, %v5663
    %v5670 = vsel %vm814, %v5649, 0
    %5672 = vmatprep.subr.bf16.mxu0 0
    %5673 = vmatpush1.bf16.msra.mxu0 0
    %5674 = vmatprep.subr.bf16.mxu0 0
    %5675 = vmatpush1.bf16.msra.mxu0 0
    %5676 = vmatprep.subr.bf16.mxu0 0
    %5677 = vmatpush1.bf16.msra.mxu0 0
    %5678 = vmatprep.subr.bf16.mxu0 0
    %5679 = vmatpush1.bf16.msra.mxu0 0
    %5680 = vmatprep.subr.bf16.mxu0 0
    %5681 = vmatpush1.bf16.msra.mxu0 0
    %5682 = vmatprep.subr.bf16.mxu0 0
    %5683 = vmatpush1.bf16.msra.mxu0 0
    %5684 = vmatprep.subr.bf16.mxu0 0
    %5685 = vmatpush1.bf16.msra.mxu0 %v5666
    %5686 = vmatprep.subr.bf16.mxu0 0
    %5687 = vmatpush1.bf16.msra.mxu0 %v5665
    %5688 = vmatprep.subr.bf16.mxu0 0
    %5689 = vmatpush2.bf16.msra.mxu0 0
    %5690 = vmatprep.subr.bf16.mxu0 0
    %5691 = vmatpush2.bf16.msra.mxu0 0
    %5692 = vmatprep.subr.bf16.mxu0 0
    %5693 = vmatpush2.bf16.msra.mxu0 0
    %5694 = vmatprep.subr.bf16.mxu0 0
    %5695 = vmatpush2.bf16.msra.mxu0 0
    %5696 = vmatprep.subr.bf16.mxu0 0
    %5697 = vmatpush2.bf16.msra.mxu0 0
    %5698 = vmatprep.subr.bf16.mxu0 0
    %5699 = vmatpush2.bf16.msra.mxu0 0
    %5700 = vmatprep.subr.bf16.mxu0 0
    %5701 = vmatpush2.bf16.msra.mxu0 0
    %5702 = vmatprep.subr.bf16.mxu0 0
    %5703 = vmatpush2.bf16.msra.mxu0 0
    %5704 = vmatprep.mubr.bf16.mxu0 0
    %5705 = vmatmul.mubr.bf16.gmra.mxu0 %v5670
    %v5706 = vpop.f32.mrf.mxu0
    %v5707 = vadd.f32 %v5655, %v5706
    %v5708 = vpop.f32.mrf.mxu0
    %v5709 = vpop.f32.mrf.mxu0
    %v5710 = vadd.f32 %v5655, %v5709
    %v5711 = vpop.f32.mrf.mxu0
    %5712 = vdwg.mxu0
    %v5713 = vld [vmem:[%s15] sm:$0x3]
    %v5714 = vpack.c.bf16 %v5713, %v5713
    %v5715 = vpack.c.bf16 %v5710, %v5707
    %v5717 = vsel %vm312, %v5714, 0
    %5719 = vmatprep.subr.bf16.mxu0 0
    %5720 = vmatpush1.bf16.msra.mxu0 0
    %5721 = vmatprep.subr.bf16.mxu0 0
    %5722 = vmatpush1.bf16.msra.mxu0 0
    %5723 = vmatprep.subr.bf16.mxu0 0
    %5724 = vmatpush1.bf16.msra.mxu0 0
    %5725 = vmatprep.subr.bf16.mxu0 0
    %5726 = vmatpush1.bf16.msra.mxu0 0
    %5727 = vmatprep.subr.bf16.mxu0 0
    %5728 = vmatpush1.bf16.msra.mxu0 0
    %5729 = vmatprep.subr.bf16.mxu0 0
    %5730 = vmatpush1.bf16.msra.mxu0 0
    %5731 = vmatprep.subr.bf16.mxu0 0
    %5732 = vmatpush1.bf16.msra.mxu0 0
    %5733 = vmatprep.subr.bf16.mxu0 0
    %5734 = vmatpush1.bf16.msra.mxu0 %v5715
    %5735 = vmatprep.subr.bf16.mxu0 0
    %5736 = vmatpush2.bf16.msra.mxu0 0
    %5737 = vmatprep.subr.bf16.mxu0 0
    %5738 = vmatpush2.bf16.msra.mxu0 0
    %5739 = vmatprep.subr.bf16.mxu0 0
    %5740 = vmatpush2.bf16.msra.mxu0 0
    %5741 = vmatprep.subr.bf16.mxu0 0
    %5742 = vmatpush2.bf16.msra.mxu0 0
    %5743 = vmatprep.subr.bf16.mxu0 0
    %5744 = vmatpush2.bf16.msra.mxu0 0
    %5745 = vmatprep.subr.bf16.mxu0 0
    %5746 = vmatpush2.bf16.msra.mxu0 0
    %5747 = vmatprep.subr.bf16.mxu0 0
    %5748 = vmatpush2.bf16.msra.mxu0 0
    %5749 = vmatprep.subr.bf16.mxu0 0
    %5750 = vmatpush2.bf16.msra.mxu0 0
    %5751 = vmatprep.mubr.bf16.mxu0 0
    %5752 = vmatmul.mubr.bf16.gmra.mxu0 %v5717
    %v5753 = vpop.f32.mrf.mxu0
    %v5754 = vadd.f32 0.0, %v5753
    %v5755 = vpop.f32.mrf.mxu0
    %v5756 = vpop.f32.mrf.mxu0
    %v5757 = vpop.f32.mrf.mxu0
    %5758 = vdwg.mxu0
    %v5759 = vld [vmem:[%s59] sm:$0xf]
    %v5760 = vld [vmem:[%s59 + $0x4] sm:$0xf]
    %v5761 = vld [vmem:[%s59 + $0x8] sm:$0xf]
    %v5762 = vld [vmem:[%s59 + $0xc] sm:$0xf]
    %v5763 = vpack.c.bf16 %v5754, %v5754
    %v5764 = vld [vmem:[#allocation14] sm:$0x1]
    %v5766 = vlaneseq
    %v5767 = vshrl.u32 %v5766, 7
    %v5768 = vsub.s32 0, %v5767
    %v5769 = vrot.slane %v5764, %v5768
    %v5775 = vunpack.c.l.b16 %v5759
    %v5776 = vunpack.c.l.b16 %v5760
    %v5777 = vunpack.c.l.b16 %v5761
    %v5778 = vunpack.c.l.b16 %v5762
    %v5779 = vpack.c.b16 %v5776, %v5775
    %v5780 = vpack.c.b16 %v5778, %v5777
    %v5784 = vsel %vm814, %v5763, 0
    %5786 = vmatprep.subr.bf16.mxu0 0
    %5787 = vmatpush1.bf16.msra.mxu0 0
    %5788 = vmatprep.subr.bf16.mxu0 0
    %5789 = vmatpush1.bf16.msra.mxu0 0
    %5790 = vmatprep.subr.bf16.mxu0 0
    %5791 = vmatpush1.bf16.msra.mxu0 0
    %5792 = vmatprep.subr.bf16.mxu0 0
    %5793 = vmatpush1.bf16.msra.mxu0 0
    %5794 = vmatprep.subr.bf16.mxu0 0
    %5795 = vmatpush1.bf16.msra.mxu0 0
    %5796 = vmatprep.subr.bf16.mxu0 0
    %5797 = vmatpush1.bf16.msra.mxu0 0
    %5798 = vmatprep.subr.bf16.mxu0 0
    %5799 = vmatpush1.bf16.msra.mxu0 %v5780
    %5800 = vmatprep.subr.bf16.mxu0 0
    %5801 = vmatpush1.bf16.msra.mxu0 %v5779
    %5802 = vmatprep.subr.bf16.mxu0 0
    %5803 = vmatpush2.bf16.msra.mxu0 0
    %5804 = vmatprep.subr.bf16.mxu0 0
    %5805 = vmatpush2.bf16.msra.mxu0 0
    %5806 = vmatprep.subr.bf16.mxu0 0
    %5807 = vmatpush2.bf16.msra.mxu0 0
    %5808 = vmatprep.subr.bf16.mxu0 0
    %5809 = vmatpush2.bf16.msra.mxu0 0
    %5810 = vmatprep.subr.bf16.mxu0 0
    %5811 = vmatpush2.bf16.msra.mxu0 0
    %5812 = vmatprep.subr.bf16.mxu0 0
    %5813 = vmatpush2.bf16.msra.mxu0 0
    %5814 = vmatprep.subr.bf16.mxu0 0
    %5815 = vmatpush2.bf16.msra.mxu0 0
    %5816 = vmatprep.subr.bf16.mxu0 0
    %5817 = vmatpush2.bf16.msra.mxu0 0
    %5818 = vmatprep.mubr.bf16.mxu0 0
    %5819 = vmatmul.mubr.bf16.gmra.mxu0 %v5784
    %v5820 = vpop.f32.mrf.mxu0
    %v5821 = vadd.f32 %v5769, %v5820
    %v5822 = vpop.f32.mrf.mxu0
    %v5823 = vpop.f32.mrf.mxu0
    %v5824 = vpop.f32.mrf.mxu0
    %5825 = vdwg.mxu0
    %v5826 = vxor.u32 %v5821, 2147483648
    %v5827 = vmul.f32 %v5826, 1.442695
    %v5828 = vpow.pop %v5827
    %v5829 = vadd.f32 %v5828, 1.0
    %v5830 = vrcp.pop %v5829
    %v5831 = vmul.f32 1.0, %v5830
    %v5832 = vmul.f32 %v5821, %v5831
    %v5833 = vld [vmem:[%s63] sm:$0xf]
    %v5834 = vld [vmem:[%s63 + $0x4] sm:$0xf]
    %v5835 = vld [vmem:[%s63 + $0x8] sm:$0xf]
    %v5836 = vld [vmem:[%s63 + $0xc] sm:$0xf]
    %v5837 = vpack.c.bf16 %v5832, %v5832
    %v5838 = vld [vmem:[#allocation16] sm:$0x1]
    %v5840 = vlaneseq
    %v5841 = vshrl.u32 %v5840, 7
    %v5842 = vsub.s32 0, %v5841
    %v5843 = vrot.slane %v5838, %v5842
    %v5849 = vunpack.c.l.b16 %v5833
    %v5850 = vunpack.c.l.b16 %v5834
    %v5851 = vunpack.c.l.b16 %v5835
    %v5852 = vunpack.c.l.b16 %v5836
    %v5853 = vpack.c.b16 %v5850, %v5849
    %v5854 = vpack.c.b16 %v5852, %v5851
    %v5858 = vsel %vm814, %v5837, 0
    %5860 = vmatprep.subr.bf16.mxu0 0
    %5861 = vmatpush1.bf16.msra.mxu0 0
    %5862 = vmatprep.subr.bf16.mxu0 0
    %5863 = vmatpush1.bf16.msra.mxu0 0
    %5864 = vmatprep.subr.bf16.mxu0 0
    %5865 = vmatpush1.bf16.msra.mxu0 0
    %5866 = vmatprep.subr.bf16.mxu0 0
    %5867 = vmatpush1.bf16.msra.mxu0 0
    %5868 = vmatprep.subr.bf16.mxu0 0
    %5869 = vmatpush1.bf16.msra.mxu0 0
    %5870 = vmatprep.subr.bf16.mxu0 0
    %5871 = vmatpush1.bf16.msra.mxu0 0
    %5872 = vmatprep.subr.bf16.mxu0 0
    %5873 = vmatpush1.bf16.msra.mxu0 %v5854
    %5874 = vmatprep.subr.bf16.mxu0 0
    %5875 = vmatpush1.bf16.msra.mxu0 %v5853
    %5876 = vmatprep.subr.bf16.mxu0 0
    %5877 = vmatpush2.bf16.msra.mxu0 0
    %5878 = vmatprep.subr.bf16.mxu0 0
    %5879 = vmatpush2.bf16.msra.mxu0 0
    %5880 = vmatprep.subr.bf16.mxu0 0
    %5881 = vmatpush2.bf16.msra.mxu0 0
    %5882 = vmatprep.subr.bf16.mxu0 0
    %5883 = vmatpush2.bf16.msra.mxu0 0
    %5884 = vmatprep.subr.bf16.mxu0 0
    %5885 = vmatpush2.bf16.msra.mxu0 0
    %5886 = vmatprep.subr.bf16.mxu0 0
    %5887 = vmatpush2.bf16.msra.mxu0 0
    %5888 = vmatprep.subr.bf16.mxu0 0
    %5889 = vmatpush2.bf16.msra.mxu0 0
    %5890 = vmatprep.subr.bf16.mxu0 0
    %5891 = vmatpush2.bf16.msra.mxu0 0
    %5892 = vmatprep.mubr.bf16.mxu0 0
    %5893 = vmatmul.mubr.bf16.gmra.mxu0 %v5858
    %v5894 = vpop.f32.mrf.mxu0
    %v5895 = vadd.f32 %v5843, %v5894
    %v5896 = vpop.f32.mrf.mxu0
    %v5897 = vpop.f32.mrf.mxu0
    %v5898 = vpop.f32.mrf.mxu0
    %5899 = vdwg.mxu0
    %vm5900 = vcmask 17408
    %v5901 = vsel %vm5900, %v5895, -inf
    %5902 = vmax.xlane.f32.xlu0 %v5901
    %v5903 = vpop.xlane.xlu0 %5902
    %v5904 = vsub.f32 %v5895, %v5903
    %v5905 = vmul.f32 %v5904, 1.442695
    %v5906 = vpow.pop %v5905
    %v5907 = vsel %vm5900, %v5906, 0.0
    %5908 = vadd.xlane.f32.xlu0 %v5907
    %v5909 = vpop.xlane.xlu0 %5908
    %v5910 = vrcp.pop %v5909
    %v5911 = vmul.f32 %v5906, %v5910
    %5912 = vst.msk [vmem:[#allocation17] sm:$0x3] %vm5900, %v5911
    %v5913 = vmin.f32 %v5895, 20.0
    %v5914 = vmul.f32 %v5913, 1.442695
    %v5915 = vpow.pop %v5914
    %v5916 = vadd.f32 %v5915, 1.0
    %v5917 = vlog2.pop %v5916
    %v5918 = vmul.f32 %v5917, 0.6931472
    %vm5919 = vcmp.gt.f32.partialorder %v5895, 20.0
    %v5920 = vsel %vm5919, %v5895, %v5918
    %5922 = vrot.lane.b32.xlu0 %v5920, 125
    %v5923 = vpop.permute.xlu0 %5922
    %5925 = vst.msk [vmem:[#allocation18] sm:$0x3] %vm5900, %v5923
    %5927 = vrot.lane.b32.xlu0 %v5895, 122
    %v5928 = vpop.permute.xlu0 %5927
    %5930 = vst.msk [vmem:[#allocation20] sm:$0x3] %vm5900, %v5928
    %5931 = vst.msk [vmem:[%s73] sm:$0xff] %vm695, %v5302
    %5932 = vst.msk [vmem:[%s73 + $0x8] sm:$0xff] %vm695, %v5303
    // Predicated region
    $region170: #{egnn_finetune_mdn_forward.1} parent=1 // pred_check
      _
    $region171: #{egnn_finetune_mdn_forward.1} parent=1 // pred_check_branch
      %5934 = sbr.rel (0) target = $region173
    $region172: #{egnn_finetune_mdn_forward.1} parent=1 // pred_region
      %s5936 = ssub.s32 32, 32
      %5937 = vsyncadd [#allocation4], %s5936
      %s5939 = sshll.u32 [#allocation17], 4
      %s5940 = int_to_ptr.vmem [resolvable:$true] %s5939
      %5942 = dma.vmem_to_hbm [thread:$0]  %s5940, 32, %s67, [#allocation4]
    $region173: #{egnn_finetune_mdn_forward.1} parent=1 // pred_fallthru
      _
    // Predicated region
    $region174: #{egnn_finetune_mdn_forward.1} parent=1 // pred_check
      _
    $region175: #{egnn_finetune_mdn_forward.1} parent=1 // pred_check_branch
      %5944 = sbr.rel (0) target = $region177
    $region176: #{egnn_finetune_mdn_forward.1} parent=1 // pred_region
      %s5946 = ssub.s32 32, 32
      %5947 = vsyncadd [#allocation19], %s5946
      %s5949 = sshll.u32 [#allocation18], 4
      %s5950 = int_to_ptr.vmem [resolvable:$true] %s5949
      %5952 = dma.vmem_to_hbm [thread:$0]  %s5950, 32, %s69, [#allocation19]
    $region177: #{egnn_finetune_mdn_forward.1} parent=1 // pred_fallthru
      _
    // Predicated region
    $region178: #{egnn_finetune_mdn_forward.1} parent=1 // pred_check
      _
    $region179: #{egnn_finetune_mdn_forward.1} parent=1 // pred_check_branch
      %5954 = sbr.rel (0) target = $region181
    $region180: #{egnn_finetune_mdn_forward.1} parent=1 // pred_region
      %s5956 = ssub.s32 32, 32
      %5957 = vsyncadd [#allocation19], %s5956
      %s5959 = sshll.u32 [#allocation20], 4
      %s5960 = int_to_ptr.vmem [resolvable:$true] %s5959
      %5962 = dma.vmem_to_hbm [thread:$0]  %s5960, 32, %s71, [#allocation19]
    $region181: #{egnn_finetune_mdn_forward.1} parent=1 // pred_fallthru
      _
    // Predicated region
    $region182: #{egnn_finetune_mdn_forward.1} parent=1 // pred_check
      _
    $region183: #{egnn_finetune_mdn_forward.1} parent=1 // pred_check_branch
      %5964 = sbr.rel (0) target = $region185
    $region184: #{egnn_finetune_mdn_forward.1} parent=1 // pred_region
      _
    $region185: #{egnn_finetune_mdn_forward.1} parent=1 // pred_fallthru
      _
    // Predicated region
    $region186: #{egnn_finetune_mdn_forward.1} parent=1 // pred_check
      _
    $region187: #{egnn_finetune_mdn_forward.1} parent=1 // pred_check_branch
      %5966 = sbr.rel (0) target = $region189
    $region188: #{egnn_finetune_mdn_forward.1} parent=1 // pred_region
      %5967 = dma.done [#allocation4], 32
    $region189: #{egnn_finetune_mdn_forward.1} parent=1 // pred_fallthru
      _
    // Predicated region
    $region190: #{egnn_finetune_mdn_forward.1} parent=1 // pred_check
      _
    $region191: #{egnn_finetune_mdn_forward.1} parent=1 // pred_check_branch
      %5969 = sbr.rel (0) target = $region193
    $region192: #{egnn_finetune_mdn_forward.1} parent=1 // pred_region
      %5970 = dma.done [#allocation19], 32
    $region193: #{egnn_finetune_mdn_forward.1} parent=1 // pred_fallthru
      _
    // Predicated region
    $region194: #{egnn_finetune_mdn_forward.1} parent=1 // pred_check
      _
    $region195: #{egnn_finetune_mdn_forward.1} parent=1 // pred_check_branch
      %5972 = sbr.rel (0) target = $region197
    $region196: #{egnn_finetune_mdn_forward.1} parent=1 // pred_region
      %5973 = dma.done [#allocation19], 32
    $region197: #{egnn_finetune_mdn_forward.1} parent=1 // pred_fallthru
      _
    // Predicated region
    $region198: #{egnn_finetune_mdn_forward.1} parent=1 // pred_check
      _
    $region199: #{egnn_finetune_mdn_forward.1} parent=1 // pred_check_branch
      %5975 = sbr.rel (0) target = $region201
    $region200: #{egnn_finetune_mdn_forward.1} parent=1 // pred_region
      _
    $region201: #{egnn_finetune_mdn_forward.1} parent=1 // pred_fallthru
      _
    %5976 = vsyncpa [#allocation3], 1
    %5977 = vsyncpa [#allocation6], 1
    %5978 = vsyncpa [#allocation9], 1
    %5979 = vsyncpa [#allocation12], 1
    %5980 = vsyncpa [#allocation15], 1
    %5981 = vsyncpa [#allocation4], 1
    %5982 = vsyncpa [#allocation19], 1

</llo_original>
